<compile_context>
chip_gen: v7x
topology: tpu7x:2x2x1
jax: 0.10.0
libtpu: 0.0.40
codegen_flags: <defaults>
</compile_context>

<pallas_src>
import functools

import jax
import jax.numpy as jnp
from jax import lax
from jax.experimental import pallas as pl
from jax.experimental.pallas import tpu as pltpu


# ----------------------------------------------------------------------------
# Fused kernel (one grid step = one batch element)
# ----------------------------------------------------------------------------
def _fused_convlstm_kernel(
    # inputs
    x_ref,        # (B, H, W, Cin)   f32   full array (global grad norm)
    hid_ref,      # (1, H, W, Ch)    f32   this batch element
    cell_ref,     # (1, H, W, Ch)    f32
    wgx_ref,      # (9, Cin, 4*Ch)   bf16  gates weights, x-channel part (0.5-scaled i/r/o cols)
    wgh_ref,      # (9, Ch,  4*Ch)   bf16  gates weights, hidden-channel part
    bg_ref,       # (1, 4*Ch)        f32   gates bias (0.5-scaled i/r/o cols)
    wot_ref,      # (9, Cin, Ch)     bf16  out-conv weights, transposed per tap
    bo_ref,       # (Cin, 1)         f32
    # outputs
    out_ref,      # (1, Cin, H*W)    f32   channel-major, lane-dense
    hidn_ref,     # (1, H, W, Ch)    f32
    celln_ref,    # (1, H, W, Ch)    f32
    norm_ref,     # (1, 1, 128)      f32   broadcast grad-norm scalar
    # scratch
    xpad_ref,     # (H+2, W+2, Cin)  f32
    hpad_ref,     # (H+2, W+2, Ch)   f32
    acc_ref,      # (H*W, 4*Ch)      f32   gates accumulator
    *, h, w, cin, ch):
  b = pl.program_id(0)
  hw = h * w

  # ---- grad norm over the WHOLE input batch: sqrt(mean(x**2)) --------------
  xf = x_ref[...]
  mean_sq = jnp.mean(xf * xf)
  norm = jnp.sqrt(mean_sq)
  norm_ref[...] = jnp.full(norm_ref.shape, norm, jnp.float32)
  # TODO(synk): no epsilon guard, faithful to the reference (all-zero x => NaN).
  inv_norm = lax.rsqrt(mean_sq)          # one EUP op instead of sqrt + divide

  # ---- fused "divide by norm + concat + zero pad" into VMEM scratch --------
  xpad_ref[...] = jnp.zeros(xpad_ref.shape, xpad_ref.dtype)
  hpad_ref[...] = jnp.zeros(hpad_ref.shape, hpad_ref.dtype)
  xpad_ref[1:h + 1, 1:w + 1, :] = x_ref[b] * inv_norm
  hpad_ref[1:h + 1, 1:w + 1, :] = hid_ref[0]

  # ---- gates conv: 9 taps x (x-part + hidden-part) bf16 GEMMs on the MXU,
  #      f32 accumulation in a VMEM scratch; bias hoisted into the init. -----
  acc_ref[...] = jnp.broadcast_to(bg_ref[...], (hw, 4 * ch))
  for ky in range(3):
    for kx in range(3):
      tap = ky * 3 + kx
      xt = xpad_ref[ky:ky + h, kx:kx + w, :].reshape(hw, cin).astype(jnp.bfloat16)
      ht = hpad_ref[ky:ky + h, kx:kx + w, :].reshape(hw, ch).astype(jnp.bfloat16)
      acc_ref[...] += (
          jnp.dot(xt, wgx_ref[tap], preferred_element_type=jnp.float32)
          + jnp.dot(ht, wgh_ref[tap], preferred_element_type=jnp.float32))
  gates = acc_ref[...]                                   # (hw, 4*ch) f32

  # ---- LSTM pointwise math.  i/r/o columns were pre-scaled by 0.5 so a
  #      single tanh pass implements all four nonlinearities:
  #      sigmoid(z) = 0.5 * (1 + tanh(z/2)).
  t = jnp.tanh(gates)
  i_g = 0.5 * (t[:, 0:ch] + 1.0)
  r_g = 0.5 * (t[:, ch:2 * ch] + 1.0)
  o_g = 0.5 * (t[:, 2 * ch:3 * ch] + 1.0)
  g_g = t[:, 3 * ch:4 * ch]

  cell_old = cell_ref[0].reshape(hw, ch)
  cell_new = r_g * cell_old + i_g * g_g
  hid_new = o_g * jnp.tanh(cell_new)

  celln_ref[...] = cell_new.reshape(1, h, w, ch).astype(celln_ref.dtype)
  hidn_ref[...] = hid_new.reshape(1, h, w, ch).astype(hidn_ref.dtype)

  # ---- output conv, fused.  Reuse hpad (borders are still zero) with the
  #      NEW hidden.  Transposed weights make each tap an A @ B.T GEMM ->
  #      channel-major (Cin, H*W) result -> lane-dense stores; NCHW reshape
  #      in the wrapper is free.
  hpad_ref[1:h + 1, 1:w + 1, :] = hid_new.reshape(h, w, ch)
  out_t = jnp.broadcast_to(bo_ref[...], (cin, hw))
  for ky in range(3):
    for kx in range(3):
      tap = ky * 3 + kx
      ht = hpad_ref[ky:ky + h, kx:kx + w, :].reshape(hw, ch).astype(jnp.bfloat16)
      out_t = out_t + lax.dot_general(
          wot_ref[tap], ht,
          dimension_numbers=(((1,), (1,)), ((), ())),     # A @ B.T
          preferred_element_type=jnp.float32)
  out_ref[...] = out_t.reshape(1, cin, hw).astype(out_ref.dtype)


# ----------------------------------------------------------------------------
# One-time parameter transform (HWIO conv weights -> kernel GEMM layout).
# In a real model this is done once when the parameters are loaded.
# ----------------------------------------------------------------------------
def prepare_params(w_gates, b_gates, w_out, b_out, dim_in, dim_hidden):
  ch = dim_hidden
  cg = 4 * ch
  # sigmoid-as-tanh: pre-scale i/r/o gate columns by 0.5.
  col_scale = jnp.concatenate([jnp.full((3 * ch,), 0.5, jnp.float32),
                               jnp.ones((ch,), jnp.float32)])
  wg = w_gates.astype(jnp.float32) * col_scale                    # (3,3,Cin+Ch,4Ch)
  wgx = wg[:, :, :dim_in, :].reshape(9, dim_in, cg).astype(jnp.bfloat16)
  wgh = wg[:, :, dim_in:, :].reshape(9, ch, cg).astype(jnp.bfloat16)
  bg_row = (b_gates.astype(jnp.float32) * col_scale).reshape(1, cg)
  # out conv: per-tap (Ch, Cin) -> transposed to (Cin, Ch).
  wot = jnp.transpose(w_out.astype(jnp.float32).reshape(9, ch, dim_in),
                      (0, 2, 1)).astype(jnp.bfloat16)
  bo_col = b_out.astype(jnp.float32).reshape(dim_in, 1)
  return wgx, wgh, bg_row, wot, bo_col


# ----------------------------------------------------------------------------
# Forward wrapper: single fused pallas_call.
# hidden/cell are carried in NHWC; x is accepted NCHW (PyTorch convention) and
# transposed once at the boundary.
# ----------------------------------------------------------------------------
@jax.jit
def conv_lstm_grad_forward(x_nchw, hidden, cell, wgx, wgh, bg_row, wot, bo_col):
  """Returns (out_nchw, new_hidden, new_cell, grad_norm)."""
  B, cin, H, W = x_nchw.shape
  ch = hidden.shape[-1]
  cg = 4 * ch

  # TODO(synk): nn.Dropout(0.1) is identity in eval mode; train-mode RNG
  # masking is not reproduced here.
  # TODO(synk): downsamp=None => AvgPool2d / UpsamplingBilinear2d are Identity.
  # TODO(synk): the PyTorch module caches _grad_norm after the first call
  # following reset_state(); here it is recomputed each call and returned so a
  # multi-step caller can manage that state itself.

  x = jnp.transpose(x_nchw, (0, 2, 3, 1))            # boundary: NCHW -> NHWC

  kernel = functools.partial(_fused_convlstm_kernel, h=H, w=W, cin=cin, ch=ch)

  out_flat, hid_new, cell_new, norm_b = pl.pallas_call(
      kernel,
      grid=(B,),
      in_specs=[
          pl.BlockSpec((B, H, W, cin), lambda b: (0, 0, 0, 0)),   # x (full)
          pl.BlockSpec((1, H, W, ch), lambda b: (b, 0, 0, 0)),    # hidden
          pl.BlockSpec((1, H, W, ch), lambda b: (b, 0, 0, 0)),    # cell
          pl.BlockSpec((9, cin, cg), lambda b: (0, 0, 0)),        # wgx
          pl.BlockSpec((9, ch, cg), lambda b: (0, 0, 0)),         # wgh
          pl.BlockSpec((1, cg), lambda b: (0, 0)),                # bg
          pl.BlockSpec((9, cin, ch), lambda b: (0, 0, 0)),        # wot
          pl.BlockSpec((cin, 1), lambda b: (0, 0)),               # bo
      ],
      out_specs=(
          pl.BlockSpec((1, cin, H * W), lambda b: (b, 0, 0)),     # out (C-major)
          pl.BlockSpec((1, H, W, ch), lambda b: (b, 0, 0, 0)),    # hidden_new
          pl.BlockSpec((1, H, W, ch), lambda b: (b, 0, 0, 0)),    # cell_new
          pl.BlockSpec((1, 1, 128), lambda b: (b, 0, 0)),         # grad norm
      ),
      out_shape=(
          jax.ShapeDtypeStruct((B, cin, H * W), jnp.float32),
          jax.ShapeDtypeStruct((B, H, W, ch), jnp.float32),
          jax.ShapeDtypeStruct((B, H, W, ch), jnp.float32),
          jax.ShapeDtypeStruct((B, 1, 128), jnp.float32),
      ),
      scratch_shapes=[
          pltpu.VMEM((H + 2, W + 2, cin), jnp.float32),           # padded x/norm
          pltpu.VMEM((H + 2, W + 2, ch), jnp.float32),            # padded hidden
          pltpu.VMEM((H * W, cg), jnp.float32),                   # gates accumulator
      ],
      compiler_params=pltpu.CompilerParams(
          dimension_semantics=("parallel",)),
  )(x, hidden, cell, wgx, wgh, bg_row, wot, bo_col)

  out_nchw = out_flat.reshape(B, cin, H, W)          # free: already channel-major
  return out_nchw, hid_new, cell_new, norm_b[0, 0, 0]


# ----------------------------------------------------------------------------
# Pure-JAX reference (for verification)
# ----------------------------------------------------------------------------
def reference_forward(x_nchw, hidden, cell, w_gates, b_gates, w_out, b_out):
  dn = ('NHWC', 'HWIO', 'NHWC')
  norm = jnp.sqrt(jnp.mean(x_nchw ** 2))
  x = jnp.transpose(x_nchw, (0, 2, 3, 1)) / norm
  xh = jnp.concatenate([x, hidden], axis=-1)
  gates = lax.conv_general_dilated(
      xh, w_gates, (1, 1), 'SAME', dimension_numbers=dn,
      precision=lax.Precision.HIGHEST) + b_gates
  ch = cell.shape[-1]
  i = jax.nn.sigmoid(gates[..., 0:ch])
  r = jax.nn.sigmoid(gates[..., ch:2 * ch])
  o = jax.nn.sigmoid(gates[..., 2 * ch:3 * ch])
  g = jnp.tanh(gates[..., 3 * ch:4 * ch])
  cell_new = r * cell + i * g
  hid = o * jnp.tanh(cell_new)
  out = lax.conv_general_dilated(
      hid, w_out, (1, 1), 'SAME', dimension_numbers=dn,
      precision=lax.Precision.HIGHEST) + b_out
  return jnp.transpose(out, (0, 3, 1, 2)), hid, cell_new, norm


# ----------------------------------------------------------------------------
# Main
# ----------------------------------------------------------------------------
if __name__ == "__main__":
  B, C_IN, C_HID, H, W, K = 2, 4, 32, 16, 16, 3

  key = jax.random.PRNGKey(0)
  k_x, k_wg, k_bg, k_wo, k_bo = jax.random.split(key, 5)

  # Synthetic parameters in HWIO layout (input-channel order = [x, hidden]).
  w_gates = (jax.random.normal(k_wg, (K, K, C_IN + C_HID, 4 * C_HID),
                               jnp.float32) * 0.1)
  b_gates = jax.random.normal(k_bg, (4 * C_HID,), jnp.float32) * 0.1
  w_out = jax.random.normal(k_wo, (K, K, C_HID, C_IN), jnp.float32) * 0.1
  b_out = jax.random.normal(k_bo, (C_IN,), jnp.float32) * 0.1

  # Input (PyTorch-style NCHW) and reset_state() zeros (carried as NHWC).
  x = jax.random.normal(k_x, (B, C_IN, H, W), jnp.float32)
  hidden0 = jnp.zeros((B, H, W, C_HID), jnp.float32)
  cell0 = jnp.zeros((B, H, W, C_HID), jnp.float32)

  # One-time parameter layout transform (GEMM layouts, bf16, sigmoid folding).
  params = prepare_params(w_gates, b_gates, w_out, b_out, C_IN, C_HID)
  params = jax.block_until_ready(params)

  out, hid, cell, norm = conv_lstm_grad_forward(x, hidden0, cell0, *params)
  jax.block_until_ready((out, hid, cell, norm))

  # Verify against a pure-JAX reference.
  ref_out, ref_hid, ref_cell, ref_norm = reference_forward(
      x, hidden0, cell0, w_gates, b_gates, w_out, b_out)
  assert out.shape == (B, C_IN, H, W)
  assert jnp.allclose(norm, ref_norm, atol=1e-4, rtol=1e-4)
  assert jnp.allclose(out, ref_out, atol=1e-2, rtol=1e-2)
  assert jnp.allclose(hid, ref_hid, atol=1e-2, rtol=1e-2)
  assert jnp.allclose(cell, ref_cell, atol=1e-2, rtol=1e-2)

  print("KERNEL_OK")
</pallas_src>

<mosaic_0001>
module attributes {stable_mosaic.version = 11 : i64} {
  func.func @_fused_convlstm_kernel(%arg0: i32, %arg1: memref<2x16x16x4xf32, #tpu.memory_space<vmem>>, %arg2: memref<1x16x16x32xf32, #tpu.memory_space<vmem>>, %arg3: memref<1x16x16x32xf32, #tpu.memory_space<vmem>>, %arg4: memref<9x4x128xbf16, #tpu.memory_space<vmem>>, %arg5: memref<9x32x128xbf16, #tpu.memory_space<vmem>>, %arg6: memref<1x128xf32, #tpu.memory_space<vmem>>, %arg7: memref<9x4x32xbf16, #tpu.memory_space<vmem>>, %arg8: memref<4x1xf32, #tpu.memory_space<vmem>>, %arg9: memref<1x4x256xf32, #tpu.memory_space<vmem>>, %arg10: memref<1x16x16x32xf32, #tpu.memory_space<vmem>>, %arg11: memref<1x16x16x32xf32, #tpu.memory_space<vmem>>, %arg12: memref<1x1x128xf32, #tpu.memory_space<vmem>>, %arg13: memref<18x18x4xf32, #tpu.memory_space<vmem>>, %arg14: memref<18x18x32xf32, #tpu.memory_space<vmem>>, %arg15: memref<256x128xf32, #tpu.memory_space<vmem>>) attributes {dimension_semantics = [#tpu.dimension_semantics<parallel>], iteration_bounds = array<i64: 2>, scalar_prefetch = 0 : i64, scratch_operands = 3 : i64, tpu.core_type = #tpu.core_type<tc>, window_params = [{pipeline_mode = #tpu.pipeline_mode<synchronous>, transform_indices = @transform_0, window_bounds = array<i64: 2, 16, 16, 4>}, {transform_indices = @transform_1, window_bounds = array<i64: 1, 16, 16, 32>}, {transform_indices = @transform_2, window_bounds = array<i64: 1, 16, 16, 32>}, {pipeline_mode = #tpu.pipeline_mode<synchronous>, transform_indices = @transform_3, window_bounds = array<i64: 9, 4, 128>}, {pipeline_mode = #tpu.pipeline_mode<synchronous>, transform_indices = @transform_4, window_bounds = array<i64: 9, 32, 128>}, {pipeline_mode = #tpu.pipeline_mode<synchronous>, transform_indices = @transform_5, window_bounds = array<i64: 1, 128>}, {pipeline_mode = #tpu.pipeline_mode<synchronous>, transform_indices = @transform_6, window_bounds = array<i64: 9, 4, 32>}, {pipeline_mode = #tpu.pipeline_mode<synchronous>, transform_indices = @transform_7, window_bounds = array<i64: 4, 1>}, {transform_indices = @transform_8, window_bounds = array<i64: 1, 4, 256>}, {transform_indices = @transform_9, window_bounds = array<i64: 1, 16, 16, 32>}, {transform_indices = @transform_10, window_bounds = array<i64: 1, 16, 16, 32>}, {transform_indices = @transform_11, window_bounds = array<i64: 1, 1, 128>}]} {
    %c0 = arith.constant 0 : index
    %c0_0 = arith.constant 0 : index
    %c0_1 = arith.constant 0 : index
    %c0_2 = arith.constant 0 : index
    %0 = vector.load %arg1[%c0, %c0_0, %c0_1, %c0_2] : memref<2x16x16x4xf32, #tpu.memory_space<vmem>>, vector<2x16x16x4xf32>
    %1 = arith.mulf %0, %0 : vector<2x16x16x4xf32>
    %2 = vector.shape_cast %1 : vector<2x16x16x4xf32> to vector<1x2x16x16x4xf32>
    %cst = arith.constant dense<0.000000e+00> : vector<1xf32>
    %3 = vector.multi_reduction <add>, %2, %cst [1, 2, 3, 4] : vector<1x2x16x16x4xf32> to vector<1xf32>
    %4 = vector.shape_cast %3 : vector<1xf32> to vector<1x1x1x1x1xf32>
    %5 = vector.extract %4[0, 0, 0, 0, 0] : f32 from vector<1x1x1x1x1xf32>
    %cst_3 = arith.constant 2.048000e+03 : f32
    %6 = arith.divf %5, %cst_3 : f32
    %7 = math.sqrt %6 : f32
    %8 = vector.broadcast %7 : f32 to vector<1x1x128xf32>
    %c0_4 = arith.constant 0 : index
    %c0_5 = arith.constant 0 : index
    %c0_6 = arith.constant 0 : index
    %9 = vector.load %arg12[%c0_4, %c0_5, %c0_6] : memref<1x1x128xf32, #tpu.memory_space<vmem>>, vector<1x1x128xf32>
    tpu.vector_store %arg12[%c0_4, %c0_5, %c0_6], %8 {strides = array<i32>} : memref<1x1x128xf32, #tpu.memory_space<vmem>>, vector<1x1x128xf32>,
    %10 = math.rsqrt %6 : f32
    %cst_7 = arith.constant 0.000000e+00 : f32
    %11 = vector.broadcast %cst_7 : f32 to vector<18x18x4xf32>
    %c0_8 = arith.constant 0 : index
    %c0_9 = arith.constant 0 : index
    %c0_10 = arith.constant 0 : index
    %12 = vector.load %arg13[%c0_8, %c0_9, %c0_10] : memref<18x18x4xf32, #tpu.memory_space<vmem>>, vector<18x18x4xf32>
    tpu.vector_store %arg13[%c0_8, %c0_9, %c0_10], %11 {strides = array<i32>} : memref<18x18x4xf32, #tpu.memory_space<vmem>>, vector<18x18x4xf32>,
    %cst_11 = arith.constant 0.000000e+00 : f32
    %13 = vector.broadcast %cst_11 : f32 to vector<18x18x32xf32>
    %c0_12 = arith.constant 0 : index
    %c0_13 = arith.constant 0 : index
    %c0_14 = arith.constant 0 : index
    %14 = vector.load %arg14[%c0_12, %c0_13, %c0_14] : memref<18x18x32xf32, #tpu.memory_space<vmem>>, vector<18x18x32xf32>
    tpu.vector_store %arg14[%c0_12, %c0_13, %c0_14], %13 {strides = array<i32>} : memref<18x18x32xf32, #tpu.memory_space<vmem>>, vector<18x18x32xf32>,
    %15 = arith.index_cast %arg0 : i32 to index
    %c0_15 = arith.constant 0 : index
    %c0_16 = arith.constant 0 : index
    %c0_17 = arith.constant 0 : index
    %16 = vector.load %arg1[%15, %c0_15, %c0_16, %c0_17] : memref<2x16x16x4xf32, #tpu.memory_space<vmem>>, vector<1x16x16x4xf32>
    %17 = vector.shape_cast %16 : vector<1x16x16x4xf32> to vector<16x16x4xf32>
    %18 = vector.broadcast %10 : f32 to vector<16x16x4xf32>
    %19 = arith.mulf %17, %18 : vector<16x16x4xf32>
    %c1 = arith.constant 1 : index
    %c1_18 = arith.constant 1 : index
    %c0_19 = arith.constant 0 : index
    %20 = vector.load %arg13[%c1, %c1_18, %c0_19] : memref<18x18x4xf32, #tpu.memory_space<vmem>>, vector<16x16x4xf32>
    tpu.vector_store %arg13[%c1, %c1_18, %c0_19], %19 {strides = array<i32>} : memref<18x18x4xf32, #tpu.memory_space<vmem>>, vector<16x16x4xf32>,
    %c0_20 = arith.constant 0 : index
    %c0_21 = arith.constant 0 : index
    %c0_22 = arith.constant 0 : index
    %c0_23 = arith.constant 0 : index
    %21 = vector.load %arg2[%c0_20, %c0_21, %c0_22, %c0_23] : memref<1x16x16x32xf32, #tpu.memory_space<vmem>>, vector<1x16x16x32xf32>
    %22 = vector.shape_cast %21 : vector<1x16x16x32xf32> to vector<16x16x32xf32>
    %c1_24 = arith.constant 1 : index
    %c1_25 = arith.constant 1 : index
    %c0_26 = arith.constant 0 : index
    %23 = vector.load %arg14[%c1_24, %c1_25, %c0_26] : memref<18x18x32xf32, #tpu.memory_space<vmem>>, vector<16x16x32xf32>
    tpu.vector_store %arg14[%c1_24, %c1_25, %c0_26], %22 {strides = array<i32>} : memref<18x18x32xf32, #tpu.memory_space<vmem>>, vector<16x16x32xf32>,
    %c0_27 = arith.constant 0 : index
    %c0_28 = arith.constant 0 : index
    %24 = vector.load %arg6[%c0_27, %c0_28] : memref<1x128xf32, #tpu.memory_space<vmem>>, vector<1x128xf32>
    %25 = vector.shape_cast %24 : vector<1x128xf32> to vector<1x128xf32>
    %26 = vector.broadcast %25 : vector<1x128xf32> to vector<256x128xf32>
    %c0_29 = arith.constant 0 : index
    %c0_30 = arith.constant 0 : index
    %27 = vector.load %arg15[%c0_29, %c0_30] : memref<256x128xf32, #tpu.memory_space<vmem>>, vector<256x128xf32>
    tpu.vector_store %arg15[%c0_29, %c0_30], %26 {strides = array<i32>} : memref<256x128xf32, #tpu.memory_space<vmem>>, vector<256x128xf32>,
    %c0_31 = arith.constant 0 : index
    %c0_32 = arith.constant 0 : index
    %c0_33 = arith.constant 0 : index
    %28 = vector.load %arg13[%c0_31, %c0_32, %c0_33] : memref<18x18x4xf32, #tpu.memory_space<vmem>>, vector<16x16x4xf32>
    %29 = vector.shape_cast %28 : vector<16x16x4xf32> to vector<256x4xf32>
    %30 = arith.truncf %29 : vector<256x4xf32> to vector<256x4xbf16>
    %c0_34 = arith.constant 0 : index
    %c0_35 = arith.constant 0 : index
    %c0_36 = arith.constant 0 : index
    %31 = vector.load %arg14[%c0_34, %c0_35, %c0_36] : memref<18x18x32xf32, #tpu.memory_space<vmem>>, vector<16x16x32xf32>
    %32 = vector.shape_cast %31 : vector<16x16x32xf32> to vector<256x32xf32>
    %33 = arith.truncf %32 : vector<256x32xf32> to vector<256x32xbf16>
    %c0_37 = arith.constant 0 : index
    %c0_38 = arith.constant 0 : index
    %34 = vector.load %arg15[%c0_37, %c0_38] : memref<256x128xf32, #tpu.memory_space<vmem>>, vector<256x128xf32>
    %c0_39 = arith.constant 0 : index
    %c0_40 = arith.constant 0 : index
    %c0_41 = arith.constant 0 : index
    %35 = vector.load %arg4[%c0_39, %c0_40, %c0_41] : memref<9x4x128xbf16, #tpu.memory_space<vmem>>, vector<1x4x128xbf16>
    %36 = vector.shape_cast %35 : vector<1x4x128xbf16> to vector<4x128xbf16>
    %cst_42 = arith.constant dense<0.000000e+00> : vector<256x128xf32>
    %37 = tpu.matmul %30, %36, %cst_42 {dimension_numbers = #tpu.dot_dimension_numbers<[1], [0], [0], [1], [0, 0, 1, 1], [], []>} : vector<256x4xbf16>, vector<4x128xbf16>, vector<256x128xf32> -> vector<256x128xf32>
    %c0_43 = arith.constant 0 : index
    %c0_44 = arith.constant 0 : index
    %c0_45 = arith.constant 0 : index
    %38 = vector.load %arg5[%c0_43, %c0_44, %c0_45] : memref<9x32x128xbf16, #tpu.memory_space<vmem>>, vector<1x32x128xbf16>
    %39 = vector.shape_cast %38 : vector<1x32x128xbf16> to vector<32x128xbf16>
    %cst_46 = arith.constant dense<0.000000e+00> : vector<256x128xf32>
    %40 = tpu.matmul %33, %39, %cst_46 {dimension_numbers = #tpu.dot_dimension_numbers<[1], [0], [0], [1], [0, 0, 1, 1], [], []>} : vector<256x32xbf16>, vector<32x128xbf16>, vector<256x128xf32> -> vector<256x128xf32>
    %41 = arith.addf %37, %40 : vector<256x128xf32>
    %42 = arith.addf %34, %41 : vector<256x128xf32>
    %c0_47 = arith.constant 0 : index
    %c0_48 = arith.constant 0 : index
    %43 = vector.load %arg15[%c0_47, %c0_48] : memref<256x128xf32, #tpu.memory_space<vmem>>, vector<256x128xf32>
    tpu.vector_store %arg15[%c0_47, %c0_48], %42 {strides = array<i32>} : memref<256x128xf32, #tpu.memory_space<vmem>>, vector<256x128xf32>,
    %c0_49 = arith.constant 0 : index
    %c1_50 = arith.constant 1 : index
    %c0_51 = arith.constant 0 : index
    %44 = vector.load %arg13[%c0_49, %c1_50, %c0_51] : memref<18x18x4xf32, #tpu.memory_space<vmem>>, vector<16x16x4xf32>
    %45 = vector.shape_cast %44 : vector<16x16x4xf32> to vector<256x4xf32>
    %46 = arith.truncf %45 : vector<256x4xf32> to vector<256x4xbf16>
    %c0_52 = arith.constant 0 : index
    %c1_53 = arith.constant 1 : index
    %c0_54 = arith.constant 0 : index
    %47 = vector.load %arg14[%c0_52, %c1_53, %c0_54] : memref<18x18x32xf32, #tpu.memory_space<vmem>>, vector<16x16x32xf32>
    %48 = vector.shape_cast %47 : vector<16x16x32xf32> to vector<256x32xf32>
    %49 = arith.truncf %48 : vector<256x32xf32> to vector<256x32xbf16>
    %c0_55 = arith.constant 0 : index
    %c0_56 = arith.constant 0 : index
    %50 = vector.load %arg15[%c0_55, %c0_56] : memref<256x128xf32, #tpu.memory_space<vmem>>, vector<256x128xf32>
    %c1_57 = arith.constant 1 : index
    %c0_58 = arith.constant 0 : index
    %c0_59 = arith.constant 0 : index
    %51 = vector.load %arg4[%c1_57, %c0_58, %c0_59] : memref<9x4x128xbf16, #tpu.memory_space<vmem>>, vector<1x4x128xbf16>
    %52 = vector.shape_cast %51 : vector<1x4x128xbf16> to vector<4x128xbf16>
    %cst_60 = arith.constant dense<0.000000e+00> : vector<256x128xf32>
    %53 = tpu.matmul %46, %52, %cst_60 {dimension_numbers = #tpu.dot_dimension_numbers<[1], [0], [0], [1], [0, 0, 1, 1], [], []>} : vector<256x4xbf16>, vector<4x128xbf16>, vector<256x128xf32> -> vector<256x128xf32>
    %c1_61 = arith.constant 1 : index
    %c0_62 = arith.constant 0 : index
    %c0_63 = arith.constant 0 : index
    %54 = vector.load %arg5[%c1_61, %c0_62, %c0_63] : memref<9x32x128xbf16, #tpu.memory_space<vmem>>, vector<1x32x128xbf16>
    %55 = vector.shape_cast %54 : vector<1x32x128xbf16> to vector<32x128xbf16>
    %cst_64 = arith.constant dense<0.000000e+00> : vector<256x128xf32>
    %56 = tpu.matmul %49, %55, %cst_64 {dimension_numbers = #tpu.dot_dimension_numbers<[1], [0], [0], [1], [0, 0, 1, 1], [], []>} : vector<256x32xbf16>, vector<32x128xbf16>, vector<256x128xf32> -> vector<256x128xf32>
    %57 = arith.addf %53, %56 : vector<256x128xf32>
    %58 = arith.addf %50, %57 : vector<256x128xf32>
    %c0_65 = arith.constant 0 : index
    %c0_66 = arith.constant 0 : index
    %59 = vector.load %arg15[%c0_65, %c0_66] : memref<256x128xf32, #tpu.memory_space<vmem>>, vector<256x128xf32>
    tpu.vector_store %arg15[%c0_65, %c0_66], %58 {strides = array<i32>} : memref<256x128xf32, #tpu.memory_space<vmem>>, vector<256x128xf32>,
    %c0_67 = arith.constant 0 : index
    %c2 = arith.constant 2 : index
    %c0_68 = arith.constant 0 : index
    %60 = vector.load %arg13[%c0_67, %c2, %c0_68] : memref<18x18x4xf32, #tpu.memory_space<vmem>>, vector<16x16x4xf32>
    %61 = vector.shape_cast %60 : vector<16x16x4xf32> to vector<256x4xf32>
    %62 = arith.truncf %61 : vector<256x4xf32> to vector<256x4xbf16>
    %c0_69 = arith.constant 0 : index
    %c2_70 = arith.constant 2 : index
    %c0_71 = arith.constant 0 : index
    %63 = vector.load %arg14[%c0_69, %c2_70, %c0_71] : memref<18x18x32xf32, #tpu.memory_space<vmem>>, vector<16x16x32xf32>
    %64 = vector.shape_cast %63 : vector<16x16x32xf32> to vector<256x32xf32>
    %65 = arith.truncf %64 : vector<256x32xf32> to vector<256x32xbf16>
    %c0_72 = arith.constant 0 : index
    %c0_73 = arith.constant 0 : index
    %66 = vector.load %arg15[%c0_72, %c0_73] : memref<256x128xf32, #tpu.memory_space<vmem>>, vector<256x128xf32>
    %c2_74 = arith.constant 2 : index
    %c0_75 = arith.constant 0 : index
    %c0_76 = arith.constant 0 : index
    %67 = vector.load %arg4[%c2_74, %c0_75, %c0_76] : memref<9x4x128xbf16, #tpu.memory_space<vmem>>, vector<1x4x128xbf16>
    %68 = vector.shape_cast %67 : vector<1x4x128xbf16> to vector<4x128xbf16>
    %cst_77 = arith.constant dense<0.000000e+00> : vector<256x128xf32>
    %69 = tpu.matmul %62, %68, %cst_77 {dimension_numbers = #tpu.dot_dimension_numbers<[1], [0], [0], [1], [0, 0, 1, 1], [], []>} : vector<256x4xbf16>, vector<4x128xbf16>, vector<256x128xf32> -> vector<256x128xf32>
    %c2_78 = arith.constant 2 : index
    %c0_79 = arith.constant 0 : index
    %c0_80 = arith.constant 0 : index
    %70 = vector.load %arg5[%c2_78, %c0_79, %c0_80] : memref<9x32x128xbf16, #tpu.memory_space<vmem>>, vector<1x32x128xbf16>
    %71 = vector.shape_cast %70 : vector<1x32x128xbf16> to vector<32x128xbf16>
    %cst_81 = arith.constant dense<0.000000e+00> : vector<256x128xf32>
    %72 = tpu.matmul %65, %71, %cst_81 {dimension_numbers = #tpu.dot_dimension_numbers<[1], [0], [0], [1], [0, 0, 1, 1], [], []>} : vector<256x32xbf16>, vector<32x128xbf16>, vector<256x128xf32> -> vector<256x128xf32>
    %73 = arith.addf %69, %72 : vector<256x128xf32>
    %74 = arith.addf %66, %73 : vector<256x128xf32>
    %c0_82 = arith.constant 0 : index
    %c0_83 = arith.constant 0 : index
    %75 = vector.load %arg15[%c0_82, %c0_83] : memref<256x128xf32, #tpu.memory_space<vmem>>, vector<256x128xf32>
    tpu.vector_store %arg15[%c0_82, %c0_83], %74 {strides = array<i32>} : memref<256x128xf32, #tpu.memory_space<vmem>>, vector<256x128xf32>,
    %c1_84 = arith.constant 1 : index
    %c0_85 = arith.constant 0 : index
    %c0_86 = arith.constant 0 : index
    %76 = vector.load %arg13[%c1_84, %c0_85, %c0_86] : memref<18x18x4xf32, #tpu.memory_space<vmem>>, vector<16x16x4xf32>
    %77 = vector.shape_cast %76 : vector<16x16x4xf32> to vector<256x4xf32>
    %78 = arith.truncf %77 : vector<256x4xf32> to vector<256x4xbf16>
    %c1_87 = arith.constant 1 : index
    %c0_88 = arith.constant 0 : index
    %c0_89 = arith.constant 0 : index
    %79 = vector.load %arg14[%c1_87, %c0_88, %c0_89] : memref<18x18x32xf32, #tpu.memory_space<vmem>>, vector<16x16x32xf32>
    %80 = vector.shape_cast %79 : vector<16x16x32xf32> to vector<256x32xf32>
    %81 = arith.truncf %80 : vector<256x32xf32> to vector<256x32xbf16>
    %c0_90 = arith.constant 0 : index
    %c0_91 = arith.constant 0 : index
    %82 = vector.load %arg15[%c0_90, %c0_91] : memref<256x128xf32, #tpu.memory_space<vmem>>, vector<256x128xf32>
    %c3 = arith.constant 3 : index
    %c0_92 = arith.constant 0 : index
    %c0_93 = arith.constant 0 : index
    %83 = vector.load %arg4[%c3, %c0_92, %c0_93] : memref<9x4x128xbf16, #tpu.memory_space<vmem>>, vector<1x4x128xbf16>
    %84 = vector.shape_cast %83 : vector<1x4x128xbf16> to vector<4x128xbf16>
    %cst_94 = arith.constant dense<0.000000e+00> : vector<256x128xf32>
    %85 = tpu.matmul %78, %84, %cst_94 {dimension_numbers = #tpu.dot_dimension_numbers<[1], [0], [0], [1], [0, 0, 1, 1], [], []>} : vector<256x4xbf16>, vector<4x128xbf16>, vector<256x128xf32> -> vector<256x128xf32>
    %c3_95 = arith.constant 3 : index
    %c0_96 = arith.constant 0 : index
    %c0_97 = arith.constant 0 : index
    %86 = vector.load %arg5[%c3_95, %c0_96, %c0_97] : memref<9x32x128xbf16, #tpu.memory_space<vmem>>, vector<1x32x128xbf16>
    %87 = vector.shape_cast %86 : vector<1x32x128xbf16> to vector<32x128xbf16>
    %cst_98 = arith.constant dense<0.000000e+00> : vector<256x128xf32>
    %88 = tpu.matmul %81, %87, %cst_98 {dimension_numbers = #tpu.dot_dimension_numbers<[1], [0], [0], [1], [0, 0, 1, 1], [], []>} : vector<256x32xbf16>, vector<32x128xbf16>, vector<256x128xf32> -> vector<256x128xf32>
    %89 = arith.addf %85, %88 : vector<256x128xf32>
    %90 = arith.addf %82, %89 : vector<256x128xf32>
    %c0_99 = arith.constant 0 : index
    %c0_100 = arith.constant 0 : index
    %91 = vector.load %arg15[%c0_99, %c0_100] : memref<256x128xf32, #tpu.memory_space<vmem>>, vector<256x128xf32>
    tpu.vector_store %arg15[%c0_99, %c0_100], %90 {strides = array<i32>} : memref<256x128xf32, #tpu.memory_space<vmem>>, vector<256x128xf32>,
    %c1_101 = arith.constant 1 : index
    %c1_102 = arith.constant 1 : index
    %c0_103 = arith.constant 0 : index
    %92 = vector.load %arg13[%c1_101, %c1_102, %c0_103] : memref<18x18x4xf32, #tpu.memory_space<vmem>>, vector<16x16x4xf32>
    %93 = vector.shape_cast %92 : vector<16x16x4xf32> to vector<256x4xf32>
    %94 = arith.truncf %93 : vector<256x4xf32> to vector<256x4xbf16>
    %c1_104 = arith.constant 1 : index
    %c1_105 = arith.constant 1 : index
    %c0_106 = arith.constant 0 : index
    %95 = vector.load %arg14[%c1_104, %c1_105, %c0_106] : memref<18x18x32xf32, #tpu.memory_space<vmem>>, vector<16x16x32xf32>
    %96 = vector.shape_cast %95 : vector<16x16x32xf32> to vector<256x32xf32>
    %97 = arith.truncf %96 : vector<256x32xf32> to vector<256x32xbf16>
    %c0_107 = arith.constant 0 : index
    %c0_108 = arith.constant 0 : index
    %98 = vector.load %arg15[%c0_107, %c0_108] : memref<256x128xf32, #tpu.memory_space<vmem>>, vector<256x128xf32>
    %c4 = arith.constant 4 : index
    %c0_109 = arith.constant 0 : index
    %c0_110 = arith.constant 0 : index
    %99 = vector.load %arg4[%c4, %c0_109, %c0_110] : memref<9x4x128xbf16, #tpu.memory_space<vmem>>, vector<1x4x128xbf16>
    %100 = vector.shape_cast %99 : vector<1x4x128xbf16> to vector<4x128xbf16>
    %cst_111 = arith.constant dense<0.000000e+00> : vector<256x128xf32>
    %101 = tpu.matmul %94, %100, %cst_111 {dimension_numbers = #tpu.dot_dimension_numbers<[1], [0], [0], [1], [0, 0, 1, 1], [], []>} : vector<256x4xbf16>, vector<4x128xbf16>, vector<256x128xf32> -> vector<256x128xf32>
    %c4_112 = arith.constant 4 : index
    %c0_113 = arith.constant 0 : index
    %c0_114 = arith.constant 0 : index
    %102 = vector.load %arg5[%c4_112, %c0_113, %c0_114] : memref<9x32x128xbf16, #tpu.memory_space<vmem>>, vector<1x32x128xbf16>
    %103 = vector.shape_cast %102 : vector<1x32x128xbf16> to vector<32x128xbf16>
    %cst_115 = arith.constant dense<0.000000e+00> : vector<256x128xf32>
    %104 = tpu.matmul %97, %103, %cst_115 {dimension_numbers = #tpu.dot_dimension_numbers<[1], [0], [0], [1], [0, 0, 1, 1], [], []>} : vector<256x32xbf16>, vector<32x128xbf16>, vector<256x128xf32> -> vector<256x128xf32>
    %105 = arith.addf %101, %104 : vector<256x128xf32>
    %106 = arith.addf %98, %105 : vector<256x128xf32>
    %c0_116 = arith.constant 0 : index
    %c0_117 = arith.constant 0 : index
    %107 = vector.load %arg15[%c0_116, %c0_117] : memref<256x128xf32, #tpu.memory_space<vmem>>, vector<256x128xf32>
    tpu.vector_store %arg15[%c0_116, %c0_117], %106 {strides = array<i32>} : memref<256x128xf32, #tpu.memory_space<vmem>>, vector<256x128xf32>,
    %c1_118 = arith.constant 1 : index
    %c2_119 = arith.constant 2 : index
    %c0_120 = arith.constant 0 : index
    %108 = vector.load %arg13[%c1_118, %c2_119, %c0_120] : memref<18x18x4xf32, #tpu.memory_space<vmem>>, vector<16x16x4xf32>
    %109 = vector.shape_cast %108 : vector<16x16x4xf32> to vector<256x4xf32>
    %110 = arith.truncf %109 : vector<256x4xf32> to vector<256x4xbf16>
    %c1_121 = arith.constant 1 : index
    %c2_122 = arith.constant 2 : index
    %c0_123 = arith.constant 0 : index
    %111 = vector.load %arg14[%c1_121, %c2_122, %c0_123] : memref<18x18x32xf32, #tpu.memory_space<vmem>>, vector<16x16x32xf32>
    %112 = vector.shape_cast %111 : vector<16x16x32xf32> to vector<256x32xf32>
    %113 = arith.truncf %112 : vector<256x32xf32> to vector<256x32xbf16>
    %c0_124 = arith.constant 0 : index
    %c0_125 = arith.constant 0 : index
    %114 = vector.load %arg15[%c0_124, %c0_125] : memref<256x128xf32, #tpu.memory_space<vmem>>, vector<256x128xf32>
    %c5 = arith.constant 5 : index
    %c0_126 = arith.constant 0 : index
    %c0_127 = arith.constant 0 : index
    %115 = vector.load %arg4[%c5, %c0_126, %c0_127] : memref<9x4x128xbf16, #tpu.memory_space<vmem>>, vector<1x4x128xbf16>
    %116 = vector.shape_cast %115 : vector<1x4x128xbf16> to vector<4x128xbf16>
    %cst_128 = arith.constant dense<0.000000e+00> : vector<256x128xf32>
    %117 = tpu.matmul %110, %116, %cst_128 {dimension_numbers = #tpu.dot_dimension_numbers<[1], [0], [0], [1], [0, 0, 1, 1], [], []>} : vector<256x4xbf16>, vector<4x128xbf16>, vector<256x128xf32> -> vector<256x128xf32>
    %c5_129 = arith.constant 5 : index
    %c0_130 = arith.constant 0 : index
    %c0_131 = arith.constant 0 : index
    %118 = vector.load %arg5[%c5_129, %c0_130, %c0_131] : memref<9x32x128xbf16, #tpu.memory_space<vmem>>, vector<1x32x128xbf16>
    %119 = vector.shape_cast %118 : vector<1x32x128xbf16> to vector<32x128xbf16>
    %cst_132 = arith.constant dense<0.000000e+00> : vector<256x128xf32>
    %120 = tpu.matmul %113, %119, %cst_132 {dimension_numbers = #tpu.dot_dimension_numbers<[1], [0], [0], [1], [0, 0, 1, 1], [], []>} : vector<256x32xbf16>, vector<32x128xbf16>, vector<256x128xf32> -> vector<256x128xf32>
    %121 = arith.addf %117, %120 : vector<256x128xf32>
    %122 = arith.addf %114, %121 : vector<256x128xf32>
    %c0_133 = arith.constant 0 : index
    %c0_134 = arith.constant 0 : index
    %123 = vector.load %arg15[%c0_133, %c0_134] : memref<256x128xf32, #tpu.memory_space<vmem>>, vector<256x128xf32>
    tpu.vector_store %arg15[%c0_133, %c0_134], %122 {strides = array<i32>} : memref<256x128xf32, #tpu.memory_space<vmem>>, vector<256x128xf32>,
    %c2_135 = arith.constant 2 : index
    %c0_136 = arith.constant 0 : index
    %c0_137 = arith.constant 0 : index
    %124 = vector.load %arg13[%c2_135, %c0_136, %c0_137] : memref<18x18x4xf32, #tpu.memory_space<vmem>>, vector<16x16x4xf32>
    %125 = vector.shape_cast %124 : vector<16x16x4xf32> to vector<256x4xf32>
    %126 = arith.truncf %125 : vector<256x4xf32> to vector<256x4xbf16>
    %c2_138 = arith.constant 2 : index
    %c0_139 = arith.constant 0 : index
    %c0_140 = arith.constant 0 : index
    %127 = vector.load %arg14[%c2_138, %c0_139, %c0_140] : memref<18x18x32xf32, #tpu.memory_space<vmem>>, vector<16x16x32xf32>
    %128 = vector.shape_cast %127 : vector<16x16x32xf32> to vector<256x32xf32>
    %129 = arith.truncf %128 : vector<256x32xf32> to vector<256x32xbf16>
    %c0_141 = arith.constant 0 : index
    %c0_142 = arith.constant 0 : index
    %130 = vector.load %arg15[%c0_141, %c0_142] : memref<256x128xf32, #tpu.memory_space<vmem>>, vector<256x128xf32>
    %c6 = arith.constant 6 : index
    %c0_143 = arith.constant 0 : index
    %c0_144 = arith.constant 0 : index
    %131 = vector.load %arg4[%c6, %c0_143, %c0_144] : memref<9x4x128xbf16, #tpu.memory_space<vmem>>, vector<1x4x128xbf16>
    %132 = vector.shape_cast %131 : vector<1x4x128xbf16> to vector<4x128xbf16>
    %cst_145 = arith.constant dense<0.000000e+00> : vector<256x128xf32>
    %133 = tpu.matmul %126, %132, %cst_145 {dimension_numbers = #tpu.dot_dimension_numbers<[1], [0], [0], [1], [0, 0, 1, 1], [], []>} : vector<256x4xbf16>, vector<4x128xbf16>, vector<256x128xf32> -> vector<256x128xf32>
    %c6_146 = arith.constant 6 : index
    %c0_147 = arith.constant 0 : index
    %c0_148 = arith.constant 0 : index
    %134 = vector.load %arg5[%c6_146, %c0_147, %c0_148] : memref<9x32x128xbf16, #tpu.memory_space<vmem>>, vector<1x32x128xbf16>
    %135 = vector.shape_cast %134 : vector<1x32x128xbf16> to vector<32x128xbf16>
    %cst_149 = arith.constant dense<0.000000e+00> : vector<256x128xf32>
    %136 = tpu.matmul %129, %135, %cst_149 {dimension_numbers = #tpu.dot_dimension_numbers<[1], [0], [0], [1], [0, 0, 1, 1], [], []>} : vector<256x32xbf16>, vector<32x128xbf16>, vector<256x128xf32> -> vector<256x128xf32>
    %137 = arith.addf %133, %136 : vector<256x128xf32>
    %138 = arith.addf %130, %137 : vector<256x128xf32>
    %c0_150 = arith.constant 0 : index
    %c0_151 = arith.constant 0 : index
    %139 = vector.load %arg15[%c0_150, %c0_151] : memref<256x128xf32, #tpu.memory_space<vmem>>, vector<256x128xf32>
    tpu.vector_store %arg15[%c0_150, %c0_151], %138 {strides = array<i32>} : memref<256x128xf32, #tpu.memory_space<vmem>>, vector<256x128xf32>,
    %c2_152 = arith.constant 2 : index
    %c1_153 = arith.constant 1 : index
    %c0_154 = arith.constant 0 : index
    %140 = vector.load %arg13[%c2_152, %c1_153, %c0_154] : memref<18x18x4xf32, #tpu.memory_space<vmem>>, vector<16x16x4xf32>
    %141 = vector.shape_cast %140 : vector<16x16x4xf32> to vector<256x4xf32>
    %142 = arith.truncf %141 : vector<256x4xf32> to vector<256x4xbf16>
    %c2_155 = arith.constant 2 : index
    %c1_156 = arith.constant 1 : index
    %c0_157 = arith.constant 0 : index
    %143 = vector.load %arg14[%c2_155, %c1_156, %c0_157] : memref<18x18x32xf32, #tpu.memory_space<vmem>>, vector<16x16x32xf32>
    %144 = vector.shape_cast %143 : vector<16x16x32xf32> to vector<256x32xf32>
    %145 = arith.truncf %144 : vector<256x32xf32> to vector<256x32xbf16>
    %c0_158 = arith.constant 0 : index
    %c0_159 = arith.constant 0 : index
    %146 = vector.load %arg15[%c0_158, %c0_159] : memref<256x128xf32, #tpu.memory_space<vmem>>, vector<256x128xf32>
    %c7 = arith.constant 7 : index
    %c0_160 = arith.constant 0 : index
    %c0_161 = arith.constant 0 : index
    %147 = vector.load %arg4[%c7, %c0_160, %c0_161] : memref<9x4x128xbf16, #tpu.memory_space<vmem>>, vector<1x4x128xbf16>
    %148 = vector.shape_cast %147 : vector<1x4x128xbf16> to vector<4x128xbf16>
    %cst_162 = arith.constant dense<0.000000e+00> : vector<256x128xf32>
    %149 = tpu.matmul %142, %148, %cst_162 {dimension_numbers = #tpu.dot_dimension_numbers<[1], [0], [0], [1], [0, 0, 1, 1], [], []>} : vector<256x4xbf16>, vector<4x128xbf16>, vector<256x128xf32> -> vector<256x128xf32>
    %c7_163 = arith.constant 7 : index
    %c0_164 = arith.constant 0 : index
    %c0_165 = arith.constant 0 : index
    %150 = vector.load %arg5[%c7_163, %c0_164, %c0_165] : memref<9x32x128xbf16, #tpu.memory_space<vmem>>, vector<1x32x128xbf16>
    %151 = vector.shape_cast %150 : vector<1x32x128xbf16> to vector<32x128xbf16>
    %cst_166 = arith.constant dense<0.000000e+00> : vector<256x128xf32>
    %152 = tpu.matmul %145, %151, %cst_166 {dimension_numbers = #tpu.dot_dimension_numbers<[1], [0], [0], [1], [0, 0, 1, 1], [], []>} : vector<256x32xbf16>, vector<32x128xbf16>, vector<256x128xf32> -> vector<256x128xf32>
    %153 = arith.addf %149, %152 : vector<256x128xf32>
    %154 = arith.addf %146, %153 : vector<256x128xf32>
    %c0_167 = arith.constant 0 : index
    %c0_168 = arith.constant 0 : index
    %155 = vector.load %arg15[%c0_167, %c0_168] : memref<256x128xf32, #tpu.memory_space<vmem>>, vector<256x128xf32>
    tpu.vector_store %arg15[%c0_167, %c0_168], %154 {strides = array<i32>} : memref<256x128xf32, #tpu.memory_space<vmem>>, vector<256x128xf32>,
    %c2_169 = arith.constant 2 : index
    %c2_170 = arith.constant 2 : index
    %c0_171 = arith.constant 0 : index
    %156 = vector.load %arg13[%c2_169, %c2_170, %c0_171] : memref<18x18x4xf32, #tpu.memory_space<vmem>>, vector<16x16x4xf32>
    %157 = vector.shape_cast %156 : vector<16x16x4xf32> to vector<256x4xf32>
    %158 = arith.truncf %157 : vector<256x4xf32> to vector<256x4xbf16>
    %c2_172 = arith.constant 2 : index
    %c2_173 = arith.constant 2 : index
    %c0_174 = arith.constant 0 : index
    %159 = vector.load %arg14[%c2_172, %c2_173, %c0_174] : memref<18x18x32xf32, #tpu.memory_space<vmem>>, vector<16x16x32xf32>
    %160 = vector.shape_cast %159 : vector<16x16x32xf32> to vector<256x32xf32>
    %161 = arith.truncf %160 : vector<256x32xf32> to vector<256x32xbf16>
    %c0_175 = arith.constant 0 : index
    %c0_176 = arith.constant 0 : index
    %162 = vector.load %arg15[%c0_175, %c0_176] : memref<256x128xf32, #tpu.memory_space<vmem>>, vector<256x128xf32>
    %c8 = arith.constant 8 : index
    %c0_177 = arith.constant 0 : index
    %c0_178 = arith.constant 0 : index
    %163 = vector.load %arg4[%c8, %c0_177, %c0_178] : memref<9x4x128xbf16, #tpu.memory_space<vmem>>, vector<1x4x128xbf16>
    %164 = vector.shape_cast %163 : vector<1x4x128xbf16> to vector<4x128xbf16>
    %cst_179 = arith.constant dense<0.000000e+00> : vector<256x128xf32>
    %165 = tpu.matmul %158, %164, %cst_179 {dimension_numbers = #tpu.dot_dimension_numbers<[1], [0], [0], [1], [0, 0, 1, 1], [], []>} : vector<256x4xbf16>, vector<4x128xbf16>, vector<256x128xf32> -> vector<256x128xf32>
    %c8_180 = arith.constant 8 : index
    %c0_181 = arith.constant 0 : index
    %c0_182 = arith.constant 0 : index
    %166 = vector.load %arg5[%c8_180, %c0_181, %c0_182] : memref<9x32x128xbf16, #tpu.memory_space<vmem>>, vector<1x32x128xbf16>
    %167 = vector.shape_cast %166 : vector<1x32x128xbf16> to vector<32x128xbf16>
    %cst_183 = arith.constant dense<0.000000e+00> : vector<256x128xf32>
    %168 = tpu.matmul %161, %167, %cst_183 {dimension_numbers = #tpu.dot_dimension_numbers<[1], [0], [0], [1], [0, 0, 1, 1], [], []>} : vector<256x32xbf16>, vector<32x128xbf16>, vector<256x128xf32> -> vector<256x128xf32>
    %169 = arith.addf %165, %168 : vector<256x128xf32>
    %170 = arith.addf %162, %169 : vector<256x128xf32>
    %c0_184 = arith.constant 0 : index
    %c0_185 = arith.constant 0 : index
    %171 = vector.load %arg15[%c0_184, %c0_185] : memref<256x128xf32, #tpu.memory_space<vmem>>, vector<256x128xf32>
    tpu.vector_store %arg15[%c0_184, %c0_185], %170 {strides = array<i32>} : memref<256x128xf32, #tpu.memory_space<vmem>>, vector<256x128xf32>,
    %c0_186 = arith.constant 0 : index
    %c0_187 = arith.constant 0 : index
    %172 = vector.load %arg15[%c0_186, %c0_187] : memref<256x128xf32, #tpu.memory_space<vmem>>, vector<256x128xf32>
    %173 = math.tanh %172 : vector<256x128xf32>
    %174 = vector.extract_strided_slice %173 {offsets = [0, 0], sizes = [256, 32], strides = [1, 1]} : vector<256x128xf32> to vector<256x32xf32>
    %cst_188 = arith.constant 1.000000e+00 : f32
    %175 = vector.broadcast %cst_188 : f32 to vector<256x32xf32>
    %176 = arith.addf %174, %175 : vector<256x32xf32>
    %cst_189 = arith.constant 5.000000e-01 : f32
    %177 = vector.broadcast %cst_189 : f32 to vector<256x32xf32>
    %178 = arith.mulf %177, %176 : vector<256x32xf32>
    %179 = vector.extract_strided_slice %173 {offsets = [0, 32], sizes = [256, 32], strides = [1, 1]} : vector<256x128xf32> to vector<256x32xf32>
    %cst_190 = arith.constant 1.000000e+00 : f32
    %180 = vector.broadcast %cst_190 : f32 to vector<256x32xf32>
    %181 = arith.addf %179, %180 : vector<256x32xf32>
    %cst_191 = arith.constant 5.000000e-01 : f32
    %182 = vector.broadcast %cst_191 : f32 to vector<256x32xf32>
    %183 = arith.mulf %182, %181 : vector<256x32xf32>
    %184 = vector.extract_strided_slice %173 {offsets = [0, 64], sizes = [256, 32], strides = [1, 1]} : vector<256x128xf32> to vector<256x32xf32>
    %cst_192 = arith.constant 1.000000e+00 : f32
    %185 = vector.broadcast %cst_192 : f32 to vector<256x32xf32>
    %186 = arith.addf %184, %185 : vector<256x32xf32>
    %cst_193 = arith.constant 5.000000e-01 : f32
    %187 = vector.broadcast %cst_193 : f32 to vector<256x32xf32>
    %188 = arith.mulf %187, %186 : vector<256x32xf32>
    %189 = vector.extract_strided_slice %173 {offsets = [0, 96], sizes = [256, 32], strides = [1, 1]} : vector<256x128xf32> to vector<256x32xf32>
    %c0_194 = arith.constant 0 : index
    %c0_195 = arith.constant 0 : index
    %c0_196 = arith.constant 0 : index
    %c0_197 = arith.constant 0 : index
    %190 = vector.load %arg3[%c0_194, %c0_195, %c0_196, %c0_197] : memref<1x16x16x32xf32, #tpu.memory_space<vmem>>, vector<1x16x16x32xf32>
    %191 = vector.shape_cast %190 : vector<1x16x16x32xf32> to vector<16x16x32xf32>
    %192 = vector.shape_cast %191 : vector<16x16x32xf32> to vector<256x32xf32>
    %193 = arith.mulf %183, %192 : vector<256x32xf32>
    %194 = arith.mulf %178, %189 : vector<256x32xf32>
    %195 = arith.addf %193, %194 : vector<256x32xf32>
    %196 = math.tanh %195 : vector<256x32xf32>
    %197 = arith.mulf %188, %196 : vector<256x32xf32>
    %198 = vector.shape_cast %195 : vector<256x32xf32> to vector<1x16x16x32xf32>
    %c0_198 = arith.constant 0 : index
    %c0_199 = arith.constant 0 : index
    %c0_200 = arith.constant 0 : index
    %c0_201 = arith.constant 0 : index
    %199 = vector.load %arg11[%c0_198, %c0_199, %c0_200, %c0_201] : memref<1x16x16x32xf32, #tpu.memory_space<vmem>>, vector<1x16x16x32xf32>
    tpu.vector_store %arg11[%c0_198, %c0_199, %c0_200, %c0_201], %198 {strides = array<i32>} : memref<1x16x16x32xf32, #tpu.memory_space<vmem>>, vector<1x16x16x32xf32>,
    %200 = vector.shape_cast %197 : vector<256x32xf32> to vector<1x16x16x32xf32>
    %c0_202 = arith.constant 0 : index
    %c0_203 = arith.constant 0 : index
    %c0_204 = arith.constant 0 : index
    %c0_205 = arith.constant 0 : index
    %201 = vector.load %arg10[%c0_202, %c0_203, %c0_204, %c0_205] : memref<1x16x16x32xf32, #tpu.memory_space<vmem>>, vector<1x16x16x32xf32>
    tpu.vector_store %arg10[%c0_202, %c0_203, %c0_204, %c0_205], %200 {strides = array<i32>} : memref<1x16x16x32xf32, #tpu.memory_space<vmem>>, vector<1x16x16x32xf32>,
    %202 = vector.shape_cast %197 : vector<256x32xf32> to vector<16x16x32xf32>
    %c1_206 = arith.constant 1 : index
    %c1_207 = arith.constant 1 : index
    %c0_208 = arith.constant 0 : index
    %203 = vector.load %arg14[%c1_206, %c1_207, %c0_208] : memref<18x18x32xf32, #tpu.memory_space<vmem>>, vector<16x16x32xf32>
    tpu.vector_store %arg14[%c1_206, %c1_207, %c0_208], %202 {strides = array<i32>} : memref<18x18x32xf32, #tpu.memory_space<vmem>>, vector<16x16x32xf32>,
    %c0_209 = arith.constant 0 : index
    %c0_210 = arith.constant 0 : index
    %204 = vector.load %arg8[%c0_209, %c0_210] : memref<4x1xf32, #tpu.memory_space<vmem>>, vector<4x1xf32>
    %205 = vector.shape_cast %204 : vector<4x1xf32> to vector<4x1xf32>
    %206 = vector.broadcast %205 : vector<4x1xf32> to vector<4x256xf32>
    %c0_211 = arith.constant 0 : index
    %c0_212 = arith.constant 0 : index
    %c0_213 = arith.constant 0 : index
    %207 = vector.load %arg14[%c0_211, %c0_212, %c0_213] : memref<18x18x32xf32, #tpu.memory_space<vmem>>, vector<16x16x32xf32>
    %208 = vector.shape_cast %207 : vector<16x16x32xf32> to vector<256x32xf32>
    %209 = arith.truncf %208 : vector<256x32xf32> to vector<256x32xbf16>
    %c0_214 = arith.constant 0 : index
    %c0_215 = arith.constant 0 : index
    %c0_216 = arith.constant 0 : index
    %210 = vector.load %arg7[%c0_214, %c0_215, %c0_216] : memref<9x4x32xbf16, #tpu.memory_space<vmem>>, vector<1x4x32xbf16>
    %211 = vector.shape_cast %210 : vector<1x4x32xbf16> to vector<4x32xbf16>
    %cst_217 = arith.constant dense<0.000000e+00> : vector<4x256xf32>
    %212 = tpu.matmul %211, %209, %cst_217 {dimension_numbers = #tpu.dot_dimension_numbers<[1], [1], [0], [0], [0, 0, 1, 0], [], []>} : vector<4x32xbf16>, vector<256x32xbf16>, vector<4x256xf32> -> vector<4x256xf32>
    %213 = arith.addf %206, %212 : vector<4x256xf32>
    %c0_218 = arith.constant 0 : index
    %c1_219 = arith.constant 1 : index
    %c0_220 = arith.constant 0 : index
    %214 = vector.load %arg14[%c0_218, %c1_219, %c0_220] : memref<18x18x32xf32, #tpu.memory_space<vmem>>, vector<16x16x32xf32>
    %215 = vector.shape_cast %214 : vector<16x16x32xf32> to vector<256x32xf32>
    %216 = arith.truncf %215 : vector<256x32xf32> to vector<256x32xbf16>
    %c1_221 = arith.constant 1 : index
    %c0_222 = arith.constant 0 : index
    %c0_223 = arith.constant 0 : index
    %217 = vector.load %arg7[%c1_221, %c0_222, %c0_223] : memref<9x4x32xbf16, #tpu.memory_space<vmem>>, vector<1x4x32xbf16>
    %218 = vector.shape_cast %217 : vector<1x4x32xbf16> to vector<4x32xbf16>
    %cst_224 = arith.constant dense<0.000000e+00> : vector<4x256xf32>
    %219 = tpu.matmul %218, %216, %cst_224 {dimension_numbers = #tpu.dot_dimension_numbers<[1], [1], [0], [0], [0, 0, 1, 0], [], []>} : vector<4x32xbf16>, vector<256x32xbf16>, vector<4x256xf32> -> vector<4x256xf32>
    %220 = arith.addf %213, %219 : vector<4x256xf32>
    %c0_225 = arith.constant 0 : index
    %c2_226 = arith.constant 2 : index
    %c0_227 = arith.constant 0 : index
    %221 = vector.load %arg14[%c0_225, %c2_226, %c0_227] : memref<18x18x32xf32, #tpu.memory_space<vmem>>, vector<16x16x32xf32>
    %222 = vector.shape_cast %221 : vector<16x16x32xf32> to vector<256x32xf32>
    %223 = arith.truncf %222 : vector<256x32xf32> to vector<256x32xbf16>
    %c2_228 = arith.constant 2 : index
    %c0_229 = arith.constant 0 : index
    %c0_230 = arith.constant 0 : index
    %224 = vector.load %arg7[%c2_228, %c0_229, %c0_230] : memref<9x4x32xbf16, #tpu.memory_space<vmem>>, vector<1x4x32xbf16>
    %225 = vector.shape_cast %224 : vector<1x4x32xbf16> to vector<4x32xbf16>
    %cst_231 = arith.constant dense<0.000000e+00> : vector<4x256xf32>
    %226 = tpu.matmul %225, %223, %cst_231 {dimension_numbers = #tpu.dot_dimension_numbers<[1], [1], [0], [0], [0, 0, 1, 0], [], []>} : vector<4x32xbf16>, vector<256x32xbf16>, vector<4x256xf32> -> vector<4x256xf32>
    %227 = arith.addf %220, %226 : vector<4x256xf32>
    %c1_232 = arith.constant 1 : index
    %c0_233 = arith.constant 0 : index
    %c0_234 = arith.constant 0 : index
    %228 = vector.load %arg14[%c1_232, %c0_233, %c0_234] : memref<18x18x32xf32, #tpu.memory_space<vmem>>, vector<16x16x32xf32>
    %229 = vector.shape_cast %228 : vector<16x16x32xf32> to vector<256x32xf32>
    %230 = arith.truncf %229 : vector<256x32xf32> to vector<256x32xbf16>
    %c3_235 = arith.constant 3 : index
    %c0_236 = arith.constant 0 : index
    %c0_237 = arith.constant 0 : index
    %231 = vector.load %arg7[%c3_235, %c0_236, %c0_237] : memref<9x4x32xbf16, #tpu.memory_space<vmem>>, vector<1x4x32xbf16>
    %232 = vector.shape_cast %231 : vector<1x4x32xbf16> to vector<4x32xbf16>
    %cst_238 = arith.constant dense<0.000000e+00> : vector<4x256xf32>
    %233 = tpu.matmul %232, %230, %cst_238 {dimension_numbers = #tpu.dot_dimension_numbers<[1], [1], [0], [0], [0, 0, 1, 0], [], []>} : vector<4x32xbf16>, vector<256x32xbf16>, vector<4x256xf32> -> vector<4x256xf32>
    %234 = arith.addf %227, %233 : vector<4x256xf32>
    %c1_239 = arith.constant 1 : index
    %c1_240 = arith.constant 1 : index
    %c0_241 = arith.constant 0 : index
    %235 = vector.load %arg14[%c1_239, %c1_240, %c0_241] : memref<18x18x32xf32, #tpu.memory_space<vmem>>, vector<16x16x32xf32>
    %236 = vector.shape_cast %235 : vector<16x16x32xf32> to vector<256x32xf32>
    %237 = arith.truncf %236 : vector<256x32xf32> to vector<256x32xbf16>
    %c4_242 = arith.constant 4 : index
    %c0_243 = arith.constant 0 : index
    %c0_244 = arith.constant 0 : index
    %238 = vector.load %arg7[%c4_242, %c0_243, %c0_244] : memref<9x4x32xbf16, #tpu.memory_space<vmem>>, vector<1x4x32xbf16>
    %239 = vector.shape_cast %238 : vector<1x4x32xbf16> to vector<4x32xbf16>
    %cst_245 = arith.constant dense<0.000000e+00> : vector<4x256xf32>
    %240 = tpu.matmul %239, %237, %cst_245 {dimension_numbers = #tpu.dot_dimension_numbers<[1], [1], [0], [0], [0, 0, 1, 0], [], []>} : vector<4x32xbf16>, vector<256x32xbf16>, vector<4x256xf32> -> vector<4x256xf32>
    %241 = arith.addf %234, %240 : vector<4x256xf32>
    %c1_246 = arith.constant 1 : index
    %c2_247 = arith.constant 2 : index
    %c0_248 = arith.constant 0 : index
    %242 = vector.load %arg14[%c1_246, %c2_247, %c0_248] : memref<18x18x32xf32, #tpu.memory_space<vmem>>, vector<16x16x32xf32>
    %243 = vector.shape_cast %242 : vector<16x16x32xf32> to vector<256x32xf32>
    %244 = arith.truncf %243 : vector<256x32xf32> to vector<256x32xbf16>
    %c5_249 = arith.constant 5 : index
    %c0_250 = arith.constant 0 : index
    %c0_251 = arith.constant 0 : index
    %245 = vector.load %arg7[%c5_249, %c0_250, %c0_251] : memref<9x4x32xbf16, #tpu.memory_space<vmem>>, vector<1x4x32xbf16>
    %246 = vector.shape_cast %245 : vector<1x4x32xbf16> to vector<4x32xbf16>
    %cst_252 = arith.constant dense<0.000000e+00> : vector<4x256xf32>
    %247 = tpu.matmul %246, %244, %cst_252 {dimension_numbers = #tpu.dot_dimension_numbers<[1], [1], [0], [0], [0, 0, 1, 0], [], []>} : vector<4x32xbf16>, vector<256x32xbf16>, vector<4x256xf32> -> vector<4x256xf32>
    %248 = arith.addf %241, %247 : vector<4x256xf32>
    %c2_253 = arith.constant 2 : index
    %c0_254 = arith.constant 0 : index
    %c0_255 = arith.constant 0 : index
    %249 = vector.load %arg14[%c2_253, %c0_254, %c0_255] : memref<18x18x32xf32, #tpu.memory_space<vmem>>, vector<16x16x32xf32>
    %250 = vector.shape_cast %249 : vector<16x16x32xf32> to vector<256x32xf32>
    %251 = arith.truncf %250 : vector<256x32xf32> to vector<256x32xbf16>
    %c6_256 = arith.constant 6 : index
    %c0_257 = arith.constant 0 : index
    %c0_258 = arith.constant 0 : index
    %252 = vector.load %arg7[%c6_256, %c0_257, %c0_258] : memref<9x4x32xbf16, #tpu.memory_space<vmem>>, vector<1x4x32xbf16>
    %253 = vector.shape_cast %252 : vector<1x4x32xbf16> to vector<4x32xbf16>
    %cst_259 = arith.constant dense<0.000000e+00> : vector<4x256xf32>
    %254 = tpu.matmul %253, %251, %cst_259 {dimension_numbers = #tpu.dot_dimension_numbers<[1], [1], [0], [0], [0, 0, 1, 0], [], []>} : vector<4x32xbf16>, vector<256x32xbf16>, vector<4x256xf32> -> vector<4x256xf32>
    %255 = arith.addf %248, %254 : vector<4x256xf32>
    %c2_260 = arith.constant 2 : index
    %c1_261 = arith.constant 1 : index
    %c0_262 = arith.constant 0 : index
    %256 = vector.load %arg14[%c2_260, %c1_261, %c0_262] : memref<18x18x32xf32, #tpu.memory_space<vmem>>, vector<16x16x32xf32>
    %257 = vector.shape_cast %256 : vector<16x16x32xf32> to vector<256x32xf32>
    %258 = arith.truncf %257 : vector<256x32xf32> to vector<256x32xbf16>
    %c7_263 = arith.constant 7 : index
    %c0_264 = arith.constant 0 : index
    %c0_265 = arith.constant 0 : index
    %259 = vector.load %arg7[%c7_263, %c0_264, %c0_265] : memref<9x4x32xbf16, #tpu.memory_space<vmem>>, vector<1x4x32xbf16>
    %260 = vector.shape_cast %259 : vector<1x4x32xbf16> to vector<4x32xbf16>
    %cst_266 = arith.constant dense<0.000000e+00> : vector<4x256xf32>
    %261 = tpu.matmul %260, %258, %cst_266 {dimension_numbers = #tpu.dot_dimension_numbers<[1], [1], [0], [0], [0, 0, 1, 0], [], []>} : vector<4x32xbf16>, vector<256x32xbf16>, vector<4x256xf32> -> vector<4x256xf32>
    %262 = arith.addf %255, %261 : vector<4x256xf32>
    %c2_267 = arith.constant 2 : index
    %c2_268 = arith.constant 2 : index
    %c0_269 = arith.constant 0 : index
    %263 = vector.load %arg14[%c2_267, %c2_268, %c0_269] : memref<18x18x32xf32, #tpu.memory_space<vmem>>, vector<16x16x32xf32>
    %264 = vector.shape_cast %263 : vector<16x16x32xf32> to vector<256x32xf32>
    %265 = arith.truncf %264 : vector<256x32xf32> to vector<256x32xbf16>
    %c8_270 = arith.constant 8 : index
    %c0_271 = arith.constant 0 : index
    %c0_272 = arith.constant 0 : index
    %266 = vector.load %arg7[%c8_270, %c0_271, %c0_272] : memref<9x4x32xbf16, #tpu.memory_space<vmem>>, vector<1x4x32xbf16>
    %267 = vector.shape_cast %266 : vector<1x4x32xbf16> to vector<4x32xbf16>
    %cst_273 = arith.constant dense<0.000000e+00> : vector<4x256xf32>
    %268 = tpu.matmul %267, %265, %cst_273 {dimension_numbers = #tpu.dot_dimension_numbers<[1], [1], [0], [0], [0, 0, 1, 0], [], []>} : vector<4x32xbf16>, vector<256x32xbf16>, vector<4x256xf32> -> vector<4x256xf32>
    %269 = arith.addf %262, %268 : vector<4x256xf32>
    %270 = vector.shape_cast %269 : vector<4x256xf32> to vector<1x4x256xf32>
    %c0_274 = arith.constant 0 : index
    %c0_275 = arith.constant 0 : index
    %c0_276 = arith.constant 0 : index
    %271 = vector.load %arg9[%c0_274, %c0_275, %c0_276] : memref<1x4x256xf32, #tpu.memory_space<vmem>>, vector<1x4x256xf32>
    tpu.vector_store %arg9[%c0_274, %c0_275, %c0_276], %270 {strides = array<i32>} : memref<1x4x256xf32, #tpu.memory_space<vmem>>, vector<1x4x256xf32>,
    return
  }
  func.func @transform_0(%arg0: i32) -> (i32, i32, i32, i32) {
    %c0_i32 = arith.constant 0 : i32
    %c0_i32_0 = arith.constant 0 : i32
    %c0_i32_1 = arith.constant 0 : i32
    %c0_i32_2 = arith.constant 0 : i32
    %c0_i32_3 = arith.constant 0 : i32
    return %c0_i32, %c0_i32_0, %c0_i32_1, %c0_i32_2 : i32, i32, i32, i32
  }
  func.func @transform_1(%arg0: i32) -> (i32, i32, i32, i32) {
    %c0_i32 = arith.constant 0 : i32
    %c0_i32_0 = arith.constant 0 : i32
    %c0_i32_1 = arith.constant 0 : i32
    %c0_i32_2 = arith.constant 0 : i32
    return %arg0, %c0_i32, %c0_i32_0, %c0_i32_1 : i32, i32, i32, i32
  }
  func.func @transform_2(%arg0: i32) -> (i32, i32, i32, i32) {
    %c0_i32 = arith.constant 0 : i32
    %c0_i32_0 = arith.constant 0 : i32
    %c0_i32_1 = arith.constant 0 : i32
    %c0_i32_2 = arith.constant 0 : i32
    return %arg0, %c0_i32, %c0_i32_0, %c0_i32_1 : i32, i32, i32, i32
  }
  func.func @transform_3(%arg0: i32) -> (i32, i32, i32) {
    %c0_i32 = arith.constant 0 : i32
    %c0_i32_0 = arith.constant 0 : i32
    %c0_i32_1 = arith.constant 0 : i32
    %c0_i32_2 = arith.constant 0 : i32
    return %c0_i32, %c0_i32_0, %c0_i32_1 : i32, i32, i32
  }
  func.func @transform_4(%arg0: i32) -> (i32, i32, i32) {
    %c0_i32 = arith.constant 0 : i32
    %c0_i32_0 = arith.constant 0 : i32
    %c0_i32_1 = arith.constant 0 : i32
    %c0_i32_2 = arith.constant 0 : i32
    return %c0_i32, %c0_i32_0, %c0_i32_1 : i32, i32, i32
  }
  func.func @transform_5(%arg0: i32) -> (i32, i32) {
    %c0_i32 = arith.constant 0 : i32
    %c0_i32_0 = arith.constant 0 : i32
    %c0_i32_1 = arith.constant 0 : i32
    return %c0_i32, %c0_i32_0 : i32, i32
  }
  func.func @transform_6(%arg0: i32) -> (i32, i32, i32) {
    %c0_i32 = arith.constant 0 : i32
    %c0_i32_0 = arith.constant 0 : i32
    %c0_i32_1 = arith.constant 0 : i32
    %c0_i32_2 = arith.constant 0 : i32
    return %c0_i32, %c0_i32_0, %c0_i32_1 : i32, i32, i32
  }
  func.func @transform_7(%arg0: i32) -> (i32, i32) {
    %c0_i32 = arith.constant 0 : i32
    %c0_i32_0 = arith.constant 0 : i32
    %c0_i32_1 = arith.constant 0 : i32
    return %c0_i32, %c0_i32_0 : i32, i32
  }
  func.func @transform_8(%arg0: i32) -> (i32, i32, i32) {
    %c0_i32 = arith.constant 0 : i32
    %c0_i32_0 = arith.constant 0 : i32
    %c0_i32_1 = arith.constant 0 : i32
    return %arg0, %c0_i32, %c0_i32_0 : i32, i32, i32
  }
  func.func @transform_9(%arg0: i32) -> (i32, i32, i32, i32) {
    %c0_i32 = arith.constant 0 : i32
    %c0_i32_0 = arith.constant 0 : i32
    %c0_i32_1 = arith.constant 0 : i32
    %c0_i32_2 = arith.constant 0 : i32
    return %arg0, %c0_i32, %c0_i32_0, %c0_i32_1 : i32, i32, i32, i32
  }
  func.func @transform_10(%arg0: i32) -> (i32, i32, i32, i32) {
    %c0_i32 = arith.constant 0 : i32
    %c0_i32_0 = arith.constant 0 : i32
    %c0_i32_1 = arith.constant 0 : i32
    %c0_i32_2 = arith.constant 0 : i32
    return %arg0, %c0_i32, %c0_i32_0, %c0_i32_1 : i32, i32, i32, i32
  }
  func.func @transform_11(%arg0: i32) -> (i32, i32, i32) {
    %c0_i32 = arith.constant 0 : i32
    %c0_i32_0 = arith.constant 0 : i32
    %c0_i32_1 = arith.constant 0 : i32
    return %arg0, %c0_i32, %c0_i32_0 : i32, i32, i32
  }
}

</mosaic_0001>

<llo_original>
// kernel: conv_lstm_grad_forward.1
$region0: #{conv_lstm_grad_forward.1}
  #allocation0 [shape = 'u32[]', space=smem, size = 0x4, offset = 0x4, fixed_abs, tag = 'smem constant byte address 0x4 - core index']
  #allocation1 [shape = 'u32[144,128]{1,0:T(1,128)}', space=vmem, size = 0x12000, scoped, tag = 'internal scratch']
  #allocation2 [shape = 'f32[18,18,4]{2,1,0:T(8,128)}', space=vmem, size = 0x36000, scoped, tag = 'scratch operand']
  #allocation3 [shape = 'f32[18,18,32]{2,1,0:T(8,128)}', space=vmem, size = 0x36000, scoped, tag = 'scratch operand']
  #allocation4 [shape = 'f32[256,128]{1,0:T(8,128)}', space=vmem, size = 0x20000, scoped, tag = 'scratch operand']
  %s0 = inlined_call_operand.vmem [shape: f32[2,16,16,4], index: 0, kind: input, shape index: {}]
  %s1 = inlined_call_operand.vmem [shape: f32[2,16,16,32], index: 1, kind: input, shape index: {}]
  %s2 = inlined_call_operand.hbm [shape: f32[2,16,16,32], index: 2, kind: input, shape index: {}]
  %s3 = inlined_call_operand.hbm [shape: bf16[9,4,128], index: 3, kind: input, shape index: {}]
  %s4 = inlined_call_operand.vmem [shape: bf16[9,32,128], index: 4, kind: input, shape index: {}]
  %s5 = inlined_call_operand.vmem [shape: f32[1,128], index: 5, kind: input, shape index: {}]
  %s6 = inlined_call_operand.hbm [shape: bf16[9,4,32], index: 6, kind: input, shape index: {}]
  %s7 = inlined_call_operand.vmem [shape: f32[4,1], index: 7, kind: input, shape index: {}]
  %s8 = inlined_call_operand.vmem [shape: f32[2,4,256], index: 8, kind: output, shape index: {0}]
  %s9 = inlined_call_operand.hbm [shape: f32[2,16,16,32], index: 9, kind: output, shape index: {1}]
  %s10 = inlined_call_operand.hbm [shape: f32[2,16,16,32], index: 10, kind: output, shape index: {2}]
  %s11 = inlined_call_operand.vmem [shape: f32[2,1,128], index: 11, kind: output, shape index: {3}]
  %12 = xla_tuple %s8, %s9, %s10, %s11
  %s13 = sld [smem:[#allocation0]]
  $region101: #{conv_lstm_grad_forward.1} parent=0
    _
  %s15 = ssub.s32 1, %s13
  %s16 = scalar_select 0, %s15, %s13
  $region1: #{conv_lstm_grad_forward.1} parent=0
    #allocation5 [shape = 'u8[262144]{0}', space=vmem, size = 0x40000, scoped, tag = 'input window, operand 2']
    #allocation6 [shape = 's32[2]{0}', space=sflag, size = 0x8, scoped, tag = 'scoped memory for conv_lstm_grad_forward.1']
    #allocation7 [shape = 's32[2]{0}', space=sflag, size = 0x8, scoped, tag = 'scoped memory for conv_lstm_grad_forward.1']
    #allocation8 [shape = 'u8[9216]{0}', space=vmem, size = 0x2400, scoped, tag = 'input window, operand 3, single buffered']
    #allocation9 [shape = 's32[1]{0}', space=sflag, size = 0x4, scoped, tag = 'scoped memory for conv_lstm_grad_forward.1']
    #allocation10 [shape = 'u8[9216]{0}', space=vmem, size = 0x2400, scoped, tag = 'input window, operand 6, single buffered']
    #allocation11 [shape = 'u8[262144]{0}', space=vmem, size = 0x40000, scoped, tag = 'output window, operand 1']
    #allocation12 [shape = 'u8[262144]{0}', space=vmem, size = 0x40000, scoped, tag = 'output window, operand 2']
    #allocation13 [shape = 's32[2]{0}', space=sflag, size = 0x8, scoped, tag = 'scoped memory for conv_lstm_grad_forward.1']
    %17 = vsyncpa [#allocation6], 0
    %s18 = scalar_lea.sflag [#allocation6], 1
    %19 = vsyncpa %s18, 0
    %20 = vsyncpa [#allocation9], 0
    %21 = vsyncpa [#allocation7], 0
    %s22 = scalar_lea.sflag [#allocation7], 1
    %23 = vsyncpa %s22, 0
    %24 = vsyncpa [#allocation13], 0
    %s25 = scalar_lea.sflag [#allocation13], 1
    %26 = vsyncpa %s25, 0
    loop: start=0, step=1, limit=4
    $region2: #{conv_lstm_grad_forward.1} parent=1 // loop_pre_header
      _
    $region3: #{conv_lstm_grad_forward.1} parent=1 // loop_header
      %s28 = sphi 0, %s32
      %p29 = scmp.ge.s32.totalorder %s28, 4
      %s36 = sphi 0, %s36
      %s38 = sphi 0, %s36
      %s39 = sphi 0, %s38
      %s53 = sphi 0, %s39
      %s59 = sphi 0, %s61
      %s62 = sphi 0, %s59
      %s63 = sphi 0, %s62
      %s79 = sphi 0, %s63
      %s85 = sphi 0, %s87
      %s88 = sphi 0, %s85
      %s89 = sphi 0, %s88
      %s105 = sphi 0, %s89
      %s109 = sphi 0, %s109
      %s111 = sphi 0, %s109
      %s112 = sphi 0, %s111
      %s126 = sphi 0, %s112
      %s130 = sphi 0, %s130
      %s132 = sphi 0, %s130
      %s133 = sphi 0, %s132
      %s147 = sphi 0, %s133
      %s151 = sphi 0, %s151
      %s153 = sphi 0, %s151
      %s154 = sphi 0, %s153
      %s168 = sphi 0, %s154
      %s172 = sphi 0, %s172
      %s174 = sphi 0, %s172
      %s175 = sphi 0, %s174
      %s189 = sphi 0, %s175
      %s193 = sphi 0, %s193
      %s195 = sphi 0, %s193
      %s196 = sphi 0, %s195
      %s210 = sphi 0, %s196
      %s216 = sphi 0, %s218
      %s219 = sphi 0, %s216
      %s220 = sphi 0, %s219
      %s236 = sphi 0, %s220
      %s242 = sphi 0, %s244
      %s245 = sphi 0, %s242
      %s246 = sphi 0, %s245
      %s262 = sphi 0, %s246
      %s268 = sphi 0, %s270
      %s271 = sphi 0, %s268
      %s272 = sphi 0, %s271
      %s288 = sphi 0, %s272
      %s294 = sphi 0, %s296
      %s297 = sphi 0, %s294
      %s298 = sphi 0, %s297
      %s314 = sphi 0, %s298
    $region4: #{conv_lstm_grad_forward.1} parent=1 // loop_header_branch
      %31 = sbr.rel (%p29) target = $region8
    $region5: #{conv_lstm_grad_forward.1} parent=1 // loop_body
      %s33 = ssub.s32 %s28, 1
      %s34 = ssub.s32 %s28, 2
      %s35 = sadd.s32 %s28, 1
      %s37 = sadd.s32 %s36, 1
      %p40 = scmp.eq.s32.totalorder %s28, 1
      %p41 = scmp.ne.s32.totalorder %s36, %s38
      %p42 = scmp.eq.s32.totalorder %s28, 0
      %p43 = por %p41, %p42
      %p44 = scmp.ne.s32.totalorder %s36, %s38
      %p45 = scmp.eq.s32.totalorder %s33, 1
      %p46 = por %p44, %p45
      %p47 = scmp.ne.s32.totalorder %s38, %s39
      %p48 = scmp.eq.s32.totalorder %s33, 0
      %p49 = por %p47, %p48
      %p50 = scmp.ne.s32.totalorder %s38, %s39
      %p51 = scmp.eq.s32.totalorder %s34, 1
      %p52 = por %p50, %p51
      %p54 = scmp.ne.s32.totalorder %s39, %s53
      %p55 = scmp.eq.s32.totalorder %s34, 0
      %p56 = por %p54, %p55
      %s57 = ssub.s32 %s28, %s35
      %p58 = scmp.eq.s32.totalorder %s57, 0
      %s60 = sadd.s32 %s59, 1
      %s61 = scalar_select %p58, %s59, %s60
      %p64 = pneg %p58
      %p65 = scmp.eq.s32.totalorder %s28, 1
      %p66 = por %p64, %p65
      %p67 = scmp.ne.s32.totalorder %s59, %s62
      %p68 = scmp.eq.s32.totalorder %s28, 0
      %p69 = por %p67, %p68
      %p70 = scmp.ne.s32.totalorder %s59, %s62
      %p71 = scmp.eq.s32.totalorder %s33, 1
      %p72 = por %p70, %p71
      %p73 = scmp.ne.s32.totalorder %s62, %s63
      %p74 = scmp.eq.s32.totalorder %s33, 0
      %p75 = por %p73, %p74
      %p76 = scmp.ne.s32.totalorder %s62, %s63
      %p77 = scmp.eq.s32.totalorder %s34, 1
      %p78 = por %p76, %p77
      %p80 = scmp.ne.s32.totalorder %s63, %s79
      %p81 = scmp.eq.s32.totalorder %s34, 0
      %p82 = por %p80, %p81
      %s83 = ssub.s32 %s28, %s35
      %p84 = scmp.eq.s32.totalorder %s83, 0
      %s86 = sadd.s32 %s85, 1
      %s87 = scalar_select %p84, %s85, %s86
      %p90 = pneg %p84
      %p91 = scmp.eq.s32.totalorder %s28, 1
      %p92 = por %p90, %p91
      %p93 = scmp.ne.s32.totalorder %s85, %s88
      %p94 = scmp.eq.s32.totalorder %s28, 0
      %p95 = por %p93, %p94
      %p96 = scmp.ne.s32.totalorder %s85, %s88
      %p97 = scmp.eq.s32.totalorder %s33, 1
      %p98 = por %p96, %p97
      %p99 = scmp.ne.s32.totalorder %s88, %s89
      %p100 = scmp.eq.s32.totalorder %s33, 0
      %p101 = por %p99, %p100
      %p102 = scmp.ne.s32.totalorder %s88, %s89
      %p103 = scmp.eq.s32.totalorder %s34, 1
      %p104 = por %p102, %p103
      %p106 = scmp.ne.s32.totalorder %s89, %s105
      %p107 = scmp.eq.s32.totalorder %s34, 0
      %p108 = por %p106, %p107
      %s110 = sadd.s32 %s109, 1
      %p113 = scmp.eq.s32.totalorder %s28, 1
      %p114 = scmp.ne.s32.totalorder %s109, %s111
      %p115 = scmp.eq.s32.totalorder %s28, 0
      %p116 = por %p114, %p115
      %p117 = scmp.ne.s32.totalorder %s109, %s111
      %p118 = scmp.eq.s32.totalorder %s33, 1
      %p119 = por %p117, %p118
      %p120 = scmp.ne.s32.totalorder %s111, %s112
      %p121 = scmp.eq.s32.totalorder %s33, 0
      %p122 = por %p120, %p121
      %p123 = scmp.ne.s32.totalorder %s111, %s112
      %p124 = scmp.eq.s32.totalorder %s34, 1
      %p125 = por %p123, %p124
      %p127 = scmp.ne.s32.totalorder %s112, %s126
      %p128 = scmp.eq.s32.totalorder %s34, 0
      %p129 = por %p127, %p128
      %s131 = sadd.s32 %s130, 1
      %p134 = scmp.eq.s32.totalorder %s28, 1
      %p135 = scmp.ne.s32.totalorder %s130, %s132
      %p136 = scmp.eq.s32.totalorder %s28, 0
      %p137 = por %p135, %p136
      %p138 = scmp.ne.s32.totalorder %s130, %s132
      %p139 = scmp.eq.s32.totalorder %s33, 1
      %p140 = por %p138, %p139
      %p141 = scmp.ne.s32.totalorder %s132, %s133
      %p142 = scmp.eq.s32.totalorder %s33, 0
      %p143 = por %p141, %p142
      %p144 = scmp.ne.s32.totalorder %s132, %s133
      %p145 = scmp.eq.s32.totalorder %s34, 1
      %p146 = por %p144, %p145
      %p148 = scmp.ne.s32.totalorder %s133, %s147
      %p149 = scmp.eq.s32.totalorder %s34, 0
      %p150 = por %p148, %p149
      %s152 = sadd.s32 %s151, 1
      %p155 = scmp.eq.s32.totalorder %s28, 1
      %p156 = scmp.ne.s32.totalorder %s151, %s153
      %p157 = scmp.eq.s32.totalorder %s28, 0
      %p158 = por %p156, %p157
      %p159 = scmp.ne.s32.totalorder %s151, %s153
      %p160 = scmp.eq.s32.totalorder %s33, 1
      %p161 = por %p159, %p160
      %p162 = scmp.ne.s32.totalorder %s153, %s154
      %p163 = scmp.eq.s32.totalorder %s33, 0
      %p164 = por %p162, %p163
      %p165 = scmp.ne.s32.totalorder %s153, %s154
      %p166 = scmp.eq.s32.totalorder %s34, 1
      %p167 = por %p165, %p166
      %p169 = scmp.ne.s32.totalorder %s154, %s168
      %p170 = scmp.eq.s32.totalorder %s34, 0
      %p171 = por %p169, %p170
      %s173 = sadd.s32 %s172, 1
      %p176 = scmp.eq.s32.totalorder %s28, 1
      %p177 = scmp.ne.s32.totalorder %s172, %s174
      %p178 = scmp.eq.s32.totalorder %s28, 0
      %p179 = por %p177, %p178
      %p180 = scmp.ne.s32.totalorder %s172, %s174
      %p181 = scmp.eq.s32.totalorder %s33, 1
      %p182 = por %p180, %p181
      %p183 = scmp.ne.s32.totalorder %s174, %s175
      %p184 = scmp.eq.s32.totalorder %s33, 0
      %p185 = por %p183, %p184
      %p186 = scmp.ne.s32.totalorder %s174, %s175
      %p187 = scmp.eq.s32.totalorder %s34, 1
      %p188 = por %p186, %p187
      %p190 = scmp.ne.s32.totalorder %s175, %s189
      %p191 = scmp.eq.s32.totalorder %s34, 0
      %p192 = por %p190, %p191
      %s194 = sadd.s32 %s193, 1
      %p197 = scmp.eq.s32.totalorder %s28, 1
      %p198 = scmp.ne.s32.totalorder %s193, %s195
      %p199 = scmp.eq.s32.totalorder %s28, 0
      %p200 = por %p198, %p199
      %p201 = scmp.ne.s32.totalorder %s193, %s195
      %p202 = scmp.eq.s32.totalorder %s33, 1
      %p203 = por %p201, %p202
      %p204 = scmp.ne.s32.totalorder %s195, %s196
      %p205 = scmp.eq.s32.totalorder %s33, 0
      %p206 = por %p204, %p205
      %p207 = scmp.ne.s32.totalorder %s195, %s196
      %p208 = scmp.eq.s32.totalorder %s34, 1
      %p209 = por %p207, %p208
      %p211 = scmp.ne.s32.totalorder %s196, %s210
      %p212 = scmp.eq.s32.totalorder %s34, 0
      %p213 = por %p211, %p212
      %s214 = ssub.s32 %s28, %s35
      %p215 = scmp.eq.s32.totalorder %s214, 0
      %s217 = sadd.s32 %s216, 1
      %s218 = scalar_select %p215, %s216, %s217
      %p221 = pneg %p215
      %p222 = scmp.eq.s32.totalorder %s28, 1
      %p223 = por %p221, %p222
      %p224 = scmp.ne.s32.totalorder %s216, %s219
      %p225 = scmp.eq.s32.totalorder %s28, 0
      %p226 = por %p224, %p225
      %p227 = scmp.ne.s32.totalorder %s216, %s219
      %p228 = scmp.eq.s32.totalorder %s33, 1
      %p229 = por %p227, %p228
      %p230 = scmp.ne.s32.totalorder %s219, %s220
      %p231 = scmp.eq.s32.totalorder %s33, 0
      %p232 = por %p230, %p231
      %p233 = scmp.ne.s32.totalorder %s219, %s220
      %p234 = scmp.eq.s32.totalorder %s34, 1
      %p235 = por %p233, %p234
      %p237 = scmp.ne.s32.totalorder %s220, %s236
      %p238 = scmp.eq.s32.totalorder %s34, 0
      %p239 = por %p237, %p238
      %s240 = ssub.s32 %s28, %s35
      %p241 = scmp.eq.s32.totalorder %s240, 0
      %s243 = sadd.s32 %s242, 1
      %s244 = scalar_select %p241, %s242, %s243
      %p247 = pneg %p241
      %p248 = scmp.eq.s32.totalorder %s28, 1
      %p249 = por %p247, %p248
      %p250 = scmp.ne.s32.totalorder %s242, %s245
      %p251 = scmp.eq.s32.totalorder %s28, 0
      %p252 = por %p250, %p251
      %p253 = scmp.ne.s32.totalorder %s242, %s245
      %p254 = scmp.eq.s32.totalorder %s33, 1
      %p255 = por %p253, %p254
      %p256 = scmp.ne.s32.totalorder %s245, %s246
      %p257 = scmp.eq.s32.totalorder %s33, 0
      %p258 = por %p256, %p257
      %p259 = scmp.ne.s32.totalorder %s245, %s246
      %p260 = scmp.eq.s32.totalorder %s34, 1
      %p261 = por %p259, %p260
      %p263 = scmp.ne.s32.totalorder %s246, %s262
      %p264 = scmp.eq.s32.totalorder %s34, 0
      %p265 = por %p263, %p264
      %s266 = ssub.s32 %s28, %s35
      %p267 = scmp.eq.s32.totalorder %s266, 0
      %s269 = sadd.s32 %s268, 1
      %s270 = scalar_select %p267, %s268, %s269
      %p273 = pneg %p267
      %p274 = scmp.eq.s32.totalorder %s28, 1
      %p275 = por %p273, %p274
      %p276 = scmp.ne.s32.totalorder %s268, %s271
      %p277 = scmp.eq.s32.totalorder %s28, 0
      %p278 = por %p276, %p277
      %p279 = scmp.ne.s32.totalorder %s268, %s271
      %p280 = scmp.eq.s32.totalorder %s33, 1
      %p281 = por %p279, %p280
      %p282 = scmp.ne.s32.totalorder %s271, %s272
      %p283 = scmp.eq.s32.totalorder %s33, 0
      %p284 = por %p282, %p283
      %p285 = scmp.ne.s32.totalorder %s271, %s272
      %p286 = scmp.eq.s32.totalorder %s34, 1
      %p287 = por %p285, %p286
      %p289 = scmp.ne.s32.totalorder %s272, %s288
      %p290 = scmp.eq.s32.totalorder %s34, 0
      %p291 = por %p289, %p290
      %s292 = ssub.s32 %s28, %s35
      %p293 = scmp.eq.s32.totalorder %s292, 0
      %s295 = sadd.s32 %s294, 1
      %s296 = scalar_select %p293, %s294, %s295
      %p299 = pneg %p293
      %p300 = scmp.eq.s32.totalorder %s28, 1
      %p301 = por %p299, %p300
      %p302 = scmp.ne.s32.totalorder %s294, %s297
      %p303 = scmp.eq.s32.totalorder %s28, 0
      %p304 = por %p302, %p303
      %p305 = scmp.ne.s32.totalorder %s294, %s297
      %p306 = scmp.eq.s32.totalorder %s33, 1
      %p307 = por %p305, %p306
      %p308 = scmp.ne.s32.totalorder %s297, %s298
      %p309 = scmp.eq.s32.totalorder %s33, 0
      %p310 = por %p308, %p309
      %p311 = scmp.ne.s32.totalorder %s297, %s298
      %p312 = scmp.eq.s32.totalorder %s34, 1
      %p313 = por %p311, %p312
      %p315 = scmp.ne.s32.totalorder %s298, %s314
      %p316 = scmp.eq.s32.totalorder %s34, 0
      %p317 = por %p315, %p316
      %p318 = scmp.le.s32.totalorder 1, %s28
      %p319 = scmp.lt.s32.totalorder %s28, 3
      %p320 = pnand %p318, %p319
      %p321 = pneg %p320
      // Predicated region
      $region9: #{conv_lstm_grad_forward.1} parent=5 // pred_check
        _
      $region10: #{conv_lstm_grad_forward.1} parent=5 // pred_check_branch
        %323 = sbr.rel (%p320) target = $region12
      $region11: #{conv_lstm_grad_forward.1} parent=5 // pred_region
        %s324 = ssub.s32 %s28, 1
        // Predicated region
        $region13: #{conv_lstm_grad_forward.1} parent=11 // pred_check
          %p325 = pneg %p49
        $region14: #{conv_lstm_grad_forward.1} parent=11 // pred_check_branch
          %327 = sbr.rel (%p325) target = $region16
        $region15: #{conv_lstm_grad_forward.1} parent=11 // pred_region
          _
        $region16: #{conv_lstm_grad_forward.1} parent=11 // pred_fallthru
          _
        // Predicated region
        $region17: #{conv_lstm_grad_forward.1} parent=11 // pred_check
          %p328 = pneg %p122
        $region18: #{conv_lstm_grad_forward.1} parent=11 // pred_check_branch
          %330 = sbr.rel (%p328) target = $region20
        $region19: #{conv_lstm_grad_forward.1} parent=11 // pred_region
          %s332 = ssub.s32 288, 288
          %333 = vsyncadd [#allocation9], %s332
          %s334 = sshll.u32 [#allocation8], 4
          %s335 = int_to_ptr.vmem [resolvable:$true] %s334
          %340 = dma.hbm_to_vmem [thread:$0]  %s3, 288, %s335, [#allocation9], 32, 32, 2
        $region20: #{conv_lstm_grad_forward.1} parent=11 // pred_fallthru
          _
        // Predicated region
        $region21: #{conv_lstm_grad_forward.1} parent=11 // pred_check
          %p341 = pneg %p143
        $region22: #{conv_lstm_grad_forward.1} parent=11 // pred_check_branch
          %343 = sbr.rel (%p341) target = $region24
        $region23: #{conv_lstm_grad_forward.1} parent=11 // pred_region
          _
        $region24: #{conv_lstm_grad_forward.1} parent=11 // pred_fallthru
          _
        // Predicated region
        $region25: #{conv_lstm_grad_forward.1} parent=11 // pred_check
          %p344 = pneg %p164
        $region26: #{conv_lstm_grad_forward.1} parent=11 // pred_check_branch
          %346 = sbr.rel (%p344) target = $region28
        $region27: #{conv_lstm_grad_forward.1} parent=11 // pred_region
          _
        $region28: #{conv_lstm_grad_forward.1} parent=11 // pred_fallthru
          _
        // Predicated region
        $region29: #{conv_lstm_grad_forward.1} parent=11 // pred_check
          %p347 = pneg %p185
        $region30: #{conv_lstm_grad_forward.1} parent=11 // pred_check_branch
          %349 = sbr.rel (%p347) target = $region32
        $region31: #{conv_lstm_grad_forward.1} parent=11 // pred_region
          %s351 = ssub.s32 288, 288
          %352 = vsyncadd [#allocation9], %s351
          %s353 = sshll.u32 [#allocation10], 4
          %s354 = int_to_ptr.vmem [resolvable:$true] %s353
          %359 = dma.hbm_to_vmem [thread:$0]  %s6, 288, %s354, [#allocation9], 32, 32, 2
        $region32: #{conv_lstm_grad_forward.1} parent=11 // pred_fallthru
          _
        // Predicated region
        $region33: #{conv_lstm_grad_forward.1} parent=11 // pred_check
          %p360 = pneg %p206
        $region34: #{conv_lstm_grad_forward.1} parent=11 // pred_check_branch
          %362 = sbr.rel (%p360) target = $region36
        $region35: #{conv_lstm_grad_forward.1} parent=11 // pred_region
          _
        $region36: #{conv_lstm_grad_forward.1} parent=11 // pred_fallthru
          _
      $region12: #{conv_lstm_grad_forward.1} parent=5 // pred_fallthru
        _
      %p363 = scmp.lt.s32.totalorder %s28, 2
      // Predicated region
      $region37: #{conv_lstm_grad_forward.1} parent=5 // pred_check
        %p364 = pneg %p363
      $region38: #{conv_lstm_grad_forward.1} parent=5 // pred_check_branch
        %366 = sbr.rel (%p364) target = $region40
      $region39: #{conv_lstm_grad_forward.1} parent=5 // pred_region
        // Predicated region
        $region41: #{conv_lstm_grad_forward.1} parent=39 // pred_check
          %p367 = pneg %p69
        $region42: #{conv_lstm_grad_forward.1} parent=39 // pred_check_branch
          %369 = sbr.rel (%p367) target = $region44
        $region43: #{conv_lstm_grad_forward.1} parent=39 // pred_region
          %p370 = scmp.lt.s32.totalorder %s28, 1
          %s371 = scalar_select %p370, %s28, 1
          %s372 = smul.addr %s371, 32
          %s373 = smul.addr %s372, 8
          %s374 = scalar_lea.vmem %s1, %s373
        $region44: #{conv_lstm_grad_forward.1} parent=39 // pred_fallthru
          _
        // Predicated region
        $region45: #{conv_lstm_grad_forward.1} parent=39 // pred_check
          %p375 = pneg %p95
        $region46: #{conv_lstm_grad_forward.1} parent=39 // pred_check_branch
          %377 = sbr.rel (%p375) target = $region48
        $region47: #{conv_lstm_grad_forward.1} parent=39 // pred_region
          %s378 = sand.u32 %s85, 1
          %s379 = scalar_lea.sflag [#allocation6], %s378
          %s380 = sand.u32 %s85, 1
          %s381 = smul.addr %s380, 256
          %s382 = scalar_lea.vmem [#allocation5], %s381
          %s384 = ssub.s32 4096, 4096
          %385 = vsyncadd %s379, %s384
          %s386 = smul.addr %s28, 32
          %s387 = smul.addr %s386, 128
          %s388 = scalar_lea.hbm %s2, %s387
          %s389 = sshll.u32 %s382, 4
          %s390 = int_to_ptr.vmem [resolvable:$true] %s389
          %395 = dma.hbm_to_vmem [thread:$0]  %s388, 4096, %s390, %s379, 128, 128, 8
        $region48: #{conv_lstm_grad_forward.1} parent=39 // pred_fallthru
          _
      $region40: #{conv_lstm_grad_forward.1} parent=5 // pred_fallthru
        _
      %p396 = scmp.le.s32.totalorder 1, %s28
      %p397 = scmp.lt.s32.totalorder %s28, 3
      %p398 = pnand %p396, %p397
      %p399 = pneg %p398
      // Predicated region
      $region49: #{conv_lstm_grad_forward.1} parent=5 // pred_check
        _
      $region50: #{conv_lstm_grad_forward.1} parent=5 // pred_check_branch
        %401 = sbr.rel (%p398) target = $region52
      $region51: #{conv_lstm_grad_forward.1} parent=5 // pred_region
        %s402 = ssub.s32 %s28, 1
        %s403 = sand.u32 %s88, 1
        %s404 = scalar_lea.sflag [#allocation6], %s403
        %s405 = sand.u32 %s88, 1
        %s406 = smul.addr %s405, 256
        %s407 = scalar_lea.vmem [#allocation5], %s406
        // Predicated region
        $region53: #{conv_lstm_grad_forward.1} parent=51 // pred_check
          %p408 = pneg %p101
        $region54: #{conv_lstm_grad_forward.1} parent=51 // pred_check_branch
          %410 = sbr.rel (%p408) target = $region56
        $region55: #{conv_lstm_grad_forward.1} parent=51 // pred_region
          %411 = dma.done %s404, 4096
        $region56: #{conv_lstm_grad_forward.1} parent=51 // pred_fallthru
          _
        // Predicated region
        $region57: #{conv_lstm_grad_forward.1} parent=51 // pred_check
          %p412 = pneg %p122
        $region58: #{conv_lstm_grad_forward.1} parent=51 // pred_check_branch
          %414 = sbr.rel (%p412) target = $region60
        $region59: #{conv_lstm_grad_forward.1} parent=51 // pred_region
          %415 = dma.done [#allocation9], 288
        $region60: #{conv_lstm_grad_forward.1} parent=51 // pred_fallthru
          _
        // Predicated region
        $region61: #{conv_lstm_grad_forward.1} parent=51 // pred_check
          %p416 = pneg %p185
        $region62: #{conv_lstm_grad_forward.1} parent=51 // pred_check_branch
          %418 = sbr.rel (%p416) target = $region64
        $region63: #{conv_lstm_grad_forward.1} parent=51 // pred_region
          %419 = dma.done [#allocation9], 288
        $region64: #{conv_lstm_grad_forward.1} parent=51 // pred_fallthru
          _
        %p420 = pneg %p49
        %p421 = pneg %p46
        %p422 = scmp.lt.s32.totalorder %s33, 1
        %s423 = scalar_select %p422, %s33, 1
        %s424 = smul.addr %s423, 32
        %s425 = smul.addr %s424, 8
        %s426 = scalar_lea.vmem %s1, %s425
        %p427 = pneg %p75
        %p428 = pneg %p72
        %s429 = sand.u32 %s88, 1
        %s430 = scalar_lea.sflag [#allocation6], %s429
        %s431 = sand.u32 %s88, 1
        %s432 = smul.addr %s431, 256
        %s433 = scalar_lea.vmem [#allocation5], %s432
        %p434 = pneg %p101
        %p435 = pneg %p98
        %p436 = pneg %p122
        %p437 = pneg %p119
        %p438 = pneg %p143
        %p439 = pneg %p140
        %p440 = pneg %p164
        %p441 = pneg %p161
        %p442 = pneg %p185
        %p443 = pneg %p182
        %p444 = pneg %p206
        %p445 = pneg %p203
        %p446 = pneg %p232
        %p447 = pneg %p229
        %p448 = scmp.lt.s32.totalorder %s33, 1
        %s449 = scalar_select %p448, %s33, 1
        %s450 = smul.addr %s449, 2
        %s451 = smul.addr %s450, 4
        %s452 = scalar_lea.vmem %s8, %s451
        %p453 = pneg %p258
        %p454 = pneg %p255
        %s455 = sand.u32 %s245, 1
        %s456 = scalar_lea.sflag [#allocation7], %s455
        %s457 = sand.u32 %s245, 1
        %s458 = smul.addr %s457, 256
        %s459 = scalar_lea.vmem [#allocation11], %s458
        %p460 = pneg %p284
        %p461 = pneg %p281
        %s462 = sand.u32 %s271, 1
        %s463 = scalar_lea.sflag [#allocation13], %s462
        %s464 = sand.u32 %s271, 1
        %s465 = smul.addr %s464, 256
        %s466 = scalar_lea.vmem [#allocation12], %s465
        %p467 = pneg %p310
        %p468 = pneg %p307
        %p469 = scmp.lt.s32.totalorder %s33, 1
        %s470 = scalar_select %p469, %s33, 1
        %s471 = scalar_lea.vmem %s11, %s470
        %p472 = scmp.lt.s32.totalorder %s33, 1
        %s473 = scalar_select %p472, %s33, 1
        %s474 = smul.addr %s473, 32
        %s475 = smul.addr %s474, 8
        %s476 = scalar_lea.vmem %s1, %s475
        %p477 = scmp.lt.s32.totalorder %s33, 1
        %s478 = scalar_select %p477, %s33, 1
        %s479 = smul.addr %s478, 2
        %s480 = smul.addr %s479, 4
        %s481 = scalar_lea.vmem %s8, %s480
        %p482 = scmp.lt.s32.totalorder %s33, 1
        %s483 = scalar_select %p482, %s33, 1
        %s484 = scalar_lea.vmem %s11, %s483
        %v486 = vld [vmem:[%s0] sm:$0xff]
        %v487 = vld [vmem:[%s0 + $0x8] sm:$0xff]
        %v488 = vld [vmem:[%s0 + $0x10] sm:$0xff]
        %v489 = vld [vmem:[%s0 + $0x18] sm:$0xff]
        %v490 = vld [vmem:[%s0 + $0x20] sm:$0xff]
        %v491 = vld [vmem:[%s0 + $0x28] sm:$0xff]
        %v492 = vld [vmem:[%s0 + $0x30] sm:$0xff]
        %v493 = vld [vmem:[%s0 + $0x38] sm:$0xff]
        %v494 = vld [vmem:[%s0 + $0x40] sm:$0xff]
        %v495 = vld [vmem:[%s0 + $0x48] sm:$0xff]
        %v496 = vld [vmem:[%s0 + $0x50] sm:$0xff]
        %v497 = vld [vmem:[%s0 + $0x58] sm:$0xff]
        %v498 = vld [vmem:[%s0 + $0x60] sm:$0xff]
        %v499 = vld [vmem:[%s0 + $0x68] sm:$0xff]
        %v500 = vld [vmem:[%s0 + $0x70] sm:$0xff]
        %v501 = vld [vmem:[%s0 + $0x78] sm:$0xff]
        %v502 = vld [vmem:[%s0 + $0x80] sm:$0xff]
        %v503 = vld [vmem:[%s0 + $0x88] sm:$0xff]
        %v504 = vld [vmem:[%s0 + $0x90] sm:$0xff]
        %v505 = vld [vmem:[%s0 + $0x98] sm:$0xff]
        %v506 = vld [vmem:[%s0 + $0xa0] sm:$0xff]
        %v507 = vld [vmem:[%s0 + $0xa8] sm:$0xff]
        %v508 = vld [vmem:[%s0 + $0xb0] sm:$0xff]
        %v509 = vld [vmem:[%s0 + $0xb8] sm:$0xff]
        %v510 = vld [vmem:[%s0 + $0xc0] sm:$0xff]
        %v511 = vld [vmem:[%s0 + $0xc8] sm:$0xff]
        %v512 = vld [vmem:[%s0 + $0xd0] sm:$0xff]
        %v513 = vld [vmem:[%s0 + $0xd8] sm:$0xff]
        %v514 = vld [vmem:[%s0 + $0xe0] sm:$0xff]
        %v515 = vld [vmem:[%s0 + $0xe8] sm:$0xff]
        %v516 = vld [vmem:[%s0 + $0xf0] sm:$0xff]
        %v517 = vld [vmem:[%s0 + $0xf8] sm:$0xff]
        %v518 = vld [vmem:[%s0 + $0x100] sm:$0xff]
        %v519 = vld [vmem:[%s0 + $0x108] sm:$0xff]
        %v520 = vld [vmem:[%s0 + $0x110] sm:$0xff]
        %v521 = vld [vmem:[%s0 + $0x118] sm:$0xff]
        %v522 = vld [vmem:[%s0 + $0x120] sm:$0xff]
        %v523 = vld [vmem:[%s0 + $0x128] sm:$0xff]
        %v524 = vld [vmem:[%s0 + $0x130] sm:$0xff]
        %v525 = vld [vmem:[%s0 + $0x138] sm:$0xff]
        %v526 = vld [vmem:[%s0 + $0x140] sm:$0xff]
        %v527 = vld [vmem:[%s0 + $0x148] sm:$0xff]
        %v528 = vld [vmem:[%s0 + $0x150] sm:$0xff]
        %v529 = vld [vmem:[%s0 + $0x158] sm:$0xff]
        %v530 = vld [vmem:[%s0 + $0x160] sm:$0xff]
        %v531 = vld [vmem:[%s0 + $0x168] sm:$0xff]
        %v532 = vld [vmem:[%s0 + $0x170] sm:$0xff]
        %v533 = vld [vmem:[%s0 + $0x178] sm:$0xff]
        %v534 = vld [vmem:[%s0 + $0x180] sm:$0xff]
        %v535 = vld [vmem:[%s0 + $0x188] sm:$0xff]
        %v536 = vld [vmem:[%s0 + $0x190] sm:$0xff]
        %v537 = vld [vmem:[%s0 + $0x198] sm:$0xff]
        %v538 = vld [vmem:[%s0 + $0x1a0] sm:$0xff]
        %v539 = vld [vmem:[%s0 + $0x1a8] sm:$0xff]
        %v540 = vld [vmem:[%s0 + $0x1b0] sm:$0xff]
        %v541 = vld [vmem:[%s0 + $0x1b8] sm:$0xff]
        %v542 = vld [vmem:[%s0 + $0x1c0] sm:$0xff]
        %v543 = vld [vmem:[%s0 + $0x1c8] sm:$0xff]
        %v544 = vld [vmem:[%s0 + $0x1d0] sm:$0xff]
        %v545 = vld [vmem:[%s0 + $0x1d8] sm:$0xff]
        %v546 = vld [vmem:[%s0 + $0x1e0] sm:$0xff]
        %v547 = vld [vmem:[%s0 + $0x1e8] sm:$0xff]
        %v548 = vld [vmem:[%s0 + $0x1f0] sm:$0xff]
        %v549 = vld [vmem:[%s0 + $0x1f8] sm:$0xff]
        %v550 = vmul.f32 %v486, %v486
        %v551 = vmul.f32 %v487, %v487
        %v552 = vmul.f32 %v488, %v488
        %v553 = vmul.f32 %v489, %v489
        %v554 = vmul.f32 %v490, %v490
        %v555 = vmul.f32 %v491, %v491
        %v556 = vmul.f32 %v492, %v492
        %v557 = vmul.f32 %v493, %v493
        %v558 = vmul.f32 %v494, %v494
        %v559 = vmul.f32 %v495, %v495
        %v560 = vmul.f32 %v496, %v496
        %v561 = vmul.f32 %v497, %v497
        %v562 = vmul.f32 %v498, %v498
        %v563 = vmul.f32 %v499, %v499
        %v564 = vmul.f32 %v500, %v500
        %v565 = vmul.f32 %v501, %v501
        %v566 = vmul.f32 %v502, %v502
        %v567 = vmul.f32 %v503, %v503
        %v568 = vmul.f32 %v504, %v504
        %v569 = vmul.f32 %v505, %v505
        %v570 = vmul.f32 %v506, %v506
        %v571 = vmul.f32 %v507, %v507
        %v572 = vmul.f32 %v508, %v508
        %v573 = vmul.f32 %v509, %v509
        %v574 = vmul.f32 %v510, %v510
        %v575 = vmul.f32 %v511, %v511
        %v576 = vmul.f32 %v512, %v512
        %v577 = vmul.f32 %v513, %v513
        %v578 = vmul.f32 %v514, %v514
        %v579 = vmul.f32 %v515, %v515
        %v580 = vmul.f32 %v516, %v516
        %v581 = vmul.f32 %v517, %v517
        %v582 = vmul.f32 %v518, %v518
        %v583 = vmul.f32 %v519, %v519
        %v584 = vmul.f32 %v520, %v520
        %v585 = vmul.f32 %v521, %v521
        %v586 = vmul.f32 %v522, %v522
        %v587 = vmul.f32 %v523, %v523
        %v588 = vmul.f32 %v524, %v524
        %v589 = vmul.f32 %v525, %v525
        %v590 = vmul.f32 %v526, %v526
        %v591 = vmul.f32 %v527, %v527
        %v592 = vmul.f32 %v528, %v528
        %v593 = vmul.f32 %v529, %v529
        %v594 = vmul.f32 %v530, %v530
        %v595 = vmul.f32 %v531, %v531
        %v596 = vmul.f32 %v532, %v532
        %v597 = vmul.f32 %v533, %v533
        %v598 = vmul.f32 %v534, %v534
        %v599 = vmul.f32 %v535, %v535
        %v600 = vmul.f32 %v536, %v536
        %v601 = vmul.f32 %v537, %v537
        %v602 = vmul.f32 %v538, %v538
        %v603 = vmul.f32 %v539, %v539
        %v604 = vmul.f32 %v540, %v540
        %v605 = vmul.f32 %v541, %v541
        %v606 = vmul.f32 %v542, %v542
        %v607 = vmul.f32 %v543, %v543
        %v608 = vmul.f32 %v544, %v544
        %v609 = vmul.f32 %v545, %v545
        %v610 = vmul.f32 %v546, %v546
        %v611 = vmul.f32 %v547, %v547
        %v612 = vmul.f32 %v548, %v548
        %v613 = vmul.f32 %v549, %v549
        %vm614 = vcmask 31744
        %v615 = vsel %vm614, %v550, 0.0
        %v616 = vsel %vm614, %v551, 0.0
        %v617 = vadd.f32 %v615, %v616
        %v618 = vsel %vm614, %v552, 0.0
        %v619 = vadd.f32 %v617, %v618
        %v620 = vsel %vm614, %v553, 0.0
        %v621 = vadd.f32 %v619, %v620
        %v622 = vsel %vm614, %v554, 0.0
        %v623 = vadd.f32 %v621, %v622
        %v624 = vsel %vm614, %v555, 0.0
        %v625 = vadd.f32 %v623, %v624
        %v626 = vsel %vm614, %v556, 0.0
        %v627 = vadd.f32 %v625, %v626
        %v628 = vsel %vm614, %v557, 0.0
        %v629 = vadd.f32 %v627, %v628
        %v630 = vsel %vm614, %v558, 0.0
        %v631 = vadd.f32 %v629, %v630
        %v632 = vsel %vm614, %v559, 0.0
        %v633 = vadd.f32 %v631, %v632
        %v634 = vsel %vm614, %v560, 0.0
        %v635 = vadd.f32 %v633, %v634
        %v636 = vsel %vm614, %v561, 0.0
        %v637 = vadd.f32 %v635, %v636
        %v638 = vsel %vm614, %v562, 0.0
        %v639 = vadd.f32 %v637, %v638
        %v640 = vsel %vm614, %v563, 0.0
        %v641 = vadd.f32 %v639, %v640
        %v642 = vsel %vm614, %v564, 0.0
        %v643 = vadd.f32 %v641, %v642
        %v644 = vsel %vm614, %v565, 0.0
        %v645 = vadd.f32 %v643, %v644
        %v646 = vsel %vm614, %v566, 0.0
        %v647 = vadd.f32 %v645, %v646
        %v648 = vsel %vm614, %v567, 0.0
        %v649 = vadd.f32 %v647, %v648
        %v650 = vsel %vm614, %v568, 0.0
        %v651 = vadd.f32 %v649, %v650
        %v652 = vsel %vm614, %v569, 0.0
        %v653 = vadd.f32 %v651, %v652
        %v654 = vsel %vm614, %v570, 0.0
        %v655 = vadd.f32 %v653, %v654
        %v656 = vsel %vm614, %v571, 0.0
        %v657 = vadd.f32 %v655, %v656
        %v658 = vsel %vm614, %v572, 0.0
        %v659 = vadd.f32 %v657, %v658
        %v660 = vsel %vm614, %v573, 0.0
        %v661 = vadd.f32 %v659, %v660
        %v662 = vsel %vm614, %v574, 0.0
        %v663 = vadd.f32 %v661, %v662
        %v664 = vsel %vm614, %v575, 0.0
        %v665 = vadd.f32 %v663, %v664
        %v666 = vsel %vm614, %v576, 0.0
        %v667 = vadd.f32 %v665, %v666
        %v668 = vsel %vm614, %v577, 0.0
        %v669 = vadd.f32 %v667, %v668
        %v670 = vsel %vm614, %v578, 0.0
        %v671 = vadd.f32 %v669, %v670
        %v672 = vsel %vm614, %v579, 0.0
        %v673 = vadd.f32 %v671, %v672
        %v674 = vsel %vm614, %v580, 0.0
        %v675 = vadd.f32 %v673, %v674
        %v676 = vsel %vm614, %v581, 0.0
        %v677 = vadd.f32 %v675, %v676
        %v678 = vsel %vm614, %v582, 0.0
        %v679 = vadd.f32 %v677, %v678
        %v680 = vsel %vm614, %v583, 0.0
        %v681 = vadd.f32 %v679, %v680
        %v682 = vsel %vm614, %v584, 0.0
        %v683 = vadd.f32 %v681, %v682
        %v684 = vsel %vm614, %v585, 0.0
        %v685 = vadd.f32 %v683, %v684
        %v686 = vsel %vm614, %v586, 0.0
        %v687 = vadd.f32 %v685, %v686
        %v688 = vsel %vm614, %v587, 0.0
        %v689 = vadd.f32 %v687, %v688
        %v690 = vsel %vm614, %v588, 0.0
        %v691 = vadd.f32 %v689, %v690
        %v692 = vsel %vm614, %v589, 0.0
        %v693 = vadd.f32 %v691, %v692
        %v694 = vsel %vm614, %v590, 0.0
        %v695 = vadd.f32 %v693, %v694
        %v696 = vsel %vm614, %v591, 0.0
        %v697 = vadd.f32 %v695, %v696
        %v698 = vsel %vm614, %v592, 0.0
        %v699 = vadd.f32 %v697, %v698
        %v700 = vsel %vm614, %v593, 0.0
        %v701 = vadd.f32 %v699, %v700
        %v702 = vsel %vm614, %v594, 0.0
        %v703 = vadd.f32 %v701, %v702
        %v704 = vsel %vm614, %v595, 0.0
        %v705 = vadd.f32 %v703, %v704
        %v706 = vsel %vm614, %v596, 0.0
        %v707 = vadd.f32 %v705, %v706
        %v708 = vsel %vm614, %v597, 0.0
        %v709 = vadd.f32 %v707, %v708
        %v710 = vsel %vm614, %v598, 0.0
        %v711 = vadd.f32 %v709, %v710
        %v712 = vsel %vm614, %v599, 0.0
        %v713 = vadd.f32 %v711, %v712
        %v714 = vsel %vm614, %v600, 0.0
        %v715 = vadd.f32 %v713, %v714
        %v716 = vsel %vm614, %v601, 0.0
        %v717 = vadd.f32 %v715, %v716
        %v718 = vsel %vm614, %v602, 0.0
        %v719 = vadd.f32 %v717, %v718
        %v720 = vsel %vm614, %v603, 0.0
        %v721 = vadd.f32 %v719, %v720
        %v722 = vsel %vm614, %v604, 0.0
        %v723 = vadd.f32 %v721, %v722
        %v724 = vsel %vm614, %v605, 0.0
        %v725 = vadd.f32 %v723, %v724
        %v726 = vsel %vm614, %v606, 0.0
        %v727 = vadd.f32 %v725, %v726
        %v728 = vsel %vm614, %v607, 0.0
        %v729 = vadd.f32 %v727, %v728
        %v730 = vsel %vm614, %v608, 0.0
        %v731 = vadd.f32 %v729, %v730
        %v732 = vsel %vm614, %v609, 0.0
        %v733 = vadd.f32 %v731, %v732
        %v734 = vsel %vm614, %v610, 0.0
        %v735 = vadd.f32 %v733, %v734
        %v736 = vsel %vm614, %v611, 0.0
        %v737 = vadd.f32 %v735, %v736
        %v738 = vsel %vm614, %v612, 0.0
        %v739 = vadd.f32 %v737, %v738
        %v740 = vsel %vm614, %v613, 0.0
        %v741 = vadd.f32 %v739, %v740
        %742 = vadd.xlane.f32.xlu0 %v741
        %v743 = vpop.xlane.xlu0 %742
        %v744 = vrot.slane %v743, 4
        %v745 = vadd.f32 %v743, %v744
        %v746 = vrot.slane %v745, 2
        %v747 = vadd.f32 %v745, %v746
        %v748 = vrot.slane %v747, 1
        %v749 = vadd.f32 %v747, %v748
        %s750 = vtos %v749
        %v751 = vrcp.pop 2048.0
        %s752 = vtos %v751
        %s753 = smul.f32 %s750, %s752
        %v754 = vstv %s753
        %v755 = vrsqrt.pop %v754
        %v756 = vmul.f32 %v754, %v755
        %vm757 = vcmp.eq.f32.partialorder %v754, inf
        %v758 = vsel %vm757, %v754, %v756
        %vm759 = vcmp.eq.f32.partialorder %v754, 0.0
        %v760 = vand.u32 %v754, 2147483648
        %v761 = vsel %vm759, %v760, %v758
        %s762 = vtos %v761
        %v763 = vstv %s762
        %764 = vst [vmem:[%s484] sm:$0x1] %v763
        %v765 = vstv %s753
        %v766 = vrsqrt.pop %v765
        %s767 = vtos %v766
        %768 = vst.msk [vmem:[#allocation2] sm:$0xff] %vm614, 0.0
        %769 = vst.msk [vmem:[#allocation2 + $0x8] sm:$0xff] %vm614, 0.0
        %vm770 = vcmask 25600
        %771 = vst.msk [vmem:[#allocation2 + $0x10] sm:$0x3] %vm770, 0.0
        %772 = vst.msk [vmem:[#allocation2 + $0x18] sm:$0xff] %vm614, 0.0
        %773 = vst.msk [vmem:[#allocation2 + $0x20] sm:$0xff] %vm614, 0.0
        %774 = vst.msk [vmem:[#allocation2 + $0x28] sm:$0x3] %vm770, 0.0
        %775 = vst.msk [vmem:[#allocation2 + $0x30] sm:$0xff] %vm614, 0.0
        %776 = vst.msk [vmem:[#allocation2 + $0x38] sm:$0xff] %vm614, 0.0
        %777 = vst.msk [vmem:[#allocation2 + $0x40] sm:$0x3] %vm770, 0.0
        %778 = vst.msk [vmem:[#allocation2 + $0x48] sm:$0xff] %vm614, 0.0
        %779 = vst.msk [vmem:[#allocation2 + $0x50] sm:$0xff] %vm614, 0.0
        %780 = vst.msk [vmem:[#allocation2 + $0x58] sm:$0x3] %vm770, 0.0
        %781 = vst.msk [vmem:[#allocation2 + $0x60] sm:$0xff] %vm614, 0.0
        %782 = vst.msk [vmem:[#allocation2 + $0x68] sm:$0xff] %vm614, 0.0
        %783 = vst.msk [vmem:[#allocation2 + $0x70] sm:$0x3] %vm770, 0.0
        %784 = vst.msk [vmem:[#allocation2 + $0x78] sm:$0xff] %vm614, 0.0
        %785 = vst.msk [vmem:[#allocation2 + $0x80] sm:$0xff] %vm614, 0.0
        %786 = vst.msk [vmem:[#allocation2 + $0x88] sm:$0x3] %vm770, 0.0
        %787 = vst.msk [vmem:[#allocation2 + $0x90] sm:$0xff] %vm614, 0.0
        %788 = vst.msk [vmem:[#allocation2 + $0x98] sm:$0xff] %vm614, 0.0
        %789 = vst.msk [vmem:[#allocation2 + $0xa0] sm:$0x3] %vm770, 0.0
        %790 = vst.msk [vmem:[#allocation2 + $0xa8] sm:$0xff] %vm614, 0.0
        %791 = vst.msk [vmem:[#allocation2 + $0xb0] sm:$0xff] %vm614, 0.0
        %792 = vst.msk [vmem:[#allocation2 + $0xb8] sm:$0x3] %vm770, 0.0
        %793 = vst.msk [vmem:[#allocation2 + $0xc0] sm:$0xff] %vm614, 0.0
        %794 = vst.msk [vmem:[#allocation2 + $0xc8] sm:$0xff] %vm614, 0.0
        %795 = vst.msk [vmem:[#allocation2 + $0xd0] sm:$0x3] %vm770, 0.0
        %796 = vst.msk [vmem:[#allocation2 + $0xd8] sm:$0xff] %vm614, 0.0
        %797 = vst.msk [vmem:[#allocation2 + $0xe0] sm:$0xff] %vm614, 0.0
        %798 = vst.msk [vmem:[#allocation2 + $0xe8] sm:$0x3] %vm770, 0.0
        %799 = vst.msk [vmem:[#allocation2 + $0xf0] sm:$0xff] %vm614, 0.0
        %800 = vst.msk [vmem:[#allocation2 + $0xf8] sm:$0xff] %vm614, 0.0
        %801 = vst.msk [vmem:[#allocation2 + $0x100] sm:$0x3] %vm770, 0.0
        %802 = vst.msk [vmem:[#allocation2 + $0x108] sm:$0xff] %vm614, 0.0
        %803 = vst.msk [vmem:[#allocation2 + $0x110] sm:$0xff] %vm614, 0.0
        %804 = vst.msk [vmem:[#allocation2 + $0x118] sm:$0x3] %vm770, 0.0
        %805 = vst.msk [vmem:[#allocation2 + $0x120] sm:$0xff] %vm614, 0.0
        %806 = vst.msk [vmem:[#allocation2 + $0x128] sm:$0xff] %vm614, 0.0
        %807 = vst.msk [vmem:[#allocation2 + $0x130] sm:$0x3] %vm770, 0.0
        %808 = vst.msk [vmem:[#allocation2 + $0x138] sm:$0xff] %vm614, 0.0
        %809 = vst.msk [vmem:[#allocation2 + $0x140] sm:$0xff] %vm614, 0.0
        %810 = vst.msk [vmem:[#allocation2 + $0x148] sm:$0x3] %vm770, 0.0
        %811 = vst.msk [vmem:[#allocation2 + $0x150] sm:$0xff] %vm614, 0.0
        %812 = vst.msk [vmem:[#allocation2 + $0x158] sm:$0xff] %vm614, 0.0
        %813 = vst.msk [vmem:[#allocation2 + $0x160] sm:$0x3] %vm770, 0.0
        %814 = vst.msk [vmem:[#allocation2 + $0x168] sm:$0xff] %vm614, 0.0
        %815 = vst.msk [vmem:[#allocation2 + $0x170] sm:$0xff] %vm614, 0.0
        %816 = vst.msk [vmem:[#allocation2 + $0x178] sm:$0x3] %vm770, 0.0
        %817 = vst.msk [vmem:[#allocation2 + $0x180] sm:$0xff] %vm614, 0.0
        %818 = vst.msk [vmem:[#allocation2 + $0x188] sm:$0xff] %vm614, 0.0
        %819 = vst.msk [vmem:[#allocation2 + $0x190] sm:$0x3] %vm770, 0.0
        %820 = vst.msk [vmem:[#allocation2 + $0x198] sm:$0xff] %vm614, 0.0
        %821 = vst.msk [vmem:[#allocation2 + $0x1a0] sm:$0xff] %vm614, 0.0
        %822 = vst.msk [vmem:[#allocation2 + $0x1a8] sm:$0x3] %vm770, 0.0
        %vm823 = vcmask 261120
        %824 = vst.msk [vmem:[#allocation3] sm:$0xff] %vm823, 0.0
        %825 = vst.msk [vmem:[#allocation3 + $0x8] sm:$0xff] %vm823, 0.0
        %vm826 = vcmask 254976
        %827 = vst.msk [vmem:[#allocation3 + $0x10] sm:$0x3] %vm826, 0.0
        %828 = vst.msk [vmem:[#allocation3 + $0x18] sm:$0xff] %vm823, 0.0
        %829 = vst.msk [vmem:[#allocation3 + $0x20] sm:$0xff] %vm823, 0.0
        %830 = vst.msk [vmem:[#allocation3 + $0x28] sm:$0x3] %vm826, 0.0
        %831 = vst.msk [vmem:[#allocation3 + $0x30] sm:$0xff] %vm823, 0.0
        %832 = vst.msk [vmem:[#allocation3 + $0x38] sm:$0xff] %vm823, 0.0
        %833 = vst.msk [vmem:[#allocation3 + $0x40] sm:$0x3] %vm826, 0.0
        %834 = vst.msk [vmem:[#allocation3 + $0x48] sm:$0xff] %vm823, 0.0
        %835 = vst.msk [vmem:[#allocation3 + $0x50] sm:$0xff] %vm823, 0.0
        %836 = vst.msk [vmem:[#allocation3 + $0x58] sm:$0x3] %vm826, 0.0
        %837 = vst.msk [vmem:[#allocation3 + $0x60] sm:$0xff] %vm823, 0.0
        %838 = vst.msk [vmem:[#allocation3 + $0x68] sm:$0xff] %vm823, 0.0
        %839 = vst.msk [vmem:[#allocation3 + $0x70] sm:$0x3] %vm826, 0.0
        %840 = vst.msk [vmem:[#allocation3 + $0x78] sm:$0xff] %vm823, 0.0
        %841 = vst.msk [vmem:[#allocation3 + $0x80] sm:$0xff] %vm823, 0.0
        %842 = vst.msk [vmem:[#allocation3 + $0x88] sm:$0x3] %vm826, 0.0
        %843 = vst.msk [vmem:[#allocation3 + $0x90] sm:$0xff] %vm823, 0.0
        %844 = vst.msk [vmem:[#allocation3 + $0x98] sm:$0xff] %vm823, 0.0
        %845 = vst.msk [vmem:[#allocation3 + $0xa0] sm:$0x3] %vm826, 0.0
        %846 = vst.msk [vmem:[#allocation3 + $0xa8] sm:$0xff] %vm823, 0.0
        %847 = vst.msk [vmem:[#allocation3 + $0xb0] sm:$0xff] %vm823, 0.0
        %848 = vst.msk [vmem:[#allocation3 + $0xb8] sm:$0x3] %vm826, 0.0
        %849 = vst.msk [vmem:[#allocation3 + $0xc0] sm:$0xff] %vm823, 0.0
        %850 = vst.msk [vmem:[#allocation3 + $0xc8] sm:$0xff] %vm823, 0.0
        %851 = vst.msk [vmem:[#allocation3 + $0xd0] sm:$0x3] %vm826, 0.0
        %852 = vst.msk [vmem:[#allocation3 + $0xd8] sm:$0xff] %vm823, 0.0
        %853 = vst.msk [vmem:[#allocation3 + $0xe0] sm:$0xff] %vm823, 0.0
        %854 = vst.msk [vmem:[#allocation3 + $0xe8] sm:$0x3] %vm826, 0.0
        %855 = vst.msk [vmem:[#allocation3 + $0xf0] sm:$0xff] %vm823, 0.0
        %856 = vst.msk [vmem:[#allocation3 + $0xf8] sm:$0xff] %vm823, 0.0
        %857 = vst.msk [vmem:[#allocation3 + $0x100] sm:$0x3] %vm826, 0.0
        %858 = vst.msk [vmem:[#allocation3 + $0x108] sm:$0xff] %vm823, 0.0
        %859 = vst.msk [vmem:[#allocation3 + $0x110] sm:$0xff] %vm823, 0.0
        %860 = vst.msk [vmem:[#allocation3 + $0x118] sm:$0x3] %vm826, 0.0
        %861 = vst.msk [vmem:[#allocation3 + $0x120] sm:$0xff] %vm823, 0.0
        %862 = vst.msk [vmem:[#allocation3 + $0x128] sm:$0xff] %vm823, 0.0
        %863 = vst.msk [vmem:[#allocation3 + $0x130] sm:$0x3] %vm826, 0.0
        %864 = vst.msk [vmem:[#allocation3 + $0x138] sm:$0xff] %vm823, 0.0
        %865 = vst.msk [vmem:[#allocation3 + $0x140] sm:$0xff] %vm823, 0.0
        %866 = vst.msk [vmem:[#allocation3 + $0x148] sm:$0x3] %vm826, 0.0
        %867 = vst.msk [vmem:[#allocation3 + $0x150] sm:$0xff] %vm823, 0.0
        %868 = vst.msk [vmem:[#allocation3 + $0x158] sm:$0xff] %vm823, 0.0
        %869 = vst.msk [vmem:[#allocation3 + $0x160] sm:$0x3] %vm826, 0.0
        %870 = vst.msk [vmem:[#allocation3 + $0x168] sm:$0xff] %vm823, 0.0
        %871 = vst.msk [vmem:[#allocation3 + $0x170] sm:$0xff] %vm823, 0.0
        %872 = vst.msk [vmem:[#allocation3 + $0x178] sm:$0x3] %vm826, 0.0
        %873 = vst.msk [vmem:[#allocation3 + $0x180] sm:$0xff] %vm823, 0.0
        %874 = vst.msk [vmem:[#allocation3 + $0x188] sm:$0xff] %vm823, 0.0
        %875 = vst.msk [vmem:[#allocation3 + $0x190] sm:$0x3] %vm826, 0.0
        %876 = vst.msk [vmem:[#allocation3 + $0x198] sm:$0xff] %vm823, 0.0
        %877 = vst.msk [vmem:[#allocation3 + $0x1a0] sm:$0xff] %vm823, 0.0
        %878 = vst.msk [vmem:[#allocation3 + $0x1a8] sm:$0x3] %vm826, 0.0
        %s879 = smul.u32 %s33, 256
        %s880 = scalar_lea.vmem %s0, %s879
        %v881 = vld [vmem:[%s880] sm:$0xff]
        %v882 = vld [vmem:[%s880 + $0x8] sm:$0xff]
        %v883 = vld [vmem:[%s880 + $0x10] sm:$0xff]
        %v884 = vld [vmem:[%s880 + $0x18] sm:$0xff]
        %v885 = vld [vmem:[%s880 + $0x20] sm:$0xff]
        %v886 = vld [vmem:[%s880 + $0x28] sm:$0xff]
        %v887 = vld [vmem:[%s880 + $0x30] sm:$0xff]
        %v888 = vld [vmem:[%s880 + $0x38] sm:$0xff]
        %v889 = vld [vmem:[%s880 + $0x40] sm:$0xff]
        %v890 = vld [vmem:[%s880 + $0x48] sm:$0xff]
        %v891 = vld [vmem:[%s880 + $0x50] sm:$0xff]
        %v892 = vld [vmem:[%s880 + $0x58] sm:$0xff]
        %v893 = vld [vmem:[%s880 + $0x60] sm:$0xff]
        %v894 = vld [vmem:[%s880 + $0x68] sm:$0xff]
        %v895 = vld [vmem:[%s880 + $0x70] sm:$0xff]
        %v896 = vld [vmem:[%s880 + $0x78] sm:$0xff]
        %v897 = vld [vmem:[%s880 + $0x80] sm:$0xff]
        %v898 = vld [vmem:[%s880 + $0x88] sm:$0xff]
        %v899 = vld [vmem:[%s880 + $0x90] sm:$0xff]
        %v900 = vld [vmem:[%s880 + $0x98] sm:$0xff]
        %v901 = vld [vmem:[%s880 + $0xa0] sm:$0xff]
        %v902 = vld [vmem:[%s880 + $0xa8] sm:$0xff]
        %v903 = vld [vmem:[%s880 + $0xb0] sm:$0xff]
        %v904 = vld [vmem:[%s880 + $0xb8] sm:$0xff]
        %v905 = vld [vmem:[%s880 + $0xc0] sm:$0xff]
        %v906 = vld [vmem:[%s880 + $0xc8] sm:$0xff]
        %v907 = vld [vmem:[%s880 + $0xd0] sm:$0xff]
        %v908 = vld [vmem:[%s880 + $0xd8] sm:$0xff]
        %v909 = vld [vmem:[%s880 + $0xe0] sm:$0xff]
        %v910 = vld [vmem:[%s880 + $0xe8] sm:$0xff]
        %v911 = vld [vmem:[%s880 + $0xf0] sm:$0xff]
        %v912 = vld [vmem:[%s880 + $0xf8] sm:$0xff]
        %v913 = vstv %s767
        %v914 = vmul.f32 %v881, %v913
        %v915 = vmul.f32 %v882, %v913
        %v916 = vmul.f32 %v883, %v913
        %v917 = vmul.f32 %v884, %v913
        %v918 = vmul.f32 %v885, %v913
        %v919 = vmul.f32 %v886, %v913
        %v920 = vmul.f32 %v887, %v913
        %v921 = vmul.f32 %v888, %v913
        %v922 = vmul.f32 %v889, %v913
        %v923 = vmul.f32 %v890, %v913
        %v924 = vmul.f32 %v891, %v913
        %v925 = vmul.f32 %v892, %v913
        %v926 = vmul.f32 %v893, %v913
        %v927 = vmul.f32 %v894, %v913
        %v928 = vmul.f32 %v895, %v913
        %v929 = vmul.f32 %v896, %v913
        %v930 = vmul.f32 %v897, %v913
        %v931 = vmul.f32 %v898, %v913
        %v932 = vmul.f32 %v899, %v913
        %v933 = vmul.f32 %v900, %v913
        %v934 = vmul.f32 %v901, %v913
        %v935 = vmul.f32 %v902, %v913
        %v936 = vmul.f32 %v903, %v913
        %v937 = vmul.f32 %v904, %v913
        %v938 = vmul.f32 %v905, %v913
        %v939 = vmul.f32 %v906, %v913
        %v940 = vmul.f32 %v907, %v913
        %v941 = vmul.f32 %v908, %v913
        %v942 = vmul.f32 %v909, %v913
        %v943 = vmul.f32 %v910, %v913
        %v944 = vmul.f32 %v911, %v913
        %v945 = vmul.f32 %v912, %v913
        %s946 = scalar_lea.vmem [#allocation2], 24
        %947 = vst.msk [vmem:[%s946 + $0x1] sm:$0xff] %vm614, %v914
        %948 = vst.msk [vmem:[%s946 + $0x9] sm:$0xff] %vm614, %v915
        %949 = vst.msk [vmem:[%s946 + $0x19] sm:$0xff] %vm614, %v916
        %950 = vst.msk [vmem:[%s946 + $0x21] sm:$0xff] %vm614, %v917
        %951 = vst.msk [vmem:[%s946 + $0x31] sm:$0xff] %vm614, %v918
        %952 = vst.msk [vmem:[%s946 + $0x39] sm:$0xff] %vm614, %v919
        %953 = vst.msk [vmem:[%s946 + $0x49] sm:$0xff] %vm614, %v920
        %954 = vst.msk [vmem:[%s946 + $0x51] sm:$0xff] %vm614, %v921
        %955 = vst.msk [vmem:[%s946 + $0x61] sm:$0xff] %vm614, %v922
        %956 = vst.msk [vmem:[%s946 + $0x69] sm:$0xff] %vm614, %v923
        %957 = vst.msk [vmem:[%s946 + $0x79] sm:$0xff] %vm614, %v924
        %958 = vst.msk [vmem:[%s946 + $0x81] sm:$0xff] %vm614, %v925
        %959 = vst.msk [vmem:[%s946 + $0x91] sm:$0xff] %vm614, %v926
        %960 = vst.msk [vmem:[%s946 + $0x99] sm:$0xff] %vm614, %v927
        %961 = vst.msk [vmem:[%s946 + $0xa9] sm:$0xff] %vm614, %v928
        %962 = vst.msk [vmem:[%s946 + $0xb1] sm:$0xff] %vm614, %v929
        %963 = vst.msk [vmem:[%s946 + $0xc1] sm:$0xff] %vm614, %v930
        %964 = vst.msk [vmem:[%s946 + $0xc9] sm:$0xff] %vm614, %v931
        %965 = vst.msk [vmem:[%s946 + $0xd9] sm:$0xff] %vm614, %v932
        %966 = vst.msk [vmem:[%s946 + $0xe1] sm:$0xff] %vm614, %v933
        %967 = vst.msk [vmem:[%s946 + $0xf1] sm:$0xff] %vm614, %v934
        %968 = vst.msk [vmem:[%s946 + $0xf9] sm:$0xff] %vm614, %v935
        %969 = vst.msk [vmem:[%s946 + $0x109] sm:$0xff] %vm614, %v936
        %970 = vst.msk [vmem:[%s946 + $0x111] sm:$0xff] %vm614, %v937
        %971 = vst.msk [vmem:[%s946 + $0x121] sm:$0xff] %vm614, %v938
        %972 = vst.msk [vmem:[%s946 + $0x129] sm:$0xff] %vm614, %v939
        %973 = vst.msk [vmem:[%s946 + $0x139] sm:$0xff] %vm614, %v940
        %974 = vst.msk [vmem:[%s946 + $0x141] sm:$0xff] %vm614, %v941
        %975 = vst.msk [vmem:[%s946 + $0x151] sm:$0xff] %vm614, %v942
        %976 = vst.msk [vmem:[%s946 + $0x159] sm:$0xff] %vm614, %v943
        %977 = vst.msk [vmem:[%s946 + $0x169] sm:$0xff] %vm614, %v944
        %978 = vst.msk [vmem:[%s946 + $0x171] sm:$0xff] %vm614, %v945
        %v979 = vld [vmem:[%s476] sm:$0xff]
        %v980 = vld [vmem:[%s476 + $0x8] sm:$0xff]
        %v981 = vld [vmem:[%s476 + $0x10] sm:$0xff]
        %v982 = vld [vmem:[%s476 + $0x18] sm:$0xff]
        %v983 = vld [vmem:[%s476 + $0x20] sm:$0xff]
        %v984 = vld [vmem:[%s476 + $0x28] sm:$0xff]
        %v985 = vld [vmem:[%s476 + $0x30] sm:$0xff]
        %v986 = vld [vmem:[%s476 + $0x38] sm:$0xff]
        %v987 = vld [vmem:[%s476 + $0x40] sm:$0xff]
        %v988 = vld [vmem:[%s476 + $0x48] sm:$0xff]
        %v989 = vld [vmem:[%s476 + $0x50] sm:$0xff]
        %v990 = vld [vmem:[%s476 + $0x58] sm:$0xff]
        %v991 = vld [vmem:[%s476 + $0x60] sm:$0xff]
        %v992 = vld [vmem:[%s476 + $0x68] sm:$0xff]
        %v993 = vld [vmem:[%s476 + $0x70] sm:$0xff]
        %v994 = vld [vmem:[%s476 + $0x78] sm:$0xff]
        %v995 = vld [vmem:[%s476 + $0x80] sm:$0xff]
        %v996 = vld [vmem:[%s476 + $0x88] sm:$0xff]
        %v997 = vld [vmem:[%s476 + $0x90] sm:$0xff]
        %v998 = vld [vmem:[%s476 + $0x98] sm:$0xff]
        %v999 = vld [vmem:[%s476 + $0xa0] sm:$0xff]
        %v1000 = vld [vmem:[%s476 + $0xa8] sm:$0xff]
        %v1001 = vld [vmem:[%s476 + $0xb0] sm:$0xff]
        %v1002 = vld [vmem:[%s476 + $0xb8] sm:$0xff]
        %v1003 = vld [vmem:[%s476 + $0xc0] sm:$0xff]
        %v1004 = vld [vmem:[%s476 + $0xc8] sm:$0xff]
        %v1005 = vld [vmem:[%s476 + $0xd0] sm:$0xff]
        %v1006 = vld [vmem:[%s476 + $0xd8] sm:$0xff]
        %v1007 = vld [vmem:[%s476 + $0xe0] sm:$0xff]
        %v1008 = vld [vmem:[%s476 + $0xe8] sm:$0xff]
        %v1009 = vld [vmem:[%s476 + $0xf0] sm:$0xff]
        %v1010 = vld [vmem:[%s476 + $0xf8] sm:$0xff]
        %s1011 = scalar_lea.vmem [#allocation3], 24
        %1012 = vst.msk [vmem:[%s1011 + $0x1] sm:$0xff] %vm823, %v979
        %1013 = vst.msk [vmem:[%s1011 + $0x9] sm:$0xff] %vm823, %v980
        %1014 = vst.msk [vmem:[%s1011 + $0x19] sm:$0xff] %vm823, %v981
        %1015 = vst.msk [vmem:[%s1011 + $0x21] sm:$0xff] %vm823, %v982
        %1016 = vst.msk [vmem:[%s1011 + $0x31] sm:$0xff] %vm823, %v983
        %1017 = vst.msk [vmem:[%s1011 + $0x39] sm:$0xff] %vm823, %v984
        %1018 = vst.msk [vmem:[%s1011 + $0x49] sm:$0xff] %vm823, %v985
        %1019 = vst.msk [vmem:[%s1011 + $0x51] sm:$0xff] %vm823, %v986
        %1020 = vst.msk [vmem:[%s1011 + $0x61] sm:$0xff] %vm823, %v987
        %1021 = vst.msk [vmem:[%s1011 + $0x69] sm:$0xff] %vm823, %v988
        %1022 = vst.msk [vmem:[%s1011 + $0x79] sm:$0xff] %vm823, %v989
        %1023 = vst.msk [vmem:[%s1011 + $0x81] sm:$0xff] %vm823, %v990
        %1024 = vst.msk [vmem:[%s1011 + $0x91] sm:$0xff] %vm823, %v991
        %1025 = vst.msk [vmem:[%s1011 + $0x99] sm:$0xff] %vm823, %v992
        %1026 = vst.msk [vmem:[%s1011 + $0xa9] sm:$0xff] %vm823, %v993
        %1027 = vst.msk [vmem:[%s1011 + $0xb1] sm:$0xff] %vm823, %v994
        %1028 = vst.msk [vmem:[%s1011 + $0xc1] sm:$0xff] %vm823, %v995
        %1029 = vst.msk [vmem:[%s1011 + $0xc9] sm:$0xff] %vm823, %v996
        %1030 = vst.msk [vmem:[%s1011 + $0xd9] sm:$0xff] %vm823, %v997
        %1031 = vst.msk [vmem:[%s1011 + $0xe1] sm:$0xff] %vm823, %v998
        %1032 = vst.msk [vmem:[%s1011 + $0xf1] sm:$0xff] %vm823, %v999
        %1033 = vst.msk [vmem:[%s1011 + $0xf9] sm:$0xff] %vm823, %v1000
        %1034 = vst.msk [vmem:[%s1011 + $0x109] sm:$0xff] %vm823, %v1001
        %1035 = vst.msk [vmem:[%s1011 + $0x111] sm:$0xff] %vm823, %v1002
        %1036 = vst.msk [vmem:[%s1011 + $0x121] sm:$0xff] %vm823, %v1003
        %1037 = vst.msk [vmem:[%s1011 + $0x129] sm:$0xff] %vm823, %v1004
        %1038 = vst.msk [vmem:[%s1011 + $0x139] sm:$0xff] %vm823, %v1005
        %1039 = vst.msk [vmem:[%s1011 + $0x141] sm:$0xff] %vm823, %v1006
        %1040 = vst.msk [vmem:[%s1011 + $0x151] sm:$0xff] %vm823, %v1007
        %1041 = vst.msk [vmem:[%s1011 + $0x159] sm:$0xff] %vm823, %v1008
        %1042 = vst.msk [vmem:[%s1011 + $0x169] sm:$0xff] %vm823, %v1009
        %1043 = vst.msk [vmem:[%s1011 + $0x171] sm:$0xff] %vm823, %v1010
        %v1044 = vld [vmem:[%s5] sm:$0x1]
        %v1046 = vlaneseq
        %v1047 = vshrl.u32 %v1046, 7
        %v1048 = vsub.s32 0, %v1047
        %v1049 = vrot.slane %v1044, %v1048
        %1051 = vst [vmem:[#allocation4] sm:$0xff] %v1049
        %1052 = vst [vmem:[#allocation4 + $0x8] sm:$0xff] %v1049
        %1053 = vst [vmem:[#allocation4 + $0x10] sm:$0xff] %v1049
        %1054 = vst [vmem:[#allocation4 + $0x18] sm:$0xff] %v1049
        %1055 = vst [vmem:[#allocation4 + $0x20] sm:$0xff] %v1049
        %1056 = vst [vmem:[#allocation4 + $0x28] sm:$0xff] %v1049
        %1057 = vst [vmem:[#allocation4 + $0x30] sm:$0xff] %v1049
        %1058 = vst [vmem:[#allocation4 + $0x38] sm:$0xff] %v1049
        %1059 = vst [vmem:[#allocation4 + $0x40] sm:$0xff] %v1049
        %1060 = vst [vmem:[#allocation4 + $0x48] sm:$0xff] %v1049
        %1061 = vst [vmem:[#allocation4 + $0x50] sm:$0xff] %v1049
        %1062 = vst [vmem:[#allocation4 + $0x58] sm:$0xff] %v1049
        %1063 = vst [vmem:[#allocation4 + $0x60] sm:$0xff] %v1049
        %1064 = vst [vmem:[#allocation4 + $0x68] sm:$0xff] %v1049
        %1065 = vst [vmem:[#allocation4 + $0x70] sm:$0xff] %v1049
        %1066 = vst [vmem:[#allocation4 + $0x78] sm:$0xff] %v1049
        %1067 = vst [vmem:[#allocation4 + $0x80] sm:$0xff] %v1049
        %1068 = vst [vmem:[#allocation4 + $0x88] sm:$0xff] %v1049
        %1069 = vst [vmem:[#allocation4 + $0x90] sm:$0xff] %v1049
        %1070 = vst [vmem:[#allocation4 + $0x98] sm:$0xff] %v1049
        %1071 = vst [vmem:[#allocation4 + $0xa0] sm:$0xff] %v1049
        %1072 = vst [vmem:[#allocation4 + $0xa8] sm:$0xff] %v1049
        %1073 = vst [vmem:[#allocation4 + $0xb0] sm:$0xff] %v1049
        %1074 = vst [vmem:[#allocation4 + $0xb8] sm:$0xff] %v1049
        %1075 = vst [vmem:[#allocation4 + $0xc0] sm:$0xff] %v1049
        %1076 = vst [vmem:[#allocation4 + $0xc8] sm:$0xff] %v1049
        %1077 = vst [vmem:[#allocation4 + $0xd0] sm:$0xff] %v1049
        %1078 = vst [vmem:[#allocation4 + $0xd8] sm:$0xff] %v1049
        %1079 = vst [vmem:[#allocation4 + $0xe0] sm:$0xff] %v1049
        %1080 = vst [vmem:[#allocation4 + $0xe8] sm:$0xff] %v1049
        %1081 = vst [vmem:[#allocation4 + $0xf0] sm:$0xff] %v1049
        %1082 = vst [vmem:[#allocation4 + $0xf8] sm:$0xff] %v1049
        %v1083 = vld [vmem:[#allocation2] sm:$0xff]
        %v1084 = vld [vmem:[#allocation2 + $0x8] sm:$0xff]
        %v1085 = vld [vmem:[#allocation2 + $0x18] sm:$0xff]
        %v1086 = vld [vmem:[#allocation2 + $0x20] sm:$0xff]
        %v1087 = vld [vmem:[#allocation2 + $0x30] sm:$0xff]
        %v1088 = vld [vmem:[#allocation2 + $0x38] sm:$0xff]
        %v1089 = vld [vmem:[#allocation2 + $0x48] sm:$0xff]
        %v1090 = vld [vmem:[#allocation2 + $0x50] sm:$0xff]
        %v1091 = vld [vmem:[#allocation2 + $0x60] sm:$0xff]
        %v1092 = vld [vmem:[#allocation2 + $0x68] sm:$0xff]
        %v1093 = vld [vmem:[#allocation2 + $0x78] sm:$0xff]
        %v1094 = vld [vmem:[#allocation2 + $0x80] sm:$0xff]
        %v1095 = vld [vmem:[#allocation2 + $0x90] sm:$0xff]
        %v1096 = vld [vmem:[#allocation2 + $0x98] sm:$0xff]
        %v1097 = vld [vmem:[#allocation2 + $0xa8] sm:$0xff]
        %v1098 = vld [vmem:[#allocation2 + $0xb0] sm:$0xff]
        %v1099 = vld [vmem:[#allocation2 + $0xc0] sm:$0xff]
        %v1100 = vld [vmem:[#allocation2 + $0xc8] sm:$0xff]
        %v1101 = vld [vmem:[#allocation2 + $0xd8] sm:$0xff]
        %v1102 = vld [vmem:[#allocation2 + $0xe0] sm:$0xff]
        %v1103 = vld [vmem:[#allocation2 + $0xf0] sm:$0xff]
        %v1104 = vld [vmem:[#allocation2 + $0xf8] sm:$0xff]
        %v1105 = vld [vmem:[#allocation2 + $0x108] sm:$0xff]
        %v1106 = vld [vmem:[#allocation2 + $0x110] sm:$0xff]
        %v1107 = vld [vmem:[#allocation2 + $0x120] sm:$0xff]
        %v1108 = vld [vmem:[#allocation2 + $0x128] sm:$0xff]
        %v1109 = vld [vmem:[#allocation2 + $0x138] sm:$0xff]
        %v1110 = vld [vmem:[#allocation2 + $0x140] sm:$0xff]
        %v1111 = vld [vmem:[#allocation2 + $0x150] sm:$0xff]
        %v1112 = vld [vmem:[#allocation2 + $0x158] sm:$0xff]
        %v1113 = vld [vmem:[#allocation2 + $0x168] sm:$0xff]
        %v1114 = vld [vmem:[#allocation2 + $0x170] sm:$0xff]
        %v1115 = vpack.c.bf16 %v1084, %v1083
        %v1116 = vpack.c.bf16 %v1086, %v1085
        %v1117 = vpack.c.bf16 %v1088, %v1087
        %v1118 = vpack.c.bf16 %v1090, %v1089
        %v1119 = vpack.c.bf16 %v1092, %v1091
        %v1120 = vpack.c.bf16 %v1094, %v1093
        %v1121 = vpack.c.bf16 %v1096, %v1095
        %v1122 = vpack.c.bf16 %v1098, %v1097
        %v1123 = vpack.c.bf16 %v1100, %v1099
        %v1124 = vpack.c.bf16 %v1102, %v1101
        %v1125 = vpack.c.bf16 %v1104, %v1103
        %v1126 = vpack.c.bf16 %v1106, %v1105
        %v1127 = vpack.c.bf16 %v1108, %v1107
        %v1128 = vpack.c.bf16 %v1110, %v1109
        %v1129 = vpack.c.bf16 %v1112, %v1111
        %v1130 = vpack.c.bf16 %v1114, %v1113
        %v1131 = vld [vmem:[#allocation3] sm:$0xff]
        %v1132 = vld [vmem:[#allocation3 + $0x8] sm:$0xff]
        %v1133 = vld [vmem:[#allocation3 + $0x18] sm:$0xff]
        %v1134 = vld [vmem:[#allocation3 + $0x20] sm:$0xff]
        %v1135 = vld [vmem:[#allocation3 + $0x30] sm:$0xff]
        %v1136 = vld [vmem:[#allocation3 + $0x38] sm:$0xff]
        %v1137 = vld [vmem:[#allocation3 + $0x48] sm:$0xff]
        %v1138 = vld [vmem:[#allocation3 + $0x50] sm:$0xff]
        %v1139 = vld [vmem:[#allocation3 + $0x60] sm:$0xff]
        %v1140 = vld [vmem:[#allocation3 + $0x68] sm:$0xff]
        %v1141 = vld [vmem:[#allocation3 + $0x78] sm:$0xff]
        %v1142 = vld [vmem:[#allocation3 + $0x80] sm:$0xff]
        %v1143 = vld [vmem:[#allocation3 + $0x90] sm:$0xff]
        %v1144 = vld [vmem:[#allocation3 + $0x98] sm:$0xff]
        %v1145 = vld [vmem:[#allocation3 + $0xa8] sm:$0xff]
        %v1146 = vld [vmem:[#allocation3 + $0xb0] sm:$0xff]
        %v1147 = vld [vmem:[#allocation3 + $0xc0] sm:$0xff]
        %v1148 = vld [vmem:[#allocation3 + $0xc8] sm:$0xff]
        %v1149 = vld [vmem:[#allocation3 + $0xd8] sm:$0xff]
        %v1150 = vld [vmem:[#allocation3 + $0xe0] sm:$0xff]
        %v1151 = vld [vmem:[#allocation3 + $0xf0] sm:$0xff]
        %v1152 = vld [vmem:[#allocation3 + $0xf8] sm:$0xff]
        %v1153 = vld [vmem:[#allocation3 + $0x108] sm:$0xff]
        %v1154 = vld [vmem:[#allocation3 + $0x110] sm:$0xff]
        %v1155 = vld [vmem:[#allocation3 + $0x120] sm:$0xff]
        %v1156 = vld [vmem:[#allocation3 + $0x128] sm:$0xff]
        %v1157 = vld [vmem:[#allocation3 + $0x138] sm:$0xff]
        %v1158 = vld [vmem:[#allocation3 + $0x140] sm:$0xff]
        %v1159 = vld [vmem:[#allocation3 + $0x150] sm:$0xff]
        %v1160 = vld [vmem:[#allocation3 + $0x158] sm:$0xff]
        %v1161 = vld [vmem:[#allocation3 + $0x168] sm:$0xff]
        %v1162 = vld [vmem:[#allocation3 + $0x170] sm:$0xff]
        %v1163 = vpack.c.bf16 %v1132, %v1131
        %v1164 = vpack.c.bf16 %v1134, %v1133
        %v1165 = vpack.c.bf16 %v1136, %v1135
        %v1166 = vpack.c.bf16 %v1138, %v1137
        %v1167 = vpack.c.bf16 %v1140, %v1139
        %v1168 = vpack.c.bf16 %v1142, %v1141
        %v1169 = vpack.c.bf16 %v1144, %v1143
        %v1170 = vpack.c.bf16 %v1146, %v1145
        %v1171 = vpack.c.bf16 %v1148, %v1147
        %v1172 = vpack.c.bf16 %v1150, %v1149
        %v1173 = vpack.c.bf16 %v1152, %v1151
        %v1174 = vpack.c.bf16 %v1154, %v1153
        %v1175 = vpack.c.bf16 %v1156, %v1155
        %v1176 = vpack.c.bf16 %v1158, %v1157
        %v1177 = vpack.c.bf16 %v1160, %v1159
        %v1178 = vpack.c.bf16 %v1162, %v1161
        %v1179 = vld [vmem:[#allocation4] sm:$0xff]
        %v1180 = vld [vmem:[#allocation4 + $0x8] sm:$0xff]
        %v1181 = vld [vmem:[#allocation4 + $0x10] sm:$0xff]
        %v1182 = vld [vmem:[#allocation4 + $0x18] sm:$0xff]
        %v1183 = vld [vmem:[#allocation4 + $0x20] sm:$0xff]
        %v1184 = vld [vmem:[#allocation4 + $0x28] sm:$0xff]
        %v1185 = vld [vmem:[#allocation4 + $0x30] sm:$0xff]
        %v1186 = vld [vmem:[#allocation4 + $0x38] sm:$0xff]
        %v1187 = vld [vmem:[#allocation4 + $0x40] sm:$0xff]
        %v1188 = vld [vmem:[#allocation4 + $0x48] sm:$0xff]
        %v1189 = vld [vmem:[#allocation4 + $0x50] sm:$0xff]
        %v1190 = vld [vmem:[#allocation4 + $0x58] sm:$0xff]
        %v1191 = vld [vmem:[#allocation4 + $0x60] sm:$0xff]
        %v1192 = vld [vmem:[#allocation4 + $0x68] sm:$0xff]
        %v1193 = vld [vmem:[#allocation4 + $0x70] sm:$0xff]
        %v1194 = vld [vmem:[#allocation4 + $0x78] sm:$0xff]
        %v1195 = vld [vmem:[#allocation4 + $0x80] sm:$0xff]
        %v1196 = vld [vmem:[#allocation4 + $0x88] sm:$0xff]
        %v1197 = vld [vmem:[#allocation4 + $0x90] sm:$0xff]
        %v1198 = vld [vmem:[#allocation4 + $0x98] sm:$0xff]
        %v1199 = vld [vmem:[#allocation4 + $0xa0] sm:$0xff]
        %v1200 = vld [vmem:[#allocation4 + $0xa8] sm:$0xff]
        %v1201 = vld [vmem:[#allocation4 + $0xb0] sm:$0xff]
        %v1202 = vld [vmem:[#allocation4 + $0xb8] sm:$0xff]
        %v1203 = vld [vmem:[#allocation4 + $0xc0] sm:$0xff]
        %v1204 = vld [vmem:[#allocation4 + $0xc8] sm:$0xff]
        %v1205 = vld [vmem:[#allocation4 + $0xd0] sm:$0xff]
        %v1206 = vld [vmem:[#allocation4 + $0xd8] sm:$0xff]
        %v1207 = vld [vmem:[#allocation4 + $0xe0] sm:$0xff]
        %v1208 = vld [vmem:[#allocation4 + $0xe8] sm:$0xff]
        %v1209 = vld [vmem:[#allocation4 + $0xf0] sm:$0xff]
        %v1210 = vld [vmem:[#allocation4 + $0xf8] sm:$0xff]
        %v1211 = vld [vmem:[#allocation8] sm:$0x3]
        %v1212 = vld [vmem:[%s4] sm:$0xf]
        %v1213 = vld [vmem:[%s4 + $0x4] sm:$0xf]
        %v1214 = vld [vmem:[%s4 + $0x8] sm:$0xf]
        %v1215 = vld [vmem:[%s4 + $0xc] sm:$0xf]
        %v1220 = vunpack.c.l.b16 %v1212
        %v1221 = vunpack.c.l.b16 %v1213
        %v1222 = vunpack.c.l.b16 %v1214
        %v1223 = vunpack.c.l.b16 %v1215
        %v1224 = vpack.c.b16 %v1221, %v1220
        %v1225 = vpack.c.b16 %v1223, %v1222
        %v1229 = vsel %vm823, %v1163, 0
        %v1232 = vsel %vm823, %v1164, 0
        %v1235 = vsel %vm823, %v1165, 0
        %v1238 = vsel %vm823, %v1166, 0
        %v1241 = vsel %vm823, %v1167, 0
        %v1244 = vsel %vm823, %v1168, 0
        %v1247 = vsel %vm823, %v1169, 0
        %v1250 = vsel %vm823, %v1170, 0
        %v1253 = vsel %vm823, %v1171, 0
        %v1256 = vsel %vm823, %v1172, 0
        %v1259 = vsel %vm823, %v1173, 0
        %v1262 = vsel %vm823, %v1174, 0
        %v1265 = vsel %vm823, %v1175, 0
        %v1268 = vsel %vm823, %v1176, 0
        %v1271 = vsel %vm823, %v1177, 0
        %v1274 = vsel %vm823, %v1178, 0
        %1276 = vmatprep.subr.bf16.mxu0 0
        %1277 = vmatpush1.bf16.msra.mxu0 %v1224
        %1278 = vmatprep.subr.bf16.mxu0 0
        %1279 = vmatpush1.bf16.msra.mxu0 %v1225
        %1280 = vmatprep.subr.bf16.mxu0 0
        %1281 = vmatpush1.bf16.msra.mxu0 0
        %1282 = vmatprep.subr.bf16.mxu0 0
        %1283 = vmatpush1.bf16.msra.mxu0 0
        %1284 = vmatprep.subr.bf16.mxu0 0
        %1285 = vmatpush1.bf16.msra.mxu0 0
        %1286 = vmatprep.subr.bf16.mxu0 0
        %1287 = vmatpush1.bf16.msra.mxu0 0
        %1288 = vmatprep.subr.bf16.mxu0 0
        %1289 = vmatpush1.bf16.msra.mxu0 0
        %1290 = vmatprep.subr.bf16.mxu0 0
        %1291 = vmatpush1.bf16.msra.mxu0 0
        %1292 = vmatprep.subr.bf16.mxu0 0
        %1293 = vmatpush1.bf16.msra.mxu0 0
        %1294 = vmatprep.subr.bf16.mxu0 0
        %1295 = vmatpush1.bf16.msra.mxu0 0
        %1296 = vmatprep.subr.bf16.mxu0 0
        %1297 = vmatpush1.bf16.msra.mxu0 0
        %1298 = vmatprep.subr.bf16.mxu0 0
        %1299 = vmatpush1.bf16.msra.mxu0 0
        %1300 = vmatprep.subr.bf16.mxu0 0
        %1301 = vmatpush1.bf16.msra.mxu0 0
        %1302 = vmatprep.subr.bf16.mxu0 0
        %1303 = vmatpush1.bf16.msra.mxu0 0
        %1304 = vmatprep.subr.bf16.mxu0 0
        %1305 = vmatpush1.bf16.msra.mxu0 0
        %1306 = vmatprep.subr.bf16.mxu0 0
        %1307 = vmatpush1.bf16.msra.mxu0 0
        %1308 = vmatprep.mubr.bf16.mxu0 0
        %1309 = vmatmul.mubr.bf16.gmra.mrb[0].mxu0 %v1229
        %v1310 = vpop.f32.mrb[0].mxu0
        %v1311 = vadd.f32 0.0, %v1310
        %v1312 = vpop.f32.mrb[0].mxu0
        %v1313 = vpop.f32.mrb[0].mxu0
        %v1314 = vadd.f32 0.0, %v1313
        %v1315 = vpop.f32.mrb[0].mxu0
        %1316 = vmatprep.mubr.bf16.mxu0 0
        %1317 = vmatmul.mubr.bf16.gmra.mrb[0].mxu0 %v1232
        %v1318 = vpop.f32.mrb[0].mxu0
        %v1319 = vadd.f32 0.0, %v1318
        %v1320 = vpop.f32.mrb[0].mxu0
        %v1321 = vpop.f32.mrb[0].mxu0
        %v1322 = vadd.f32 0.0, %v1321
        %v1323 = vpop.f32.mrb[0].mxu0
        %1324 = vmatprep.mubr.bf16.mxu0 0
        %1325 = vmatmul.mubr.bf16.gmra.mrb[0].mxu0 %v1235
        %v1326 = vpop.f32.mrb[0].mxu0
        %v1327 = vadd.f32 0.0, %v1326
        %v1328 = vpop.f32.mrb[0].mxu0
        %v1329 = vpop.f32.mrb[0].mxu0
        %v1330 = vadd.f32 0.0, %v1329
        %v1331 = vpop.f32.mrb[0].mxu0
        %1332 = vmatprep.mubr.bf16.mxu0 0
        %1333 = vmatmul.mubr.bf16.gmra.mrb[0].mxu0 %v1238
        %v1334 = vpop.f32.mrb[0].mxu0
        %v1335 = vadd.f32 0.0, %v1334
        %v1336 = vpop.f32.mrb[0].mxu0
        %v1337 = vpop.f32.mrb[0].mxu0
        %v1338 = vadd.f32 0.0, %v1337
        %v1339 = vpop.f32.mrb[0].mxu0
        %1340 = vmatprep.mubr.bf16.mxu0 0
        %1341 = vmatmul.mubr.bf16.gmra.mrb[0].mxu0 %v1241
        %v1342 = vpop.f32.mrb[0].mxu0
        %v1343 = vadd.f32 0.0, %v1342
        %v1344 = vpop.f32.mrb[0].mxu0
        %v1345 = vpop.f32.mrb[0].mxu0
        %v1346 = vadd.f32 0.0, %v1345
        %v1347 = vpop.f32.mrb[0].mxu0
        %1348 = vmatprep.mubr.bf16.mxu0 0
        %1349 = vmatmul.mubr.bf16.gmra.mrb[0].mxu0 %v1244
        %v1350 = vpop.f32.mrb[0].mxu0
        %v1351 = vadd.f32 0.0, %v1350
        %v1352 = vpop.f32.mrb[0].mxu0
        %v1353 = vpop.f32.mrb[0].mxu0
        %v1354 = vadd.f32 0.0, %v1353
        %v1355 = vpop.f32.mrb[0].mxu0
        %1356 = vmatprep.mubr.bf16.mxu0 0
        %1357 = vmatmul.mubr.bf16.gmra.mrb[0].mxu0 %v1247
        %v1358 = vpop.f32.mrb[0].mxu0
        %v1359 = vadd.f32 0.0, %v1358
        %v1360 = vpop.f32.mrb[0].mxu0
        %v1361 = vpop.f32.mrb[0].mxu0
        %v1362 = vadd.f32 0.0, %v1361
        %v1363 = vpop.f32.mrb[0].mxu0
        %1364 = vmatprep.mubr.bf16.mxu0 0
        %1365 = vmatmul.mubr.bf16.gmra.mrb[0].mxu0 %v1250
        %v1366 = vpop.f32.mrb[0].mxu0
        %v1367 = vadd.f32 0.0, %v1366
        %v1368 = vpop.f32.mrb[0].mxu0
        %v1369 = vpop.f32.mrb[0].mxu0
        %v1370 = vadd.f32 0.0, %v1369
        %v1371 = vpop.f32.mrb[0].mxu0
        %1372 = vmatprep.mubr.bf16.mxu0 0
        %1373 = vmatmul.mubr.bf16.gmra.mrb[0].mxu0 %v1253
        %v1374 = vpop.f32.mrb[0].mxu0
        %v1375 = vadd.f32 0.0, %v1374
        %v1376 = vpop.f32.mrb[0].mxu0
        %v1377 = vpop.f32.mrb[0].mxu0
        %v1378 = vadd.f32 0.0, %v1377
        %v1379 = vpop.f32.mrb[0].mxu0
        %1380 = vmatprep.mubr.bf16.mxu0 0
        %1381 = vmatmul.mubr.bf16.gmra.mrb[0].mxu0 %v1256
        %v1382 = vpop.f32.mrb[0].mxu0
        %v1383 = vadd.f32 0.0, %v1382
        %v1384 = vpop.f32.mrb[0].mxu0
        %v1385 = vpop.f32.mrb[0].mxu0
        %v1386 = vadd.f32 0.0, %v1385
        %v1387 = vpop.f32.mrb[0].mxu0
        %1388 = vmatprep.mubr.bf16.mxu0 0
        %1389 = vmatmul.mubr.bf16.gmra.mrb[0].mxu0 %v1259
        %v1390 = vpop.f32.mrb[0].mxu0
        %v1391 = vadd.f32 0.0, %v1390
        %v1392 = vpop.f32.mrb[0].mxu0
        %v1393 = vpop.f32.mrb[0].mxu0
        %v1394 = vadd.f32 0.0, %v1393
        %v1395 = vpop.f32.mrb[0].mxu0
        %1396 = vmatprep.mubr.bf16.mxu0 0
        %1397 = vmatmul.mubr.bf16.gmra.mrb[0].mxu0 %v1262
        %v1398 = vpop.f32.mrb[0].mxu0
        %v1399 = vadd.f32 0.0, %v1398
        %v1400 = vpop.f32.mrb[0].mxu0
        %v1401 = vpop.f32.mrb[0].mxu0
        %v1402 = vadd.f32 0.0, %v1401
        %v1403 = vpop.f32.mrb[0].mxu0
        %1404 = vmatprep.mubr.bf16.mxu0 0
        %1405 = vmatmul.mubr.bf16.gmra.mrb[0].mxu0 %v1265
        %v1406 = vpop.f32.mrb[0].mxu0
        %v1407 = vadd.f32 0.0, %v1406
        %v1408 = vpop.f32.mrb[0].mxu0
        %v1409 = vpop.f32.mrb[0].mxu0
        %v1410 = vadd.f32 0.0, %v1409
        %v1411 = vpop.f32.mrb[0].mxu0
        %1412 = vmatprep.mubr.bf16.mxu0 0
        %1413 = vmatmul.mubr.bf16.gmra.mrb[0].mxu0 %v1268
        %v1414 = vpop.f32.mrb[0].mxu0
        %v1415 = vadd.f32 0.0, %v1414
        %v1416 = vpop.f32.mrb[0].mxu0
        %v1417 = vpop.f32.mrb[0].mxu0
        %v1418 = vadd.f32 0.0, %v1417
        %v1419 = vpop.f32.mrb[0].mxu0
        %1420 = vmatprep.mubr.bf16.mxu0 0
        %1421 = vmatmul.mubr.bf16.gmra.mrb[0].mxu0 %v1271
        %v1422 = vpop.f32.mrb[0].mxu0
        %v1423 = vadd.f32 0.0, %v1422
        %v1424 = vpop.f32.mrb[0].mxu0
        %v1425 = vpop.f32.mrb[0].mxu0
        %v1426 = vadd.f32 0.0, %v1425
        %v1427 = vpop.f32.mrb[0].mxu0
        %1428 = vmatprep.mubr.bf16.mxu0 0
        %1429 = vmatmul.mubr.bf16.gmra.mrb[0].mxu0 %v1274
        %v1430 = vpop.f32.mrb[0].mxu0
        %v1431 = vadd.f32 0.0, %v1430
        %v1432 = vpop.f32.mrb[0].mxu0
        %v1433 = vpop.f32.mrb[0].mxu0
        %v1434 = vadd.f32 0.0, %v1433
        %v1435 = vpop.f32.mrb[0].mxu0
        %1436 = vdwg.mxu0
        %v1438 = vsel %vm614, %v1115, 0
        %v1441 = vsel %vm614, %v1116, 0
        %v1444 = vsel %vm614, %v1117, 0
        %v1447 = vsel %vm614, %v1118, 0
        %v1450 = vsel %vm614, %v1119, 0
        %v1453 = vsel %vm614, %v1120, 0
        %v1456 = vsel %vm614, %v1121, 0
        %v1459 = vsel %vm614, %v1122, 0
        %v1462 = vsel %vm614, %v1123, 0
        %v1465 = vsel %vm614, %v1124, 0
        %v1468 = vsel %vm614, %v1125, 0
        %v1471 = vsel %vm614, %v1126, 0
        %v1474 = vsel %vm614, %v1127, 0
        %v1477 = vsel %vm614, %v1128, 0
        %v1480 = vsel %vm614, %v1129, 0
        %v1483 = vsel %vm614, %v1130, 0
        %vm1485 = vcmask 1041408
        %v1487 = vsel %vm1485, %v1211, 0
        %1489 = vmatprep.subr.bf16.mxu0 0
        %1490 = vmatpush1.bf16.msra.mxu0 %v1487
        %1491 = vmatprep.subr.bf16.mxu0 0
        %1492 = vmatpush1.bf16.msra.mxu0 0
        %1493 = vmatprep.subr.bf16.mxu0 0
        %1494 = vmatpush1.bf16.msra.mxu0 0
        %1495 = vmatprep.subr.bf16.mxu0 0
        %1496 = vmatpush1.bf16.msra.mxu0 0
        %1497 = vmatprep.subr.bf16.mxu0 0
        %1498 = vmatpush1.bf16.msra.mxu0 0
        %1499 = vmatprep.subr.bf16.mxu0 0
        %1500 = vmatpush1.bf16.msra.mxu0 0
        %1501 = vmatprep.subr.bf16.mxu0 0
        %1502 = vmatpush1.bf16.msra.mxu0 0
        %1503 = vmatprep.subr.bf16.mxu0 0
        %1504 = vmatpush1.bf16.msra.mxu0 0
        %1505 = vmatprep.subr.bf16.mxu0 0
        %1506 = vmatpush1.bf16.msra.mxu0 0
        %1507 = vmatprep.subr.bf16.mxu0 0
        %1508 = vmatpush1.bf16.msra.mxu0 0
        %1509 = vmatprep.subr.bf16.mxu0 0
        %1510 = vmatpush1.bf16.msra.mxu0 0
        %1511 = vmatprep.subr.bf16.mxu0 0
        %1512 = vmatpush1.bf16.msra.mxu0 0
        %1513 = vmatprep.subr.bf16.mxu0 0
        %1514 = vmatpush1.bf16.msra.mxu0 0
        %1515 = vmatprep.subr.bf16.mxu0 0
        %1516 = vmatpush1.bf16.msra.mxu0 0
        %1517 = vmatprep.subr.bf16.mxu0 0
        %1518 = vmatpush1.bf16.msra.mxu0 0
        %1519 = vmatprep.subr.bf16.mxu0 0
        %1520 = vmatpush1.bf16.msra.mxu0 0
        %1521 = vmatprep.mubr.bf16.mxu0 0
        %1522 = vmatmul.mubr.bf16.gmra.mrb[0].mxu0 %v1438
        %v1523 = vpop.f32.mrb[0].mxu0
        %v1524 = vadd.f32 %v1311, %v1523
        %v1525 = vpop.f32.mrb[0].mxu0
        %v1526 = vpop.f32.mrb[0].mxu0
        %v1527 = vadd.f32 %v1314, %v1526
        %v1528 = vpop.f32.mrb[0].mxu0
        %1529 = vmatprep.mubr.bf16.mxu0 0
        %1530 = vmatmul.mubr.bf16.gmra.mrb[0].mxu0 %v1441
        %v1531 = vpop.f32.mrb[0].mxu0
        %v1532 = vadd.f32 %v1319, %v1531
        %v1533 = vpop.f32.mrb[0].mxu0
        %v1534 = vpop.f32.mrb[0].mxu0
        %v1535 = vadd.f32 %v1322, %v1534
        %v1536 = vpop.f32.mrb[0].mxu0
        %1537 = vmatprep.mubr.bf16.mxu0 0
        %1538 = vmatmul.mubr.bf16.gmra.mrb[0].mxu0 %v1444
        %v1539 = vpop.f32.mrb[0].mxu0
        %v1540 = vadd.f32 %v1327, %v1539
        %v1541 = vpop.f32.mrb[0].mxu0
        %v1542 = vpop.f32.mrb[0].mxu0
        %v1543 = vadd.f32 %v1330, %v1542
        %v1544 = vpop.f32.mrb[0].mxu0
        %1545 = vmatprep.mubr.bf16.mxu0 0
        %1546 = vmatmul.mubr.bf16.gmra.mrb[0].mxu0 %v1447
        %v1547 = vpop.f32.mrb[0].mxu0
        %v1548 = vadd.f32 %v1335, %v1547
        %v1549 = vpop.f32.mrb[0].mxu0
        %v1550 = vpop.f32.mrb[0].mxu0
        %v1551 = vadd.f32 %v1338, %v1550
        %v1552 = vpop.f32.mrb[0].mxu0
        %1553 = vmatprep.mubr.bf16.mxu0 0
        %1554 = vmatmul.mubr.bf16.gmra.mrb[0].mxu0 %v1450
        %v1555 = vpop.f32.mrb[0].mxu0
        %v1556 = vadd.f32 %v1343, %v1555
        %v1557 = vpop.f32.mrb[0].mxu0
        %v1558 = vpop.f32.mrb[0].mxu0
        %v1559 = vadd.f32 %v1346, %v1558
        %v1560 = vpop.f32.mrb[0].mxu0
        %1561 = vmatprep.mubr.bf16.mxu0 0
        %1562 = vmatmul.mubr.bf16.gmra.mrb[0].mxu0 %v1453
        %v1563 = vpop.f32.mrb[0].mxu0
        %v1564 = vadd.f32 %v1351, %v1563
        %v1565 = vpop.f32.mrb[0].mxu0
        %v1566 = vpop.f32.mrb[0].mxu0
        %v1567 = vadd.f32 %v1354, %v1566
        %v1568 = vpop.f32.mrb[0].mxu0
        %1569 = vmatprep.mubr.bf16.mxu0 0
        %1570 = vmatmul.mubr.bf16.gmra.mrb[0].mxu0 %v1456
        %v1571 = vpop.f32.mrb[0].mxu0
        %v1572 = vadd.f32 %v1359, %v1571
        %v1573 = vpop.f32.mrb[0].mxu0
        %v1574 = vpop.f32.mrb[0].mxu0
        %v1575 = vadd.f32 %v1362, %v1574
        %v1576 = vpop.f32.mrb[0].mxu0
        %1577 = vmatprep.mubr.bf16.mxu0 0
        %1578 = vmatmul.mubr.bf16.gmra.mrb[0].mxu0 %v1459
        %v1579 = vpop.f32.mrb[0].mxu0
        %v1580 = vadd.f32 %v1367, %v1579
        %v1581 = vpop.f32.mrb[0].mxu0
        %v1582 = vpop.f32.mrb[0].mxu0
        %v1583 = vadd.f32 %v1370, %v1582
        %v1584 = vpop.f32.mrb[0].mxu0
        %1585 = vmatprep.mubr.bf16.mxu0 0
        %1586 = vmatmul.mubr.bf16.gmra.mrb[0].mxu0 %v1462
        %v1587 = vpop.f32.mrb[0].mxu0
        %v1588 = vadd.f32 %v1375, %v1587
        %v1589 = vpop.f32.mrb[0].mxu0
        %v1590 = vpop.f32.mrb[0].mxu0
        %v1591 = vadd.f32 %v1378, %v1590
        %v1592 = vpop.f32.mrb[0].mxu0
        %1593 = vmatprep.mubr.bf16.mxu0 0
        %1594 = vmatmul.mubr.bf16.gmra.mrb[0].mxu0 %v1465
        %v1595 = vpop.f32.mrb[0].mxu0
        %v1596 = vadd.f32 %v1383, %v1595
        %v1597 = vpop.f32.mrb[0].mxu0
        %v1598 = vpop.f32.mrb[0].mxu0
        %v1599 = vadd.f32 %v1386, %v1598
        %v1600 = vpop.f32.mrb[0].mxu0
        %1601 = vmatprep.mubr.bf16.mxu0 0
        %1602 = vmatmul.mubr.bf16.gmra.mrb[0].mxu0 %v1468
        %v1603 = vpop.f32.mrb[0].mxu0
        %v1604 = vadd.f32 %v1391, %v1603
        %v1605 = vpop.f32.mrb[0].mxu0
        %v1606 = vpop.f32.mrb[0].mxu0
        %v1607 = vadd.f32 %v1394, %v1606
        %v1608 = vpop.f32.mrb[0].mxu0
        %1609 = vmatprep.mubr.bf16.mxu0 0
        %1610 = vmatmul.mubr.bf16.gmra.mrb[0].mxu0 %v1471
        %v1611 = vpop.f32.mrb[0].mxu0
        %v1612 = vadd.f32 %v1399, %v1611
        %v1613 = vpop.f32.mrb[0].mxu0
        %v1614 = vpop.f32.mrb[0].mxu0
        %v1615 = vadd.f32 %v1402, %v1614
        %v1616 = vpop.f32.mrb[0].mxu0
        %1617 = vmatprep.mubr.bf16.mxu0 0
        %1618 = vmatmul.mubr.bf16.gmra.mrb[0].mxu0 %v1474
        %v1619 = vpop.f32.mrb[0].mxu0
        %v1620 = vadd.f32 %v1407, %v1619
        %v1621 = vpop.f32.mrb[0].mxu0
        %v1622 = vpop.f32.mrb[0].mxu0
        %v1623 = vadd.f32 %v1410, %v1622
        %v1624 = vpop.f32.mrb[0].mxu0
        %1625 = vmatprep.mubr.bf16.mxu0 0
        %1626 = vmatmul.mubr.bf16.gmra.mrb[0].mxu0 %v1477
        %v1627 = vpop.f32.mrb[0].mxu0
        %v1628 = vadd.f32 %v1415, %v1627
        %v1629 = vpop.f32.mrb[0].mxu0
        %v1630 = vpop.f32.mrb[0].mxu0
        %v1631 = vadd.f32 %v1418, %v1630
        %v1632 = vpop.f32.mrb[0].mxu0
        %1633 = vmatprep.mubr.bf16.mxu0 0
        %1634 = vmatmul.mubr.bf16.gmra.mrb[0].mxu0 %v1480
        %v1635 = vpop.f32.mrb[0].mxu0
        %v1636 = vadd.f32 %v1423, %v1635
        %v1637 = vpop.f32.mrb[0].mxu0
        %v1638 = vpop.f32.mrb[0].mxu0
        %v1639 = vadd.f32 %v1426, %v1638
        %v1640 = vpop.f32.mrb[0].mxu0
        %1641 = vmatprep.mubr.bf16.mxu0 0
        %1642 = vmatmul.mubr.bf16.gmra.mrb[0].mxu0 %v1483
        %v1643 = vpop.f32.mrb[0].mxu0
        %v1644 = vadd.f32 %v1431, %v1643
        %v1645 = vpop.f32.mrb[0].mxu0
        %v1646 = vpop.f32.mrb[0].mxu0
        %v1647 = vadd.f32 %v1434, %v1646
        %v1648 = vpop.f32.mrb[0].mxu0
        %1649 = vdwg.mxu0
        %v1650 = vadd.f32 %v1179, %v1524
        %v1651 = vadd.f32 %v1180, %v1527
        %v1652 = vadd.f32 %v1181, %v1532
        %v1653 = vadd.f32 %v1182, %v1535
        %v1654 = vadd.f32 %v1183, %v1540
        %v1655 = vadd.f32 %v1184, %v1543
        %v1656 = vadd.f32 %v1185, %v1548
        %v1657 = vadd.f32 %v1186, %v1551
        %v1658 = vadd.f32 %v1187, %v1556
        %v1659 = vadd.f32 %v1188, %v1559
        %v1660 = vadd.f32 %v1189, %v1564
        %v1661 = vadd.f32 %v1190, %v1567
        %v1662 = vadd.f32 %v1191, %v1572
        %v1663 = vadd.f32 %v1192, %v1575
        %v1664 = vadd.f32 %v1193, %v1580
        %v1665 = vadd.f32 %v1194, %v1583
        %v1666 = vadd.f32 %v1195, %v1588
        %v1667 = vadd.f32 %v1196, %v1591
        %v1668 = vadd.f32 %v1197, %v1596
        %v1669 = vadd.f32 %v1198, %v1599
        %v1670 = vadd.f32 %v1199, %v1604
        %v1671 = vadd.f32 %v1200, %v1607
        %v1672 = vadd.f32 %v1201, %v1612
        %v1673 = vadd.f32 %v1202, %v1615
        %v1674 = vadd.f32 %v1203, %v1620
        %v1675 = vadd.f32 %v1204, %v1623
        %v1676 = vadd.f32 %v1205, %v1628
        %v1677 = vadd.f32 %v1206, %v1631
        %v1678 = vadd.f32 %v1207, %v1636
        %v1679 = vadd.f32 %v1208, %v1639
        %v1680 = vadd.f32 %v1209, %v1644
        %v1681 = vadd.f32 %v1210, %v1647
        %1682 = vst [vmem:[#allocation4] sm:$0xff] %v1650
        %1683 = vst [vmem:[#allocation4 + $0x8] sm:$0xff] %v1651
        %1684 = vst [vmem:[#allocation4 + $0x10] sm:$0xff] %v1652
        %1685 = vst [vmem:[#allocation4 + $0x18] sm:$0xff] %v1653
        %1686 = vst [vmem:[#allocation4 + $0x20] sm:$0xff] %v1654
        %1687 = vst [vmem:[#allocation4 + $0x28] sm:$0xff] %v1655
        %1688 = vst [vmem:[#allocation4 + $0x30] sm:$0xff] %v1656
        %1689 = vst [vmem:[#allocation4 + $0x38] sm:$0xff] %v1657
        %1690 = vst [vmem:[#allocation4 + $0x40] sm:$0xff] %v1658
        %1691 = vst [vmem:[#allocation4 + $0x48] sm:$0xff] %v1659
        %1692 = vst [vmem:[#allocation4 + $0x50] sm:$0xff] %v1660
        %1693 = vst [vmem:[#allocation4 + $0x58] sm:$0xff] %v1661
        %1694 = vst [vmem:[#allocation4 + $0x60] sm:$0xff] %v1662
        %1695 = vst [vmem:[#allocation4 + $0x68] sm:$0xff] %v1663
        %1696 = vst [vmem:[#allocation4 + $0x70] sm:$0xff] %v1664
        %1697 = vst [vmem:[#allocation4 + $0x78] sm:$0xff] %v1665
        %1698 = vst [vmem:[#allocation4 + $0x80] sm:$0xff] %v1666
        %1699 = vst [vmem:[#allocation4 + $0x88] sm:$0xff] %v1667
        %1700 = vst [vmem:[#allocation4 + $0x90] sm:$0xff] %v1668
        %1701 = vst [vmem:[#allocation4 + $0x98] sm:$0xff] %v1669
        %1702 = vst [vmem:[#allocation4 + $0xa0] sm:$0xff] %v1670
        %1703 = vst [vmem:[#allocation4 + $0xa8] sm:$0xff] %v1671
        %1704 = vst [vmem:[#allocation4 + $0xb0] sm:$0xff] %v1672
        %1705 = vst [vmem:[#allocation4 + $0xb8] sm:$0xff] %v1673
        %1706 = vst [vmem:[#allocation4 + $0xc0] sm:$0xff] %v1674
        %1707 = vst [vmem:[#allocation4 + $0xc8] sm:$0xff] %v1675
        %1708 = vst [vmem:[#allocation4 + $0xd0] sm:$0xff] %v1676
        %1709 = vst [vmem:[#allocation4 + $0xd8] sm:$0xff] %v1677
        %1710 = vst [vmem:[#allocation4 + $0xe0] sm:$0xff] %v1678
        %1711 = vst [vmem:[#allocation4 + $0xe8] sm:$0xff] %v1679
        %1712 = vst [vmem:[#allocation4 + $0xf0] sm:$0xff] %v1680
        %1713 = vst [vmem:[#allocation4 + $0xf8] sm:$0xff] %v1681
        %v1714 = vld [vmem:[#allocation2 + $0x1] sm:$0xff]
        %v1715 = vld [vmem:[#allocation2 + $0x9] sm:$0xff]
        %v1716 = vld [vmem:[#allocation2 + $0x19] sm:$0xff]
        %v1717 = vld [vmem:[#allocation2 + $0x21] sm:$0xff]
        %v1718 = vld [vmem:[#allocation2 + $0x31] sm:$0xff]
        %v1719 = vld [vmem:[#allocation2 + $0x39] sm:$0xff]
        %v1720 = vld [vmem:[#allocation2 + $0x49] sm:$0xff]
        %v1721 = vld [vmem:[#allocation2 + $0x51] sm:$0xff]
        %v1722 = vld [vmem:[#allocation2 + $0x61] sm:$0xff]
        %v1723 = vld [vmem:[#allocation2 + $0x69] sm:$0xff]
        %v1724 = vld [vmem:[#allocation2 + $0x79] sm:$0xff]
        %v1725 = vld [vmem:[#allocation2 + $0x81] sm:$0xff]
        %v1726 = vld [vmem:[#allocation2 + $0x91] sm:$0xff]
        %v1727 = vld [vmem:[#allocation2 + $0x99] sm:$0xff]
        %v1728 = vld [vmem:[#allocation2 + $0xa9] sm:$0xff]
        %v1729 = vld [vmem:[#allocation2 + $0xb1] sm:$0xff]
        %v1730 = vld [vmem:[#allocation2 + $0xc1] sm:$0xff]
        %v1731 = vld [vmem:[#allocation2 + $0xc9] sm:$0xff]
        %v1732 = vld [vmem:[#allocation2 + $0xd9] sm:$0xff]
        %v1733 = vld [vmem:[#allocation2 + $0xe1] sm:$0xff]
        %v1734 = vld [vmem:[#allocation2 + $0xf1] sm:$0xff]
        %v1735 = vld [vmem:[#allocation2 + $0xf9] sm:$0xff]
        %v1736 = vld [vmem:[#allocation2 + $0x109] sm:$0xff]
        %v1737 = vld [vmem:[#allocation2 + $0x111] sm:$0xff]
        %v1738 = vld [vmem:[#allocation2 + $0x121] sm:$0xff]
        %v1739 = vld [vmem:[#allocation2 + $0x129] sm:$0xff]
        %v1740 = vld [vmem:[#allocation2 + $0x139] sm:$0xff]
        %v1741 = vld [vmem:[#allocation2 + $0x141] sm:$0xff]
        %v1742 = vld [vmem:[#allocation2 + $0x151] sm:$0xff]
        %v1743 = vld [vmem:[#allocation2 + $0x159] sm:$0xff]
        %v1744 = vld [vmem:[#allocation2 + $0x169] sm:$0xff]
        %v1745 = vld [vmem:[#allocation2 + $0x171] sm:$0xff]
        %v1746 = vpack.c.bf16 %v1715, %v1714
        %v1747 = vpack.c.bf16 %v1717, %v1716
        %v1748 = vpack.c.bf16 %v1719, %v1718
        %v1749 = vpack.c.bf16 %v1721, %v1720
        %v1750 = vpack.c.bf16 %v1723, %v1722
        %v1751 = vpack.c.bf16 %v1725, %v1724
        %v1752 = vpack.c.bf16 %v1727, %v1726
        %v1753 = vpack.c.bf16 %v1729, %v1728
        %v1754 = vpack.c.bf16 %v1731, %v1730
        %v1755 = vpack.c.bf16 %v1733, %v1732
        %v1756 = vpack.c.bf16 %v1735, %v1734
        %v1757 = vpack.c.bf16 %v1737, %v1736
        %v1758 = vpack.c.bf16 %v1739, %v1738
        %v1759 = vpack.c.bf16 %v1741, %v1740
        %v1760 = vpack.c.bf16 %v1743, %v1742
        %v1761 = vpack.c.bf16 %v1745, %v1744
        %v1762 = vld [vmem:[#allocation3 + $0x1] sm:$0xff]
        %v1763 = vld [vmem:[#allocation3 + $0x9] sm:$0xff]
        %v1764 = vld [vmem:[#allocation3 + $0x19] sm:$0xff]
        %v1765 = vld [vmem:[#allocation3 + $0x21] sm:$0xff]
        %v1766 = vld [vmem:[#allocation3 + $0x31] sm:$0xff]
        %v1767 = vld [vmem:[#allocation3 + $0x39] sm:$0xff]
        %v1768 = vld [vmem:[#allocation3 + $0x49] sm:$0xff]
        %v1769 = vld [vmem:[#allocation3 + $0x51] sm:$0xff]
        %v1770 = vld [vmem:[#allocation3 + $0x61] sm:$0xff]
        %v1771 = vld [vmem:[#allocation3 + $0x69] sm:$0xff]
        %v1772 = vld [vmem:[#allocation3 + $0x79] sm:$0xff]
        %v1773 = vld [vmem:[#allocation3 + $0x81] sm:$0xff]
        %v1774 = vld [vmem:[#allocation3 + $0x91] sm:$0xff]
        %v1775 = vld [vmem:[#allocation3 + $0x99] sm:$0xff]
        %v1776 = vld [vmem:[#allocation3 + $0xa9] sm:$0xff]
        %v1777 = vld [vmem:[#allocation3 + $0xb1] sm:$0xff]
        %v1778 = vld [vmem:[#allocation3 + $0xc1] sm:$0xff]
        %v1779 = vld [vmem:[#allocation3 + $0xc9] sm:$0xff]
        %v1780 = vld [vmem:[#allocation3 + $0xd9] sm:$0xff]
        %v1781 = vld [vmem:[#allocation3 + $0xe1] sm:$0xff]
        %v1782 = vld [vmem:[#allocation3 + $0xf1] sm:$0xff]
        %v1783 = vld [vmem:[#allocation3 + $0xf9] sm:$0xff]
        %v1784 = vld [vmem:[#allocation3 + $0x109] sm:$0xff]
        %v1785 = vld [vmem:[#allocation3 + $0x111] sm:$0xff]
        %v1786 = vld [vmem:[#allocation3 + $0x121] sm:$0xff]
        %v1787 = vld [vmem:[#allocation3 + $0x129] sm:$0xff]
        %v1788 = vld [vmem:[#allocation3 + $0x139] sm:$0xff]
        %v1789 = vld [vmem:[#allocation3 + $0x141] sm:$0xff]
        %v1790 = vld [vmem:[#allocation3 + $0x151] sm:$0xff]
        %v1791 = vld [vmem:[#allocation3 + $0x159] sm:$0xff]
        %v1792 = vld [vmem:[#allocation3 + $0x169] sm:$0xff]
        %v1793 = vld [vmem:[#allocation3 + $0x171] sm:$0xff]
        %v1794 = vpack.c.bf16 %v1763, %v1762
        %v1795 = vpack.c.bf16 %v1765, %v1764
        %v1796 = vpack.c.bf16 %v1767, %v1766
        %v1797 = vpack.c.bf16 %v1769, %v1768
        %v1798 = vpack.c.bf16 %v1771, %v1770
        %v1799 = vpack.c.bf16 %v1773, %v1772
        %v1800 = vpack.c.bf16 %v1775, %v1774
        %v1801 = vpack.c.bf16 %v1777, %v1776
        %v1802 = vpack.c.bf16 %v1779, %v1778
        %v1803 = vpack.c.bf16 %v1781, %v1780
        %v1804 = vpack.c.bf16 %v1783, %v1782
        %v1805 = vpack.c.bf16 %v1785, %v1784
        %v1806 = vpack.c.bf16 %v1787, %v1786
        %v1807 = vpack.c.bf16 %v1789, %v1788
        %v1808 = vpack.c.bf16 %v1791, %v1790
        %v1809 = vpack.c.bf16 %v1793, %v1792
        %v1810 = vld [vmem:[#allocation4] sm:$0xff]
        %v1811 = vld [vmem:[#allocation4 + $0x8] sm:$0xff]
        %v1812 = vld [vmem:[#allocation4 + $0x10] sm:$0xff]
        %v1813 = vld [vmem:[#allocation4 + $0x18] sm:$0xff]
        %v1814 = vld [vmem:[#allocation4 + $0x20] sm:$0xff]
        %v1815 = vld [vmem:[#allocation4 + $0x28] sm:$0xff]
        %v1816 = vld [vmem:[#allocation4 + $0x30] sm:$0xff]
        %v1817 = vld [vmem:[#allocation4 + $0x38] sm:$0xff]
        %v1818 = vld [vmem:[#allocation4 + $0x40] sm:$0xff]
        %v1819 = vld [vmem:[#allocation4 + $0x48] sm:$0xff]
        %v1820 = vld [vmem:[#allocation4 + $0x50] sm:$0xff]
        %v1821 = vld [vmem:[#allocation4 + $0x58] sm:$0xff]
        %v1822 = vld [vmem:[#allocation4 + $0x60] sm:$0xff]
        %v1823 = vld [vmem:[#allocation4 + $0x68] sm:$0xff]
        %v1824 = vld [vmem:[#allocation4 + $0x70] sm:$0xff]
        %v1825 = vld [vmem:[#allocation4 + $0x78] sm:$0xff]
        %v1826 = vld [vmem:[#allocation4 + $0x80] sm:$0xff]
        %v1827 = vld [vmem:[#allocation4 + $0x88] sm:$0xff]
        %v1828 = vld [vmem:[#allocation4 + $0x90] sm:$0xff]
        %v1829 = vld [vmem:[#allocation4 + $0x98] sm:$0xff]
        %v1830 = vld [vmem:[#allocation4 + $0xa0] sm:$0xff]
        %v1831 = vld [vmem:[#allocation4 + $0xa8] sm:$0xff]
        %v1832 = vld [vmem:[#allocation4 + $0xb0] sm:$0xff]
        %v1833 = vld [vmem:[#allocation4 + $0xb8] sm:$0xff]
        %v1834 = vld [vmem:[#allocation4 + $0xc0] sm:$0xff]
        %v1835 = vld [vmem:[#allocation4 + $0xc8] sm:$0xff]
        %v1836 = vld [vmem:[#allocation4 + $0xd0] sm:$0xff]
        %v1837 = vld [vmem:[#allocation4 + $0xd8] sm:$0xff]
        %v1838 = vld [vmem:[#allocation4 + $0xe0] sm:$0xff]
        %v1839 = vld [vmem:[#allocation4 + $0xe8] sm:$0xff]
        %v1840 = vld [vmem:[#allocation4 + $0xf0] sm:$0xff]
        %v1841 = vld [vmem:[#allocation4 + $0xf8] sm:$0xff]
        %s1842 = scalar_lea.vmem [#allocation8], 2
        %v1843 = vld [vmem:[%s1842] sm:$0x3]
        %s1844 = scalar_lea.vmem %s4, 16
        %v1845 = vld [vmem:[%s1844] sm:$0xf]
        %v1846 = vld [vmem:[%s1844 + $0x4] sm:$0xf]
        %v1847 = vld [vmem:[%s1844 + $0x8] sm:$0xf]
        %v1848 = vld [vmem:[%s1844 + $0xc] sm:$0xf]
        %v1853 = vunpack.c.l.b16 %v1845
        %v1854 = vunpack.c.l.b16 %v1846
        %v1855 = vunpack.c.l.b16 %v1847
        %v1856 = vunpack.c.l.b16 %v1848
        %v1857 = vpack.c.b16 %v1854, %v1853
        %v1858 = vpack.c.b16 %v1856, %v1855
        %v1862 = vsel %vm823, %v1794, 0
        %v1865 = vsel %vm823, %v1795, 0
        %v1868 = vsel %vm823, %v1796, 0
        %v1871 = vsel %vm823, %v1797, 0
        %v1874 = vsel %vm823, %v1798, 0
        %v1877 = vsel %vm823, %v1799, 0
        %v1880 = vsel %vm823, %v1800, 0
        %v1883 = vsel %vm823, %v1801, 0
        %v1886 = vsel %vm823, %v1802, 0
        %v1889 = vsel %vm823, %v1803, 0
        %v1892 = vsel %vm823, %v1804, 0
        %v1895 = vsel %vm823, %v1805, 0
        %v1898 = vsel %vm823, %v1806, 0
        %v1901 = vsel %vm823, %v1807, 0
        %v1904 = vsel %vm823, %v1808, 0
        %v1907 = vsel %vm823, %v1809, 0
        %1909 = vmatprep.subr.bf16.mxu0 0
        %1910 = vmatpush1.bf16.msra.mxu0 %v1857
        %1911 = vmatprep.subr.bf16.mxu0 0
        %1912 = vmatpush1.bf16.msra.mxu0 %v1858
        %1913 = vmatprep.subr.bf16.mxu0 0
        %1914 = vmatpush1.bf16.msra.mxu0 0
        %1915 = vmatprep.subr.bf16.mxu0 0
        %1916 = vmatpush1.bf16.msra.mxu0 0
        %1917 = vmatprep.subr.bf16.mxu0 0
        %1918 = vmatpush1.bf16.msra.mxu0 0
        %1919 = vmatprep.subr.bf16.mxu0 0
        %1920 = vmatpush1.bf16.msra.mxu0 0
        %1921 = vmatprep.subr.bf16.mxu0 0
        %1922 = vmatpush1.bf16.msra.mxu0 0
        %1923 = vmatprep.subr.bf16.mxu0 0
        %1924 = vmatpush1.bf16.msra.mxu0 0
        %1925 = vmatprep.subr.bf16.mxu0 0
        %1926 = vmatpush1.bf16.msra.mxu0 0
        %1927 = vmatprep.subr.bf16.mxu0 0
        %1928 = vmatpush1.bf16.msra.mxu0 0
        %1929 = vmatprep.subr.bf16.mxu0 0
        %1930 = vmatpush1.bf16.msra.mxu0 0
        %1931 = vmatprep.subr.bf16.mxu0 0
        %1932 = vmatpush1.bf16.msra.mxu0 0
        %1933 = vmatprep.subr.bf16.mxu0 0
        %1934 = vmatpush1.bf16.msra.mxu0 0
        %1935 = vmatprep.subr.bf16.mxu0 0
        %1936 = vmatpush1.bf16.msra.mxu0 0
        %1937 = vmatprep.subr.bf16.mxu0 0
        %1938 = vmatpush1.bf16.msra.mxu0 0
        %1939 = vmatprep.subr.bf16.mxu0 0
        %1940 = vmatpush1.bf16.msra.mxu0 0
        %1941 = vmatprep.mubr.bf16.mxu0 0
        %1942 = vmatmul.mubr.bf16.gmra.mrb[0].mxu0 %v1862
        %v1943 = vpop.f32.mrb[0].mxu0
        %v1944 = vadd.f32 0.0, %v1943
        %v1945 = vpop.f32.mrb[0].mxu0
        %v1946 = vpop.f32.mrb[0].mxu0
        %v1947 = vadd.f32 0.0, %v1946
        %v1948 = vpop.f32.mrb[0].mxu0
        %1949 = vmatprep.mubr.bf16.mxu0 0
        %1950 = vmatmul.mubr.bf16.gmra.mrb[0].mxu0 %v1865
        %v1951 = vpop.f32.mrb[0].mxu0
        %v1952 = vadd.f32 0.0, %v1951
        %v1953 = vpop.f32.mrb[0].mxu0
        %v1954 = vpop.f32.mrb[0].mxu0
        %v1955 = vadd.f32 0.0, %v1954
        %v1956 = vpop.f32.mrb[0].mxu0
        %1957 = vmatprep.mubr.bf16.mxu0 0
        %1958 = vmatmul.mubr.bf16.gmra.mrb[0].mxu0 %v1868
        %v1959 = vpop.f32.mrb[0].mxu0
        %v1960 = vadd.f32 0.0, %v1959
        %v1961 = vpop.f32.mrb[0].mxu0
        %v1962 = vpop.f32.mrb[0].mxu0
        %v1963 = vadd.f32 0.0, %v1962
        %v1964 = vpop.f32.mrb[0].mxu0
        %1965 = vmatprep.mubr.bf16.mxu0 0
        %1966 = vmatmul.mubr.bf16.gmra.mrb[0].mxu0 %v1871
        %v1967 = vpop.f32.mrb[0].mxu0
        %v1968 = vadd.f32 0.0, %v1967
        %v1969 = vpop.f32.mrb[0].mxu0
        %v1970 = vpop.f32.mrb[0].mxu0
        %v1971 = vadd.f32 0.0, %v1970
        %v1972 = vpop.f32.mrb[0].mxu0
        %1973 = vmatprep.mubr.bf16.mxu0 0
        %1974 = vmatmul.mubr.bf16.gmra.mrb[0].mxu0 %v1874
        %v1975 = vpop.f32.mrb[0].mxu0
        %v1976 = vadd.f32 0.0, %v1975
        %v1977 = vpop.f32.mrb[0].mxu0
        %v1978 = vpop.f32.mrb[0].mxu0
        %v1979 = vadd.f32 0.0, %v1978
        %v1980 = vpop.f32.mrb[0].mxu0
        %1981 = vmatprep.mubr.bf16.mxu0 0
        %1982 = vmatmul.mubr.bf16.gmra.mrb[0].mxu0 %v1877
        %v1983 = vpop.f32.mrb[0].mxu0
        %v1984 = vadd.f32 0.0, %v1983
        %v1985 = vpop.f32.mrb[0].mxu0
        %v1986 = vpop.f32.mrb[0].mxu0
        %v1987 = vadd.f32 0.0, %v1986
        %v1988 = vpop.f32.mrb[0].mxu0
        %1989 = vmatprep.mubr.bf16.mxu0 0
        %1990 = vmatmul.mubr.bf16.gmra.mrb[0].mxu0 %v1880
        %v1991 = vpop.f32.mrb[0].mxu0
        %v1992 = vadd.f32 0.0, %v1991
        %v1993 = vpop.f32.mrb[0].mxu0
        %v1994 = vpop.f32.mrb[0].mxu0
        %v1995 = vadd.f32 0.0, %v1994
        %v1996 = vpop.f32.mrb[0].mxu0
        %1997 = vmatprep.mubr.bf16.mxu0 0
        %1998 = vmatmul.mubr.bf16.gmra.mrb[0].mxu0 %v1883
        %v1999 = vpop.f32.mrb[0].mxu0
        %v2000 = vadd.f32 0.0, %v1999
        %v2001 = vpop.f32.mrb[0].mxu0
        %v2002 = vpop.f32.mrb[0].mxu0
        %v2003 = vadd.f32 0.0, %v2002
        %v2004 = vpop.f32.mrb[0].mxu0
        %2005 = vmatprep.mubr.bf16.mxu0 0
        %2006 = vmatmul.mubr.bf16.gmra.mrb[0].mxu0 %v1886
        %v2007 = vpop.f32.mrb[0].mxu0
        %v2008 = vadd.f32 0.0, %v2007
        %v2009 = vpop.f32.mrb[0].mxu0
        %v2010 = vpop.f32.mrb[0].mxu0
        %v2011 = vadd.f32 0.0, %v2010
        %v2012 = vpop.f32.mrb[0].mxu0
        %2013 = vmatprep.mubr.bf16.mxu0 0
        %2014 = vmatmul.mubr.bf16.gmra.mrb[0].mxu0 %v1889
        %v2015 = vpop.f32.mrb[0].mxu0
        %v2016 = vadd.f32 0.0, %v2015
        %v2017 = vpop.f32.mrb[0].mxu0
        %v2018 = vpop.f32.mrb[0].mxu0
        %v2019 = vadd.f32 0.0, %v2018
        %v2020 = vpop.f32.mrb[0].mxu0
        %2021 = vmatprep.mubr.bf16.mxu0 0
        %2022 = vmatmul.mubr.bf16.gmra.mrb[0].mxu0 %v1892
        %v2023 = vpop.f32.mrb[0].mxu0
        %v2024 = vadd.f32 0.0, %v2023
        %v2025 = vpop.f32.mrb[0].mxu0
        %v2026 = vpop.f32.mrb[0].mxu0
        %v2027 = vadd.f32 0.0, %v2026
        %v2028 = vpop.f32.mrb[0].mxu0
        %2029 = vmatprep.mubr.bf16.mxu0 0
        %2030 = vmatmul.mubr.bf16.gmra.mrb[0].mxu0 %v1895
        %v2031 = vpop.f32.mrb[0].mxu0
        %v2032 = vadd.f32 0.0, %v2031
        %v2033 = vpop.f32.mrb[0].mxu0
        %v2034 = vpop.f32.mrb[0].mxu0
        %v2035 = vadd.f32 0.0, %v2034
        %v2036 = vpop.f32.mrb[0].mxu0
        %2037 = vmatprep.mubr.bf16.mxu0 0
        %2038 = vmatmul.mubr.bf16.gmra.mrb[0].mxu0 %v1898
        %v2039 = vpop.f32.mrb[0].mxu0
        %v2040 = vadd.f32 0.0, %v2039
        %v2041 = vpop.f32.mrb[0].mxu0
        %v2042 = vpop.f32.mrb[0].mxu0
        %v2043 = vadd.f32 0.0, %v2042
        %v2044 = vpop.f32.mrb[0].mxu0
        %2045 = vmatprep.mubr.bf16.mxu0 0
        %2046 = vmatmul.mubr.bf16.gmra.mrb[0].mxu0 %v1901
        %v2047 = vpop.f32.mrb[0].mxu0
        %v2048 = vadd.f32 0.0, %v2047
        %v2049 = vpop.f32.mrb[0].mxu0
        %v2050 = vpop.f32.mrb[0].mxu0
        %v2051 = vadd.f32 0.0, %v2050
        %v2052 = vpop.f32.mrb[0].mxu0
        %2053 = vmatprep.mubr.bf16.mxu0 0
        %2054 = vmatmul.mubr.bf16.gmra.mrb[0].mxu0 %v1904
        %v2055 = vpop.f32.mrb[0].mxu0
        %v2056 = vadd.f32 0.0, %v2055
        %v2057 = vpop.f32.mrb[0].mxu0
        %v2058 = vpop.f32.mrb[0].mxu0
        %v2059 = vadd.f32 0.0, %v2058
        %v2060 = vpop.f32.mrb[0].mxu0
        %2061 = vmatprep.mubr.bf16.mxu0 0
        %2062 = vmatmul.mubr.bf16.gmra.mrb[0].mxu0 %v1907
        %v2063 = vpop.f32.mrb[0].mxu0
        %v2064 = vadd.f32 0.0, %v2063
        %v2065 = vpop.f32.mrb[0].mxu0
        %v2066 = vpop.f32.mrb[0].mxu0
        %v2067 = vadd.f32 0.0, %v2066
        %v2068 = vpop.f32.mrb[0].mxu0
        %2069 = vdwg.mxu0
        %v2071 = vsel %vm614, %v1746, 0
        %v2074 = vsel %vm614, %v1747, 0
        %v2077 = vsel %vm614, %v1748, 0
        %v2080 = vsel %vm614, %v1749, 0
        %v2083 = vsel %vm614, %v1750, 0
        %v2086 = vsel %vm614, %v1751, 0
        %v2089 = vsel %vm614, %v1752, 0
        %v2092 = vsel %vm614, %v1753, 0
        %v2095 = vsel %vm614, %v1754, 0
        %v2098 = vsel %vm614, %v1755, 0
        %v2101 = vsel %vm614, %v1756, 0
        %v2104 = vsel %vm614, %v1757, 0
        %v2107 = vsel %vm614, %v1758, 0
        %v2110 = vsel %vm614, %v1759, 0
        %v2113 = vsel %vm614, %v1760, 0
        %v2116 = vsel %vm614, %v1761, 0
        %v2119 = vsel %vm1485, %v1843, 0
        %2121 = vmatprep.subr.bf16.mxu0 0
        %2122 = vmatpush1.bf16.msra.mxu0 %v2119
        %2123 = vmatprep.subr.bf16.mxu0 0
        %2124 = vmatpush1.bf16.msra.mxu0 0
        %2125 = vmatprep.subr.bf16.mxu0 0
        %2126 = vmatpush1.bf16.msra.mxu0 0
        %2127 = vmatprep.subr.bf16.mxu0 0
        %2128 = vmatpush1.bf16.msra.mxu0 0
        %2129 = vmatprep.subr.bf16.mxu0 0
        %2130 = vmatpush1.bf16.msra.mxu0 0
        %2131 = vmatprep.subr.bf16.mxu0 0
        %2132 = vmatpush1.bf16.msra.mxu0 0
        %2133 = vmatprep.subr.bf16.mxu0 0
        %2134 = vmatpush1.bf16.msra.mxu0 0
        %2135 = vmatprep.subr.bf16.mxu0 0
        %2136 = vmatpush1.bf16.msra.mxu0 0
        %2137 = vmatprep.subr.bf16.mxu0 0
        %2138 = vmatpush1.bf16.msra.mxu0 0
        %2139 = vmatprep.subr.bf16.mxu0 0
        %2140 = vmatpush1.bf16.msra.mxu0 0
        %2141 = vmatprep.subr.bf16.mxu0 0
        %2142 = vmatpush1.bf16.msra.mxu0 0
        %2143 = vmatprep.subr.bf16.mxu0 0
        %2144 = vmatpush1.bf16.msra.mxu0 0
        %2145 = vmatprep.subr.bf16.mxu0 0
        %2146 = vmatpush1.bf16.msra.mxu0 0
        %2147 = vmatprep.subr.bf16.mxu0 0
        %2148 = vmatpush1.bf16.msra.mxu0 0
        %2149 = vmatprep.subr.bf16.mxu0 0
        %2150 = vmatpush1.bf16.msra.mxu0 0
        %2151 = vmatprep.subr.bf16.mxu0 0
        %2152 = vmatpush1.bf16.msra.mxu0 0
        %2153 = vmatprep.mubr.bf16.mxu0 0
        %2154 = vmatmul.mubr.bf16.gmra.mrb[0].mxu0 %v2071
        %v2155 = vpop.f32.mrb[0].mxu0
        %v2156 = vadd.f32 %v1944, %v2155
        %v2157 = vpop.f32.mrb[0].mxu0
        %v2158 = vpop.f32.mrb[0].mxu0
        %v2159 = vadd.f32 %v1947, %v2158
        %v2160 = vpop.f32.mrb[0].mxu0
        %2161 = vmatprep.mubr.bf16.mxu0 0
        %2162 = vmatmul.mubr.bf16.gmra.mrb[0].mxu0 %v2074
        %v2163 = vpop.f32.mrb[0].mxu0
        %v2164 = vadd.f32 %v1952, %v2163
        %v2165 = vpop.f32.mrb[0].mxu0
        %v2166 = vpop.f32.mrb[0].mxu0
        %v2167 = vadd.f32 %v1955, %v2166
        %v2168 = vpop.f32.mrb[0].mxu0
        %2169 = vmatprep.mubr.bf16.mxu0 0
        %2170 = vmatmul.mubr.bf16.gmra.mrb[0].mxu0 %v2077
        %v2171 = vpop.f32.mrb[0].mxu0
        %v2172 = vadd.f32 %v1960, %v2171
        %v2173 = vpop.f32.mrb[0].mxu0
        %v2174 = vpop.f32.mrb[0].mxu0
        %v2175 = vadd.f32 %v1963, %v2174
        %v2176 = vpop.f32.mrb[0].mxu0
        %2177 = vmatprep.mubr.bf16.mxu0 0
        %2178 = vmatmul.mubr.bf16.gmra.mrb[0].mxu0 %v2080
        %v2179 = vpop.f32.mrb[0].mxu0
        %v2180 = vadd.f32 %v1968, %v2179
        %v2181 = vpop.f32.mrb[0].mxu0
        %v2182 = vpop.f32.mrb[0].mxu0
        %v2183 = vadd.f32 %v1971, %v2182
        %v2184 = vpop.f32.mrb[0].mxu0
        %2185 = vmatprep.mubr.bf16.mxu0 0
        %2186 = vmatmul.mubr.bf16.gmra.mrb[0].mxu0 %v2083
        %v2187 = vpop.f32.mrb[0].mxu0
        %v2188 = vadd.f32 %v1976, %v2187
        %v2189 = vpop.f32.mrb[0].mxu0
        %v2190 = vpop.f32.mrb[0].mxu0
        %v2191 = vadd.f32 %v1979, %v2190
        %v2192 = vpop.f32.mrb[0].mxu0
        %2193 = vmatprep.mubr.bf16.mxu0 0
        %2194 = vmatmul.mubr.bf16.gmra.mrb[0].mxu0 %v2086
        %v2195 = vpop.f32.mrb[0].mxu0
        %v2196 = vadd.f32 %v1984, %v2195
        %v2197 = vpop.f32.mrb[0].mxu0
        %v2198 = vpop.f32.mrb[0].mxu0
        %v2199 = vadd.f32 %v1987, %v2198
        %v2200 = vpop.f32.mrb[0].mxu0
        %2201 = vmatprep.mubr.bf16.mxu0 0
        %2202 = vmatmul.mubr.bf16.gmra.mrb[0].mxu0 %v2089
        %v2203 = vpop.f32.mrb[0].mxu0
        %v2204 = vadd.f32 %v1992, %v2203
        %v2205 = vpop.f32.mrb[0].mxu0
        %v2206 = vpop.f32.mrb[0].mxu0
        %v2207 = vadd.f32 %v1995, %v2206
        %v2208 = vpop.f32.mrb[0].mxu0
        %2209 = vmatprep.mubr.bf16.mxu0 0
        %2210 = vmatmul.mubr.bf16.gmra.mrb[0].mxu0 %v2092
        %v2211 = vpop.f32.mrb[0].mxu0
        %v2212 = vadd.f32 %v2000, %v2211
        %v2213 = vpop.f32.mrb[0].mxu0
        %v2214 = vpop.f32.mrb[0].mxu0
        %v2215 = vadd.f32 %v2003, %v2214
        %v2216 = vpop.f32.mrb[0].mxu0
        %2217 = vmatprep.mubr.bf16.mxu0 0
        %2218 = vmatmul.mubr.bf16.gmra.mrb[0].mxu0 %v2095
        %v2219 = vpop.f32.mrb[0].mxu0
        %v2220 = vadd.f32 %v2008, %v2219
        %v2221 = vpop.f32.mrb[0].mxu0
        %v2222 = vpop.f32.mrb[0].mxu0
        %v2223 = vadd.f32 %v2011, %v2222
        %v2224 = vpop.f32.mrb[0].mxu0
        %2225 = vmatprep.mubr.bf16.mxu0 0
        %2226 = vmatmul.mubr.bf16.gmra.mrb[0].mxu0 %v2098
        %v2227 = vpop.f32.mrb[0].mxu0
        %v2228 = vadd.f32 %v2016, %v2227
        %v2229 = vpop.f32.mrb[0].mxu0
        %v2230 = vpop.f32.mrb[0].mxu0
        %v2231 = vadd.f32 %v2019, %v2230
        %v2232 = vpop.f32.mrb[0].mxu0
        %2233 = vmatprep.mubr.bf16.mxu0 0
        %2234 = vmatmul.mubr.bf16.gmra.mrb[0].mxu0 %v2101
        %v2235 = vpop.f32.mrb[0].mxu0
        %v2236 = vadd.f32 %v2024, %v2235
        %v2237 = vpop.f32.mrb[0].mxu0
        %v2238 = vpop.f32.mrb[0].mxu0
        %v2239 = vadd.f32 %v2027, %v2238
        %v2240 = vpop.f32.mrb[0].mxu0
        %2241 = vmatprep.mubr.bf16.mxu0 0
        %2242 = vmatmul.mubr.bf16.gmra.mrb[0].mxu0 %v2104
        %v2243 = vpop.f32.mrb[0].mxu0
        %v2244 = vadd.f32 %v2032, %v2243
        %v2245 = vpop.f32.mrb[0].mxu0
        %v2246 = vpop.f32.mrb[0].mxu0
        %v2247 = vadd.f32 %v2035, %v2246
        %v2248 = vpop.f32.mrb[0].mxu0
        %2249 = vmatprep.mubr.bf16.mxu0 0
        %2250 = vmatmul.mubr.bf16.gmra.mrb[0].mxu0 %v2107
        %v2251 = vpop.f32.mrb[0].mxu0
        %v2252 = vadd.f32 %v2040, %v2251
        %v2253 = vpop.f32.mrb[0].mxu0
        %v2254 = vpop.f32.mrb[0].mxu0
        %v2255 = vadd.f32 %v2043, %v2254
        %v2256 = vpop.f32.mrb[0].mxu0
        %2257 = vmatprep.mubr.bf16.mxu0 0
        %2258 = vmatmul.mubr.bf16.gmra.mrb[0].mxu0 %v2110
        %v2259 = vpop.f32.mrb[0].mxu0
        %v2260 = vadd.f32 %v2048, %v2259
        %v2261 = vpop.f32.mrb[0].mxu0
        %v2262 = vpop.f32.mrb[0].mxu0
        %v2263 = vadd.f32 %v2051, %v2262
        %v2264 = vpop.f32.mrb[0].mxu0
        %2265 = vmatprep.mubr.bf16.mxu0 0
        %2266 = vmatmul.mubr.bf16.gmra.mrb[0].mxu0 %v2113
        %v2267 = vpop.f32.mrb[0].mxu0
        %v2268 = vadd.f32 %v2056, %v2267
        %v2269 = vpop.f32.mrb[0].mxu0
        %v2270 = vpop.f32.mrb[0].mxu0
        %v2271 = vadd.f32 %v2059, %v2270
        %v2272 = vpop.f32.mrb[0].mxu0
        %2273 = vmatprep.mubr.bf16.mxu0 0
        %2274 = vmatmul.mubr.bf16.gmra.mrb[0].mxu0 %v2116
        %v2275 = vpop.f32.mrb[0].mxu0
        %v2276 = vadd.f32 %v2064, %v2275
        %v2277 = vpop.f32.mrb[0].mxu0
        %v2278 = vpop.f32.mrb[0].mxu0
        %v2279 = vadd.f32 %v2067, %v2278
        %v2280 = vpop.f32.mrb[0].mxu0
        %2281 = vdwg.mxu0
        %v2282 = vadd.f32 %v1810, %v2156
        %v2283 = vadd.f32 %v1811, %v2159
        %v2284 = vadd.f32 %v1812, %v2164
        %v2285 = vadd.f32 %v1813, %v2167
        %v2286 = vadd.f32 %v1814, %v2172
        %v2287 = vadd.f32 %v1815, %v2175
        %v2288 = vadd.f32 %v1816, %v2180
        %v2289 = vadd.f32 %v1817, %v2183
        %v2290 = vadd.f32 %v1818, %v2188
        %v2291 = vadd.f32 %v1819, %v2191
        %v2292 = vadd.f32 %v1820, %v2196
        %v2293 = vadd.f32 %v1821, %v2199
        %v2294 = vadd.f32 %v1822, %v2204
        %v2295 = vadd.f32 %v1823, %v2207
        %v2296 = vadd.f32 %v1824, %v2212
        %v2297 = vadd.f32 %v1825, %v2215
        %v2298 = vadd.f32 %v1826, %v2220
        %v2299 = vadd.f32 %v1827, %v2223
        %v2300 = vadd.f32 %v1828, %v2228
        %v2301 = vadd.f32 %v1829, %v2231
        %v2302 = vadd.f32 %v1830, %v2236
        %v2303 = vadd.f32 %v1831, %v2239
        %v2304 = vadd.f32 %v1832, %v2244
        %v2305 = vadd.f32 %v1833, %v2247
        %v2306 = vadd.f32 %v1834, %v2252
        %v2307 = vadd.f32 %v1835, %v2255
        %v2308 = vadd.f32 %v1836, %v2260
        %v2309 = vadd.f32 %v1837, %v2263
        %v2310 = vadd.f32 %v1838, %v2268
        %v2311 = vadd.f32 %v1839, %v2271
        %v2312 = vadd.f32 %v1840, %v2276
        %v2313 = vadd.f32 %v1841, %v2279
        %2314 = vst [vmem:[#allocation4] sm:$0xff] %v2282
        %2315 = vst [vmem:[#allocation4 + $0x8] sm:$0xff] %v2283
        %2316 = vst [vmem:[#allocation4 + $0x10] sm:$0xff] %v2284
        %2317 = vst [vmem:[#allocation4 + $0x18] sm:$0xff] %v2285
        %2318 = vst [vmem:[#allocation4 + $0x20] sm:$0xff] %v2286
        %2319 = vst [vmem:[#allocation4 + $0x28] sm:$0xff] %v2287
        %2320 = vst [vmem:[#allocation4 + $0x30] sm:$0xff] %v2288
        %2321 = vst [vmem:[#allocation4 + $0x38] sm:$0xff] %v2289
        %2322 = vst [vmem:[#allocation4 + $0x40] sm:$0xff] %v2290
        %2323 = vst [vmem:[#allocation4 + $0x48] sm:$0xff] %v2291
        %2324 = vst [vmem:[#allocation4 + $0x50] sm:$0xff] %v2292
        %2325 = vst [vmem:[#allocation4 + $0x58] sm:$0xff] %v2293
        %2326 = vst [vmem:[#allocation4 + $0x60] sm:$0xff] %v2294
        %2327 = vst [vmem:[#allocation4 + $0x68] sm:$0xff] %v2295
        %2328 = vst [vmem:[#allocation4 + $0x70] sm:$0xff] %v2296
        %2329 = vst [vmem:[#allocation4 + $0x78] sm:$0xff] %v2297
        %2330 = vst [vmem:[#allocation4 + $0x80] sm:$0xff] %v2298
        %2331 = vst [vmem:[#allocation4 + $0x88] sm:$0xff] %v2299
        %2332 = vst [vmem:[#allocation4 + $0x90] sm:$0xff] %v2300
        %2333 = vst [vmem:[#allocation4 + $0x98] sm:$0xff] %v2301
        %2334 = vst [vmem:[#allocation4 + $0xa0] sm:$0xff] %v2302
        %2335 = vst [vmem:[#allocation4 + $0xa8] sm:$0xff] %v2303
        %2336 = vst [vmem:[#allocation4 + $0xb0] sm:$0xff] %v2304
        %2337 = vst [vmem:[#allocation4 + $0xb8] sm:$0xff] %v2305
        %2338 = vst [vmem:[#allocation4 + $0xc0] sm:$0xff] %v2306
        %2339 = vst [vmem:[#allocation4 + $0xc8] sm:$0xff] %v2307
        %2340 = vst [vmem:[#allocation4 + $0xd0] sm:$0xff] %v2308
        %2341 = vst [vmem:[#allocation4 + $0xd8] sm:$0xff] %v2309
        %2342 = vst [vmem:[#allocation4 + $0xe0] sm:$0xff] %v2310
        %2343 = vst [vmem:[#allocation4 + $0xe8] sm:$0xff] %v2311
        %2344 = vst [vmem:[#allocation4 + $0xf0] sm:$0xff] %v2312
        %2345 = vst [vmem:[#allocation4 + $0xf8] sm:$0xff] %v2313
        %v2346 = vld [vmem:[#allocation2 + $0x2] sm:$0xff]
        %v2347 = vld [vmem:[#allocation2 + $0xa] sm:$0xff]
        %v2348 = vld [vmem:[#allocation2 + $0x1a] sm:$0xff]
        %v2349 = vld [vmem:[#allocation2 + $0x22] sm:$0xff]
        %v2350 = vld [vmem:[#allocation2 + $0x32] sm:$0xff]
        %v2351 = vld [vmem:[#allocation2 + $0x3a] sm:$0xff]
        %v2352 = vld [vmem:[#allocation2 + $0x4a] sm:$0xff]
        %v2353 = vld [vmem:[#allocation2 + $0x52] sm:$0xff]
        %v2354 = vld [vmem:[#allocation2 + $0x62] sm:$0xff]
        %v2355 = vld [vmem:[#allocation2 + $0x6a] sm:$0xff]
        %v2356 = vld [vmem:[#allocation2 + $0x7a] sm:$0xff]
        %v2357 = vld [vmem:[#allocation2 + $0x82] sm:$0xff]
        %v2358 = vld [vmem:[#allocation2 + $0x92] sm:$0xff]
        %v2359 = vld [vmem:[#allocation2 + $0x9a] sm:$0xff]
        %v2360 = vld [vmem:[#allocation2 + $0xaa] sm:$0xff]
        %v2361 = vld [vmem:[#allocation2 + $0xb2] sm:$0xff]
        %v2362 = vld [vmem:[#allocation2 + $0xc2] sm:$0xff]
        %v2363 = vld [vmem:[#allocation2 + $0xca] sm:$0xff]
        %v2364 = vld [vmem:[#allocation2 + $0xda] sm:$0xff]
        %v2365 = vld [vmem:[#allocation2 + $0xe2] sm:$0xff]
        %v2366 = vld [vmem:[#allocation2 + $0xf2] sm:$0xff]
        %v2367 = vld [vmem:[#allocation2 + $0xfa] sm:$0xff]
        %v2368 = vld [vmem:[#allocation2 + $0x10a] sm:$0xff]
        %v2369 = vld [vmem:[#allocation2 + $0x112] sm:$0xff]
        %v2370 = vld [vmem:[#allocation2 + $0x122] sm:$0xff]
        %v2371 = vld [vmem:[#allocation2 + $0x12a] sm:$0xff]
        %v2372 = vld [vmem:[#allocation2 + $0x13a] sm:$0xff]
        %v2373 = vld [vmem:[#allocation2 + $0x142] sm:$0xff]
        %v2374 = vld [vmem:[#allocation2 + $0x152] sm:$0xff]
        %v2375 = vld [vmem:[#allocation2 + $0x15a] sm:$0xff]
        %v2376 = vld [vmem:[#allocation2 + $0x16a] sm:$0xff]
        %v2377 = vld [vmem:[#allocation2 + $0x172] sm:$0xff]
        %v2378 = vpack.c.bf16 %v2347, %v2346
        %v2379 = vpack.c.bf16 %v2349, %v2348
        %v2380 = vpack.c.bf16 %v2351, %v2350
        %v2381 = vpack.c.bf16 %v2353, %v2352
        %v2382 = vpack.c.bf16 %v2355, %v2354
        %v2383 = vpack.c.bf16 %v2357, %v2356
        %v2384 = vpack.c.bf16 %v2359, %v2358
        %v2385 = vpack.c.bf16 %v2361, %v2360
        %v2386 = vpack.c.bf16 %v2363, %v2362
        %v2387 = vpack.c.bf16 %v2365, %v2364
        %v2388 = vpack.c.bf16 %v2367, %v2366
        %v2389 = vpack.c.bf16 %v2369, %v2368
        %v2390 = vpack.c.bf16 %v2371, %v2370
        %v2391 = vpack.c.bf16 %v2373, %v2372
        %v2392 = vpack.c.bf16 %v2375, %v2374
        %v2393 = vpack.c.bf16 %v2377, %v2376
        %v2394 = vld [vmem:[#allocation3 + $0x2] sm:$0xff]
        %v2395 = vld [vmem:[#allocation3 + $0xa] sm:$0xff]
        %v2396 = vld [vmem:[#allocation3 + $0x1a] sm:$0xff]
        %v2397 = vld [vmem:[#allocation3 + $0x22] sm:$0xff]
        %v2398 = vld [vmem:[#allocation3 + $0x32] sm:$0xff]
        %v2399 = vld [vmem:[#allocation3 + $0x3a] sm:$0xff]
        %v2400 = vld [vmem:[#allocation3 + $0x4a] sm:$0xff]
        %v2401 = vld [vmem:[#allocation3 + $0x52] sm:$0xff]
        %v2402 = vld [vmem:[#allocation3 + $0x62] sm:$0xff]
        %v2403 = vld [vmem:[#allocation3 + $0x6a] sm:$0xff]
        %v2404 = vld [vmem:[#allocation3 + $0x7a] sm:$0xff]
        %v2405 = vld [vmem:[#allocation3 + $0x82] sm:$0xff]
        %v2406 = vld [vmem:[#allocation3 + $0x92] sm:$0xff]
        %v2407 = vld [vmem:[#allocation3 + $0x9a] sm:$0xff]
        %v2408 = vld [vmem:[#allocation3 + $0xaa] sm:$0xff]
        %v2409 = vld [vmem:[#allocation3 + $0xb2] sm:$0xff]
        %v2410 = vld [vmem:[#allocation3 + $0xc2] sm:$0xff]
        %v2411 = vld [vmem:[#allocation3 + $0xca] sm:$0xff]
        %v2412 = vld [vmem:[#allocation3 + $0xda] sm:$0xff]
        %v2413 = vld [vmem:[#allocation3 + $0xe2] sm:$0xff]
        %v2414 = vld [vmem:[#allocation3 + $0xf2] sm:$0xff]
        %v2415 = vld [vmem:[#allocation3 + $0xfa] sm:$0xff]
        %v2416 = vld [vmem:[#allocation3 + $0x10a] sm:$0xff]
        %v2417 = vld [vmem:[#allocation3 + $0x112] sm:$0xff]
        %v2418 = vld [vmem:[#allocation3 + $0x122] sm:$0xff]
        %v2419 = vld [vmem:[#allocation3 + $0x12a] sm:$0xff]
        %v2420 = vld [vmem:[#allocation3 + $0x13a] sm:$0xff]
        %v2421 = vld [vmem:[#allocation3 + $0x142] sm:$0xff]
        %v2422 = vld [vmem:[#allocation3 + $0x152] sm:$0xff]
        %v2423 = vld [vmem:[#allocation3 + $0x15a] sm:$0xff]
        %v2424 = vld [vmem:[#allocation3 + $0x16a] sm:$0xff]
        %v2425 = vld [vmem:[#allocation3 + $0x172] sm:$0xff]
        %v2426 = vpack.c.bf16 %v2395, %v2394
        %v2427 = vpack.c.bf16 %v2397, %v2396
        %v2428 = vpack.c.bf16 %v2399, %v2398
        %v2429 = vpack.c.bf16 %v2401, %v2400
        %v2430 = vpack.c.bf16 %v2403, %v2402
        %v2431 = vpack.c.bf16 %v2405, %v2404
        %v2432 = vpack.c.bf16 %v2407, %v2406
        %v2433 = vpack.c.bf16 %v2409, %v2408
        %v2434 = vpack.c.bf16 %v2411, %v2410
        %v2435 = vpack.c.bf16 %v2413, %v2412
        %v2436 = vpack.c.bf16 %v2415, %v2414
        %v2437 = vpack.c.bf16 %v2417, %v2416
        %v2438 = vpack.c.bf16 %v2419, %v2418
        %v2439 = vpack.c.bf16 %v2421, %v2420
        %v2440 = vpack.c.bf16 %v2423, %v2422
        %v2441 = vpack.c.bf16 %v2425, %v2424
        %v2442 = vld [vmem:[#allocation4] sm:$0xff]
        %v2443 = vld [vmem:[#allocation4 + $0x8] sm:$0xff]
        %v2444 = vld [vmem:[#allocation4 + $0x10] sm:$0xff]
        %v2445 = vld [vmem:[#allocation4 + $0x18] sm:$0xff]
        %v2446 = vld [vmem:[#allocation4 + $0x20] sm:$0xff]
        %v2447 = vld [vmem:[#allocation4 + $0x28] sm:$0xff]
        %v2448 = vld [vmem:[#allocation4 + $0x30] sm:$0xff]
        %v2449 = vld [vmem:[#allocation4 + $0x38] sm:$0xff]
        %v2450 = vld [vmem:[#allocation4 + $0x40] sm:$0xff]
        %v2451 = vld [vmem:[#allocation4 + $0x48] sm:$0xff]
        %v2452 = vld [vmem:[#allocation4 + $0x50] sm:$0xff]
        %v2453 = vld [vmem:[#allocation4 + $0x58] sm:$0xff]
        %v2454 = vld [vmem:[#allocation4 + $0x60] sm:$0xff]
        %v2455 = vld [vmem:[#allocation4 + $0x68] sm:$0xff]
        %v2456 = vld [vmem:[#allocation4 + $0x70] sm:$0xff]
        %v2457 = vld [vmem:[#allocation4 + $0x78] sm:$0xff]
        %v2458 = vld [vmem:[#allocation4 + $0x80] sm:$0xff]
        %v2459 = vld [vmem:[#allocation4 + $0x88] sm:$0xff]
        %v2460 = vld [vmem:[#allocation4 + $0x90] sm:$0xff]
        %v2461 = vld [vmem:[#allocation4 + $0x98] sm:$0xff]
        %v2462 = vld [vmem:[#allocation4 + $0xa0] sm:$0xff]
        %v2463 = vld [vmem:[#allocation4 + $0xa8] sm:$0xff]
        %v2464 = vld [vmem:[#allocation4 + $0xb0] sm:$0xff]
        %v2465 = vld [vmem:[#allocation4 + $0xb8] sm:$0xff]
        %v2466 = vld [vmem:[#allocation4 + $0xc0] sm:$0xff]
        %v2467 = vld [vmem:[#allocation4 + $0xc8] sm:$0xff]
        %v2468 = vld [vmem:[#allocation4 + $0xd0] sm:$0xff]
        %v2469 = vld [vmem:[#allocation4 + $0xd8] sm:$0xff]
        %v2470 = vld [vmem:[#allocation4 + $0xe0] sm:$0xff]
        %v2471 = vld [vmem:[#allocation4 + $0xe8] sm:$0xff]
        %v2472 = vld [vmem:[#allocation4 + $0xf0] sm:$0xff]
        %v2473 = vld [vmem:[#allocation4 + $0xf8] sm:$0xff]
        %s2474 = scalar_lea.vmem [#allocation8], 4
        %v2475 = vld [vmem:[%s2474] sm:$0x3]
        %s2476 = scalar_lea.vmem %s4, 32
        %v2477 = vld [vmem:[%s2476] sm:$0xf]
        %v2478 = vld [vmem:[%s2476 + $0x4] sm:$0xf]
        %v2479 = vld [vmem:[%s2476 + $0x8] sm:$0xf]
        %v2480 = vld [vmem:[%s2476 + $0xc] sm:$0xf]
        %v2485 = vunpack.c.l.b16 %v2477
        %v2486 = vunpack.c.l.b16 %v2478
        %v2487 = vunpack.c.l.b16 %v2479
        %v2488 = vunpack.c.l.b16 %v2480
        %v2489 = vpack.c.b16 %v2486, %v2485
        %v2490 = vpack.c.b16 %v2488, %v2487
        %v2494 = vsel %vm823, %v2426, 0
        %v2497 = vsel %vm823, %v2427, 0
        %v2500 = vsel %vm823, %v2428, 0
        %v2503 = vsel %vm823, %v2429, 0
        %v2506 = vsel %vm823, %v2430, 0
        %v2509 = vsel %vm823, %v2431, 0
        %v2512 = vsel %vm823, %v2432, 0
        %v2515 = vsel %vm823, %v2433, 0
        %v2518 = vsel %vm823, %v2434, 0
        %v2521 = vsel %vm823, %v2435, 0
        %v2524 = vsel %vm823, %v2436, 0
        %v2527 = vsel %vm823, %v2437, 0
        %v2530 = vsel %vm823, %v2438, 0
        %v2533 = vsel %vm823, %v2439, 0
        %v2536 = vsel %vm823, %v2440, 0
        %v2539 = vsel %vm823, %v2441, 0
        %2541 = vmatprep.subr.bf16.mxu0 0
        %2542 = vmatpush1.bf16.msra.mxu0 %v2489
        %2543 = vmatprep.subr.bf16.mxu0 0
        %2544 = vmatpush1.bf16.msra.mxu0 %v2490
        %2545 = vmatprep.subr.bf16.mxu0 0
        %2546 = vmatpush1.bf16.msra.mxu0 0
        %2547 = vmatprep.subr.bf16.mxu0 0
        %2548 = vmatpush1.bf16.msra.mxu0 0
        %2549 = vmatprep.subr.bf16.mxu0 0
        %2550 = vmatpush1.bf16.msra.mxu0 0
        %2551 = vmatprep.subr.bf16.mxu0 0
        %2552 = vmatpush1.bf16.msra.mxu0 0
        %2553 = vmatprep.subr.bf16.mxu0 0
        %2554 = vmatpush1.bf16.msra.mxu0 0
        %2555 = vmatprep.subr.bf16.mxu0 0
        %2556 = vmatpush1.bf16.msra.mxu0 0
        %2557 = vmatprep.subr.bf16.mxu0 0
        %2558 = vmatpush1.bf16.msra.mxu0 0
        %2559 = vmatprep.subr.bf16.mxu0 0
        %2560 = vmatpush1.bf16.msra.mxu0 0
        %2561 = vmatprep.subr.bf16.mxu0 0
        %2562 = vmatpush1.bf16.msra.mxu0 0
        %2563 = vmatprep.subr.bf16.mxu0 0
        %2564 = vmatpush1.bf16.msra.mxu0 0
        %2565 = vmatprep.subr.bf16.mxu0 0
        %2566 = vmatpush1.bf16.msra.mxu0 0
        %2567 = vmatprep.subr.bf16.mxu0 0
        %2568 = vmatpush1.bf16.msra.mxu0 0
        %2569 = vmatprep.subr.bf16.mxu0 0
        %2570 = vmatpush1.bf16.msra.mxu0 0
        %2571 = vmatprep.subr.bf16.mxu0 0
        %2572 = vmatpush1.bf16.msra.mxu0 0
        %2573 = vmatprep.mubr.bf16.mxu0 0
        %2574 = vmatmul.mubr.bf16.gmra.mrb[0].mxu0 %v2494
        %v2575 = vpop.f32.mrb[0].mxu0
        %v2576 = vadd.f32 0.0, %v2575
        %v2577 = vpop.f32.mrb[0].mxu0
        %v2578 = vpop.f32.mrb[0].mxu0
        %v2579 = vadd.f32 0.0, %v2578
        %v2580 = vpop.f32.mrb[0].mxu0
        %2581 = vmatprep.mubr.bf16.mxu0 0
        %2582 = vmatmul.mubr.bf16.gmra.mrb[0].mxu0 %v2497
        %v2583 = vpop.f32.mrb[0].mxu0
        %v2584 = vadd.f32 0.0, %v2583
        %v2585 = vpop.f32.mrb[0].mxu0
        %v2586 = vpop.f32.mrb[0].mxu0
        %v2587 = vadd.f32 0.0, %v2586
        %v2588 = vpop.f32.mrb[0].mxu0
        %2589 = vmatprep.mubr.bf16.mxu0 0
        %2590 = vmatmul.mubr.bf16.gmra.mrb[0].mxu0 %v2500
        %v2591 = vpop.f32.mrb[0].mxu0
        %v2592 = vadd.f32 0.0, %v2591
        %v2593 = vpop.f32.mrb[0].mxu0
        %v2594 = vpop.f32.mrb[0].mxu0
        %v2595 = vadd.f32 0.0, %v2594
        %v2596 = vpop.f32.mrb[0].mxu0
        %2597 = vmatprep.mubr.bf16.mxu0 0
        %2598 = vmatmul.mubr.bf16.gmra.mrb[0].mxu0 %v2503
        %v2599 = vpop.f32.mrb[0].mxu0
        %v2600 = vadd.f32 0.0, %v2599
        %v2601 = vpop.f32.mrb[0].mxu0
        %v2602 = vpop.f32.mrb[0].mxu0
        %v2603 = vadd.f32 0.0, %v2602
        %v2604 = vpop.f32.mrb[0].mxu0
        %2605 = vmatprep.mubr.bf16.mxu0 0
        %2606 = vmatmul.mubr.bf16.gmra.mrb[0].mxu0 %v2506
        %v2607 = vpop.f32.mrb[0].mxu0
        %v2608 = vadd.f32 0.0, %v2607
        %v2609 = vpop.f32.mrb[0].mxu0
        %v2610 = vpop.f32.mrb[0].mxu0
        %v2611 = vadd.f32 0.0, %v2610
        %v2612 = vpop.f32.mrb[0].mxu0
        %2613 = vmatprep.mubr.bf16.mxu0 0
        %2614 = vmatmul.mubr.bf16.gmra.mrb[0].mxu0 %v2509
        %v2615 = vpop.f32.mrb[0].mxu0
        %v2616 = vadd.f32 0.0, %v2615
        %v2617 = vpop.f32.mrb[0].mxu0
        %v2618 = vpop.f32.mrb[0].mxu0
        %v2619 = vadd.f32 0.0, %v2618
        %v2620 = vpop.f32.mrb[0].mxu0
        %2621 = vmatprep.mubr.bf16.mxu0 0
        %2622 = vmatmul.mubr.bf16.gmra.mrb[0].mxu0 %v2512
        %v2623 = vpop.f32.mrb[0].mxu0
        %v2624 = vadd.f32 0.0, %v2623
        %v2625 = vpop.f32.mrb[0].mxu0
        %v2626 = vpop.f32.mrb[0].mxu0
        %v2627 = vadd.f32 0.0, %v2626
        %v2628 = vpop.f32.mrb[0].mxu0
        %2629 = vmatprep.mubr.bf16.mxu0 0
        %2630 = vmatmul.mubr.bf16.gmra.mrb[0].mxu0 %v2515
        %v2631 = vpop.f32.mrb[0].mxu0
        %v2632 = vadd.f32 0.0, %v2631
        %v2633 = vpop.f32.mrb[0].mxu0
        %v2634 = vpop.f32.mrb[0].mxu0
        %v2635 = vadd.f32 0.0, %v2634
        %v2636 = vpop.f32.mrb[0].mxu0
        %2637 = vmatprep.mubr.bf16.mxu0 0
        %2638 = vmatmul.mubr.bf16.gmra.mrb[0].mxu0 %v2518
        %v2639 = vpop.f32.mrb[0].mxu0
        %v2640 = vadd.f32 0.0, %v2639
        %v2641 = vpop.f32.mrb[0].mxu0
        %v2642 = vpop.f32.mrb[0].mxu0
        %v2643 = vadd.f32 0.0, %v2642
        %v2644 = vpop.f32.mrb[0].mxu0
        %2645 = vmatprep.mubr.bf16.mxu0 0
        %2646 = vmatmul.mubr.bf16.gmra.mrb[0].mxu0 %v2521
        %v2647 = vpop.f32.mrb[0].mxu0
        %v2648 = vadd.f32 0.0, %v2647
        %v2649 = vpop.f32.mrb[0].mxu0
        %v2650 = vpop.f32.mrb[0].mxu0
        %v2651 = vadd.f32 0.0, %v2650
        %v2652 = vpop.f32.mrb[0].mxu0
        %2653 = vmatprep.mubr.bf16.mxu0 0
        %2654 = vmatmul.mubr.bf16.gmra.mrb[0].mxu0 %v2524
        %v2655 = vpop.f32.mrb[0].mxu0
        %v2656 = vadd.f32 0.0, %v2655
        %v2657 = vpop.f32.mrb[0].mxu0
        %v2658 = vpop.f32.mrb[0].mxu0
        %v2659 = vadd.f32 0.0, %v2658
        %v2660 = vpop.f32.mrb[0].mxu0
        %2661 = vmatprep.mubr.bf16.mxu0 0
        %2662 = vmatmul.mubr.bf16.gmra.mrb[0].mxu0 %v2527
        %v2663 = vpop.f32.mrb[0].mxu0
        %v2664 = vadd.f32 0.0, %v2663
        %v2665 = vpop.f32.mrb[0].mxu0
        %v2666 = vpop.f32.mrb[0].mxu0
        %v2667 = vadd.f32 0.0, %v2666
        %v2668 = vpop.f32.mrb[0].mxu0
        %2669 = vmatprep.mubr.bf16.mxu0 0
        %2670 = vmatmul.mubr.bf16.gmra.mrb[0].mxu0 %v2530
        %v2671 = vpop.f32.mrb[0].mxu0
        %v2672 = vadd.f32 0.0, %v2671
        %v2673 = vpop.f32.mrb[0].mxu0
        %v2674 = vpop.f32.mrb[0].mxu0
        %v2675 = vadd.f32 0.0, %v2674
        %v2676 = vpop.f32.mrb[0].mxu0
        %2677 = vmatprep.mubr.bf16.mxu0 0
        %2678 = vmatmul.mubr.bf16.gmra.mrb[0].mxu0 %v2533
        %v2679 = vpop.f32.mrb[0].mxu0
        %v2680 = vadd.f32 0.0, %v2679
        %v2681 = vpop.f32.mrb[0].mxu0
        %v2682 = vpop.f32.mrb[0].mxu0
        %v2683 = vadd.f32 0.0, %v2682
        %v2684 = vpop.f32.mrb[0].mxu0
        %2685 = vmatprep.mubr.bf16.mxu0 0
        %2686 = vmatmul.mubr.bf16.gmra.mrb[0].mxu0 %v2536
        %v2687 = vpop.f32.mrb[0].mxu0
        %v2688 = vadd.f32 0.0, %v2687
        %v2689 = vpop.f32.mrb[0].mxu0
        %v2690 = vpop.f32.mrb[0].mxu0
        %v2691 = vadd.f32 0.0, %v2690
        %v2692 = vpop.f32.mrb[0].mxu0
        %2693 = vmatprep.mubr.bf16.mxu0 0
        %2694 = vmatmul.mubr.bf16.gmra.mrb[0].mxu0 %v2539
        %v2695 = vpop.f32.mrb[0].mxu0
        %v2696 = vadd.f32 0.0, %v2695
        %v2697 = vpop.f32.mrb[0].mxu0
        %v2698 = vpop.f32.mrb[0].mxu0
        %v2699 = vadd.f32 0.0, %v2698
        %v2700 = vpop.f32.mrb[0].mxu0
        %2701 = vdwg.mxu0
        %v2703 = vsel %vm614, %v2378, 0
        %v2706 = vsel %vm614, %v2379, 0
        %v2709 = vsel %vm614, %v2380, 0
        %v2712 = vsel %vm614, %v2381, 0
        %v2715 = vsel %vm614, %v2382, 0
        %v2718 = vsel %vm614, %v2383, 0
        %v2721 = vsel %vm614, %v2384, 0
        %v2724 = vsel %vm614, %v2385, 0
        %v2727 = vsel %vm614, %v2386, 0
        %v2730 = vsel %vm614, %v2387, 0
        %v2733 = vsel %vm614, %v2388, 0
        %v2736 = vsel %vm614, %v2389, 0
        %v2739 = vsel %vm614, %v2390, 0
        %v2742 = vsel %vm614, %v2391, 0
        %v2745 = vsel %vm614, %v2392, 0
        %v2748 = vsel %vm614, %v2393, 0
        %v2751 = vsel %vm1485, %v2475, 0
        %2753 = vmatprep.subr.bf16.mxu0 0
        %2754 = vmatpush1.bf16.msra.mxu0 %v2751
        %2755 = vmatprep.subr.bf16.mxu0 0
        %2756 = vmatpush1.bf16.msra.mxu0 0
        %2757 = vmatprep.subr.bf16.mxu0 0
        %2758 = vmatpush1.bf16.msra.mxu0 0
        %2759 = vmatprep.subr.bf16.mxu0 0
        %2760 = vmatpush1.bf16.msra.mxu0 0
        %2761 = vmatprep.subr.bf16.mxu0 0
        %2762 = vmatpush1.bf16.msra.mxu0 0
        %2763 = vmatprep.subr.bf16.mxu0 0
        %2764 = vmatpush1.bf16.msra.mxu0 0
        %2765 = vmatprep.subr.bf16.mxu0 0
        %2766 = vmatpush1.bf16.msra.mxu0 0
        %2767 = vmatprep.subr.bf16.mxu0 0
        %2768 = vmatpush1.bf16.msra.mxu0 0
        %2769 = vmatprep.subr.bf16.mxu0 0
        %2770 = vmatpush1.bf16.msra.mxu0 0
        %2771 = vmatprep.subr.bf16.mxu0 0
        %2772 = vmatpush1.bf16.msra.mxu0 0
        %2773 = vmatprep.subr.bf16.mxu0 0
        %2774 = vmatpush1.bf16.msra.mxu0 0
        %2775 = vmatprep.subr.bf16.mxu0 0
        %2776 = vmatpush1.bf16.msra.mxu0 0
        %2777 = vmatprep.subr.bf16.mxu0 0
        %2778 = vmatpush1.bf16.msra.mxu0 0
        %2779 = vmatprep.subr.bf16.mxu0 0
        %2780 = vmatpush1.bf16.msra.mxu0 0
        %2781 = vmatprep.subr.bf16.mxu0 0
        %2782 = vmatpush1.bf16.msra.mxu0 0
        %2783 = vmatprep.subr.bf16.mxu0 0
        %2784 = vmatpush1.bf16.msra.mxu0 0
        %2785 = vmatprep.mubr.bf16.mxu0 0
        %2786 = vmatmul.mubr.bf16.gmra.mrb[0].mxu0 %v2703
        %v2787 = vpop.f32.mrb[0].mxu0
        %v2788 = vadd.f32 %v2576, %v2787
        %v2789 = vpop.f32.mrb[0].mxu0
        %v2790 = vpop.f32.mrb[0].mxu0
        %v2791 = vadd.f32 %v2579, %v2790
        %v2792 = vpop.f32.mrb[0].mxu0
        %2793 = vmatprep.mubr.bf16.mxu0 0
        %2794 = vmatmul.mubr.bf16.gmra.mrb[0].mxu0 %v2706
        %v2795 = vpop.f32.mrb[0].mxu0
        %v2796 = vadd.f32 %v2584, %v2795
        %v2797 = vpop.f32.mrb[0].mxu0
        %v2798 = vpop.f32.mrb[0].mxu0
        %v2799 = vadd.f32 %v2587, %v2798
        %v2800 = vpop.f32.mrb[0].mxu0
        %2801 = vmatprep.mubr.bf16.mxu0 0
        %2802 = vmatmul.mubr.bf16.gmra.mrb[0].mxu0 %v2709
        %v2803 = vpop.f32.mrb[0].mxu0
        %v2804 = vadd.f32 %v2592, %v2803
        %v2805 = vpop.f32.mrb[0].mxu0
        %v2806 = vpop.f32.mrb[0].mxu0
        %v2807 = vadd.f32 %v2595, %v2806
        %v2808 = vpop.f32.mrb[0].mxu0
        %2809 = vmatprep.mubr.bf16.mxu0 0
        %2810 = vmatmul.mubr.bf16.gmra.mrb[0].mxu0 %v2712
        %v2811 = vpop.f32.mrb[0].mxu0
        %v2812 = vadd.f32 %v2600, %v2811
        %v2813 = vpop.f32.mrb[0].mxu0
        %v2814 = vpop.f32.mrb[0].mxu0
        %v2815 = vadd.f32 %v2603, %v2814
        %v2816 = vpop.f32.mrb[0].mxu0
        %2817 = vmatprep.mubr.bf16.mxu0 0
        %2818 = vmatmul.mubr.bf16.gmra.mrb[0].mxu0 %v2715
        %v2819 = vpop.f32.mrb[0].mxu0
        %v2820 = vadd.f32 %v2608, %v2819
        %v2821 = vpop.f32.mrb[0].mxu0
        %v2822 = vpop.f32.mrb[0].mxu0
        %v2823 = vadd.f32 %v2611, %v2822
        %v2824 = vpop.f32.mrb[0].mxu0
        %2825 = vmatprep.mubr.bf16.mxu0 0
        %2826 = vmatmul.mubr.bf16.gmra.mrb[0].mxu0 %v2718
        %v2827 = vpop.f32.mrb[0].mxu0
        %v2828 = vadd.f32 %v2616, %v2827
        %v2829 = vpop.f32.mrb[0].mxu0
        %v2830 = vpop.f32.mrb[0].mxu0
        %v2831 = vadd.f32 %v2619, %v2830
        %v2832 = vpop.f32.mrb[0].mxu0
        %2833 = vmatprep.mubr.bf16.mxu0 0
        %2834 = vmatmul.mubr.bf16.gmra.mrb[0].mxu0 %v2721
        %v2835 = vpop.f32.mrb[0].mxu0
        %v2836 = vadd.f32 %v2624, %v2835
        %v2837 = vpop.f32.mrb[0].mxu0
        %v2838 = vpop.f32.mrb[0].mxu0
        %v2839 = vadd.f32 %v2627, %v2838
        %v2840 = vpop.f32.mrb[0].mxu0
        %2841 = vmatprep.mubr.bf16.mxu0 0
        %2842 = vmatmul.mubr.bf16.gmra.mrb[0].mxu0 %v2724
        %v2843 = vpop.f32.mrb[0].mxu0
        %v2844 = vadd.f32 %v2632, %v2843
        %v2845 = vpop.f32.mrb[0].mxu0
        %v2846 = vpop.f32.mrb[0].mxu0
        %v2847 = vadd.f32 %v2635, %v2846
        %v2848 = vpop.f32.mrb[0].mxu0
        %2849 = vmatprep.mubr.bf16.mxu0 0
        %2850 = vmatmul.mubr.bf16.gmra.mrb[0].mxu0 %v2727
        %v2851 = vpop.f32.mrb[0].mxu0
        %v2852 = vadd.f32 %v2640, %v2851
        %v2853 = vpop.f32.mrb[0].mxu0
        %v2854 = vpop.f32.mrb[0].mxu0
        %v2855 = vadd.f32 %v2643, %v2854
        %v2856 = vpop.f32.mrb[0].mxu0
        %2857 = vmatprep.mubr.bf16.mxu0 0
        %2858 = vmatmul.mubr.bf16.gmra.mrb[0].mxu0 %v2730
        %v2859 = vpop.f32.mrb[0].mxu0
        %v2860 = vadd.f32 %v2648, %v2859
        %v2861 = vpop.f32.mrb[0].mxu0
        %v2862 = vpop.f32.mrb[0].mxu0
        %v2863 = vadd.f32 %v2651, %v2862
        %v2864 = vpop.f32.mrb[0].mxu0
        %2865 = vmatprep.mubr.bf16.mxu0 0
        %2866 = vmatmul.mubr.bf16.gmra.mrb[0].mxu0 %v2733
        %v2867 = vpop.f32.mrb[0].mxu0
        %v2868 = vadd.f32 %v2656, %v2867
        %v2869 = vpop.f32.mrb[0].mxu0
        %v2870 = vpop.f32.mrb[0].mxu0
        %v2871 = vadd.f32 %v2659, %v2870
        %v2872 = vpop.f32.mrb[0].mxu0
        %2873 = vmatprep.mubr.bf16.mxu0 0
        %2874 = vmatmul.mubr.bf16.gmra.mrb[0].mxu0 %v2736
        %v2875 = vpop.f32.mrb[0].mxu0
        %v2876 = vadd.f32 %v2664, %v2875
        %v2877 = vpop.f32.mrb[0].mxu0
        %v2878 = vpop.f32.mrb[0].mxu0
        %v2879 = vadd.f32 %v2667, %v2878
        %v2880 = vpop.f32.mrb[0].mxu0
        %2881 = vmatprep.mubr.bf16.mxu0 0
        %2882 = vmatmul.mubr.bf16.gmra.mrb[0].mxu0 %v2739
        %v2883 = vpop.f32.mrb[0].mxu0
        %v2884 = vadd.f32 %v2672, %v2883
        %v2885 = vpop.f32.mrb[0].mxu0
        %v2886 = vpop.f32.mrb[0].mxu0
        %v2887 = vadd.f32 %v2675, %v2886
        %v2888 = vpop.f32.mrb[0].mxu0
        %2889 = vmatprep.mubr.bf16.mxu0 0
        %2890 = vmatmul.mubr.bf16.gmra.mrb[0].mxu0 %v2742
        %v2891 = vpop.f32.mrb[0].mxu0
        %v2892 = vadd.f32 %v2680, %v2891
        %v2893 = vpop.f32.mrb[0].mxu0
        %v2894 = vpop.f32.mrb[0].mxu0
        %v2895 = vadd.f32 %v2683, %v2894
        %v2896 = vpop.f32.mrb[0].mxu0
        %2897 = vmatprep.mubr.bf16.mxu0 0
        %2898 = vmatmul.mubr.bf16.gmra.mrb[0].mxu0 %v2745
        %v2899 = vpop.f32.mrb[0].mxu0
        %v2900 = vadd.f32 %v2688, %v2899
        %v2901 = vpop.f32.mrb[0].mxu0
        %v2902 = vpop.f32.mrb[0].mxu0
        %v2903 = vadd.f32 %v2691, %v2902
        %v2904 = vpop.f32.mrb[0].mxu0
        %2905 = vmatprep.mubr.bf16.mxu0 0
        %2906 = vmatmul.mubr.bf16.gmra.mrb[0].mxu0 %v2748
        %v2907 = vpop.f32.mrb[0].mxu0
        %v2908 = vadd.f32 %v2696, %v2907
        %v2909 = vpop.f32.mrb[0].mxu0
        %v2910 = vpop.f32.mrb[0].mxu0
        %v2911 = vadd.f32 %v2699, %v2910
        %v2912 = vpop.f32.mrb[0].mxu0
        %2913 = vdwg.mxu0
        %v2914 = vadd.f32 %v2442, %v2788
        %v2915 = vadd.f32 %v2443, %v2791
        %v2916 = vadd.f32 %v2444, %v2796
        %v2917 = vadd.f32 %v2445, %v2799
        %v2918 = vadd.f32 %v2446, %v2804
        %v2919 = vadd.f32 %v2447, %v2807
        %v2920 = vadd.f32 %v2448, %v2812
        %v2921 = vadd.f32 %v2449, %v2815
        %v2922 = vadd.f32 %v2450, %v2820
        %v2923 = vadd.f32 %v2451, %v2823
        %v2924 = vadd.f32 %v2452, %v2828
        %v2925 = vadd.f32 %v2453, %v2831
        %v2926 = vadd.f32 %v2454, %v2836
        %v2927 = vadd.f32 %v2455, %v2839
        %v2928 = vadd.f32 %v2456, %v2844
        %v2929 = vadd.f32 %v2457, %v2847
        %v2930 = vadd.f32 %v2458, %v2852
        %v2931 = vadd.f32 %v2459, %v2855
        %v2932 = vadd.f32 %v2460, %v2860
        %v2933 = vadd.f32 %v2461, %v2863
        %v2934 = vadd.f32 %v2462, %v2868
        %v2935 = vadd.f32 %v2463, %v2871
        %v2936 = vadd.f32 %v2464, %v2876
        %v2937 = vadd.f32 %v2465, %v2879
        %v2938 = vadd.f32 %v2466, %v2884
        %v2939 = vadd.f32 %v2467, %v2887
        %v2940 = vadd.f32 %v2468, %v2892
        %v2941 = vadd.f32 %v2469, %v2895
        %v2942 = vadd.f32 %v2470, %v2900
        %v2943 = vadd.f32 %v2471, %v2903
        %v2944 = vadd.f32 %v2472, %v2908
        %v2945 = vadd.f32 %v2473, %v2911
        %2946 = vst [vmem:[#allocation4] sm:$0xff] %v2914
        %2947 = vst [vmem:[#allocation4 + $0x8] sm:$0xff] %v2915
        %2948 = vst [vmem:[#allocation4 + $0x10] sm:$0xff] %v2916
        %2949 = vst [vmem:[#allocation4 + $0x18] sm:$0xff] %v2917
        %2950 = vst [vmem:[#allocation4 + $0x20] sm:$0xff] %v2918
        %2951 = vst [vmem:[#allocation4 + $0x28] sm:$0xff] %v2919
        %2952 = vst [vmem:[#allocation4 + $0x30] sm:$0xff] %v2920
        %2953 = vst [vmem:[#allocation4 + $0x38] sm:$0xff] %v2921
        %2954 = vst [vmem:[#allocation4 + $0x40] sm:$0xff] %v2922
        %2955 = vst [vmem:[#allocation4 + $0x48] sm:$0xff] %v2923
        %2956 = vst [vmem:[#allocation4 + $0x50] sm:$0xff] %v2924
        %2957 = vst [vmem:[#allocation4 + $0x58] sm:$0xff] %v2925
        %2958 = vst [vmem:[#allocation4 + $0x60] sm:$0xff] %v2926
        %2959 = vst [vmem:[#allocation4 + $0x68] sm:$0xff] %v2927
        %2960 = vst [vmem:[#allocation4 + $0x70] sm:$0xff] %v2928
        %2961 = vst [vmem:[#allocation4 + $0x78] sm:$0xff] %v2929
        %2962 = vst [vmem:[#allocation4 + $0x80] sm:$0xff] %v2930
        %2963 = vst [vmem:[#allocation4 + $0x88] sm:$0xff] %v2931
        %2964 = vst [vmem:[#allocation4 + $0x90] sm:$0xff] %v2932
        %2965 = vst [vmem:[#allocation4 + $0x98] sm:$0xff] %v2933
        %2966 = vst [vmem:[#allocation4 + $0xa0] sm:$0xff] %v2934
        %2967 = vst [vmem:[#allocation4 + $0xa8] sm:$0xff] %v2935
        %2968 = vst [vmem:[#allocation4 + $0xb0] sm:$0xff] %v2936
        %2969 = vst [vmem:[#allocation4 + $0xb8] sm:$0xff] %v2937
        %2970 = vst [vmem:[#allocation4 + $0xc0] sm:$0xff] %v2938
        %2971 = vst [vmem:[#allocation4 + $0xc8] sm:$0xff] %v2939
        %2972 = vst [vmem:[#allocation4 + $0xd0] sm:$0xff] %v2940
        %2973 = vst [vmem:[#allocation4 + $0xd8] sm:$0xff] %v2941
        %2974 = vst [vmem:[#allocation4 + $0xe0] sm:$0xff] %v2942
        %2975 = vst [vmem:[#allocation4 + $0xe8] sm:$0xff] %v2943
        %2976 = vst [vmem:[#allocation4 + $0xf0] sm:$0xff] %v2944
        %2977 = vst [vmem:[#allocation4 + $0xf8] sm:$0xff] %v2945
        %v2978 = vld [vmem:[%s946] sm:$0xff]
        %v2979 = vld [vmem:[%s946 + $0x8] sm:$0xff]
        %v2980 = vld [vmem:[%s946 + $0x18] sm:$0xff]
        %v2981 = vld [vmem:[%s946 + $0x20] sm:$0xff]
        %v2982 = vld [vmem:[%s946 + $0x30] sm:$0xff]
        %v2983 = vld [vmem:[%s946 + $0x38] sm:$0xff]
        %v2984 = vld [vmem:[%s946 + $0x48] sm:$0xff]
        %v2985 = vld [vmem:[%s946 + $0x50] sm:$0xff]
        %v2986 = vld [vmem:[%s946 + $0x60] sm:$0xff]
        %v2987 = vld [vmem:[%s946 + $0x68] sm:$0xff]
        %v2988 = vld [vmem:[%s946 + $0x78] sm:$0xff]
        %v2989 = vld [vmem:[%s946 + $0x80] sm:$0xff]
        %v2990 = vld [vmem:[%s946 + $0x90] sm:$0xff]
        %v2991 = vld [vmem:[%s946 + $0x98] sm:$0xff]
        %v2992 = vld [vmem:[%s946 + $0xa8] sm:$0xff]
        %v2993 = vld [vmem:[%s946 + $0xb0] sm:$0xff]
        %v2994 = vld [vmem:[%s946 + $0xc0] sm:$0xff]
        %v2995 = vld [vmem:[%s946 + $0xc8] sm:$0xff]
        %v2996 = vld [vmem:[%s946 + $0xd8] sm:$0xff]
        %v2997 = vld [vmem:[%s946 + $0xe0] sm:$0xff]
        %v2998 = vld [vmem:[%s946 + $0xf0] sm:$0xff]
        %v2999 = vld [vmem:[%s946 + $0xf8] sm:$0xff]
        %v3000 = vld [vmem:[%s946 + $0x108] sm:$0xff]
        %v3001 = vld [vmem:[%s946 + $0x110] sm:$0xff]
        %v3002 = vld [vmem:[%s946 + $0x120] sm:$0xff]
        %v3003 = vld [vmem:[%s946 + $0x128] sm:$0xff]
        %v3004 = vld [vmem:[%s946 + $0x138] sm:$0xff]
        %v3005 = vld [vmem:[%s946 + $0x140] sm:$0xff]
        %v3006 = vld [vmem:[%s946 + $0x150] sm:$0xff]
        %v3007 = vld [vmem:[%s946 + $0x158] sm:$0xff]
        %v3008 = vld [vmem:[%s946 + $0x168] sm:$0xff]
        %v3009 = vld [vmem:[%s946 + $0x170] sm:$0xff]
        %v3010 = vpack.c.bf16 %v2979, %v2978
        %v3011 = vpack.c.bf16 %v2981, %v2980
        %v3012 = vpack.c.bf16 %v2983, %v2982
        %v3013 = vpack.c.bf16 %v2985, %v2984
        %v3014 = vpack.c.bf16 %v2987, %v2986
        %v3015 = vpack.c.bf16 %v2989, %v2988
        %v3016 = vpack.c.bf16 %v2991, %v2990
        %v3017 = vpack.c.bf16 %v2993, %v2992
        %v3018 = vpack.c.bf16 %v2995, %v2994
        %v3019 = vpack.c.bf16 %v2997, %v2996
        %v3020 = vpack.c.bf16 %v2999, %v2998
        %v3021 = vpack.c.bf16 %v3001, %v3000
        %v3022 = vpack.c.bf16 %v3003, %v3002
        %v3023 = vpack.c.bf16 %v3005, %v3004
        %v3024 = vpack.c.bf16 %v3007, %v3006
        %v3025 = vpack.c.bf16 %v3009, %v3008
        %v3026 = vld [vmem:[%s1011] sm:$0xff]
        %v3027 = vld [vmem:[%s1011 + $0x8] sm:$0xff]
        %v3028 = vld [vmem:[%s1011 + $0x18] sm:$0xff]
        %v3029 = vld [vmem:[%s1011 + $0x20] sm:$0xff]
        %v3030 = vld [vmem:[%s1011 + $0x30] sm:$0xff]
        %v3031 = vld [vmem:[%s1011 + $0x38] sm:$0xff]
        %v3032 = vld [vmem:[%s1011 + $0x48] sm:$0xff]
        %v3033 = vld [vmem:[%s1011 + $0x50] sm:$0xff]
        %v3034 = vld [vmem:[%s1011 + $0x60] sm:$0xff]
        %v3035 = vld [vmem:[%s1011 + $0x68] sm:$0xff]
        %v3036 = vld [vmem:[%s1011 + $0x78] sm:$0xff]
        %v3037 = vld [vmem:[%s1011 + $0x80] sm:$0xff]
        %v3038 = vld [vmem:[%s1011 + $0x90] sm:$0xff]
        %v3039 = vld [vmem:[%s1011 + $0x98] sm:$0xff]
        %v3040 = vld [vmem:[%s1011 + $0xa8] sm:$0xff]
        %v3041 = vld [vmem:[%s1011 + $0xb0] sm:$0xff]
        %v3042 = vld [vmem:[%s1011 + $0xc0] sm:$0xff]
        %v3043 = vld [vmem:[%s1011 + $0xc8] sm:$0xff]
        %v3044 = vld [vmem:[%s1011 + $0xd8] sm:$0xff]
        %v3045 = vld [vmem:[%s1011 + $0xe0] sm:$0xff]
        %v3046 = vld [vmem:[%s1011 + $0xf0] sm:$0xff]
        %v3047 = vld [vmem:[%s1011 + $0xf8] sm:$0xff]
        %v3048 = vld [vmem:[%s1011 + $0x108] sm:$0xff]
        %v3049 = vld [vmem:[%s1011 + $0x110] sm:$0xff]
        %v3050 = vld [vmem:[%s1011 + $0x120] sm:$0xff]
        %v3051 = vld [vmem:[%s1011 + $0x128] sm:$0xff]
        %v3052 = vld [vmem:[%s1011 + $0x138] sm:$0xff]
        %v3053 = vld [vmem:[%s1011 + $0x140] sm:$0xff]
        %v3054 = vld [vmem:[%s1011 + $0x150] sm:$0xff]
        %v3055 = vld [vmem:[%s1011 + $0x158] sm:$0xff]
        %v3056 = vld [vmem:[%s1011 + $0x168] sm:$0xff]
        %v3057 = vld [vmem:[%s1011 + $0x170] sm:$0xff]
        %v3058 = vpack.c.bf16 %v3027, %v3026
        %v3059 = vpack.c.bf16 %v3029, %v3028
        %v3060 = vpack.c.bf16 %v3031, %v3030
        %v3061 = vpack.c.bf16 %v3033, %v3032
        %v3062 = vpack.c.bf16 %v3035, %v3034
        %v3063 = vpack.c.bf16 %v3037, %v3036
        %v3064 = vpack.c.bf16 %v3039, %v3038
        %v3065 = vpack.c.bf16 %v3041, %v3040
        %v3066 = vpack.c.bf16 %v3043, %v3042
        %v3067 = vpack.c.bf16 %v3045, %v3044
        %v3068 = vpack.c.bf16 %v3047, %v3046
        %v3069 = vpack.c.bf16 %v3049, %v3048
        %v3070 = vpack.c.bf16 %v3051, %v3050
        %v3071 = vpack.c.bf16 %v3053, %v3052
        %v3072 = vpack.c.bf16 %v3055, %v3054
        %v3073 = vpack.c.bf16 %v3057, %v3056
        %v3074 = vld [vmem:[#allocation4] sm:$0xff]
        %v3075 = vld [vmem:[#allocation4 + $0x8] sm:$0xff]
        %v3076 = vld [vmem:[#allocation4 + $0x10] sm:$0xff]
        %v3077 = vld [vmem:[#allocation4 + $0x18] sm:$0xff]
        %v3078 = vld [vmem:[#allocation4 + $0x20] sm:$0xff]
        %v3079 = vld [vmem:[#allocation4 + $0x28] sm:$0xff]
        %v3080 = vld [vmem:[#allocation4 + $0x30] sm:$0xff]
        %v3081 = vld [vmem:[#allocation4 + $0x38] sm:$0xff]
        %v3082 = vld [vmem:[#allocation4 + $0x40] sm:$0xff]
        %v3083 = vld [vmem:[#allocation4 + $0x48] sm:$0xff]
        %v3084 = vld [vmem:[#allocation4 + $0x50] sm:$0xff]
        %v3085 = vld [vmem:[#allocation4 + $0x58] sm:$0xff]
        %v3086 = vld [vmem:[#allocation4 + $0x60] sm:$0xff]
        %v3087 = vld [vmem:[#allocation4 + $0x68] sm:$0xff]
        %v3088 = vld [vmem:[#allocation4 + $0x70] sm:$0xff]
        %v3089 = vld [vmem:[#allocation4 + $0x78] sm:$0xff]
        %v3090 = vld [vmem:[#allocation4 + $0x80] sm:$0xff]
        %v3091 = vld [vmem:[#allocation4 + $0x88] sm:$0xff]
        %v3092 = vld [vmem:[#allocation4 + $0x90] sm:$0xff]
        %v3093 = vld [vmem:[#allocation4 + $0x98] sm:$0xff]
        %v3094 = vld [vmem:[#allocation4 + $0xa0] sm:$0xff]
        %v3095 = vld [vmem:[#allocation4 + $0xa8] sm:$0xff]
        %v3096 = vld [vmem:[#allocation4 + $0xb0] sm:$0xff]
        %v3097 = vld [vmem:[#allocation4 + $0xb8] sm:$0xff]
        %v3098 = vld [vmem:[#allocation4 + $0xc0] sm:$0xff]
        %v3099 = vld [vmem:[#allocation4 + $0xc8] sm:$0xff]
        %v3100 = vld [vmem:[#allocation4 + $0xd0] sm:$0xff]
        %v3101 = vld [vmem:[#allocation4 + $0xd8] sm:$0xff]
        %v3102 = vld [vmem:[#allocation4 + $0xe0] sm:$0xff]
        %v3103 = vld [vmem:[#allocation4 + $0xe8] sm:$0xff]
        %v3104 = vld [vmem:[#allocation4 + $0xf0] sm:$0xff]
        %v3105 = vld [vmem:[#allocation4 + $0xf8] sm:$0xff]
        %s3106 = scalar_lea.vmem [#allocation8], 6
        %v3107 = vld [vmem:[%s3106] sm:$0x3]
        %s3108 = scalar_lea.vmem %s4, 48
        %v3109 = vld [vmem:[%s3108] sm:$0xf]
        %v3110 = vld [vmem:[%s3108 + $0x4] sm:$0xf]
        %v3111 = vld [vmem:[%s3108 + $0x8] sm:$0xf]
        %v3112 = vld [vmem:[%s3108 + $0xc] sm:$0xf]
        %v3117 = vunpack.c.l.b16 %v3109
        %v3118 = vunpack.c.l.b16 %v3110
        %v3119 = vunpack.c.l.b16 %v3111
        %v3120 = vunpack.c.l.b16 %v3112
        %v3121 = vpack.c.b16 %v3118, %v3117
        %v3122 = vpack.c.b16 %v3120, %v3119
        %v3126 = vsel %vm823, %v3058, 0
        %v3129 = vsel %vm823, %v3059, 0
        %v3132 = vsel %vm823, %v3060, 0
        %v3135 = vsel %vm823, %v3061, 0
        %v3138 = vsel %vm823, %v3062, 0
        %v3141 = vsel %vm823, %v3063, 0
        %v3144 = vsel %vm823, %v3064, 0
        %v3147 = vsel %vm823, %v3065, 0
        %v3150 = vsel %vm823, %v3066, 0
        %v3153 = vsel %vm823, %v3067, 0
        %v3156 = vsel %vm823, %v3068, 0
        %v3159 = vsel %vm823, %v3069, 0
        %v3162 = vsel %vm823, %v3070, 0
        %v3165 = vsel %vm823, %v3071, 0
        %v3168 = vsel %vm823, %v3072, 0
        %v3171 = vsel %vm823, %v3073, 0
        %3173 = vmatprep.subr.bf16.mxu0 0
        %3174 = vmatpush1.bf16.msra.mxu0 %v3121
        %3175 = vmatprep.subr.bf16.mxu0 0
        %3176 = vmatpush1.bf16.msra.mxu0 %v3122
        %3177 = vmatprep.subr.bf16.mxu0 0
        %3178 = vmatpush1.bf16.msra.mxu0 0
        %3179 = vmatprep.subr.bf16.mxu0 0
        %3180 = vmatpush1.bf16.msra.mxu0 0
        %3181 = vmatprep.subr.bf16.mxu0 0
        %3182 = vmatpush1.bf16.msra.mxu0 0
        %3183 = vmatprep.subr.bf16.mxu0 0
        %3184 = vmatpush1.bf16.msra.mxu0 0
        %3185 = vmatprep.subr.bf16.mxu0 0
        %3186 = vmatpush1.bf16.msra.mxu0 0
        %3187 = vmatprep.subr.bf16.mxu0 0
        %3188 = vmatpush1.bf16.msra.mxu0 0
        %3189 = vmatprep.subr.bf16.mxu0 0
        %3190 = vmatpush1.bf16.msra.mxu0 0
        %3191 = vmatprep.subr.bf16.mxu0 0
        %3192 = vmatpush1.bf16.msra.mxu0 0
        %3193 = vmatprep.subr.bf16.mxu0 0
        %3194 = vmatpush1.bf16.msra.mxu0 0
        %3195 = vmatprep.subr.bf16.mxu0 0
        %3196 = vmatpush1.bf16.msra.mxu0 0
        %3197 = vmatprep.subr.bf16.mxu0 0
        %3198 = vmatpush1.bf16.msra.mxu0 0
        %3199 = vmatprep.subr.bf16.mxu0 0
        %3200 = vmatpush1.bf16.msra.mxu0 0
        %3201 = vmatprep.subr.bf16.mxu0 0
        %3202 = vmatpush1.bf16.msra.mxu0 0
        %3203 = vmatprep.subr.bf16.mxu0 0
        %3204 = vmatpush1.bf16.msra.mxu0 0
        %3205 = vmatprep.mubr.bf16.mxu0 0
        %3206 = vmatmul.mubr.bf16.gmra.mrb[0].mxu0 %v3126
        %v3207 = vpop.f32.mrb[0].mxu0
        %v3208 = vadd.f32 0.0, %v3207
        %v3209 = vpop.f32.mrb[0].mxu0
        %v3210 = vpop.f32.mrb[0].mxu0
        %v3211 = vadd.f32 0.0, %v3210
        %v3212 = vpop.f32.mrb[0].mxu0
        %3213 = vmatprep.mubr.bf16.mxu0 0
        %3214 = vmatmul.mubr.bf16.gmra.mrb[0].mxu0 %v3129
        %v3215 = vpop.f32.mrb[0].mxu0
        %v3216 = vadd.f32 0.0, %v3215
        %v3217 = vpop.f32.mrb[0].mxu0
        %v3218 = vpop.f32.mrb[0].mxu0
        %v3219 = vadd.f32 0.0, %v3218
        %v3220 = vpop.f32.mrb[0].mxu0
        %3221 = vmatprep.mubr.bf16.mxu0 0
        %3222 = vmatmul.mubr.bf16.gmra.mrb[0].mxu0 %v3132
        %v3223 = vpop.f32.mrb[0].mxu0
        %v3224 = vadd.f32 0.0, %v3223
        %v3225 = vpop.f32.mrb[0].mxu0
        %v3226 = vpop.f32.mrb[0].mxu0
        %v3227 = vadd.f32 0.0, %v3226
        %v3228 = vpop.f32.mrb[0].mxu0
        %3229 = vmatprep.mubr.bf16.mxu0 0
        %3230 = vmatmul.mubr.bf16.gmra.mrb[0].mxu0 %v3135
        %v3231 = vpop.f32.mrb[0].mxu0
        %v3232 = vadd.f32 0.0, %v3231
        %v3233 = vpop.f32.mrb[0].mxu0
        %v3234 = vpop.f32.mrb[0].mxu0
        %v3235 = vadd.f32 0.0, %v3234
        %v3236 = vpop.f32.mrb[0].mxu0
        %3237 = vmatprep.mubr.bf16.mxu0 0
        %3238 = vmatmul.mubr.bf16.gmra.mrb[0].mxu0 %v3138
        %v3239 = vpop.f32.mrb[0].mxu0
        %v3240 = vadd.f32 0.0, %v3239
        %v3241 = vpop.f32.mrb[0].mxu0
        %v3242 = vpop.f32.mrb[0].mxu0
        %v3243 = vadd.f32 0.0, %v3242
        %v3244 = vpop.f32.mrb[0].mxu0
        %3245 = vmatprep.mubr.bf16.mxu0 0
        %3246 = vmatmul.mubr.bf16.gmra.mrb[0].mxu0 %v3141
        %v3247 = vpop.f32.mrb[0].mxu0
        %v3248 = vadd.f32 0.0, %v3247
        %v3249 = vpop.f32.mrb[0].mxu0
        %v3250 = vpop.f32.mrb[0].mxu0
        %v3251 = vadd.f32 0.0, %v3250
        %v3252 = vpop.f32.mrb[0].mxu0
        %3253 = vmatprep.mubr.bf16.mxu0 0
        %3254 = vmatmul.mubr.bf16.gmra.mrb[0].mxu0 %v3144
        %v3255 = vpop.f32.mrb[0].mxu0
        %v3256 = vadd.f32 0.0, %v3255
        %v3257 = vpop.f32.mrb[0].mxu0
        %v3258 = vpop.f32.mrb[0].mxu0
        %v3259 = vadd.f32 0.0, %v3258
        %v3260 = vpop.f32.mrb[0].mxu0
        %3261 = vmatprep.mubr.bf16.mxu0 0
        %3262 = vmatmul.mubr.bf16.gmra.mrb[0].mxu0 %v3147
        %v3263 = vpop.f32.mrb[0].mxu0
        %v3264 = vadd.f32 0.0, %v3263
        %v3265 = vpop.f32.mrb[0].mxu0
        %v3266 = vpop.f32.mrb[0].mxu0
        %v3267 = vadd.f32 0.0, %v3266
        %v3268 = vpop.f32.mrb[0].mxu0
        %3269 = vmatprep.mubr.bf16.mxu0 0
        %3270 = vmatmul.mubr.bf16.gmra.mrb[0].mxu0 %v3150
        %v3271 = vpop.f32.mrb[0].mxu0
        %v3272 = vadd.f32 0.0, %v3271
        %v3273 = vpop.f32.mrb[0].mxu0
        %v3274 = vpop.f32.mrb[0].mxu0
        %v3275 = vadd.f32 0.0, %v3274
        %v3276 = vpop.f32.mrb[0].mxu0
        %3277 = vmatprep.mubr.bf16.mxu0 0
        %3278 = vmatmul.mubr.bf16.gmra.mrb[0].mxu0 %v3153
        %v3279 = vpop.f32.mrb[0].mxu0
        %v3280 = vadd.f32 0.0, %v3279
        %v3281 = vpop.f32.mrb[0].mxu0
        %v3282 = vpop.f32.mrb[0].mxu0
        %v3283 = vadd.f32 0.0, %v3282
        %v3284 = vpop.f32.mrb[0].mxu0
        %3285 = vmatprep.mubr.bf16.mxu0 0
        %3286 = vmatmul.mubr.bf16.gmra.mrb[0].mxu0 %v3156
        %v3287 = vpop.f32.mrb[0].mxu0
        %v3288 = vadd.f32 0.0, %v3287
        %v3289 = vpop.f32.mrb[0].mxu0
        %v3290 = vpop.f32.mrb[0].mxu0
        %v3291 = vadd.f32 0.0, %v3290
        %v3292 = vpop.f32.mrb[0].mxu0
        %3293 = vmatprep.mubr.bf16.mxu0 0
        %3294 = vmatmul.mubr.bf16.gmra.mrb[0].mxu0 %v3159
        %v3295 = vpop.f32.mrb[0].mxu0
        %v3296 = vadd.f32 0.0, %v3295
        %v3297 = vpop.f32.mrb[0].mxu0
        %v3298 = vpop.f32.mrb[0].mxu0
        %v3299 = vadd.f32 0.0, %v3298
        %v3300 = vpop.f32.mrb[0].mxu0
        %3301 = vmatprep.mubr.bf16.mxu0 0
        %3302 = vmatmul.mubr.bf16.gmra.mrb[0].mxu0 %v3162
        %v3303 = vpop.f32.mrb[0].mxu0
        %v3304 = vadd.f32 0.0, %v3303
        %v3305 = vpop.f32.mrb[0].mxu0
        %v3306 = vpop.f32.mrb[0].mxu0
        %v3307 = vadd.f32 0.0, %v3306
        %v3308 = vpop.f32.mrb[0].mxu0
        %3309 = vmatprep.mubr.bf16.mxu0 0
        %3310 = vmatmul.mubr.bf16.gmra.mrb[0].mxu0 %v3165
        %v3311 = vpop.f32.mrb[0].mxu0
        %v3312 = vadd.f32 0.0, %v3311
        %v3313 = vpop.f32.mrb[0].mxu0
        %v3314 = vpop.f32.mrb[0].mxu0
        %v3315 = vadd.f32 0.0, %v3314
        %v3316 = vpop.f32.mrb[0].mxu0
        %3317 = vmatprep.mubr.bf16.mxu0 0
        %3318 = vmatmul.mubr.bf16.gmra.mrb[0].mxu0 %v3168
        %v3319 = vpop.f32.mrb[0].mxu0
        %v3320 = vadd.f32 0.0, %v3319
        %v3321 = vpop.f32.mrb[0].mxu0
        %v3322 = vpop.f32.mrb[0].mxu0
        %v3323 = vadd.f32 0.0, %v3322
        %v3324 = vpop.f32.mrb[0].mxu0
        %3325 = vmatprep.mubr.bf16.mxu0 0
        %3326 = vmatmul.mubr.bf16.gmra.mrb[0].mxu0 %v3171
        %v3327 = vpop.f32.mrb[0].mxu0
        %v3328 = vadd.f32 0.0, %v3327
        %v3329 = vpop.f32.mrb[0].mxu0
        %v3330 = vpop.f32.mrb[0].mxu0
        %v3331 = vadd.f32 0.0, %v3330
        %v3332 = vpop.f32.mrb[0].mxu0
        %3333 = vdwg.mxu0
        %v3335 = vsel %vm614, %v3010, 0
        %v3338 = vsel %vm614, %v3011, 0
        %v3341 = vsel %vm614, %v3012, 0
        %v3344 = vsel %vm614, %v3013, 0
        %v3347 = vsel %vm614, %v3014, 0
        %v3350 = vsel %vm614, %v3015, 0
        %v3353 = vsel %vm614, %v3016, 0
        %v3356 = vsel %vm614, %v3017, 0
        %v3359 = vsel %vm614, %v3018, 0
        %v3362 = vsel %vm614, %v3019, 0
        %v3365 = vsel %vm614, %v3020, 0
        %v3368 = vsel %vm614, %v3021, 0
        %v3371 = vsel %vm614, %v3022, 0
        %v3374 = vsel %vm614, %v3023, 0
        %v3377 = vsel %vm614, %v3024, 0
        %v3380 = vsel %vm614, %v3025, 0
        %v3383 = vsel %vm1485, %v3107, 0
        %3385 = vmatprep.subr.bf16.mxu0 0
        %3386 = vmatpush1.bf16.msra.mxu0 %v3383
        %3387 = vmatprep.subr.bf16.mxu0 0
        %3388 = vmatpush1.bf16.msra.mxu0 0
        %3389 = vmatprep.subr.bf16.mxu0 0
        %3390 = vmatpush1.bf16.msra.mxu0 0
        %3391 = vmatprep.subr.bf16.mxu0 0
        %3392 = vmatpush1.bf16.msra.mxu0 0
        %3393 = vmatprep.subr.bf16.mxu0 0
        %3394 = vmatpush1.bf16.msra.mxu0 0
        %3395 = vmatprep.subr.bf16.mxu0 0
        %3396 = vmatpush1.bf16.msra.mxu0 0
        %3397 = vmatprep.subr.bf16.mxu0 0
        %3398 = vmatpush1.bf16.msra.mxu0 0
        %3399 = vmatprep.subr.bf16.mxu0 0
        %3400 = vmatpush1.bf16.msra.mxu0 0
        %3401 = vmatprep.subr.bf16.mxu0 0
        %3402 = vmatpush1.bf16.msra.mxu0 0
        %3403 = vmatprep.subr.bf16.mxu0 0
        %3404 = vmatpush1.bf16.msra.mxu0 0
        %3405 = vmatprep.subr.bf16.mxu0 0
        %3406 = vmatpush1.bf16.msra.mxu0 0
        %3407 = vmatprep.subr.bf16.mxu0 0
        %3408 = vmatpush1.bf16.msra.mxu0 0
        %3409 = vmatprep.subr.bf16.mxu0 0
        %3410 = vmatpush1.bf16.msra.mxu0 0
        %3411 = vmatprep.subr.bf16.mxu0 0
        %3412 = vmatpush1.bf16.msra.mxu0 0
        %3413 = vmatprep.subr.bf16.mxu0 0
        %3414 = vmatpush1.bf16.msra.mxu0 0
        %3415 = vmatprep.subr.bf16.mxu0 0
        %3416 = vmatpush1.bf16.msra.mxu0 0
        %3417 = vmatprep.mubr.bf16.mxu0 0
        %3418 = vmatmul.mubr.bf16.gmra.mrb[0].mxu0 %v3335
        %v3419 = vpop.f32.mrb[0].mxu0
        %v3420 = vadd.f32 %v3208, %v3419
        %v3421 = vpop.f32.mrb[0].mxu0
        %v3422 = vpop.f32.mrb[0].mxu0
        %v3423 = vadd.f32 %v3211, %v3422
        %v3424 = vpop.f32.mrb[0].mxu0
        %3425 = vmatprep.mubr.bf16.mxu0 0
        %3426 = vmatmul.mubr.bf16.gmra.mrb[0].mxu0 %v3338
        %v3427 = vpop.f32.mrb[0].mxu0
        %v3428 = vadd.f32 %v3216, %v3427
        %v3429 = vpop.f32.mrb[0].mxu0
        %v3430 = vpop.f32.mrb[0].mxu0
        %v3431 = vadd.f32 %v3219, %v3430
        %v3432 = vpop.f32.mrb[0].mxu0
        %3433 = vmatprep.mubr.bf16.mxu0 0
        %3434 = vmatmul.mubr.bf16.gmra.mrb[0].mxu0 %v3341
        %v3435 = vpop.f32.mrb[0].mxu0
        %v3436 = vadd.f32 %v3224, %v3435
        %v3437 = vpop.f32.mrb[0].mxu0
        %v3438 = vpop.f32.mrb[0].mxu0
        %v3439 = vadd.f32 %v3227, %v3438
        %v3440 = vpop.f32.mrb[0].mxu0
        %3441 = vmatprep.mubr.bf16.mxu0 0
        %3442 = vmatmul.mubr.bf16.gmra.mrb[0].mxu0 %v3344
        %v3443 = vpop.f32.mrb[0].mxu0
        %v3444 = vadd.f32 %v3232, %v3443
        %v3445 = vpop.f32.mrb[0].mxu0
        %v3446 = vpop.f32.mrb[0].mxu0
        %v3447 = vadd.f32 %v3235, %v3446
        %v3448 = vpop.f32.mrb[0].mxu0
        %3449 = vmatprep.mubr.bf16.mxu0 0
        %3450 = vmatmul.mubr.bf16.gmra.mrb[0].mxu0 %v3347
        %v3451 = vpop.f32.mrb[0].mxu0
        %v3452 = vadd.f32 %v3240, %v3451
        %v3453 = vpop.f32.mrb[0].mxu0
        %v3454 = vpop.f32.mrb[0].mxu0
        %v3455 = vadd.f32 %v3243, %v3454
        %v3456 = vpop.f32.mrb[0].mxu0
        %3457 = vmatprep.mubr.bf16.mxu0 0
        %3458 = vmatmul.mubr.bf16.gmra.mrb[0].mxu0 %v3350
        %v3459 = vpop.f32.mrb[0].mxu0
        %v3460 = vadd.f32 %v3248, %v3459
        %v3461 = vpop.f32.mrb[0].mxu0
        %v3462 = vpop.f32.mrb[0].mxu0
        %v3463 = vadd.f32 %v3251, %v3462
        %v3464 = vpop.f32.mrb[0].mxu0
        %3465 = vmatprep.mubr.bf16.mxu0 0
        %3466 = vmatmul.mubr.bf16.gmra.mrb[0].mxu0 %v3353
        %v3467 = vpop.f32.mrb[0].mxu0
        %v3468 = vadd.f32 %v3256, %v3467
        %v3469 = vpop.f32.mrb[0].mxu0
        %v3470 = vpop.f32.mrb[0].mxu0
        %v3471 = vadd.f32 %v3259, %v3470
        %v3472 = vpop.f32.mrb[0].mxu0
        %3473 = vmatprep.mubr.bf16.mxu0 0
        %3474 = vmatmul.mubr.bf16.gmra.mrb[0].mxu0 %v3356
        %v3475 = vpop.f32.mrb[0].mxu0
        %v3476 = vadd.f32 %v3264, %v3475
        %v3477 = vpop.f32.mrb[0].mxu0
        %v3478 = vpop.f32.mrb[0].mxu0
        %v3479 = vadd.f32 %v3267, %v3478
        %v3480 = vpop.f32.mrb[0].mxu0
        %3481 = vmatprep.mubr.bf16.mxu0 0
        %3482 = vmatmul.mubr.bf16.gmra.mrb[0].mxu0 %v3359
        %v3483 = vpop.f32.mrb[0].mxu0
        %v3484 = vadd.f32 %v3272, %v3483
        %v3485 = vpop.f32.mrb[0].mxu0
        %v3486 = vpop.f32.mrb[0].mxu0
        %v3487 = vadd.f32 %v3275, %v3486
        %v3488 = vpop.f32.mrb[0].mxu0
        %3489 = vmatprep.mubr.bf16.mxu0 0
        %3490 = vmatmul.mubr.bf16.gmra.mrb[0].mxu0 %v3362
        %v3491 = vpop.f32.mrb[0].mxu0
        %v3492 = vadd.f32 %v3280, %v3491
        %v3493 = vpop.f32.mrb[0].mxu0
        %v3494 = vpop.f32.mrb[0].mxu0
        %v3495 = vadd.f32 %v3283, %v3494
        %v3496 = vpop.f32.mrb[0].mxu0
        %3497 = vmatprep.mubr.bf16.mxu0 0
        %3498 = vmatmul.mubr.bf16.gmra.mrb[0].mxu0 %v3365
        %v3499 = vpop.f32.mrb[0].mxu0
        %v3500 = vadd.f32 %v3288, %v3499
        %v3501 = vpop.f32.mrb[0].mxu0
        %v3502 = vpop.f32.mrb[0].mxu0
        %v3503 = vadd.f32 %v3291, %v3502
        %v3504 = vpop.f32.mrb[0].mxu0
        %3505 = vmatprep.mubr.bf16.mxu0 0
        %3506 = vmatmul.mubr.bf16.gmra.mrb[0].mxu0 %v3368
        %v3507 = vpop.f32.mrb[0].mxu0
        %v3508 = vadd.f32 %v3296, %v3507
        %v3509 = vpop.f32.mrb[0].mxu0
        %v3510 = vpop.f32.mrb[0].mxu0
        %v3511 = vadd.f32 %v3299, %v3510
        %v3512 = vpop.f32.mrb[0].mxu0
        %3513 = vmatprep.mubr.bf16.mxu0 0
        %3514 = vmatmul.mubr.bf16.gmra.mrb[0].mxu0 %v3371
        %v3515 = vpop.f32.mrb[0].mxu0
        %v3516 = vadd.f32 %v3304, %v3515
        %v3517 = vpop.f32.mrb[0].mxu0
        %v3518 = vpop.f32.mrb[0].mxu0
        %v3519 = vadd.f32 %v3307, %v3518
        %v3520 = vpop.f32.mrb[0].mxu0
        %3521 = vmatprep.mubr.bf16.mxu0 0
        %3522 = vmatmul.mubr.bf16.gmra.mrb[0].mxu0 %v3374
        %v3523 = vpop.f32.mrb[0].mxu0
        %v3524 = vadd.f32 %v3312, %v3523
        %v3525 = vpop.f32.mrb[0].mxu0
        %v3526 = vpop.f32.mrb[0].mxu0
        %v3527 = vadd.f32 %v3315, %v3526
        %v3528 = vpop.f32.mrb[0].mxu0
        %3529 = vmatprep.mubr.bf16.mxu0 0
        %3530 = vmatmul.mubr.bf16.gmra.mrb[0].mxu0 %v3377
        %v3531 = vpop.f32.mrb[0].mxu0
        %v3532 = vadd.f32 %v3320, %v3531
        %v3533 = vpop.f32.mrb[0].mxu0
        %v3534 = vpop.f32.mrb[0].mxu0
        %v3535 = vadd.f32 %v3323, %v3534
        %v3536 = vpop.f32.mrb[0].mxu0
        %3537 = vmatprep.mubr.bf16.mxu0 0
        %3538 = vmatmul.mubr.bf16.gmra.mrb[0].mxu0 %v3380
        %v3539 = vpop.f32.mrb[0].mxu0
        %v3540 = vadd.f32 %v3328, %v3539
        %v3541 = vpop.f32.mrb[0].mxu0
        %v3542 = vpop.f32.mrb[0].mxu0
        %v3543 = vadd.f32 %v3331, %v3542
        %v3544 = vpop.f32.mrb[0].mxu0
        %3545 = vdwg.mxu0
        %v3546 = vadd.f32 %v3074, %v3420
        %v3547 = vadd.f32 %v3075, %v3423
        %v3548 = vadd.f32 %v3076, %v3428
        %v3549 = vadd.f32 %v3077, %v3431
        %v3550 = vadd.f32 %v3078, %v3436
        %v3551 = vadd.f32 %v3079, %v3439
        %v3552 = vadd.f32 %v3080, %v3444
        %v3553 = vadd.f32 %v3081, %v3447
        %v3554 = vadd.f32 %v3082, %v3452
        %v3555 = vadd.f32 %v3083, %v3455
        %v3556 = vadd.f32 %v3084, %v3460
        %v3557 = vadd.f32 %v3085, %v3463
        %v3558 = vadd.f32 %v3086, %v3468
        %v3559 = vadd.f32 %v3087, %v3471
        %v3560 = vadd.f32 %v3088, %v3476
        %v3561 = vadd.f32 %v3089, %v3479
        %v3562 = vadd.f32 %v3090, %v3484
        %v3563 = vadd.f32 %v3091, %v3487
        %v3564 = vadd.f32 %v3092, %v3492
        %v3565 = vadd.f32 %v3093, %v3495
        %v3566 = vadd.f32 %v3094, %v3500
        %v3567 = vadd.f32 %v3095, %v3503
        %v3568 = vadd.f32 %v3096, %v3508
        %v3569 = vadd.f32 %v3097, %v3511
        %v3570 = vadd.f32 %v3098, %v3516
        %v3571 = vadd.f32 %v3099, %v3519
        %v3572 = vadd.f32 %v3100, %v3524
        %v3573 = vadd.f32 %v3101, %v3527
        %v3574 = vadd.f32 %v3102, %v3532
        %v3575 = vadd.f32 %v3103, %v3535
        %v3576 = vadd.f32 %v3104, %v3540
        %v3577 = vadd.f32 %v3105, %v3543
        %3578 = vst [vmem:[#allocation4] sm:$0xff] %v3546
        %3579 = vst [vmem:[#allocation4 + $0x8] sm:$0xff] %v3547
        %3580 = vst [vmem:[#allocation4 + $0x10] sm:$0xff] %v3548
        %3581 = vst [vmem:[#allocation4 + $0x18] sm:$0xff] %v3549
        %3582 = vst [vmem:[#allocation4 + $0x20] sm:$0xff] %v3550
        %3583 = vst [vmem:[#allocation4 + $0x28] sm:$0xff] %v3551
        %3584 = vst [vmem:[#allocation4 + $0x30] sm:$0xff] %v3552
        %3585 = vst [vmem:[#allocation4 + $0x38] sm:$0xff] %v3553
        %3586 = vst [vmem:[#allocation4 + $0x40] sm:$0xff] %v3554
        %3587 = vst [vmem:[#allocation4 + $0x48] sm:$0xff] %v3555
        %3588 = vst [vmem:[#allocation4 + $0x50] sm:$0xff] %v3556
        %3589 = vst [vmem:[#allocation4 + $0x58] sm:$0xff] %v3557
        %3590 = vst [vmem:[#allocation4 + $0x60] sm:$0xff] %v3558
        %3591 = vst [vmem:[#allocation4 + $0x68] sm:$0xff] %v3559
        %3592 = vst [vmem:[#allocation4 + $0x70] sm:$0xff] %v3560
        %3593 = vst [vmem:[#allocation4 + $0x78] sm:$0xff] %v3561
        %3594 = vst [vmem:[#allocation4 + $0x80] sm:$0xff] %v3562
        %3595 = vst [vmem:[#allocation4 + $0x88] sm:$0xff] %v3563
        %3596 = vst [vmem:[#allocation4 + $0x90] sm:$0xff] %v3564
        %3597 = vst [vmem:[#allocation4 + $0x98] sm:$0xff] %v3565
        %3598 = vst [vmem:[#allocation4 + $0xa0] sm:$0xff] %v3566
        %3599 = vst [vmem:[#allocation4 + $0xa8] sm:$0xff] %v3567
        %3600 = vst [vmem:[#allocation4 + $0xb0] sm:$0xff] %v3568
        %3601 = vst [vmem:[#allocation4 + $0xb8] sm:$0xff] %v3569
        %3602 = vst [vmem:[#allocation4 + $0xc0] sm:$0xff] %v3570
        %3603 = vst [vmem:[#allocation4 + $0xc8] sm:$0xff] %v3571
        %3604 = vst [vmem:[#allocation4 + $0xd0] sm:$0xff] %v3572
        %3605 = vst [vmem:[#allocation4 + $0xd8] sm:$0xff] %v3573
        %3606 = vst [vmem:[#allocation4 + $0xe0] sm:$0xff] %v3574
        %3607 = vst [vmem:[#allocation4 + $0xe8] sm:$0xff] %v3575
        %3608 = vst [vmem:[#allocation4 + $0xf0] sm:$0xff] %v3576
        %3609 = vst [vmem:[#allocation4 + $0xf8] sm:$0xff] %v3577
        %v3610 = vld [vmem:[%s946 + $0x1] sm:$0xff]
        %v3611 = vld [vmem:[%s946 + $0x9] sm:$0xff]
        %v3612 = vld [vmem:[%s946 + $0x19] sm:$0xff]
        %v3613 = vld [vmem:[%s946 + $0x21] sm:$0xff]
        %v3614 = vld [vmem:[%s946 + $0x31] sm:$0xff]
        %v3615 = vld [vmem:[%s946 + $0x39] sm:$0xff]
        %v3616 = vld [vmem:[%s946 + $0x49] sm:$0xff]
        %v3617 = vld [vmem:[%s946 + $0x51] sm:$0xff]
        %v3618 = vld [vmem:[%s946 + $0x61] sm:$0xff]
        %v3619 = vld [vmem:[%s946 + $0x69] sm:$0xff]
        %v3620 = vld [vmem:[%s946 + $0x79] sm:$0xff]
        %v3621 = vld [vmem:[%s946 + $0x81] sm:$0xff]
        %v3622 = vld [vmem:[%s946 + $0x91] sm:$0xff]
        %v3623 = vld [vmem:[%s946 + $0x99] sm:$0xff]
        %v3624 = vld [vmem:[%s946 + $0xa9] sm:$0xff]
        %v3625 = vld [vmem:[%s946 + $0xb1] sm:$0xff]
        %v3626 = vld [vmem:[%s946 + $0xc1] sm:$0xff]
        %v3627 = vld [vmem:[%s946 + $0xc9] sm:$0xff]
        %v3628 = vld [vmem:[%s946 + $0xd9] sm:$0xff]
        %v3629 = vld [vmem:[%s946 + $0xe1] sm:$0xff]
        %v3630 = vld [vmem:[%s946 + $0xf1] sm:$0xff]
        %v3631 = vld [vmem:[%s946 + $0xf9] sm:$0xff]
        %v3632 = vld [vmem:[%s946 + $0x109] sm:$0xff]
        %v3633 = vld [vmem:[%s946 + $0x111] sm:$0xff]
        %v3634 = vld [vmem:[%s946 + $0x121] sm:$0xff]
        %v3635 = vld [vmem:[%s946 + $0x129] sm:$0xff]
        %v3636 = vld [vmem:[%s946 + $0x139] sm:$0xff]
        %v3637 = vld [vmem:[%s946 + $0x141] sm:$0xff]
        %v3638 = vld [vmem:[%s946 + $0x151] sm:$0xff]
        %v3639 = vld [vmem:[%s946 + $0x159] sm:$0xff]
        %v3640 = vld [vmem:[%s946 + $0x169] sm:$0xff]
        %v3641 = vld [vmem:[%s946 + $0x171] sm:$0xff]
        %v3642 = vpack.c.bf16 %v3611, %v3610
        %v3643 = vpack.c.bf16 %v3613, %v3612
        %v3644 = vpack.c.bf16 %v3615, %v3614
        %v3645 = vpack.c.bf16 %v3617, %v3616
        %v3646 = vpack.c.bf16 %v3619, %v3618
        %v3647 = vpack.c.bf16 %v3621, %v3620
        %v3648 = vpack.c.bf16 %v3623, %v3622
        %v3649 = vpack.c.bf16 %v3625, %v3624
        %v3650 = vpack.c.bf16 %v3627, %v3626
        %v3651 = vpack.c.bf16 %v3629, %v3628
        %v3652 = vpack.c.bf16 %v3631, %v3630
        %v3653 = vpack.c.bf16 %v3633, %v3632
        %v3654 = vpack.c.bf16 %v3635, %v3634
        %v3655 = vpack.c.bf16 %v3637, %v3636
        %v3656 = vpack.c.bf16 %v3639, %v3638
        %v3657 = vpack.c.bf16 %v3641, %v3640
        %v3658 = vld [vmem:[%s1011 + $0x1] sm:$0xff]
        %v3659 = vld [vmem:[%s1011 + $0x9] sm:$0xff]
        %v3660 = vld [vmem:[%s1011 + $0x19] sm:$0xff]
        %v3661 = vld [vmem:[%s1011 + $0x21] sm:$0xff]
        %v3662 = vld [vmem:[%s1011 + $0x31] sm:$0xff]
        %v3663 = vld [vmem:[%s1011 + $0x39] sm:$0xff]
        %v3664 = vld [vmem:[%s1011 + $0x49] sm:$0xff]
        %v3665 = vld [vmem:[%s1011 + $0x51] sm:$0xff]
        %v3666 = vld [vmem:[%s1011 + $0x61] sm:$0xff]
        %v3667 = vld [vmem:[%s1011 + $0x69] sm:$0xff]
        %v3668 = vld [vmem:[%s1011 + $0x79] sm:$0xff]
        %v3669 = vld [vmem:[%s1011 + $0x81] sm:$0xff]
        %v3670 = vld [vmem:[%s1011 + $0x91] sm:$0xff]
        %v3671 = vld [vmem:[%s1011 + $0x99] sm:$0xff]
        %v3672 = vld [vmem:[%s1011 + $0xa9] sm:$0xff]
        %v3673 = vld [vmem:[%s1011 + $0xb1] sm:$0xff]
        %v3674 = vld [vmem:[%s1011 + $0xc1] sm:$0xff]
        %v3675 = vld [vmem:[%s1011 + $0xc9] sm:$0xff]
        %v3676 = vld [vmem:[%s1011 + $0xd9] sm:$0xff]
        %v3677 = vld [vmem:[%s1011 + $0xe1] sm:$0xff]
        %v3678 = vld [vmem:[%s1011 + $0xf1] sm:$0xff]
        %v3679 = vld [vmem:[%s1011 + $0xf9] sm:$0xff]
        %v3680 = vld [vmem:[%s1011 + $0x109] sm:$0xff]
        %v3681 = vld [vmem:[%s1011 + $0x111] sm:$0xff]
        %v3682 = vld [vmem:[%s1011 + $0x121] sm:$0xff]
        %v3683 = vld [vmem:[%s1011 + $0x129] sm:$0xff]
        %v3684 = vld [vmem:[%s1011 + $0x139] sm:$0xff]
        %v3685 = vld [vmem:[%s1011 + $0x141] sm:$0xff]
        %v3686 = vld [vmem:[%s1011 + $0x151] sm:$0xff]
        %v3687 = vld [vmem:[%s1011 + $0x159] sm:$0xff]
        %v3688 = vld [vmem:[%s1011 + $0x169] sm:$0xff]
        %v3689 = vld [vmem:[%s1011 + $0x171] sm:$0xff]
        %v3690 = vpack.c.bf16 %v3659, %v3658
        %v3691 = vpack.c.bf16 %v3661, %v3660
        %v3692 = vpack.c.bf16 %v3663, %v3662
        %v3693 = vpack.c.bf16 %v3665, %v3664
        %v3694 = vpack.c.bf16 %v3667, %v3666
        %v3695 = vpack.c.bf16 %v3669, %v3668
        %v3696 = vpack.c.bf16 %v3671, %v3670
        %v3697 = vpack.c.bf16 %v3673, %v3672
        %v3698 = vpack.c.bf16 %v3675, %v3674
        %v3699 = vpack.c.bf16 %v3677, %v3676
        %v3700 = vpack.c.bf16 %v3679, %v3678
        %v3701 = vpack.c.bf16 %v3681, %v3680
        %v3702 = vpack.c.bf16 %v3683, %v3682
        %v3703 = vpack.c.bf16 %v3685, %v3684
        %v3704 = vpack.c.bf16 %v3687, %v3686
        %v3705 = vpack.c.bf16 %v3689, %v3688
        %v3706 = vld [vmem:[#allocation4] sm:$0xff]
        %v3707 = vld [vmem:[#allocation4 + $0x8] sm:$0xff]
        %v3708 = vld [vmem:[#allocation4 + $0x10] sm:$0xff]
        %v3709 = vld [vmem:[#allocation4 + $0x18] sm:$0xff]
        %v3710 = vld [vmem:[#allocation4 + $0x20] sm:$0xff]
        %v3711 = vld [vmem:[#allocation4 + $0x28] sm:$0xff]
        %v3712 = vld [vmem:[#allocation4 + $0x30] sm:$0xff]
        %v3713 = vld [vmem:[#allocation4 + $0x38] sm:$0xff]
        %v3714 = vld [vmem:[#allocation4 + $0x40] sm:$0xff]
        %v3715 = vld [vmem:[#allocation4 + $0x48] sm:$0xff]
        %v3716 = vld [vmem:[#allocation4 + $0x50] sm:$0xff]
        %v3717 = vld [vmem:[#allocation4 + $0x58] sm:$0xff]
        %v3718 = vld [vmem:[#allocation4 + $0x60] sm:$0xff]
        %v3719 = vld [vmem:[#allocation4 + $0x68] sm:$0xff]
        %v3720 = vld [vmem:[#allocation4 + $0x70] sm:$0xff]
        %v3721 = vld [vmem:[#allocation4 + $0x78] sm:$0xff]
        %v3722 = vld [vmem:[#allocation4 + $0x80] sm:$0xff]
        %v3723 = vld [vmem:[#allocation4 + $0x88] sm:$0xff]
        %v3724 = vld [vmem:[#allocation4 + $0x90] sm:$0xff]
        %v3725 = vld [vmem:[#allocation4 + $0x98] sm:$0xff]
        %v3726 = vld [vmem:[#allocation4 + $0xa0] sm:$0xff]
        %v3727 = vld [vmem:[#allocation4 + $0xa8] sm:$0xff]
        %v3728 = vld [vmem:[#allocation4 + $0xb0] sm:$0xff]
        %v3729 = vld [vmem:[#allocation4 + $0xb8] sm:$0xff]
        %v3730 = vld [vmem:[#allocation4 + $0xc0] sm:$0xff]
        %v3731 = vld [vmem:[#allocation4 + $0xc8] sm:$0xff]
        %v3732 = vld [vmem:[#allocation4 + $0xd0] sm:$0xff]
        %v3733 = vld [vmem:[#allocation4 + $0xd8] sm:$0xff]
        %v3734 = vld [vmem:[#allocation4 + $0xe0] sm:$0xff]
        %v3735 = vld [vmem:[#allocation4 + $0xe8] sm:$0xff]
        %v3736 = vld [vmem:[#allocation4 + $0xf0] sm:$0xff]
        %v3737 = vld [vmem:[#allocation4 + $0xf8] sm:$0xff]
        %s3738 = scalar_lea.vmem [#allocation8], 8
        %v3739 = vld [vmem:[%s3738] sm:$0x3]
        %s3740 = scalar_lea.vmem %s4, 64
        %v3741 = vld [vmem:[%s3740] sm:$0xf]
        %v3742 = vld [vmem:[%s3740 + $0x4] sm:$0xf]
        %v3743 = vld [vmem:[%s3740 + $0x8] sm:$0xf]
        %v3744 = vld [vmem:[%s3740 + $0xc] sm:$0xf]
        %v3749 = vunpack.c.l.b16 %v3741
        %v3750 = vunpack.c.l.b16 %v3742
        %v3751 = vunpack.c.l.b16 %v3743
        %v3752 = vunpack.c.l.b16 %v3744
        %v3753 = vpack.c.b16 %v3750, %v3749
        %v3754 = vpack.c.b16 %v3752, %v3751
        %v3758 = vsel %vm823, %v3690, 0
        %v3761 = vsel %vm823, %v3691, 0
        %v3764 = vsel %vm823, %v3692, 0
        %v3767 = vsel %vm823, %v3693, 0
        %v3770 = vsel %vm823, %v3694, 0
        %v3773 = vsel %vm823, %v3695, 0
        %v3776 = vsel %vm823, %v3696, 0
        %v3779 = vsel %vm823, %v3697, 0
        %v3782 = vsel %vm823, %v3698, 0
        %v3785 = vsel %vm823, %v3699, 0
        %v3788 = vsel %vm823, %v3700, 0
        %v3791 = vsel %vm823, %v3701, 0
        %v3794 = vsel %vm823, %v3702, 0
        %v3797 = vsel %vm823, %v3703, 0
        %v3800 = vsel %vm823, %v3704, 0
        %v3803 = vsel %vm823, %v3705, 0
        %3805 = vmatprep.subr.bf16.mxu0 0
        %3806 = vmatpush1.bf16.msra.mxu0 %v3753
        %3807 = vmatprep.subr.bf16.mxu0 0
        %3808 = vmatpush1.bf16.msra.mxu0 %v3754
        %3809 = vmatprep.subr.bf16.mxu0 0
        %3810 = vmatpush1.bf16.msra.mxu0 0
        %3811 = vmatprep.subr.bf16.mxu0 0
        %3812 = vmatpush1.bf16.msra.mxu0 0
        %3813 = vmatprep.subr.bf16.mxu0 0
        %3814 = vmatpush1.bf16.msra.mxu0 0
        %3815 = vmatprep.subr.bf16.mxu0 0
        %3816 = vmatpush1.bf16.msra.mxu0 0
        %3817 = vmatprep.subr.bf16.mxu0 0
        %3818 = vmatpush1.bf16.msra.mxu0 0
        %3819 = vmatprep.subr.bf16.mxu0 0
        %3820 = vmatpush1.bf16.msra.mxu0 0
        %3821 = vmatprep.subr.bf16.mxu0 0
        %3822 = vmatpush1.bf16.msra.mxu0 0
        %3823 = vmatprep.subr.bf16.mxu0 0
        %3824 = vmatpush1.bf16.msra.mxu0 0
        %3825 = vmatprep.subr.bf16.mxu0 0
        %3826 = vmatpush1.bf16.msra.mxu0 0
        %3827 = vmatprep.subr.bf16.mxu0 0
        %3828 = vmatpush1.bf16.msra.mxu0 0
        %3829 = vmatprep.subr.bf16.mxu0 0
        %3830 = vmatpush1.bf16.msra.mxu0 0
        %3831 = vmatprep.subr.bf16.mxu0 0
        %3832 = vmatpush1.bf16.msra.mxu0 0
        %3833 = vmatprep.subr.bf16.mxu0 0
        %3834 = vmatpush1.bf16.msra.mxu0 0
        %3835 = vmatprep.subr.bf16.mxu0 0
        %3836 = vmatpush1.bf16.msra.mxu0 0
        %3837 = vmatprep.mubr.bf16.mxu0 0
        %3838 = vmatmul.mubr.bf16.gmra.mrb[0].mxu0 %v3758
        %v3839 = vpop.f32.mrb[0].mxu0
        %v3840 = vadd.f32 0.0, %v3839
        %v3841 = vpop.f32.mrb[0].mxu0
        %v3842 = vpop.f32.mrb[0].mxu0
        %v3843 = vadd.f32 0.0, %v3842
        %v3844 = vpop.f32.mrb[0].mxu0
        %3845 = vmatprep.mubr.bf16.mxu0 0
        %3846 = vmatmul.mubr.bf16.gmra.mrb[0].mxu0 %v3761
        %v3847 = vpop.f32.mrb[0].mxu0
        %v3848 = vadd.f32 0.0, %v3847
        %v3849 = vpop.f32.mrb[0].mxu0
        %v3850 = vpop.f32.mrb[0].mxu0
        %v3851 = vadd.f32 0.0, %v3850
        %v3852 = vpop.f32.mrb[0].mxu0
        %3853 = vmatprep.mubr.bf16.mxu0 0
        %3854 = vmatmul.mubr.bf16.gmra.mrb[0].mxu0 %v3764
        %v3855 = vpop.f32.mrb[0].mxu0
        %v3856 = vadd.f32 0.0, %v3855
        %v3857 = vpop.f32.mrb[0].mxu0
        %v3858 = vpop.f32.mrb[0].mxu0
        %v3859 = vadd.f32 0.0, %v3858
        %v3860 = vpop.f32.mrb[0].mxu0
        %3861 = vmatprep.mubr.bf16.mxu0 0
        %3862 = vmatmul.mubr.bf16.gmra.mrb[0].mxu0 %v3767
        %v3863 = vpop.f32.mrb[0].mxu0
        %v3864 = vadd.f32 0.0, %v3863
        %v3865 = vpop.f32.mrb[0].mxu0
        %v3866 = vpop.f32.mrb[0].mxu0
        %v3867 = vadd.f32 0.0, %v3866
        %v3868 = vpop.f32.mrb[0].mxu0
        %3869 = vmatprep.mubr.bf16.mxu0 0
        %3870 = vmatmul.mubr.bf16.gmra.mrb[0].mxu0 %v3770
        %v3871 = vpop.f32.mrb[0].mxu0
        %v3872 = vadd.f32 0.0, %v3871
        %v3873 = vpop.f32.mrb[0].mxu0
        %v3874 = vpop.f32.mrb[0].mxu0
        %v3875 = vadd.f32 0.0, %v3874
        %v3876 = vpop.f32.mrb[0].mxu0
        %3877 = vmatprep.mubr.bf16.mxu0 0
        %3878 = vmatmul.mubr.bf16.gmra.mrb[0].mxu0 %v3773
        %v3879 = vpop.f32.mrb[0].mxu0
        %v3880 = vadd.f32 0.0, %v3879
        %v3881 = vpop.f32.mrb[0].mxu0
        %v3882 = vpop.f32.mrb[0].mxu0
        %v3883 = vadd.f32 0.0, %v3882
        %v3884 = vpop.f32.mrb[0].mxu0
        %3885 = vmatprep.mubr.bf16.mxu0 0
        %3886 = vmatmul.mubr.bf16.gmra.mrb[0].mxu0 %v3776
        %v3887 = vpop.f32.mrb[0].mxu0
        %v3888 = vadd.f32 0.0, %v3887
        %v3889 = vpop.f32.mrb[0].mxu0
        %v3890 = vpop.f32.mrb[0].mxu0
        %v3891 = vadd.f32 0.0, %v3890
        %v3892 = vpop.f32.mrb[0].mxu0
        %3893 = vmatprep.mubr.bf16.mxu0 0
        %3894 = vmatmul.mubr.bf16.gmra.mrb[0].mxu0 %v3779
        %v3895 = vpop.f32.mrb[0].mxu0
        %v3896 = vadd.f32 0.0, %v3895
        %v3897 = vpop.f32.mrb[0].mxu0
        %v3898 = vpop.f32.mrb[0].mxu0
        %v3899 = vadd.f32 0.0, %v3898
        %v3900 = vpop.f32.mrb[0].mxu0
        %3901 = vmatprep.mubr.bf16.mxu0 0
        %3902 = vmatmul.mubr.bf16.gmra.mrb[0].mxu0 %v3782
        %v3903 = vpop.f32.mrb[0].mxu0
        %v3904 = vadd.f32 0.0, %v3903
        %v3905 = vpop.f32.mrb[0].mxu0
        %v3906 = vpop.f32.mrb[0].mxu0
        %v3907 = vadd.f32 0.0, %v3906
        %v3908 = vpop.f32.mrb[0].mxu0
        %3909 = vmatprep.mubr.bf16.mxu0 0
        %3910 = vmatmul.mubr.bf16.gmra.mrb[0].mxu0 %v3785
        %v3911 = vpop.f32.mrb[0].mxu0
        %v3912 = vadd.f32 0.0, %v3911
        %v3913 = vpop.f32.mrb[0].mxu0
        %v3914 = vpop.f32.mrb[0].mxu0
        %v3915 = vadd.f32 0.0, %v3914
        %v3916 = vpop.f32.mrb[0].mxu0
        %3917 = vmatprep.mubr.bf16.mxu0 0
        %3918 = vmatmul.mubr.bf16.gmra.mrb[0].mxu0 %v3788
        %v3919 = vpop.f32.mrb[0].mxu0
        %v3920 = vadd.f32 0.0, %v3919
        %v3921 = vpop.f32.mrb[0].mxu0
        %v3922 = vpop.f32.mrb[0].mxu0
        %v3923 = vadd.f32 0.0, %v3922
        %v3924 = vpop.f32.mrb[0].mxu0
        %3925 = vmatprep.mubr.bf16.mxu0 0
        %3926 = vmatmul.mubr.bf16.gmra.mrb[0].mxu0 %v3791
        %v3927 = vpop.f32.mrb[0].mxu0
        %v3928 = vadd.f32 0.0, %v3927
        %v3929 = vpop.f32.mrb[0].mxu0
        %v3930 = vpop.f32.mrb[0].mxu0
        %v3931 = vadd.f32 0.0, %v3930
        %v3932 = vpop.f32.mrb[0].mxu0
        %3933 = vmatprep.mubr.bf16.mxu0 0
        %3934 = vmatmul.mubr.bf16.gmra.mrb[0].mxu0 %v3794
        %v3935 = vpop.f32.mrb[0].mxu0
        %v3936 = vadd.f32 0.0, %v3935
        %v3937 = vpop.f32.mrb[0].mxu0
        %v3938 = vpop.f32.mrb[0].mxu0
        %v3939 = vadd.f32 0.0, %v3938
        %v3940 = vpop.f32.mrb[0].mxu0
        %3941 = vmatprep.mubr.bf16.mxu0 0
        %3942 = vmatmul.mubr.bf16.gmra.mrb[0].mxu0 %v3797
        %v3943 = vpop.f32.mrb[0].mxu0
        %v3944 = vadd.f32 0.0, %v3943
        %v3945 = vpop.f32.mrb[0].mxu0
        %v3946 = vpop.f32.mrb[0].mxu0
        %v3947 = vadd.f32 0.0, %v3946
        %v3948 = vpop.f32.mrb[0].mxu0
        %3949 = vmatprep.mubr.bf16.mxu0 0
        %3950 = vmatmul.mubr.bf16.gmra.mrb[0].mxu0 %v3800
        %v3951 = vpop.f32.mrb[0].mxu0
        %v3952 = vadd.f32 0.0, %v3951
        %v3953 = vpop.f32.mrb[0].mxu0
        %v3954 = vpop.f32.mrb[0].mxu0
        %v3955 = vadd.f32 0.0, %v3954
        %v3956 = vpop.f32.mrb[0].mxu0
        %3957 = vmatprep.mubr.bf16.mxu0 0
        %3958 = vmatmul.mubr.bf16.gmra.mrb[0].mxu0 %v3803
        %v3959 = vpop.f32.mrb[0].mxu0
        %v3960 = vadd.f32 0.0, %v3959
        %v3961 = vpop.f32.mrb[0].mxu0
        %v3962 = vpop.f32.mrb[0].mxu0
        %v3963 = vadd.f32 0.0, %v3962
        %v3964 = vpop.f32.mrb[0].mxu0
        %3965 = vdwg.mxu0
        %v3967 = vsel %vm614, %v3642, 0
        %v3970 = vsel %vm614, %v3643, 0
        %v3973 = vsel %vm614, %v3644, 0
        %v3976 = vsel %vm614, %v3645, 0
        %v3979 = vsel %vm614, %v3646, 0
        %v3982 = vsel %vm614, %v3647, 0
        %v3985 = vsel %vm614, %v3648, 0
        %v3988 = vsel %vm614, %v3649, 0
        %v3991 = vsel %vm614, %v3650, 0
        %v3994 = vsel %vm614, %v3651, 0
        %v3997 = vsel %vm614, %v3652, 0
        %v4000 = vsel %vm614, %v3653, 0
        %v4003 = vsel %vm614, %v3654, 0
        %v4006 = vsel %vm614, %v3655, 0
        %v4009 = vsel %vm614, %v3656, 0
        %v4012 = vsel %vm614, %v3657, 0
        %v4015 = vsel %vm1485, %v3739, 0
        %4017 = vmatprep.subr.bf16.mxu0 0
        %4018 = vmatpush1.bf16.msra.mxu0 %v4015
        %4019 = vmatprep.subr.bf16.mxu0 0
        %4020 = vmatpush1.bf16.msra.mxu0 0
        %4021 = vmatprep.subr.bf16.mxu0 0
        %4022 = vmatpush1.bf16.msra.mxu0 0
        %4023 = vmatprep.subr.bf16.mxu0 0
        %4024 = vmatpush1.bf16.msra.mxu0 0
        %4025 = vmatprep.subr.bf16.mxu0 0
        %4026 = vmatpush1.bf16.msra.mxu0 0
        %4027 = vmatprep.subr.bf16.mxu0 0
        %4028 = vmatpush1.bf16.msra.mxu0 0
        %4029 = vmatprep.subr.bf16.mxu0 0
        %4030 = vmatpush1.bf16.msra.mxu0 0
        %4031 = vmatprep.subr.bf16.mxu0 0
        %4032 = vmatpush1.bf16.msra.mxu0 0
        %4033 = vmatprep.subr.bf16.mxu0 0
        %4034 = vmatpush1.bf16.msra.mxu0 0
        %4035 = vmatprep.subr.bf16.mxu0 0
        %4036 = vmatpush1.bf16.msra.mxu0 0
        %4037 = vmatprep.subr.bf16.mxu0 0
        %4038 = vmatpush1.bf16.msra.mxu0 0
        %4039 = vmatprep.subr.bf16.mxu0 0
        %4040 = vmatpush1.bf16.msra.mxu0 0
        %4041 = vmatprep.subr.bf16.mxu0 0
        %4042 = vmatpush1.bf16.msra.mxu0 0
        %4043 = vmatprep.subr.bf16.mxu0 0
        %4044 = vmatpush1.bf16.msra.mxu0 0
        %4045 = vmatprep.subr.bf16.mxu0 0
        %4046 = vmatpush1.bf16.msra.mxu0 0
        %4047 = vmatprep.subr.bf16.mxu0 0
        %4048 = vmatpush1.bf16.msra.mxu0 0
        %4049 = vmatprep.mubr.bf16.mxu0 0
        %4050 = vmatmul.mubr.bf16.gmra.mrb[0].mxu0 %v3967
        %v4051 = vpop.f32.mrb[0].mxu0
        %v4052 = vadd.f32 %v3840, %v4051
        %v4053 = vpop.f32.mrb[0].mxu0
        %v4054 = vpop.f32.mrb[0].mxu0
        %v4055 = vadd.f32 %v3843, %v4054
        %v4056 = vpop.f32.mrb[0].mxu0
        %4057 = vmatprep.mubr.bf16.mxu0 0
        %4058 = vmatmul.mubr.bf16.gmra.mrb[0].mxu0 %v3970
        %v4059 = vpop.f32.mrb[0].mxu0
        %v4060 = vadd.f32 %v3848, %v4059
        %v4061 = vpop.f32.mrb[0].mxu0
        %v4062 = vpop.f32.mrb[0].mxu0
        %v4063 = vadd.f32 %v3851, %v4062
        %v4064 = vpop.f32.mrb[0].mxu0
        %4065 = vmatprep.mubr.bf16.mxu0 0
        %4066 = vmatmul.mubr.bf16.gmra.mrb[0].mxu0 %v3973
        %v4067 = vpop.f32.mrb[0].mxu0
        %v4068 = vadd.f32 %v3856, %v4067
        %v4069 = vpop.f32.mrb[0].mxu0
        %v4070 = vpop.f32.mrb[0].mxu0
        %v4071 = vadd.f32 %v3859, %v4070
        %v4072 = vpop.f32.mrb[0].mxu0
        %4073 = vmatprep.mubr.bf16.mxu0 0
        %4074 = vmatmul.mubr.bf16.gmra.mrb[0].mxu0 %v3976
        %v4075 = vpop.f32.mrb[0].mxu0
        %v4076 = vadd.f32 %v3864, %v4075
        %v4077 = vpop.f32.mrb[0].mxu0
        %v4078 = vpop.f32.mrb[0].mxu0
        %v4079 = vadd.f32 %v3867, %v4078
        %v4080 = vpop.f32.mrb[0].mxu0
        %4081 = vmatprep.mubr.bf16.mxu0 0
        %4082 = vmatmul.mubr.bf16.gmra.mrb[0].mxu0 %v3979
        %v4083 = vpop.f32.mrb[0].mxu0
        %v4084 = vadd.f32 %v3872, %v4083
        %v4085 = vpop.f32.mrb[0].mxu0
        %v4086 = vpop.f32.mrb[0].mxu0
        %v4087 = vadd.f32 %v3875, %v4086
        %v4088 = vpop.f32.mrb[0].mxu0
        %4089 = vmatprep.mubr.bf16.mxu0 0
        %4090 = vmatmul.mubr.bf16.gmra.mrb[0].mxu0 %v3982
        %v4091 = vpop.f32.mrb[0].mxu0
        %v4092 = vadd.f32 %v3880, %v4091
        %v4093 = vpop.f32.mrb[0].mxu0
        %v4094 = vpop.f32.mrb[0].mxu0
        %v4095 = vadd.f32 %v3883, %v4094
        %v4096 = vpop.f32.mrb[0].mxu0
        %4097 = vmatprep.mubr.bf16.mxu0 0
        %4098 = vmatmul.mubr.bf16.gmra.mrb[0].mxu0 %v3985
        %v4099 = vpop.f32.mrb[0].mxu0
        %v4100 = vadd.f32 %v3888, %v4099
        %v4101 = vpop.f32.mrb[0].mxu0
        %v4102 = vpop.f32.mrb[0].mxu0
        %v4103 = vadd.f32 %v3891, %v4102
        %v4104 = vpop.f32.mrb[0].mxu0
        %4105 = vmatprep.mubr.bf16.mxu0 0
        %4106 = vmatmul.mubr.bf16.gmra.mrb[0].mxu0 %v3988
        %v4107 = vpop.f32.mrb[0].mxu0
        %v4108 = vadd.f32 %v3896, %v4107
        %v4109 = vpop.f32.mrb[0].mxu0
        %v4110 = vpop.f32.mrb[0].mxu0
        %v4111 = vadd.f32 %v3899, %v4110
        %v4112 = vpop.f32.mrb[0].mxu0
        %4113 = vmatprep.mubr.bf16.mxu0 0
        %4114 = vmatmul.mubr.bf16.gmra.mrb[0].mxu0 %v3991
        %v4115 = vpop.f32.mrb[0].mxu0
        %v4116 = vadd.f32 %v3904, %v4115
        %v4117 = vpop.f32.mrb[0].mxu0
        %v4118 = vpop.f32.mrb[0].mxu0
        %v4119 = vadd.f32 %v3907, %v4118
        %v4120 = vpop.f32.mrb[0].mxu0
        %4121 = vmatprep.mubr.bf16.mxu0 0
        %4122 = vmatmul.mubr.bf16.gmra.mrb[0].mxu0 %v3994
        %v4123 = vpop.f32.mrb[0].mxu0
        %v4124 = vadd.f32 %v3912, %v4123
        %v4125 = vpop.f32.mrb[0].mxu0
        %v4126 = vpop.f32.mrb[0].mxu0
        %v4127 = vadd.f32 %v3915, %v4126
        %v4128 = vpop.f32.mrb[0].mxu0
        %4129 = vmatprep.mubr.bf16.mxu0 0
        %4130 = vmatmul.mubr.bf16.gmra.mrb[0].mxu0 %v3997
        %v4131 = vpop.f32.mrb[0].mxu0
        %v4132 = vadd.f32 %v3920, %v4131
        %v4133 = vpop.f32.mrb[0].mxu0
        %v4134 = vpop.f32.mrb[0].mxu0
        %v4135 = vadd.f32 %v3923, %v4134
        %v4136 = vpop.f32.mrb[0].mxu0
        %4137 = vmatprep.mubr.bf16.mxu0 0
        %4138 = vmatmul.mubr.bf16.gmra.mrb[0].mxu0 %v4000
        %v4139 = vpop.f32.mrb[0].mxu0
        %v4140 = vadd.f32 %v3928, %v4139
        %v4141 = vpop.f32.mrb[0].mxu0
        %v4142 = vpop.f32.mrb[0].mxu0
        %v4143 = vadd.f32 %v3931, %v4142
        %v4144 = vpop.f32.mrb[0].mxu0
        %4145 = vmatprep.mubr.bf16.mxu0 0
        %4146 = vmatmul.mubr.bf16.gmra.mrb[0].mxu0 %v4003
        %v4147 = vpop.f32.mrb[0].mxu0
        %v4148 = vadd.f32 %v3936, %v4147
        %v4149 = vpop.f32.mrb[0].mxu0
        %v4150 = vpop.f32.mrb[0].mxu0
        %v4151 = vadd.f32 %v3939, %v4150
        %v4152 = vpop.f32.mrb[0].mxu0
        %4153 = vmatprep.mubr.bf16.mxu0 0
        %4154 = vmatmul.mubr.bf16.gmra.mrb[0].mxu0 %v4006
        %v4155 = vpop.f32.mrb[0].mxu0
        %v4156 = vadd.f32 %v3944, %v4155
        %v4157 = vpop.f32.mrb[0].mxu0
        %v4158 = vpop.f32.mrb[0].mxu0
        %v4159 = vadd.f32 %v3947, %v4158
        %v4160 = vpop.f32.mrb[0].mxu0
        %4161 = vmatprep.mubr.bf16.mxu0 0
        %4162 = vmatmul.mubr.bf16.gmra.mrb[0].mxu0 %v4009
        %v4163 = vpop.f32.mrb[0].mxu0
        %v4164 = vadd.f32 %v3952, %v4163
        %v4165 = vpop.f32.mrb[0].mxu0
        %v4166 = vpop.f32.mrb[0].mxu0
        %v4167 = vadd.f32 %v3955, %v4166
        %v4168 = vpop.f32.mrb[0].mxu0
        %4169 = vmatprep.mubr.bf16.mxu0 0
        %4170 = vmatmul.mubr.bf16.gmra.mrb[0].mxu0 %v4012
        %v4171 = vpop.f32.mrb[0].mxu0
        %v4172 = vadd.f32 %v3960, %v4171
        %v4173 = vpop.f32.mrb[0].mxu0
        %v4174 = vpop.f32.mrb[0].mxu0
        %v4175 = vadd.f32 %v3963, %v4174
        %v4176 = vpop.f32.mrb[0].mxu0
        %4177 = vdwg.mxu0
        %v4178 = vadd.f32 %v3706, %v4052
        %v4179 = vadd.f32 %v3707, %v4055
        %v4180 = vadd.f32 %v3708, %v4060
        %v4181 = vadd.f32 %v3709, %v4063
        %v4182 = vadd.f32 %v3710, %v4068
        %v4183 = vadd.f32 %v3711, %v4071
        %v4184 = vadd.f32 %v3712, %v4076
        %v4185 = vadd.f32 %v3713, %v4079
        %v4186 = vadd.f32 %v3714, %v4084
        %v4187 = vadd.f32 %v3715, %v4087
        %v4188 = vadd.f32 %v3716, %v4092
        %v4189 = vadd.f32 %v3717, %v4095
        %v4190 = vadd.f32 %v3718, %v4100
        %v4191 = vadd.f32 %v3719, %v4103
        %v4192 = vadd.f32 %v3720, %v4108
        %v4193 = vadd.f32 %v3721, %v4111
        %v4194 = vadd.f32 %v3722, %v4116
        %v4195 = vadd.f32 %v3723, %v4119
        %v4196 = vadd.f32 %v3724, %v4124
        %v4197 = vadd.f32 %v3725, %v4127
        %v4198 = vadd.f32 %v3726, %v4132
        %v4199 = vadd.f32 %v3727, %v4135
        %v4200 = vadd.f32 %v3728, %v4140
        %v4201 = vadd.f32 %v3729, %v4143
        %v4202 = vadd.f32 %v3730, %v4148
        %v4203 = vadd.f32 %v3731, %v4151
        %v4204 = vadd.f32 %v3732, %v4156
        %v4205 = vadd.f32 %v3733, %v4159
        %v4206 = vadd.f32 %v3734, %v4164
        %v4207 = vadd.f32 %v3735, %v4167
        %v4208 = vadd.f32 %v3736, %v4172
        %v4209 = vadd.f32 %v3737, %v4175
        %4210 = vst [vmem:[#allocation4] sm:$0xff] %v4178
        %4211 = vst [vmem:[#allocation4 + $0x8] sm:$0xff] %v4179
        %4212 = vst [vmem:[#allocation4 + $0x10] sm:$0xff] %v4180
        %4213 = vst [vmem:[#allocation4 + $0x18] sm:$0xff] %v4181
        %4214 = vst [vmem:[#allocation4 + $0x20] sm:$0xff] %v4182
        %4215 = vst [vmem:[#allocation4 + $0x28] sm:$0xff] %v4183
        %4216 = vst [vmem:[#allocation4 + $0x30] sm:$0xff] %v4184
        %4217 = vst [vmem:[#allocation4 + $0x38] sm:$0xff] %v4185
        %4218 = vst [vmem:[#allocation4 + $0x40] sm:$0xff] %v4186
        %4219 = vst [vmem:[#allocation4 + $0x48] sm:$0xff] %v4187
        %4220 = vst [vmem:[#allocation4 + $0x50] sm:$0xff] %v4188
        %4221 = vst [vmem:[#allocation4 + $0x58] sm:$0xff] %v4189
        %4222 = vst [vmem:[#allocation4 + $0x60] sm:$0xff] %v4190
        %4223 = vst [vmem:[#allocation4 + $0x68] sm:$0xff] %v4191
        %4224 = vst [vmem:[#allocation4 + $0x70] sm:$0xff] %v4192
        %4225 = vst [vmem:[#allocation4 + $0x78] sm:$0xff] %v4193
        %4226 = vst [vmem:[#allocation4 + $0x80] sm:$0xff] %v4194
        %4227 = vst [vmem:[#allocation4 + $0x88] sm:$0xff] %v4195
        %4228 = vst [vmem:[#allocation4 + $0x90] sm:$0xff] %v4196
        %4229 = vst [vmem:[#allocation4 + $0x98] sm:$0xff] %v4197
        %4230 = vst [vmem:[#allocation4 + $0xa0] sm:$0xff] %v4198
        %4231 = vst [vmem:[#allocation4 + $0xa8] sm:$0xff] %v4199
        %4232 = vst [vmem:[#allocation4 + $0xb0] sm:$0xff] %v4200
        %4233 = vst [vmem:[#allocation4 + $0xb8] sm:$0xff] %v4201
        %4234 = vst [vmem:[#allocation4 + $0xc0] sm:$0xff] %v4202
        %4235 = vst [vmem:[#allocation4 + $0xc8] sm:$0xff] %v4203
        %4236 = vst [vmem:[#allocation4 + $0xd0] sm:$0xff] %v4204
        %4237 = vst [vmem:[#allocation4 + $0xd8] sm:$0xff] %v4205
        %4238 = vst [vmem:[#allocation4 + $0xe0] sm:$0xff] %v4206
        %4239 = vst [vmem:[#allocation4 + $0xe8] sm:$0xff] %v4207
        %4240 = vst [vmem:[#allocation4 + $0xf0] sm:$0xff] %v4208
        %4241 = vst [vmem:[#allocation4 + $0xf8] sm:$0xff] %v4209
        %v4242 = vld [vmem:[%s946 + $0x2] sm:$0xff]
        %v4243 = vld [vmem:[%s946 + $0xa] sm:$0xff]
        %v4244 = vld [vmem:[%s946 + $0x1a] sm:$0xff]
        %v4245 = vld [vmem:[%s946 + $0x22] sm:$0xff]
        %v4246 = vld [vmem:[%s946 + $0x32] sm:$0xff]
        %v4247 = vld [vmem:[%s946 + $0x3a] sm:$0xff]
        %v4248 = vld [vmem:[%s946 + $0x4a] sm:$0xff]
        %v4249 = vld [vmem:[%s946 + $0x52] sm:$0xff]
        %v4250 = vld [vmem:[%s946 + $0x62] sm:$0xff]
        %v4251 = vld [vmem:[%s946 + $0x6a] sm:$0xff]
        %v4252 = vld [vmem:[%s946 + $0x7a] sm:$0xff]
        %v4253 = vld [vmem:[%s946 + $0x82] sm:$0xff]
        %v4254 = vld [vmem:[%s946 + $0x92] sm:$0xff]
        %v4255 = vld [vmem:[%s946 + $0x9a] sm:$0xff]
        %v4256 = vld [vmem:[%s946 + $0xaa] sm:$0xff]
        %v4257 = vld [vmem:[%s946 + $0xb2] sm:$0xff]
        %v4258 = vld [vmem:[%s946 + $0xc2] sm:$0xff]
        %v4259 = vld [vmem:[%s946 + $0xca] sm:$0xff]
        %v4260 = vld [vmem:[%s946 + $0xda] sm:$0xff]
        %v4261 = vld [vmem:[%s946 + $0xe2] sm:$0xff]
        %v4262 = vld [vmem:[%s946 + $0xf2] sm:$0xff]
        %v4263 = vld [vmem:[%s946 + $0xfa] sm:$0xff]
        %v4264 = vld [vmem:[%s946 + $0x10a] sm:$0xff]
        %v4265 = vld [vmem:[%s946 + $0x112] sm:$0xff]
        %v4266 = vld [vmem:[%s946 + $0x122] sm:$0xff]
        %v4267 = vld [vmem:[%s946 + $0x12a] sm:$0xff]
        %v4268 = vld [vmem:[%s946 + $0x13a] sm:$0xff]
        %v4269 = vld [vmem:[%s946 + $0x142] sm:$0xff]
        %v4270 = vld [vmem:[%s946 + $0x152] sm:$0xff]
        %v4271 = vld [vmem:[%s946 + $0x15a] sm:$0xff]
        %v4272 = vld [vmem:[%s946 + $0x16a] sm:$0xff]
        %v4273 = vld [vmem:[%s946 + $0x172] sm:$0xff]
        %v4274 = vpack.c.bf16 %v4243, %v4242
        %v4275 = vpack.c.bf16 %v4245, %v4244
        %v4276 = vpack.c.bf16 %v4247, %v4246
        %v4277 = vpack.c.bf16 %v4249, %v4248
        %v4278 = vpack.c.bf16 %v4251, %v4250
        %v4279 = vpack.c.bf16 %v4253, %v4252
        %v4280 = vpack.c.bf16 %v4255, %v4254
        %v4281 = vpack.c.bf16 %v4257, %v4256
        %v4282 = vpack.c.bf16 %v4259, %v4258
        %v4283 = vpack.c.bf16 %v4261, %v4260
        %v4284 = vpack.c.bf16 %v4263, %v4262
        %v4285 = vpack.c.bf16 %v4265, %v4264
        %v4286 = vpack.c.bf16 %v4267, %v4266
        %v4287 = vpack.c.bf16 %v4269, %v4268
        %v4288 = vpack.c.bf16 %v4271, %v4270
        %v4289 = vpack.c.bf16 %v4273, %v4272
        %v4290 = vld [vmem:[%s1011 + $0x2] sm:$0xff]
        %v4291 = vld [vmem:[%s1011 + $0xa] sm:$0xff]
        %v4292 = vld [vmem:[%s1011 + $0x1a] sm:$0xff]
        %v4293 = vld [vmem:[%s1011 + $0x22] sm:$0xff]
        %v4294 = vld [vmem:[%s1011 + $0x32] sm:$0xff]
        %v4295 = vld [vmem:[%s1011 + $0x3a] sm:$0xff]
        %v4296 = vld [vmem:[%s1011 + $0x4a] sm:$0xff]
        %v4297 = vld [vmem:[%s1011 + $0x52] sm:$0xff]
        %v4298 = vld [vmem:[%s1011 + $0x62] sm:$0xff]
        %v4299 = vld [vmem:[%s1011 + $0x6a] sm:$0xff]
        %v4300 = vld [vmem:[%s1011 + $0x7a] sm:$0xff]
        %v4301 = vld [vmem:[%s1011 + $0x82] sm:$0xff]
        %v4302 = vld [vmem:[%s1011 + $0x92] sm:$0xff]
        %v4303 = vld [vmem:[%s1011 + $0x9a] sm:$0xff]
        %v4304 = vld [vmem:[%s1011 + $0xaa] sm:$0xff]
        %v4305 = vld [vmem:[%s1011 + $0xb2] sm:$0xff]
        %v4306 = vld [vmem:[%s1011 + $0xc2] sm:$0xff]
        %v4307 = vld [vmem:[%s1011 + $0xca] sm:$0xff]
        %v4308 = vld [vmem:[%s1011 + $0xda] sm:$0xff]
        %v4309 = vld [vmem:[%s1011 + $0xe2] sm:$0xff]
        %v4310 = vld [vmem:[%s1011 + $0xf2] sm:$0xff]
        %v4311 = vld [vmem:[%s1011 + $0xfa] sm:$0xff]
        %v4312 = vld [vmem:[%s1011 + $0x10a] sm:$0xff]
        %v4313 = vld [vmem:[%s1011 + $0x112] sm:$0xff]
        %v4314 = vld [vmem:[%s1011 + $0x122] sm:$0xff]
        %v4315 = vld [vmem:[%s1011 + $0x12a] sm:$0xff]
        %v4316 = vld [vmem:[%s1011 + $0x13a] sm:$0xff]
        %v4317 = vld [vmem:[%s1011 + $0x142] sm:$0xff]
        %v4318 = vld [vmem:[%s1011 + $0x152] sm:$0xff]
        %v4319 = vld [vmem:[%s1011 + $0x15a] sm:$0xff]
        %v4320 = vld [vmem:[%s1011 + $0x16a] sm:$0xff]
        %v4321 = vld [vmem:[%s1011 + $0x172] sm:$0xff]
        %v4322 = vpack.c.bf16 %v4291, %v4290
        %v4323 = vpack.c.bf16 %v4293, %v4292
        %v4324 = vpack.c.bf16 %v4295, %v4294
        %v4325 = vpack.c.bf16 %v4297, %v4296
        %v4326 = vpack.c.bf16 %v4299, %v4298
        %v4327 = vpack.c.bf16 %v4301, %v4300
        %v4328 = vpack.c.bf16 %v4303, %v4302
        %v4329 = vpack.c.bf16 %v4305, %v4304
        %v4330 = vpack.c.bf16 %v4307, %v4306
        %v4331 = vpack.c.bf16 %v4309, %v4308
        %v4332 = vpack.c.bf16 %v4311, %v4310
        %v4333 = vpack.c.bf16 %v4313, %v4312
        %v4334 = vpack.c.bf16 %v4315, %v4314
        %v4335 = vpack.c.bf16 %v4317, %v4316
        %v4336 = vpack.c.bf16 %v4319, %v4318
        %v4337 = vpack.c.bf16 %v4321, %v4320
        %v4338 = vld [vmem:[#allocation4] sm:$0xff]
        %v4339 = vld [vmem:[#allocation4 + $0x8] sm:$0xff]
        %v4340 = vld [vmem:[#allocation4 + $0x10] sm:$0xff]
        %v4341 = vld [vmem:[#allocation4 + $0x18] sm:$0xff]
        %v4342 = vld [vmem:[#allocation4 + $0x20] sm:$0xff]
        %v4343 = vld [vmem:[#allocation4 + $0x28] sm:$0xff]
        %v4344 = vld [vmem:[#allocation4 + $0x30] sm:$0xff]
        %v4345 = vld [vmem:[#allocation4 + $0x38] sm:$0xff]
        %v4346 = vld [vmem:[#allocation4 + $0x40] sm:$0xff]
        %v4347 = vld [vmem:[#allocation4 + $0x48] sm:$0xff]
        %v4348 = vld [vmem:[#allocation4 + $0x50] sm:$0xff]
        %v4349 = vld [vmem:[#allocation4 + $0x58] sm:$0xff]
        %v4350 = vld [vmem:[#allocation4 + $0x60] sm:$0xff]
        %v4351 = vld [vmem:[#allocation4 + $0x68] sm:$0xff]
        %v4352 = vld [vmem:[#allocation4 + $0x70] sm:$0xff]
        %v4353 = vld [vmem:[#allocation4 + $0x78] sm:$0xff]
        %v4354 = vld [vmem:[#allocation4 + $0x80] sm:$0xff]
        %v4355 = vld [vmem:[#allocation4 + $0x88] sm:$0xff]
        %v4356 = vld [vmem:[#allocation4 + $0x90] sm:$0xff]
        %v4357 = vld [vmem:[#allocation4 + $0x98] sm:$0xff]
        %v4358 = vld [vmem:[#allocation4 + $0xa0] sm:$0xff]
        %v4359 = vld [vmem:[#allocation4 + $0xa8] sm:$0xff]
        %v4360 = vld [vmem:[#allocation4 + $0xb0] sm:$0xff]
        %v4361 = vld [vmem:[#allocation4 + $0xb8] sm:$0xff]
        %v4362 = vld [vmem:[#allocation4 + $0xc0] sm:$0xff]
        %v4363 = vld [vmem:[#allocation4 + $0xc8] sm:$0xff]
        %v4364 = vld [vmem:[#allocation4 + $0xd0] sm:$0xff]
        %v4365 = vld [vmem:[#allocation4 + $0xd8] sm:$0xff]
        %v4366 = vld [vmem:[#allocation4 + $0xe0] sm:$0xff]
        %v4367 = vld [vmem:[#allocation4 + $0xe8] sm:$0xff]
        %v4368 = vld [vmem:[#allocation4 + $0xf0] sm:$0xff]
        %v4369 = vld [vmem:[#allocation4 + $0xf8] sm:$0xff]
        %s4370 = scalar_lea.vmem [#allocation8], 10
        %v4371 = vld [vmem:[%s4370] sm:$0x3]
        %s4372 = scalar_lea.vmem %s4, 80
        %v4373 = vld [vmem:[%s4372] sm:$0xf]
        %v4374 = vld [vmem:[%s4372 + $0x4] sm:$0xf]
        %v4375 = vld [vmem:[%s4372 + $0x8] sm:$0xf]
        %v4376 = vld [vmem:[%s4372 + $0xc] sm:$0xf]
        %v4381 = vunpack.c.l.b16 %v4373
        %v4382 = vunpack.c.l.b16 %v4374
        %v4383 = vunpack.c.l.b16 %v4375
        %v4384 = vunpack.c.l.b16 %v4376
        %v4385 = vpack.c.b16 %v4382, %v4381
        %v4386 = vpack.c.b16 %v4384, %v4383
        %v4390 = vsel %vm823, %v4322, 0
        %v4393 = vsel %vm823, %v4323, 0
        %v4396 = vsel %vm823, %v4324, 0
        %v4399 = vsel %vm823, %v4325, 0
        %v4402 = vsel %vm823, %v4326, 0
        %v4405 = vsel %vm823, %v4327, 0
        %v4408 = vsel %vm823, %v4328, 0
        %v4411 = vsel %vm823, %v4329, 0
        %v4414 = vsel %vm823, %v4330, 0
        %v4417 = vsel %vm823, %v4331, 0
        %v4420 = vsel %vm823, %v4332, 0
        %v4423 = vsel %vm823, %v4333, 0
        %v4426 = vsel %vm823, %v4334, 0
        %v4429 = vsel %vm823, %v4335, 0
        %v4432 = vsel %vm823, %v4336, 0
        %v4435 = vsel %vm823, %v4337, 0
        %4437 = vmatprep.subr.bf16.mxu0 0
        %4438 = vmatpush1.bf16.msra.mxu0 %v4385
        %4439 = vmatprep.subr.bf16.mxu0 0
        %4440 = vmatpush1.bf16.msra.mxu0 %v4386
        %4441 = vmatprep.subr.bf16.mxu0 0
        %4442 = vmatpush1.bf16.msra.mxu0 0
        %4443 = vmatprep.subr.bf16.mxu0 0
        %4444 = vmatpush1.bf16.msra.mxu0 0
        %4445 = vmatprep.subr.bf16.mxu0 0
        %4446 = vmatpush1.bf16.msra.mxu0 0
        %4447 = vmatprep.subr.bf16.mxu0 0
        %4448 = vmatpush1.bf16.msra.mxu0 0
        %4449 = vmatprep.subr.bf16.mxu0 0
        %4450 = vmatpush1.bf16.msra.mxu0 0
        %4451 = vmatprep.subr.bf16.mxu0 0
        %4452 = vmatpush1.bf16.msra.mxu0 0
        %4453 = vmatprep.subr.bf16.mxu0 0
        %4454 = vmatpush1.bf16.msra.mxu0 0
        %4455 = vmatprep.subr.bf16.mxu0 0
        %4456 = vmatpush1.bf16.msra.mxu0 0
        %4457 = vmatprep.subr.bf16.mxu0 0
        %4458 = vmatpush1.bf16.msra.mxu0 0
        %4459 = vmatprep.subr.bf16.mxu0 0
        %4460 = vmatpush1.bf16.msra.mxu0 0
        %4461 = vmatprep.subr.bf16.mxu0 0
        %4462 = vmatpush1.bf16.msra.mxu0 0
        %4463 = vmatprep.subr.bf16.mxu0 0
        %4464 = vmatpush1.bf16.msra.mxu0 0
        %4465 = vmatprep.subr.bf16.mxu0 0
        %4466 = vmatpush1.bf16.msra.mxu0 0
        %4467 = vmatprep.subr.bf16.mxu0 0
        %4468 = vmatpush1.bf16.msra.mxu0 0
        %4469 = vmatprep.mubr.bf16.mxu0 0
        %4470 = vmatmul.mubr.bf16.gmra.mrb[0].mxu0 %v4390
        %v4471 = vpop.f32.mrb[0].mxu0
        %v4472 = vadd.f32 0.0, %v4471
        %v4473 = vpop.f32.mrb[0].mxu0
        %v4474 = vpop.f32.mrb[0].mxu0
        %v4475 = vadd.f32 0.0, %v4474
        %v4476 = vpop.f32.mrb[0].mxu0
        %4477 = vmatprep.mubr.bf16.mxu0 0
        %4478 = vmatmul.mubr.bf16.gmra.mrb[0].mxu0 %v4393
        %v4479 = vpop.f32.mrb[0].mxu0
        %v4480 = vadd.f32 0.0, %v4479
        %v4481 = vpop.f32.mrb[0].mxu0
        %v4482 = vpop.f32.mrb[0].mxu0
        %v4483 = vadd.f32 0.0, %v4482
        %v4484 = vpop.f32.mrb[0].mxu0
        %4485 = vmatprep.mubr.bf16.mxu0 0
        %4486 = vmatmul.mubr.bf16.gmra.mrb[0].mxu0 %v4396
        %v4487 = vpop.f32.mrb[0].mxu0
        %v4488 = vadd.f32 0.0, %v4487
        %v4489 = vpop.f32.mrb[0].mxu0
        %v4490 = vpop.f32.mrb[0].mxu0
        %v4491 = vadd.f32 0.0, %v4490
        %v4492 = vpop.f32.mrb[0].mxu0
        %4493 = vmatprep.mubr.bf16.mxu0 0
        %4494 = vmatmul.mubr.bf16.gmra.mrb[0].mxu0 %v4399
        %v4495 = vpop.f32.mrb[0].mxu0
        %v4496 = vadd.f32 0.0, %v4495
        %v4497 = vpop.f32.mrb[0].mxu0
        %v4498 = vpop.f32.mrb[0].mxu0
        %v4499 = vadd.f32 0.0, %v4498
        %v4500 = vpop.f32.mrb[0].mxu0
        %4501 = vmatprep.mubr.bf16.mxu0 0
        %4502 = vmatmul.mubr.bf16.gmra.mrb[0].mxu0 %v4402
        %v4503 = vpop.f32.mrb[0].mxu0
        %v4504 = vadd.f32 0.0, %v4503
        %v4505 = vpop.f32.mrb[0].mxu0
        %v4506 = vpop.f32.mrb[0].mxu0
        %v4507 = vadd.f32 0.0, %v4506
        %v4508 = vpop.f32.mrb[0].mxu0
        %4509 = vmatprep.mubr.bf16.mxu0 0
        %4510 = vmatmul.mubr.bf16.gmra.mrb[0].mxu0 %v4405
        %v4511 = vpop.f32.mrb[0].mxu0
        %v4512 = vadd.f32 0.0, %v4511
        %v4513 = vpop.f32.mrb[0].mxu0
        %v4514 = vpop.f32.mrb[0].mxu0
        %v4515 = vadd.f32 0.0, %v4514
        %v4516 = vpop.f32.mrb[0].mxu0
        %4517 = vmatprep.mubr.bf16.mxu0 0
        %4518 = vmatmul.mubr.bf16.gmra.mrb[0].mxu0 %v4408
        %v4519 = vpop.f32.mrb[0].mxu0
        %v4520 = vadd.f32 0.0, %v4519
        %v4521 = vpop.f32.mrb[0].mxu0
        %v4522 = vpop.f32.mrb[0].mxu0
        %v4523 = vadd.f32 0.0, %v4522
        %v4524 = vpop.f32.mrb[0].mxu0
        %4525 = vmatprep.mubr.bf16.mxu0 0
        %4526 = vmatmul.mubr.bf16.gmra.mrb[0].mxu0 %v4411
        %v4527 = vpop.f32.mrb[0].mxu0
        %v4528 = vadd.f32 0.0, %v4527
        %v4529 = vpop.f32.mrb[0].mxu0
        %v4530 = vpop.f32.mrb[0].mxu0
        %v4531 = vadd.f32 0.0, %v4530
        %v4532 = vpop.f32.mrb[0].mxu0
        %4533 = vmatprep.mubr.bf16.mxu0 0
        %4534 = vmatmul.mubr.bf16.gmra.mrb[0].mxu0 %v4414
        %v4535 = vpop.f32.mrb[0].mxu0
        %v4536 = vadd.f32 0.0, %v4535
        %v4537 = vpop.f32.mrb[0].mxu0
        %v4538 = vpop.f32.mrb[0].mxu0
        %v4539 = vadd.f32 0.0, %v4538
        %v4540 = vpop.f32.mrb[0].mxu0
        %4541 = vmatprep.mubr.bf16.mxu0 0
        %4542 = vmatmul.mubr.bf16.gmra.mrb[0].mxu0 %v4417
        %v4543 = vpop.f32.mrb[0].mxu0
        %v4544 = vadd.f32 0.0, %v4543
        %v4545 = vpop.f32.mrb[0].mxu0
        %v4546 = vpop.f32.mrb[0].mxu0
        %v4547 = vadd.f32 0.0, %v4546
        %v4548 = vpop.f32.mrb[0].mxu0
        %4549 = vmatprep.mubr.bf16.mxu0 0
        %4550 = vmatmul.mubr.bf16.gmra.mrb[0].mxu0 %v4420
        %v4551 = vpop.f32.mrb[0].mxu0
        %v4552 = vadd.f32 0.0, %v4551
        %v4553 = vpop.f32.mrb[0].mxu0
        %v4554 = vpop.f32.mrb[0].mxu0
        %v4555 = vadd.f32 0.0, %v4554
        %v4556 = vpop.f32.mrb[0].mxu0
        %4557 = vmatprep.mubr.bf16.mxu0 0
        %4558 = vmatmul.mubr.bf16.gmra.mrb[0].mxu0 %v4423
        %v4559 = vpop.f32.mrb[0].mxu0
        %v4560 = vadd.f32 0.0, %v4559
        %v4561 = vpop.f32.mrb[0].mxu0
        %v4562 = vpop.f32.mrb[0].mxu0
        %v4563 = vadd.f32 0.0, %v4562
        %v4564 = vpop.f32.mrb[0].mxu0
        %4565 = vmatprep.mubr.bf16.mxu0 0
        %4566 = vmatmul.mubr.bf16.gmra.mrb[0].mxu0 %v4426
        %v4567 = vpop.f32.mrb[0].mxu0
        %v4568 = vadd.f32 0.0, %v4567
        %v4569 = vpop.f32.mrb[0].mxu0
        %v4570 = vpop.f32.mrb[0].mxu0
        %v4571 = vadd.f32 0.0, %v4570
        %v4572 = vpop.f32.mrb[0].mxu0
        %4573 = vmatprep.mubr.bf16.mxu0 0
        %4574 = vmatmul.mubr.bf16.gmra.mrb[0].mxu0 %v4429
        %v4575 = vpop.f32.mrb[0].mxu0
        %v4576 = vadd.f32 0.0, %v4575
        %v4577 = vpop.f32.mrb[0].mxu0
        %v4578 = vpop.f32.mrb[0].mxu0
        %v4579 = vadd.f32 0.0, %v4578
        %v4580 = vpop.f32.mrb[0].mxu0
        %4581 = vmatprep.mubr.bf16.mxu0 0
        %4582 = vmatmul.mubr.bf16.gmra.mrb[0].mxu0 %v4432
        %v4583 = vpop.f32.mrb[0].mxu0
        %v4584 = vadd.f32 0.0, %v4583
        %v4585 = vpop.f32.mrb[0].mxu0
        %v4586 = vpop.f32.mrb[0].mxu0
        %v4587 = vadd.f32 0.0, %v4586
        %v4588 = vpop.f32.mrb[0].mxu0
        %4589 = vmatprep.mubr.bf16.mxu0 0
        %4590 = vmatmul.mubr.bf16.gmra.mrb[0].mxu0 %v4435
        %v4591 = vpop.f32.mrb[0].mxu0
        %v4592 = vadd.f32 0.0, %v4591
        %v4593 = vpop.f32.mrb[0].mxu0
        %v4594 = vpop.f32.mrb[0].mxu0
        %v4595 = vadd.f32 0.0, %v4594
        %v4596 = vpop.f32.mrb[0].mxu0
        %4597 = vdwg.mxu0
        %v4599 = vsel %vm614, %v4274, 0
        %v4602 = vsel %vm614, %v4275, 0
        %v4605 = vsel %vm614, %v4276, 0
        %v4608 = vsel %vm614, %v4277, 0
        %v4611 = vsel %vm614, %v4278, 0
        %v4614 = vsel %vm614, %v4279, 0
        %v4617 = vsel %vm614, %v4280, 0
        %v4620 = vsel %vm614, %v4281, 0
        %v4623 = vsel %vm614, %v4282, 0
        %v4626 = vsel %vm614, %v4283, 0
        %v4629 = vsel %vm614, %v4284, 0
        %v4632 = vsel %vm614, %v4285, 0
        %v4635 = vsel %vm614, %v4286, 0
        %v4638 = vsel %vm614, %v4287, 0
        %v4641 = vsel %vm614, %v4288, 0
        %v4644 = vsel %vm614, %v4289, 0
        %v4647 = vsel %vm1485, %v4371, 0
        %4649 = vmatprep.subr.bf16.mxu0 0
        %4650 = vmatpush1.bf16.msra.mxu0 %v4647
        %4651 = vmatprep.subr.bf16.mxu0 0
        %4652 = vmatpush1.bf16.msra.mxu0 0
        %4653 = vmatprep.subr.bf16.mxu0 0
        %4654 = vmatpush1.bf16.msra.mxu0 0
        %4655 = vmatprep.subr.bf16.mxu0 0
        %4656 = vmatpush1.bf16.msra.mxu0 0
        %4657 = vmatprep.subr.bf16.mxu0 0
        %4658 = vmatpush1.bf16.msra.mxu0 0
        %4659 = vmatprep.subr.bf16.mxu0 0
        %4660 = vmatpush1.bf16.msra.mxu0 0
        %4661 = vmatprep.subr.bf16.mxu0 0
        %4662 = vmatpush1.bf16.msra.mxu0 0
        %4663 = vmatprep.subr.bf16.mxu0 0
        %4664 = vmatpush1.bf16.msra.mxu0 0
        %4665 = vmatprep.subr.bf16.mxu0 0
        %4666 = vmatpush1.bf16.msra.mxu0 0
        %4667 = vmatprep.subr.bf16.mxu0 0
        %4668 = vmatpush1.bf16.msra.mxu0 0
        %4669 = vmatprep.subr.bf16.mxu0 0
        %4670 = vmatpush1.bf16.msra.mxu0 0
        %4671 = vmatprep.subr.bf16.mxu0 0
        %4672 = vmatpush1.bf16.msra.mxu0 0
        %4673 = vmatprep.subr.bf16.mxu0 0
        %4674 = vmatpush1.bf16.msra.mxu0 0
        %4675 = vmatprep.subr.bf16.mxu0 0
        %4676 = vmatpush1.bf16.msra.mxu0 0
        %4677 = vmatprep.subr.bf16.mxu0 0
        %4678 = vmatpush1.bf16.msra.mxu0 0
        %4679 = vmatprep.subr.bf16.mxu0 0
        %4680 = vmatpush1.bf16.msra.mxu0 0
        %4681 = vmatprep.mubr.bf16.mxu0 0
        %4682 = vmatmul.mubr.bf16.gmra.mrb[0].mxu0 %v4599
        %v4683 = vpop.f32.mrb[0].mxu0
        %v4684 = vadd.f32 %v4472, %v4683
        %v4685 = vpop.f32.mrb[0].mxu0
        %v4686 = vpop.f32.mrb[0].mxu0
        %v4687 = vadd.f32 %v4475, %v4686
        %v4688 = vpop.f32.mrb[0].mxu0
        %4689 = vmatprep.mubr.bf16.mxu0 0
        %4690 = vmatmul.mubr.bf16.gmra.mrb[0].mxu0 %v4602
        %v4691 = vpop.f32.mrb[0].mxu0
        %v4692 = vadd.f32 %v4480, %v4691
        %v4693 = vpop.f32.mrb[0].mxu0
        %v4694 = vpop.f32.mrb[0].mxu0
        %v4695 = vadd.f32 %v4483, %v4694
        %v4696 = vpop.f32.mrb[0].mxu0
        %4697 = vmatprep.mubr.bf16.mxu0 0
        %4698 = vmatmul.mubr.bf16.gmra.mrb[0].mxu0 %v4605
        %v4699 = vpop.f32.mrb[0].mxu0
        %v4700 = vadd.f32 %v4488, %v4699
        %v4701 = vpop.f32.mrb[0].mxu0
        %v4702 = vpop.f32.mrb[0].mxu0
        %v4703 = vadd.f32 %v4491, %v4702
        %v4704 = vpop.f32.mrb[0].mxu0
        %4705 = vmatprep.mubr.bf16.mxu0 0
        %4706 = vmatmul.mubr.bf16.gmra.mrb[0].mxu0 %v4608
        %v4707 = vpop.f32.mrb[0].mxu0
        %v4708 = vadd.f32 %v4496, %v4707
        %v4709 = vpop.f32.mrb[0].mxu0
        %v4710 = vpop.f32.mrb[0].mxu0
        %v4711 = vadd.f32 %v4499, %v4710
        %v4712 = vpop.f32.mrb[0].mxu0
        %4713 = vmatprep.mubr.bf16.mxu0 0
        %4714 = vmatmul.mubr.bf16.gmra.mrb[0].mxu0 %v4611
        %v4715 = vpop.f32.mrb[0].mxu0
        %v4716 = vadd.f32 %v4504, %v4715
        %v4717 = vpop.f32.mrb[0].mxu0
        %v4718 = vpop.f32.mrb[0].mxu0
        %v4719 = vadd.f32 %v4507, %v4718
        %v4720 = vpop.f32.mrb[0].mxu0
        %4721 = vmatprep.mubr.bf16.mxu0 0
        %4722 = vmatmul.mubr.bf16.gmra.mrb[0].mxu0 %v4614
        %v4723 = vpop.f32.mrb[0].mxu0
        %v4724 = vadd.f32 %v4512, %v4723
        %v4725 = vpop.f32.mrb[0].mxu0
        %v4726 = vpop.f32.mrb[0].mxu0
        %v4727 = vadd.f32 %v4515, %v4726
        %v4728 = vpop.f32.mrb[0].mxu0
        %4729 = vmatprep.mubr.bf16.mxu0 0
        %4730 = vmatmul.mubr.bf16.gmra.mrb[0].mxu0 %v4617
        %v4731 = vpop.f32.mrb[0].mxu0
        %v4732 = vadd.f32 %v4520, %v4731
        %v4733 = vpop.f32.mrb[0].mxu0
        %v4734 = vpop.f32.mrb[0].mxu0
        %v4735 = vadd.f32 %v4523, %v4734
        %v4736 = vpop.f32.mrb[0].mxu0
        %4737 = vmatprep.mubr.bf16.mxu0 0
        %4738 = vmatmul.mubr.bf16.gmra.mrb[0].mxu0 %v4620
        %v4739 = vpop.f32.mrb[0].mxu0
        %v4740 = vadd.f32 %v4528, %v4739
        %v4741 = vpop.f32.mrb[0].mxu0
        %v4742 = vpop.f32.mrb[0].mxu0
        %v4743 = vadd.f32 %v4531, %v4742
        %v4744 = vpop.f32.mrb[0].mxu0
        %4745 = vmatprep.mubr.bf16.mxu0 0
        %4746 = vmatmul.mubr.bf16.gmra.mrb[0].mxu0 %v4623
        %v4747 = vpop.f32.mrb[0].mxu0
        %v4748 = vadd.f32 %v4536, %v4747
        %v4749 = vpop.f32.mrb[0].mxu0
        %v4750 = vpop.f32.mrb[0].mxu0
        %v4751 = vadd.f32 %v4539, %v4750
        %v4752 = vpop.f32.mrb[0].mxu0
        %4753 = vmatprep.mubr.bf16.mxu0 0
        %4754 = vmatmul.mubr.bf16.gmra.mrb[0].mxu0 %v4626
        %v4755 = vpop.f32.mrb[0].mxu0
        %v4756 = vadd.f32 %v4544, %v4755
        %v4757 = vpop.f32.mrb[0].mxu0
        %v4758 = vpop.f32.mrb[0].mxu0
        %v4759 = vadd.f32 %v4547, %v4758
        %v4760 = vpop.f32.mrb[0].mxu0
        %4761 = vmatprep.mubr.bf16.mxu0 0
        %4762 = vmatmul.mubr.bf16.gmra.mrb[0].mxu0 %v4629
        %v4763 = vpop.f32.mrb[0].mxu0
        %v4764 = vadd.f32 %v4552, %v4763
        %v4765 = vpop.f32.mrb[0].mxu0
        %v4766 = vpop.f32.mrb[0].mxu0
        %v4767 = vadd.f32 %v4555, %v4766
        %v4768 = vpop.f32.mrb[0].mxu0
        %4769 = vmatprep.mubr.bf16.mxu0 0
        %4770 = vmatmul.mubr.bf16.gmra.mrb[0].mxu0 %v4632
        %v4771 = vpop.f32.mrb[0].mxu0
        %v4772 = vadd.f32 %v4560, %v4771
        %v4773 = vpop.f32.mrb[0].mxu0
        %v4774 = vpop.f32.mrb[0].mxu0
        %v4775 = vadd.f32 %v4563, %v4774
        %v4776 = vpop.f32.mrb[0].mxu0
        %4777 = vmatprep.mubr.bf16.mxu0 0
        %4778 = vmatmul.mubr.bf16.gmra.mrb[0].mxu0 %v4635
        %v4779 = vpop.f32.mrb[0].mxu0
        %v4780 = vadd.f32 %v4568, %v4779
        %v4781 = vpop.f32.mrb[0].mxu0
        %v4782 = vpop.f32.mrb[0].mxu0
        %v4783 = vadd.f32 %v4571, %v4782
        %v4784 = vpop.f32.mrb[0].mxu0
        %4785 = vmatprep.mubr.bf16.mxu0 0
        %4786 = vmatmul.mubr.bf16.gmra.mrb[0].mxu0 %v4638
        %v4787 = vpop.f32.mrb[0].mxu0
        %v4788 = vadd.f32 %v4576, %v4787
        %v4789 = vpop.f32.mrb[0].mxu0
        %v4790 = vpop.f32.mrb[0].mxu0
        %v4791 = vadd.f32 %v4579, %v4790
        %v4792 = vpop.f32.mrb[0].mxu0
        %4793 = vmatprep.mubr.bf16.mxu0 0
        %4794 = vmatmul.mubr.bf16.gmra.mrb[0].mxu0 %v4641
        %v4795 = vpop.f32.mrb[0].mxu0
        %v4796 = vadd.f32 %v4584, %v4795
        %v4797 = vpop.f32.mrb[0].mxu0
        %v4798 = vpop.f32.mrb[0].mxu0
        %v4799 = vadd.f32 %v4587, %v4798
        %v4800 = vpop.f32.mrb[0].mxu0
        %4801 = vmatprep.mubr.bf16.mxu0 0
        %4802 = vmatmul.mubr.bf16.gmra.mrb[0].mxu0 %v4644
        %v4803 = vpop.f32.mrb[0].mxu0
        %v4804 = vadd.f32 %v4592, %v4803
        %v4805 = vpop.f32.mrb[0].mxu0
        %v4806 = vpop.f32.mrb[0].mxu0
        %v4807 = vadd.f32 %v4595, %v4806
        %v4808 = vpop.f32.mrb[0].mxu0
        %4809 = vdwg.mxu0
        %v4810 = vadd.f32 %v4338, %v4684
        %v4811 = vadd.f32 %v4339, %v4687
        %v4812 = vadd.f32 %v4340, %v4692
        %v4813 = vadd.f32 %v4341, %v4695
        %v4814 = vadd.f32 %v4342, %v4700
        %v4815 = vadd.f32 %v4343, %v4703
        %v4816 = vadd.f32 %v4344, %v4708
        %v4817 = vadd.f32 %v4345, %v4711
        %v4818 = vadd.f32 %v4346, %v4716
        %v4819 = vadd.f32 %v4347, %v4719
        %v4820 = vadd.f32 %v4348, %v4724
        %v4821 = vadd.f32 %v4349, %v4727
        %v4822 = vadd.f32 %v4350, %v4732
        %v4823 = vadd.f32 %v4351, %v4735
        %v4824 = vadd.f32 %v4352, %v4740
        %v4825 = vadd.f32 %v4353, %v4743
        %v4826 = vadd.f32 %v4354, %v4748
        %v4827 = vadd.f32 %v4355, %v4751
        %v4828 = vadd.f32 %v4356, %v4756
        %v4829 = vadd.f32 %v4357, %v4759
        %v4830 = vadd.f32 %v4358, %v4764
        %v4831 = vadd.f32 %v4359, %v4767
        %v4832 = vadd.f32 %v4360, %v4772
        %v4833 = vadd.f32 %v4361, %v4775
        %v4834 = vadd.f32 %v4362, %v4780
        %v4835 = vadd.f32 %v4363, %v4783
        %v4836 = vadd.f32 %v4364, %v4788
        %v4837 = vadd.f32 %v4365, %v4791
        %v4838 = vadd.f32 %v4366, %v4796
        %v4839 = vadd.f32 %v4367, %v4799
        %v4840 = vadd.f32 %v4368, %v4804
        %v4841 = vadd.f32 %v4369, %v4807
        %4842 = vst [vmem:[#allocation4] sm:$0xff] %v4810
        %4843 = vst [vmem:[#allocation4 + $0x8] sm:$0xff] %v4811
        %4844 = vst [vmem:[#allocation4 + $0x10] sm:$0xff] %v4812
        %4845 = vst [vmem:[#allocation4 + $0x18] sm:$0xff] %v4813
        %4846 = vst [vmem:[#allocation4 + $0x20] sm:$0xff] %v4814
        %4847 = vst [vmem:[#allocation4 + $0x28] sm:$0xff] %v4815
        %4848 = vst [vmem:[#allocation4 + $0x30] sm:$0xff] %v4816
        %4849 = vst [vmem:[#allocation4 + $0x38] sm:$0xff] %v4817
        %4850 = vst [vmem:[#allocation4 + $0x40] sm:$0xff] %v4818
        %4851 = vst [vmem:[#allocation4 + $0x48] sm:$0xff] %v4819
        %4852 = vst [vmem:[#allocation4 + $0x50] sm:$0xff] %v4820
        %4853 = vst [vmem:[#allocation4 + $0x58] sm:$0xff] %v4821
        %4854 = vst [vmem:[#allocation4 + $0x60] sm:$0xff] %v4822
        %4855 = vst [vmem:[#allocation4 + $0x68] sm:$0xff] %v4823
        %4856 = vst [vmem:[#allocation4 + $0x70] sm:$0xff] %v4824
        %4857 = vst [vmem:[#allocation4 + $0x78] sm:$0xff] %v4825
        %4858 = vst [vmem:[#allocation4 + $0x80] sm:$0xff] %v4826
        %4859 = vst [vmem:[#allocation4 + $0x88] sm:$0xff] %v4827
        %4860 = vst [vmem:[#allocation4 + $0x90] sm:$0xff] %v4828
        %4861 = vst [vmem:[#allocation4 + $0x98] sm:$0xff] %v4829
        %4862 = vst [vmem:[#allocation4 + $0xa0] sm:$0xff] %v4830
        %4863 = vst [vmem:[#allocation4 + $0xa8] sm:$0xff] %v4831
        %4864 = vst [vmem:[#allocation4 + $0xb0] sm:$0xff] %v4832
        %4865 = vst [vmem:[#allocation4 + $0xb8] sm:$0xff] %v4833
        %4866 = vst [vmem:[#allocation4 + $0xc0] sm:$0xff] %v4834
        %4867 = vst [vmem:[#allocation4 + $0xc8] sm:$0xff] %v4835
        %4868 = vst [vmem:[#allocation4 + $0xd0] sm:$0xff] %v4836
        %4869 = vst [vmem:[#allocation4 + $0xd8] sm:$0xff] %v4837
        %4870 = vst [vmem:[#allocation4 + $0xe0] sm:$0xff] %v4838
        %4871 = vst [vmem:[#allocation4 + $0xe8] sm:$0xff] %v4839
        %4872 = vst [vmem:[#allocation4 + $0xf0] sm:$0xff] %v4840
        %4873 = vst [vmem:[#allocation4 + $0xf8] sm:$0xff] %v4841
        %s4874 = scalar_lea.vmem [#allocation2], 48
        %v4875 = vld [vmem:[%s4874] sm:$0xff]
        %v4876 = vld [vmem:[%s4874 + $0x8] sm:$0xff]
        %v4877 = vld [vmem:[%s4874 + $0x18] sm:$0xff]
        %v4878 = vld [vmem:[%s4874 + $0x20] sm:$0xff]
        %v4879 = vld [vmem:[%s4874 + $0x30] sm:$0xff]
        %v4880 = vld [vmem:[%s4874 + $0x38] sm:$0xff]
        %v4881 = vld [vmem:[%s4874 + $0x48] sm:$0xff]
        %v4882 = vld [vmem:[%s4874 + $0x50] sm:$0xff]
        %v4883 = vld [vmem:[%s4874 + $0x60] sm:$0xff]
        %v4884 = vld [vmem:[%s4874 + $0x68] sm:$0xff]
        %v4885 = vld [vmem:[%s4874 + $0x78] sm:$0xff]
        %v4886 = vld [vmem:[%s4874 + $0x80] sm:$0xff]
        %v4887 = vld [vmem:[%s4874 + $0x90] sm:$0xff]
        %v4888 = vld [vmem:[%s4874 + $0x98] sm:$0xff]
        %v4889 = vld [vmem:[%s4874 + $0xa8] sm:$0xff]
        %v4890 = vld [vmem:[%s4874 + $0xb0] sm:$0xff]
        %v4891 = vld [vmem:[%s4874 + $0xc0] sm:$0xff]
        %v4892 = vld [vmem:[%s4874 + $0xc8] sm:$0xff]
        %v4893 = vld [vmem:[%s4874 + $0xd8] sm:$0xff]
        %v4894 = vld [vmem:[%s4874 + $0xe0] sm:$0xff]
        %v4895 = vld [vmem:[%s4874 + $0xf0] sm:$0xff]
        %v4896 = vld [vmem:[%s4874 + $0xf8] sm:$0xff]
        %v4897 = vld [vmem:[%s4874 + $0x108] sm:$0xff]
        %v4898 = vld [vmem:[%s4874 + $0x110] sm:$0xff]
        %v4899 = vld [vmem:[%s4874 + $0x120] sm:$0xff]
        %v4900 = vld [vmem:[%s4874 + $0x128] sm:$0xff]
        %v4901 = vld [vmem:[%s4874 + $0x138] sm:$0xff]
        %v4902 = vld [vmem:[%s4874 + $0x140] sm:$0xff]
        %v4903 = vld [vmem:[%s4874 + $0x150] sm:$0xff]
        %v4904 = vld [vmem:[%s4874 + $0x158] sm:$0xff]
        %v4905 = vld [vmem:[%s4874 + $0x168] sm:$0xff]
        %v4906 = vld [vmem:[%s4874 + $0x170] sm:$0xff]
        %v4907 = vpack.c.bf16 %v4876, %v4875
        %v4908 = vpack.c.bf16 %v4878, %v4877
        %v4909 = vpack.c.bf16 %v4880, %v4879
        %v4910 = vpack.c.bf16 %v4882, %v4881
        %v4911 = vpack.c.bf16 %v4884, %v4883
        %v4912 = vpack.c.bf16 %v4886, %v4885
        %v4913 = vpack.c.bf16 %v4888, %v4887
        %v4914 = vpack.c.bf16 %v4890, %v4889
        %v4915 = vpack.c.bf16 %v4892, %v4891
        %v4916 = vpack.c.bf16 %v4894, %v4893
        %v4917 = vpack.c.bf16 %v4896, %v4895
        %v4918 = vpack.c.bf16 %v4898, %v4897
        %v4919 = vpack.c.bf16 %v4900, %v4899
        %v4920 = vpack.c.bf16 %v4902, %v4901
        %v4921 = vpack.c.bf16 %v4904, %v4903
        %v4922 = vpack.c.bf16 %v4906, %v4905
        %s4923 = scalar_lea.vmem [#allocation3], 48
        %v4924 = vld [vmem:[%s4923] sm:$0xff]
        %v4925 = vld [vmem:[%s4923 + $0x8] sm:$0xff]
        %v4926 = vld [vmem:[%s4923 + $0x18] sm:$0xff]
        %v4927 = vld [vmem:[%s4923 + $0x20] sm:$0xff]
        %v4928 = vld [vmem:[%s4923 + $0x30] sm:$0xff]
        %v4929 = vld [vmem:[%s4923 + $0x38] sm:$0xff]
        %v4930 = vld [vmem:[%s4923 + $0x48] sm:$0xff]
        %v4931 = vld [vmem:[%s4923 + $0x50] sm:$0xff]
        %v4932 = vld [vmem:[%s4923 + $0x60] sm:$0xff]
        %v4933 = vld [vmem:[%s4923 + $0x68] sm:$0xff]
        %v4934 = vld [vmem:[%s4923 + $0x78] sm:$0xff]
        %v4935 = vld [vmem:[%s4923 + $0x80] sm:$0xff]
        %v4936 = vld [vmem:[%s4923 + $0x90] sm:$0xff]
        %v4937 = vld [vmem:[%s4923 + $0x98] sm:$0xff]
        %v4938 = vld [vmem:[%s4923 + $0xa8] sm:$0xff]
        %v4939 = vld [vmem:[%s4923 + $0xb0] sm:$0xff]
        %v4940 = vld [vmem:[%s4923 + $0xc0] sm:$0xff]
        %v4941 = vld [vmem:[%s4923 + $0xc8] sm:$0xff]
        %v4942 = vld [vmem:[%s4923 + $0xd8] sm:$0xff]
        %v4943 = vld [vmem:[%s4923 + $0xe0] sm:$0xff]
        %v4944 = vld [vmem:[%s4923 + $0xf0] sm:$0xff]
        %v4945 = vld [vmem:[%s4923 + $0xf8] sm:$0xff]
        %v4946 = vld [vmem:[%s4923 + $0x108] sm:$0xff]
        %v4947 = vld [vmem:[%s4923 + $0x110] sm:$0xff]
        %v4948 = vld [vmem:[%s4923 + $0x120] sm:$0xff]
        %v4949 = vld [vmem:[%s4923 + $0x128] sm:$0xff]
        %v4950 = vld [vmem:[%s4923 + $0x138] sm:$0xff]
        %v4951 = vld [vmem:[%s4923 + $0x140] sm:$0xff]
        %v4952 = vld [vmem:[%s4923 + $0x150] sm:$0xff]
        %v4953 = vld [vmem:[%s4923 + $0x158] sm:$0xff]
        %v4954 = vld [vmem:[%s4923 + $0x168] sm:$0xff]
        %v4955 = vld [vmem:[%s4923 + $0x170] sm:$0xff]
        %v4956 = vpack.c.bf16 %v4925, %v4924
        %v4957 = vpack.c.bf16 %v4927, %v4926
        %v4958 = vpack.c.bf16 %v4929, %v4928
        %v4959 = vpack.c.bf16 %v4931, %v4930
        %v4960 = vpack.c.bf16 %v4933, %v4932
        %v4961 = vpack.c.bf16 %v4935, %v4934
        %v4962 = vpack.c.bf16 %v4937, %v4936
        %v4963 = vpack.c.bf16 %v4939, %v4938
        %v4964 = vpack.c.bf16 %v4941, %v4940
        %v4965 = vpack.c.bf16 %v4943, %v4942
        %v4966 = vpack.c.bf16 %v4945, %v4944
        %v4967 = vpack.c.bf16 %v4947, %v4946
        %v4968 = vpack.c.bf16 %v4949, %v4948
        %v4969 = vpack.c.bf16 %v4951, %v4950
        %v4970 = vpack.c.bf16 %v4953, %v4952
        %v4971 = vpack.c.bf16 %v4955, %v4954
        %v4972 = vld [vmem:[#allocation4] sm:$0xff]
        %v4973 = vld [vmem:[#allocation4 + $0x8] sm:$0xff]
        %v4974 = vld [vmem:[#allocation4 + $0x10] sm:$0xff]
        %v4975 = vld [vmem:[#allocation4 + $0x18] sm:$0xff]
        %v4976 = vld [vmem:[#allocation4 + $0x20] sm:$0xff]
        %v4977 = vld [vmem:[#allocation4 + $0x28] sm:$0xff]
        %v4978 = vld [vmem:[#allocation4 + $0x30] sm:$0xff]
        %v4979 = vld [vmem:[#allocation4 + $0x38] sm:$0xff]
        %v4980 = vld [vmem:[#allocation4 + $0x40] sm:$0xff]
        %v4981 = vld [vmem:[#allocation4 + $0x48] sm:$0xff]
        %v4982 = vld [vmem:[#allocation4 + $0x50] sm:$0xff]
        %v4983 = vld [vmem:[#allocation4 + $0x58] sm:$0xff]
        %v4984 = vld [vmem:[#allocation4 + $0x60] sm:$0xff]
        %v4985 = vld [vmem:[#allocation4 + $0x68] sm:$0xff]
        %v4986 = vld [vmem:[#allocation4 + $0x70] sm:$0xff]
        %v4987 = vld [vmem:[#allocation4 + $0x78] sm:$0xff]
        %v4988 = vld [vmem:[#allocation4 + $0x80] sm:$0xff]
        %v4989 = vld [vmem:[#allocation4 + $0x88] sm:$0xff]
        %v4990 = vld [vmem:[#allocation4 + $0x90] sm:$0xff]
        %v4991 = vld [vmem:[#allocation4 + $0x98] sm:$0xff]
        %v4992 = vld [vmem:[#allocation4 + $0xa0] sm:$0xff]
        %v4993 = vld [vmem:[#allocation4 + $0xa8] sm:$0xff]
        %v4994 = vld [vmem:[#allocation4 + $0xb0] sm:$0xff]
        %v4995 = vld [vmem:[#allocation4 + $0xb8] sm:$0xff]
        %v4996 = vld [vmem:[#allocation4 + $0xc0] sm:$0xff]
        %v4997 = vld [vmem:[#allocation4 + $0xc8] sm:$0xff]
        %v4998 = vld [vmem:[#allocation4 + $0xd0] sm:$0xff]
        %v4999 = vld [vmem:[#allocation4 + $0xd8] sm:$0xff]
        %v5000 = vld [vmem:[#allocation4 + $0xe0] sm:$0xff]
        %v5001 = vld [vmem:[#allocation4 + $0xe8] sm:$0xff]
        %v5002 = vld [vmem:[#allocation4 + $0xf0] sm:$0xff]
        %v5003 = vld [vmem:[#allocation4 + $0xf8] sm:$0xff]
        %s5004 = scalar_lea.vmem [#allocation8], 12
        %v5005 = vld [vmem:[%s5004] sm:$0x3]
        %s5006 = scalar_lea.vmem %s4, 96
        %v5007 = vld [vmem:[%s5006] sm:$0xf]
        %v5008 = vld [vmem:[%s5006 + $0x4] sm:$0xf]
        %v5009 = vld [vmem:[%s5006 + $0x8] sm:$0xf]
        %v5010 = vld [vmem:[%s5006 + $0xc] sm:$0xf]
        %v5015 = vunpack.c.l.b16 %v5007
        %v5016 = vunpack.c.l.b16 %v5008
        %v5017 = vunpack.c.l.b16 %v5009
        %v5018 = vunpack.c.l.b16 %v5010
        %v5019 = vpack.c.b16 %v5016, %v5015
        %v5020 = vpack.c.b16 %v5018, %v5017
        %v5024 = vsel %vm823, %v4956, 0
        %v5027 = vsel %vm823, %v4957, 0
        %v5030 = vsel %vm823, %v4958, 0
        %v5033 = vsel %vm823, %v4959, 0
        %v5036 = vsel %vm823, %v4960, 0
        %v5039 = vsel %vm823, %v4961, 0
        %v5042 = vsel %vm823, %v4962, 0
        %v5045 = vsel %vm823, %v4963, 0
        %v5048 = vsel %vm823, %v4964, 0
        %v5051 = vsel %vm823, %v4965, 0
        %v5054 = vsel %vm823, %v4966, 0
        %v5057 = vsel %vm823, %v4967, 0
        %v5060 = vsel %vm823, %v4968, 0
        %v5063 = vsel %vm823, %v4969, 0
        %v5066 = vsel %vm823, %v4970, 0
        %v5069 = vsel %vm823, %v4971, 0
        %5071 = vmatprep.subr.bf16.mxu0 0
        %5072 = vmatpush1.bf16.msra.mxu0 %v5019
        %5073 = vmatprep.subr.bf16.mxu0 0
        %5074 = vmatpush1.bf16.msra.mxu0 %v5020
        %5075 = vmatprep.subr.bf16.mxu0 0
        %5076 = vmatpush1.bf16.msra.mxu0 0
        %5077 = vmatprep.subr.bf16.mxu0 0
        %5078 = vmatpush1.bf16.msra.mxu0 0
        %5079 = vmatprep.subr.bf16.mxu0 0
        %5080 = vmatpush1.bf16.msra.mxu0 0
        %5081 = vmatprep.subr.bf16.mxu0 0
        %5082 = vmatpush1.bf16.msra.mxu0 0
        %5083 = vmatprep.subr.bf16.mxu0 0
        %5084 = vmatpush1.bf16.msra.mxu0 0
        %5085 = vmatprep.subr.bf16.mxu0 0
        %5086 = vmatpush1.bf16.msra.mxu0 0
        %5087 = vmatprep.subr.bf16.mxu0 0
        %5088 = vmatpush1.bf16.msra.mxu0 0
        %5089 = vmatprep.subr.bf16.mxu0 0
        %5090 = vmatpush1.bf16.msra.mxu0 0
        %5091 = vmatprep.subr.bf16.mxu0 0
        %5092 = vmatpush1.bf16.msra.mxu0 0
        %5093 = vmatprep.subr.bf16.mxu0 0
        %5094 = vmatpush1.bf16.msra.mxu0 0
        %5095 = vmatprep.subr.bf16.mxu0 0
        %5096 = vmatpush1.bf16.msra.mxu0 0
        %5097 = vmatprep.subr.bf16.mxu0 0
        %5098 = vmatpush1.bf16.msra.mxu0 0
        %5099 = vmatprep.subr.bf16.mxu0 0
        %5100 = vmatpush1.bf16.msra.mxu0 0
        %5101 = vmatprep.subr.bf16.mxu0 0
        %5102 = vmatpush1.bf16.msra.mxu0 0
        %5103 = vmatprep.mubr.bf16.mxu0 0
        %5104 = vmatmul.mubr.bf16.gmra.mrb[0].mxu0 %v5024
        %v5105 = vpop.f32.mrb[0].mxu0
        %v5106 = vadd.f32 0.0, %v5105
        %v5107 = vpop.f32.mrb[0].mxu0
        %v5108 = vpop.f32.mrb[0].mxu0
        %v5109 = vadd.f32 0.0, %v5108
        %v5110 = vpop.f32.mrb[0].mxu0
        %5111 = vmatprep.mubr.bf16.mxu0 0
        %5112 = vmatmul.mubr.bf16.gmra.mrb[0].mxu0 %v5027
        %v5113 = vpop.f32.mrb[0].mxu0
        %v5114 = vadd.f32 0.0, %v5113
        %v5115 = vpop.f32.mrb[0].mxu0
        %v5116 = vpop.f32.mrb[0].mxu0
        %v5117 = vadd.f32 0.0, %v5116
        %v5118 = vpop.f32.mrb[0].mxu0
        %5119 = vmatprep.mubr.bf16.mxu0 0
        %5120 = vmatmul.mubr.bf16.gmra.mrb[0].mxu0 %v5030
        %v5121 = vpop.f32.mrb[0].mxu0
        %v5122 = vadd.f32 0.0, %v5121
        %v5123 = vpop.f32.mrb[0].mxu0
        %v5124 = vpop.f32.mrb[0].mxu0
        %v5125 = vadd.f32 0.0, %v5124
        %v5126 = vpop.f32.mrb[0].mxu0
        %5127 = vmatprep.mubr.bf16.mxu0 0
        %5128 = vmatmul.mubr.bf16.gmra.mrb[0].mxu0 %v5033
        %v5129 = vpop.f32.mrb[0].mxu0
        %v5130 = vadd.f32 0.0, %v5129
        %v5131 = vpop.f32.mrb[0].mxu0
        %v5132 = vpop.f32.mrb[0].mxu0
        %v5133 = vadd.f32 0.0, %v5132
        %v5134 = vpop.f32.mrb[0].mxu0
        %5135 = vmatprep.mubr.bf16.mxu0 0
        %5136 = vmatmul.mubr.bf16.gmra.mrb[0].mxu0 %v5036
        %v5137 = vpop.f32.mrb[0].mxu0
        %v5138 = vadd.f32 0.0, %v5137
        %v5139 = vpop.f32.mrb[0].mxu0
        %v5140 = vpop.f32.mrb[0].mxu0
        %v5141 = vadd.f32 0.0, %v5140
        %v5142 = vpop.f32.mrb[0].mxu0
        %5143 = vmatprep.mubr.bf16.mxu0 0
        %5144 = vmatmul.mubr.bf16.gmra.mrb[0].mxu0 %v5039
        %v5145 = vpop.f32.mrb[0].mxu0
        %v5146 = vadd.f32 0.0, %v5145
        %v5147 = vpop.f32.mrb[0].mxu0
        %v5148 = vpop.f32.mrb[0].mxu0
        %v5149 = vadd.f32 0.0, %v5148
        %v5150 = vpop.f32.mrb[0].mxu0
        %5151 = vmatprep.mubr.bf16.mxu0 0
        %5152 = vmatmul.mubr.bf16.gmra.mrb[0].mxu0 %v5042
        %v5153 = vpop.f32.mrb[0].mxu0
        %v5154 = vadd.f32 0.0, %v5153
        %v5155 = vpop.f32.mrb[0].mxu0
        %v5156 = vpop.f32.mrb[0].mxu0
        %v5157 = vadd.f32 0.0, %v5156
        %v5158 = vpop.f32.mrb[0].mxu0
        %5159 = vmatprep.mubr.bf16.mxu0 0
        %5160 = vmatmul.mubr.bf16.gmra.mrb[0].mxu0 %v5045
        %v5161 = vpop.f32.mrb[0].mxu0
        %v5162 = vadd.f32 0.0, %v5161
        %v5163 = vpop.f32.mrb[0].mxu0
        %v5164 = vpop.f32.mrb[0].mxu0
        %v5165 = vadd.f32 0.0, %v5164
        %v5166 = vpop.f32.mrb[0].mxu0
        %5167 = vmatprep.mubr.bf16.mxu0 0
        %5168 = vmatmul.mubr.bf16.gmra.mrb[0].mxu0 %v5048
        %v5169 = vpop.f32.mrb[0].mxu0
        %v5170 = vadd.f32 0.0, %v5169
        %v5171 = vpop.f32.mrb[0].mxu0
        %v5172 = vpop.f32.mrb[0].mxu0
        %v5173 = vadd.f32 0.0, %v5172
        %v5174 = vpop.f32.mrb[0].mxu0
        %5175 = vmatprep.mubr.bf16.mxu0 0
        %5176 = vmatmul.mubr.bf16.gmra.mrb[0].mxu0 %v5051
        %v5177 = vpop.f32.mrb[0].mxu0
        %v5178 = vadd.f32 0.0, %v5177
        %v5179 = vpop.f32.mrb[0].mxu0
        %v5180 = vpop.f32.mrb[0].mxu0
        %v5181 = vadd.f32 0.0, %v5180
        %v5182 = vpop.f32.mrb[0].mxu0
        %5183 = vmatprep.mubr.bf16.mxu0 0
        %5184 = vmatmul.mubr.bf16.gmra.mrb[0].mxu0 %v5054
        %v5185 = vpop.f32.mrb[0].mxu0
        %v5186 = vadd.f32 0.0, %v5185
        %v5187 = vpop.f32.mrb[0].mxu0
        %v5188 = vpop.f32.mrb[0].mxu0
        %v5189 = vadd.f32 0.0, %v5188
        %v5190 = vpop.f32.mrb[0].mxu0
        %5191 = vmatprep.mubr.bf16.mxu0 0
        %5192 = vmatmul.mubr.bf16.gmra.mrb[0].mxu0 %v5057
        %v5193 = vpop.f32.mrb[0].mxu0
        %v5194 = vadd.f32 0.0, %v5193
        %v5195 = vpop.f32.mrb[0].mxu0
        %v5196 = vpop.f32.mrb[0].mxu0
        %v5197 = vadd.f32 0.0, %v5196
        %v5198 = vpop.f32.mrb[0].mxu0
        %5199 = vmatprep.mubr.bf16.mxu0 0
        %5200 = vmatmul.mubr.bf16.gmra.mrb[0].mxu0 %v5060
        %v5201 = vpop.f32.mrb[0].mxu0
        %v5202 = vadd.f32 0.0, %v5201
        %v5203 = vpop.f32.mrb[0].mxu0
        %v5204 = vpop.f32.mrb[0].mxu0
        %v5205 = vadd.f32 0.0, %v5204
        %v5206 = vpop.f32.mrb[0].mxu0
        %5207 = vmatprep.mubr.bf16.mxu0 0
        %5208 = vmatmul.mubr.bf16.gmra.mrb[0].mxu0 %v5063
        %v5209 = vpop.f32.mrb[0].mxu0
        %v5210 = vadd.f32 0.0, %v5209
        %v5211 = vpop.f32.mrb[0].mxu0
        %v5212 = vpop.f32.mrb[0].mxu0
        %v5213 = vadd.f32 0.0, %v5212
        %v5214 = vpop.f32.mrb[0].mxu0
        %5215 = vmatprep.mubr.bf16.mxu0 0
        %5216 = vmatmul.mubr.bf16.gmra.mrb[0].mxu0 %v5066
        %v5217 = vpop.f32.mrb[0].mxu0
        %v5218 = vadd.f32 0.0, %v5217
        %v5219 = vpop.f32.mrb[0].mxu0
        %v5220 = vpop.f32.mrb[0].mxu0
        %v5221 = vadd.f32 0.0, %v5220
        %v5222 = vpop.f32.mrb[0].mxu0
        %5223 = vmatprep.mubr.bf16.mxu0 0
        %5224 = vmatmul.mubr.bf16.gmra.mrb[0].mxu0 %v5069
        %v5225 = vpop.f32.mrb[0].mxu0
        %v5226 = vadd.f32 0.0, %v5225
        %v5227 = vpop.f32.mrb[0].mxu0
        %v5228 = vpop.f32.mrb[0].mxu0
        %v5229 = vadd.f32 0.0, %v5228
        %v5230 = vpop.f32.mrb[0].mxu0
        %5231 = vdwg.mxu0
        %v5233 = vsel %vm614, %v4907, 0
        %v5236 = vsel %vm614, %v4908, 0
        %v5239 = vsel %vm614, %v4909, 0
        %v5242 = vsel %vm614, %v4910, 0
        %v5245 = vsel %vm614, %v4911, 0
        %v5248 = vsel %vm614, %v4912, 0
        %v5251 = vsel %vm614, %v4913, 0
        %v5254 = vsel %vm614, %v4914, 0
        %v5257 = vsel %vm614, %v4915, 0
        %v5260 = vsel %vm614, %v4916, 0
        %v5263 = vsel %vm614, %v4917, 0
        %v5266 = vsel %vm614, %v4918, 0
        %v5269 = vsel %vm614, %v4919, 0
        %v5272 = vsel %vm614, %v4920, 0
        %v5275 = vsel %vm614, %v4921, 0
        %v5278 = vsel %vm614, %v4922, 0
        %v5281 = vsel %vm1485, %v5005, 0
        %5283 = vmatprep.subr.bf16.mxu0 0
        %5284 = vmatpush1.bf16.msra.mxu0 %v5281
        %5285 = vmatprep.subr.bf16.mxu0 0
        %5286 = vmatpush1.bf16.msra.mxu0 0
        %5287 = vmatprep.subr.bf16.mxu0 0
        %5288 = vmatpush1.bf16.msra.mxu0 0
        %5289 = vmatprep.subr.bf16.mxu0 0
        %5290 = vmatpush1.bf16.msra.mxu0 0
        %5291 = vmatprep.subr.bf16.mxu0 0
        %5292 = vmatpush1.bf16.msra.mxu0 0
        %5293 = vmatprep.subr.bf16.mxu0 0
        %5294 = vmatpush1.bf16.msra.mxu0 0
        %5295 = vmatprep.subr.bf16.mxu0 0
        %5296 = vmatpush1.bf16.msra.mxu0 0
        %5297 = vmatprep.subr.bf16.mxu0 0
        %5298 = vmatpush1.bf16.msra.mxu0 0
        %5299 = vmatprep.subr.bf16.mxu0 0
        %5300 = vmatpush1.bf16.msra.mxu0 0
        %5301 = vmatprep.subr.bf16.mxu0 0
        %5302 = vmatpush1.bf16.msra.mxu0 0
        %5303 = vmatprep.subr.bf16.mxu0 0
        %5304 = vmatpush1.bf16.msra.mxu0 0
        %5305 = vmatprep.subr.bf16.mxu0 0
        %5306 = vmatpush1.bf16.msra.mxu0 0
        %5307 = vmatprep.subr.bf16.mxu0 0
        %5308 = vmatpush1.bf16.msra.mxu0 0
        %5309 = vmatprep.subr.bf16.mxu0 0
        %5310 = vmatpush1.bf16.msra.mxu0 0
        %5311 = vmatprep.subr.bf16.mxu0 0
        %5312 = vmatpush1.bf16.msra.mxu0 0
        %5313 = vmatprep.subr.bf16.mxu0 0
        %5314 = vmatpush1.bf16.msra.mxu0 0
        %5315 = vmatprep.mubr.bf16.mxu0 0
        %5316 = vmatmul.mubr.bf16.gmra.mrb[0].mxu0 %v5233
        %v5317 = vpop.f32.mrb[0].mxu0
        %v5318 = vadd.f32 %v5106, %v5317
        %v5319 = vpop.f32.mrb[0].mxu0
        %v5320 = vpop.f32.mrb[0].mxu0
        %v5321 = vadd.f32 %v5109, %v5320
        %v5322 = vpop.f32.mrb[0].mxu0
        %5323 = vmatprep.mubr.bf16.mxu0 0
        %5324 = vmatmul.mubr.bf16.gmra.mrb[0].mxu0 %v5236
        %v5325 = vpop.f32.mrb[0].mxu0
        %v5326 = vadd.f32 %v5114, %v5325
        %v5327 = vpop.f32.mrb[0].mxu0
        %v5328 = vpop.f32.mrb[0].mxu0
        %v5329 = vadd.f32 %v5117, %v5328
        %v5330 = vpop.f32.mrb[0].mxu0
        %5331 = vmatprep.mubr.bf16.mxu0 0
        %5332 = vmatmul.mubr.bf16.gmra.mrb[0].mxu0 %v5239
        %v5333 = vpop.f32.mrb[0].mxu0
        %v5334 = vadd.f32 %v5122, %v5333
        %v5335 = vpop.f32.mrb[0].mxu0
        %v5336 = vpop.f32.mrb[0].mxu0
        %v5337 = vadd.f32 %v5125, %v5336
        %v5338 = vpop.f32.mrb[0].mxu0
        %5339 = vmatprep.mubr.bf16.mxu0 0
        %5340 = vmatmul.mubr.bf16.gmra.mrb[0].mxu0 %v5242
        %v5341 = vpop.f32.mrb[0].mxu0
        %v5342 = vadd.f32 %v5130, %v5341
        %v5343 = vpop.f32.mrb[0].mxu0
        %v5344 = vpop.f32.mrb[0].mxu0
        %v5345 = vadd.f32 %v5133, %v5344
        %v5346 = vpop.f32.mrb[0].mxu0
        %5347 = vmatprep.mubr.bf16.mxu0 0
        %5348 = vmatmul.mubr.bf16.gmra.mrb[0].mxu0 %v5245
        %v5349 = vpop.f32.mrb[0].mxu0
        %v5350 = vadd.f32 %v5138, %v5349
        %v5351 = vpop.f32.mrb[0].mxu0
        %v5352 = vpop.f32.mrb[0].mxu0
        %v5353 = vadd.f32 %v5141, %v5352
        %v5354 = vpop.f32.mrb[0].mxu0
        %5355 = vmatprep.mubr.bf16.mxu0 0
        %5356 = vmatmul.mubr.bf16.gmra.mrb[0].mxu0 %v5248
        %v5357 = vpop.f32.mrb[0].mxu0
        %v5358 = vadd.f32 %v5146, %v5357
        %v5359 = vpop.f32.mrb[0].mxu0
        %v5360 = vpop.f32.mrb[0].mxu0
        %v5361 = vadd.f32 %v5149, %v5360
        %v5362 = vpop.f32.mrb[0].mxu0
        %5363 = vmatprep.mubr.bf16.mxu0 0
        %5364 = vmatmul.mubr.bf16.gmra.mrb[0].mxu0 %v5251
        %v5365 = vpop.f32.mrb[0].mxu0
        %v5366 = vadd.f32 %v5154, %v5365
        %v5367 = vpop.f32.mrb[0].mxu0
        %v5368 = vpop.f32.mrb[0].mxu0
        %v5369 = vadd.f32 %v5157, %v5368
        %v5370 = vpop.f32.mrb[0].mxu0
        %5371 = vmatprep.mubr.bf16.mxu0 0
        %5372 = vmatmul.mubr.bf16.gmra.mrb[0].mxu0 %v5254
        %v5373 = vpop.f32.mrb[0].mxu0
        %v5374 = vadd.f32 %v5162, %v5373
        %v5375 = vpop.f32.mrb[0].mxu0
        %v5376 = vpop.f32.mrb[0].mxu0
        %v5377 = vadd.f32 %v5165, %v5376
        %v5378 = vpop.f32.mrb[0].mxu0
        %5379 = vmatprep.mubr.bf16.mxu0 0
        %5380 = vmatmul.mubr.bf16.gmra.mrb[0].mxu0 %v5257
        %v5381 = vpop.f32.mrb[0].mxu0
        %v5382 = vadd.f32 %v5170, %v5381
        %v5383 = vpop.f32.mrb[0].mxu0
        %v5384 = vpop.f32.mrb[0].mxu0
        %v5385 = vadd.f32 %v5173, %v5384
        %v5386 = vpop.f32.mrb[0].mxu0
        %5387 = vmatprep.mubr.bf16.mxu0 0
        %5388 = vmatmul.mubr.bf16.gmra.mrb[0].mxu0 %v5260
        %v5389 = vpop.f32.mrb[0].mxu0
        %v5390 = vadd.f32 %v5178, %v5389
        %v5391 = vpop.f32.mrb[0].mxu0
        %v5392 = vpop.f32.mrb[0].mxu0
        %v5393 = vadd.f32 %v5181, %v5392
        %v5394 = vpop.f32.mrb[0].mxu0
        %5395 = vmatprep.mubr.bf16.mxu0 0
        %5396 = vmatmul.mubr.bf16.gmra.mrb[0].mxu0 %v5263
        %v5397 = vpop.f32.mrb[0].mxu0
        %v5398 = vadd.f32 %v5186, %v5397
        %v5399 = vpop.f32.mrb[0].mxu0
        %v5400 = vpop.f32.mrb[0].mxu0
        %v5401 = vadd.f32 %v5189, %v5400
        %v5402 = vpop.f32.mrb[0].mxu0
        %5403 = vmatprep.mubr.bf16.mxu0 0
        %5404 = vmatmul.mubr.bf16.gmra.mrb[0].mxu0 %v5266
        %v5405 = vpop.f32.mrb[0].mxu0
        %v5406 = vadd.f32 %v5194, %v5405
        %v5407 = vpop.f32.mrb[0].mxu0
        %v5408 = vpop.f32.mrb[0].mxu0
        %v5409 = vadd.f32 %v5197, %v5408
        %v5410 = vpop.f32.mrb[0].mxu0
        %5411 = vmatprep.mubr.bf16.mxu0 0
        %5412 = vmatmul.mubr.bf16.gmra.mrb[0].mxu0 %v5269
        %v5413 = vpop.f32.mrb[0].mxu0
        %v5414 = vadd.f32 %v5202, %v5413
        %v5415 = vpop.f32.mrb[0].mxu0
        %v5416 = vpop.f32.mrb[0].mxu0
        %v5417 = vadd.f32 %v5205, %v5416
        %v5418 = vpop.f32.mrb[0].mxu0
        %5419 = vmatprep.mubr.bf16.mxu0 0
        %5420 = vmatmul.mubr.bf16.gmra.mrb[0].mxu0 %v5272
        %v5421 = vpop.f32.mrb[0].mxu0
        %v5422 = vadd.f32 %v5210, %v5421
        %v5423 = vpop.f32.mrb[0].mxu0
        %v5424 = vpop.f32.mrb[0].mxu0
        %v5425 = vadd.f32 %v5213, %v5424
        %v5426 = vpop.f32.mrb[0].mxu0
        %5427 = vmatprep.mubr.bf16.mxu0 0
        %5428 = vmatmul.mubr.bf16.gmra.mrb[0].mxu0 %v5275
        %v5429 = vpop.f32.mrb[0].mxu0
        %v5430 = vadd.f32 %v5218, %v5429
        %v5431 = vpop.f32.mrb[0].mxu0
        %v5432 = vpop.f32.mrb[0].mxu0
        %v5433 = vadd.f32 %v5221, %v5432
        %v5434 = vpop.f32.mrb[0].mxu0
        %5435 = vmatprep.mubr.bf16.mxu0 0
        %5436 = vmatmul.mubr.bf16.gmra.mrb[0].mxu0 %v5278
        %v5437 = vpop.f32.mrb[0].mxu0
        %v5438 = vadd.f32 %v5226, %v5437
        %v5439 = vpop.f32.mrb[0].mxu0
        %v5440 = vpop.f32.mrb[0].mxu0
        %v5441 = vadd.f32 %v5229, %v5440
        %v5442 = vpop.f32.mrb[0].mxu0
        %5443 = vdwg.mxu0
        %v5444 = vadd.f32 %v4972, %v5318
        %v5445 = vadd.f32 %v4973, %v5321
        %v5446 = vadd.f32 %v4974, %v5326
        %v5447 = vadd.f32 %v4975, %v5329
        %v5448 = vadd.f32 %v4976, %v5334
        %v5449 = vadd.f32 %v4977, %v5337
        %v5450 = vadd.f32 %v4978, %v5342
        %v5451 = vadd.f32 %v4979, %v5345
        %v5452 = vadd.f32 %v4980, %v5350
        %v5453 = vadd.f32 %v4981, %v5353
        %v5454 = vadd.f32 %v4982, %v5358
        %v5455 = vadd.f32 %v4983, %v5361
        %v5456 = vadd.f32 %v4984, %v5366
        %v5457 = vadd.f32 %v4985, %v5369
        %v5458 = vadd.f32 %v4986, %v5374
        %v5459 = vadd.f32 %v4987, %v5377
        %v5460 = vadd.f32 %v4988, %v5382
        %v5461 = vadd.f32 %v4989, %v5385
        %v5462 = vadd.f32 %v4990, %v5390
        %v5463 = vadd.f32 %v4991, %v5393
        %v5464 = vadd.f32 %v4992, %v5398
        %v5465 = vadd.f32 %v4993, %v5401
        %v5466 = vadd.f32 %v4994, %v5406
        %v5467 = vadd.f32 %v4995, %v5409
        %v5468 = vadd.f32 %v4996, %v5414
        %v5469 = vadd.f32 %v4997, %v5417
        %v5470 = vadd.f32 %v4998, %v5422
        %v5471 = vadd.f32 %v4999, %v5425
        %v5472 = vadd.f32 %v5000, %v5430
        %v5473 = vadd.f32 %v5001, %v5433
        %v5474 = vadd.f32 %v5002, %v5438
        %v5475 = vadd.f32 %v5003, %v5441
        %5476 = vst [vmem:[#allocation4] sm:$0xff] %v5444
        %5477 = vst [vmem:[#allocation4 + $0x8] sm:$0xff] %v5445
        %5478 = vst [vmem:[#allocation4 + $0x10] sm:$0xff] %v5446
        %5479 = vst [vmem:[#allocation4 + $0x18] sm:$0xff] %v5447
        %5480 = vst [vmem:[#allocation4 + $0x20] sm:$0xff] %v5448
        %5481 = vst [vmem:[#allocation4 + $0x28] sm:$0xff] %v5449
        %5482 = vst [vmem:[#allocation4 + $0x30] sm:$0xff] %v5450
        %5483 = vst [vmem:[#allocation4 + $0x38] sm:$0xff] %v5451
        %5484 = vst [vmem:[#allocation4 + $0x40] sm:$0xff] %v5452
        %5485 = vst [vmem:[#allocation4 + $0x48] sm:$0xff] %v5453
        %5486 = vst [vmem:[#allocation4 + $0x50] sm:$0xff] %v5454
        %5487 = vst [vmem:[#allocation4 + $0x58] sm:$0xff] %v5455
        %5488 = vst [vmem:[#allocation4 + $0x60] sm:$0xff] %v5456
        %5489 = vst [vmem:[#allocation4 + $0x68] sm:$0xff] %v5457
        %5490 = vst [vmem:[#allocation4 + $0x70] sm:$0xff] %v5458
        %5491 = vst [vmem:[#allocation4 + $0x78] sm:$0xff] %v5459
        %5492 = vst [vmem:[#allocation4 + $0x80] sm:$0xff] %v5460
        %5493 = vst [vmem:[#allocation4 + $0x88] sm:$0xff] %v5461
        %5494 = vst [vmem:[#allocation4 + $0x90] sm:$0xff] %v5462
        %5495 = vst [vmem:[#allocation4 + $0x98] sm:$0xff] %v5463
        %5496 = vst [vmem:[#allocation4 + $0xa0] sm:$0xff] %v5464
        %5497 = vst [vmem:[#allocation4 + $0xa8] sm:$0xff] %v5465
        %5498 = vst [vmem:[#allocation4 + $0xb0] sm:$0xff] %v5466
        %5499 = vst [vmem:[#allocation4 + $0xb8] sm:$0xff] %v5467
        %5500 = vst [vmem:[#allocation4 + $0xc0] sm:$0xff] %v5468
        %5501 = vst [vmem:[#allocation4 + $0xc8] sm:$0xff] %v5469
        %5502 = vst [vmem:[#allocation4 + $0xd0] sm:$0xff] %v5470
        %5503 = vst [vmem:[#allocation4 + $0xd8] sm:$0xff] %v5471
        %5504 = vst [vmem:[#allocation4 + $0xe0] sm:$0xff] %v5472
        %5505 = vst [vmem:[#allocation4 + $0xe8] sm:$0xff] %v5473
        %5506 = vst [vmem:[#allocation4 + $0xf0] sm:$0xff] %v5474
        %5507 = vst [vmem:[#allocation4 + $0xf8] sm:$0xff] %v5475
        %v5508 = vld [vmem:[%s4874 + $0x1] sm:$0xff]
        %v5509 = vld [vmem:[%s4874 + $0x9] sm:$0xff]
        %v5510 = vld [vmem:[%s4874 + $0x19] sm:$0xff]
        %v5511 = vld [vmem:[%s4874 + $0x21] sm:$0xff]
        %v5512 = vld [vmem:[%s4874 + $0x31] sm:$0xff]
        %v5513 = vld [vmem:[%s4874 + $0x39] sm:$0xff]
        %v5514 = vld [vmem:[%s4874 + $0x49] sm:$0xff]
        %v5515 = vld [vmem:[%s4874 + $0x51] sm:$0xff]
        %v5516 = vld [vmem:[%s4874 + $0x61] sm:$0xff]
        %v5517 = vld [vmem:[%s4874 + $0x69] sm:$0xff]
        %v5518 = vld [vmem:[%s4874 + $0x79] sm:$0xff]
        %v5519 = vld [vmem:[%s4874 + $0x81] sm:$0xff]
        %v5520 = vld [vmem:[%s4874 + $0x91] sm:$0xff]
        %v5521 = vld [vmem:[%s4874 + $0x99] sm:$0xff]
        %v5522 = vld [vmem:[%s4874 + $0xa9] sm:$0xff]
        %v5523 = vld [vmem:[%s4874 + $0xb1] sm:$0xff]
        %v5524 = vld [vmem:[%s4874 + $0xc1] sm:$0xff]
        %v5525 = vld [vmem:[%s4874 + $0xc9] sm:$0xff]
        %v5526 = vld [vmem:[%s4874 + $0xd9] sm:$0xff]
        %v5527 = vld [vmem:[%s4874 + $0xe1] sm:$0xff]
        %v5528 = vld [vmem:[%s4874 + $0xf1] sm:$0xff]
        %v5529 = vld [vmem:[%s4874 + $0xf9] sm:$0xff]
        %v5530 = vld [vmem:[%s4874 + $0x109] sm:$0xff]
        %v5531 = vld [vmem:[%s4874 + $0x111] sm:$0xff]
        %v5532 = vld [vmem:[%s4874 + $0x121] sm:$0xff]
        %v5533 = vld [vmem:[%s4874 + $0x129] sm:$0xff]
        %v5534 = vld [vmem:[%s4874 + $0x139] sm:$0xff]
        %v5535 = vld [vmem:[%s4874 + $0x141] sm:$0xff]
        %v5536 = vld [vmem:[%s4874 + $0x151] sm:$0xff]
        %v5537 = vld [vmem:[%s4874 + $0x159] sm:$0xff]
        %v5538 = vld [vmem:[%s4874 + $0x169] sm:$0xff]
        %v5539 = vld [vmem:[%s4874 + $0x171] sm:$0xff]
        %v5540 = vpack.c.bf16 %v5509, %v5508
        %v5541 = vpack.c.bf16 %v5511, %v5510
        %v5542 = vpack.c.bf16 %v5513, %v5512
        %v5543 = vpack.c.bf16 %v5515, %v5514
        %v5544 = vpack.c.bf16 %v5517, %v5516
        %v5545 = vpack.c.bf16 %v5519, %v5518
        %v5546 = vpack.c.bf16 %v5521, %v5520
        %v5547 = vpack.c.bf16 %v5523, %v5522
        %v5548 = vpack.c.bf16 %v5525, %v5524
        %v5549 = vpack.c.bf16 %v5527, %v5526
        %v5550 = vpack.c.bf16 %v5529, %v5528
        %v5551 = vpack.c.bf16 %v5531, %v5530
        %v5552 = vpack.c.bf16 %v5533, %v5532
        %v5553 = vpack.c.bf16 %v5535, %v5534
        %v5554 = vpack.c.bf16 %v5537, %v5536
        %v5555 = vpack.c.bf16 %v5539, %v5538
        %v5556 = vld [vmem:[%s4923 + $0x1] sm:$0xff]
        %v5557 = vld [vmem:[%s4923 + $0x9] sm:$0xff]
        %v5558 = vld [vmem:[%s4923 + $0x19] sm:$0xff]
        %v5559 = vld [vmem:[%s4923 + $0x21] sm:$0xff]
        %v5560 = vld [vmem:[%s4923 + $0x31] sm:$0xff]
        %v5561 = vld [vmem:[%s4923 + $0x39] sm:$0xff]
        %v5562 = vld [vmem:[%s4923 + $0x49] sm:$0xff]
        %v5563 = vld [vmem:[%s4923 + $0x51] sm:$0xff]
        %v5564 = vld [vmem:[%s4923 + $0x61] sm:$0xff]
        %v5565 = vld [vmem:[%s4923 + $0x69] sm:$0xff]
        %v5566 = vld [vmem:[%s4923 + $0x79] sm:$0xff]
        %v5567 = vld [vmem:[%s4923 + $0x81] sm:$0xff]
        %v5568 = vld [vmem:[%s4923 + $0x91] sm:$0xff]
        %v5569 = vld [vmem:[%s4923 + $0x99] sm:$0xff]
        %v5570 = vld [vmem:[%s4923 + $0xa9] sm:$0xff]
        %v5571 = vld [vmem:[%s4923 + $0xb1] sm:$0xff]
        %v5572 = vld [vmem:[%s4923 + $0xc1] sm:$0xff]
        %v5573 = vld [vmem:[%s4923 + $0xc9] sm:$0xff]
        %v5574 = vld [vmem:[%s4923 + $0xd9] sm:$0xff]
        %v5575 = vld [vmem:[%s4923 + $0xe1] sm:$0xff]
        %v5576 = vld [vmem:[%s4923 + $0xf1] sm:$0xff]
        %v5577 = vld [vmem:[%s4923 + $0xf9] sm:$0xff]
        %v5578 = vld [vmem:[%s4923 + $0x109] sm:$0xff]
        %v5579 = vld [vmem:[%s4923 + $0x111] sm:$0xff]
        %v5580 = vld [vmem:[%s4923 + $0x121] sm:$0xff]
        %v5581 = vld [vmem:[%s4923 + $0x129] sm:$0xff]
        %v5582 = vld [vmem:[%s4923 + $0x139] sm:$0xff]
        %v5583 = vld [vmem:[%s4923 + $0x141] sm:$0xff]
        %v5584 = vld [vmem:[%s4923 + $0x151] sm:$0xff]
        %v5585 = vld [vmem:[%s4923 + $0x159] sm:$0xff]
        %v5586 = vld [vmem:[%s4923 + $0x169] sm:$0xff]
        %v5587 = vld [vmem:[%s4923 + $0x171] sm:$0xff]
        %v5588 = vpack.c.bf16 %v5557, %v5556
        %v5589 = vpack.c.bf16 %v5559, %v5558
        %v5590 = vpack.c.bf16 %v5561, %v5560
        %v5591 = vpack.c.bf16 %v5563, %v5562
        %v5592 = vpack.c.bf16 %v5565, %v5564
        %v5593 = vpack.c.bf16 %v5567, %v5566
        %v5594 = vpack.c.bf16 %v5569, %v5568
        %v5595 = vpack.c.bf16 %v5571, %v5570
        %v5596 = vpack.c.bf16 %v5573, %v5572
        %v5597 = vpack.c.bf16 %v5575, %v5574
        %v5598 = vpack.c.bf16 %v5577, %v5576
        %v5599 = vpack.c.bf16 %v5579, %v5578
        %v5600 = vpack.c.bf16 %v5581, %v5580
        %v5601 = vpack.c.bf16 %v5583, %v5582
        %v5602 = vpack.c.bf16 %v5585, %v5584
        %v5603 = vpack.c.bf16 %v5587, %v5586
        %v5604 = vld [vmem:[#allocation4] sm:$0xff]
        %v5605 = vld [vmem:[#allocation4 + $0x8] sm:$0xff]
        %v5606 = vld [vmem:[#allocation4 + $0x10] sm:$0xff]
        %v5607 = vld [vmem:[#allocation4 + $0x18] sm:$0xff]
        %v5608 = vld [vmem:[#allocation4 + $0x20] sm:$0xff]
        %v5609 = vld [vmem:[#allocation4 + $0x28] sm:$0xff]
        %v5610 = vld [vmem:[#allocation4 + $0x30] sm:$0xff]
        %v5611 = vld [vmem:[#allocation4 + $0x38] sm:$0xff]
        %v5612 = vld [vmem:[#allocation4 + $0x40] sm:$0xff]
        %v5613 = vld [vmem:[#allocation4 + $0x48] sm:$0xff]
        %v5614 = vld [vmem:[#allocation4 + $0x50] sm:$0xff]
        %v5615 = vld [vmem:[#allocation4 + $0x58] sm:$0xff]
        %v5616 = vld [vmem:[#allocation4 + $0x60] sm:$0xff]
        %v5617 = vld [vmem:[#allocation4 + $0x68] sm:$0xff]
        %v5618 = vld [vmem:[#allocation4 + $0x70] sm:$0xff]
        %v5619 = vld [vmem:[#allocation4 + $0x78] sm:$0xff]
        %v5620 = vld [vmem:[#allocation4 + $0x80] sm:$0xff]
        %v5621 = vld [vmem:[#allocation4 + $0x88] sm:$0xff]
        %v5622 = vld [vmem:[#allocation4 + $0x90] sm:$0xff]
        %v5623 = vld [vmem:[#allocation4 + $0x98] sm:$0xff]
        %v5624 = vld [vmem:[#allocation4 + $0xa0] sm:$0xff]
        %v5625 = vld [vmem:[#allocation4 + $0xa8] sm:$0xff]
        %v5626 = vld [vmem:[#allocation4 + $0xb0] sm:$0xff]
        %v5627 = vld [vmem:[#allocation4 + $0xb8] sm:$0xff]
        %v5628 = vld [vmem:[#allocation4 + $0xc0] sm:$0xff]
        %v5629 = vld [vmem:[#allocation4 + $0xc8] sm:$0xff]
        %v5630 = vld [vmem:[#allocation4 + $0xd0] sm:$0xff]
        %v5631 = vld [vmem:[#allocation4 + $0xd8] sm:$0xff]
        %v5632 = vld [vmem:[#allocation4 + $0xe0] sm:$0xff]
        %v5633 = vld [vmem:[#allocation4 + $0xe8] sm:$0xff]
        %v5634 = vld [vmem:[#allocation4 + $0xf0] sm:$0xff]
        %v5635 = vld [vmem:[#allocation4 + $0xf8] sm:$0xff]
        %s5636 = scalar_lea.vmem [#allocation8], 14
        %v5637 = vld [vmem:[%s5636] sm:$0x3]
        %s5638 = scalar_lea.vmem %s4, 112
        %v5639 = vld [vmem:[%s5638] sm:$0xf]
        %v5640 = vld [vmem:[%s5638 + $0x4] sm:$0xf]
        %v5641 = vld [vmem:[%s5638 + $0x8] sm:$0xf]
        %v5642 = vld [vmem:[%s5638 + $0xc] sm:$0xf]
        %v5647 = vunpack.c.l.b16 %v5639
        %v5648 = vunpack.c.l.b16 %v5640
        %v5649 = vunpack.c.l.b16 %v5641
        %v5650 = vunpack.c.l.b16 %v5642
        %v5651 = vpack.c.b16 %v5648, %v5647
        %v5652 = vpack.c.b16 %v5650, %v5649
        %v5656 = vsel %vm823, %v5588, 0
        %v5659 = vsel %vm823, %v5589, 0
        %v5662 = vsel %vm823, %v5590, 0
        %v5665 = vsel %vm823, %v5591, 0
        %v5668 = vsel %vm823, %v5592, 0
        %v5671 = vsel %vm823, %v5593, 0
        %v5674 = vsel %vm823, %v5594, 0
        %v5677 = vsel %vm823, %v5595, 0
        %v5680 = vsel %vm823, %v5596, 0
        %v5683 = vsel %vm823, %v5597, 0
        %v5686 = vsel %vm823, %v5598, 0
        %v5689 = vsel %vm823, %v5599, 0
        %v5692 = vsel %vm823, %v5600, 0
        %v5695 = vsel %vm823, %v5601, 0
        %v5698 = vsel %vm823, %v5602, 0
        %v5701 = vsel %vm823, %v5603, 0
        %5703 = vmatprep.subr.bf16.mxu0 0
        %5704 = vmatpush1.bf16.msra.mxu0 %v5651
        %5705 = vmatprep.subr.bf16.mxu0 0
        %5706 = vmatpush1.bf16.msra.mxu0 %v5652
        %5707 = vmatprep.subr.bf16.mxu0 0
        %5708 = vmatpush1.bf16.msra.mxu0 0
        %5709 = vmatprep.subr.bf16.mxu0 0
        %5710 = vmatpush1.bf16.msra.mxu0 0
        %5711 = vmatprep.subr.bf16.mxu0 0
        %5712 = vmatpush1.bf16.msra.mxu0 0
        %5713 = vmatprep.subr.bf16.mxu0 0
        %5714 = vmatpush1.bf16.msra.mxu0 0
        %5715 = vmatprep.subr.bf16.mxu0 0
        %5716 = vmatpush1.bf16.msra.mxu0 0
        %5717 = vmatprep.subr.bf16.mxu0 0
        %5718 = vmatpush1.bf16.msra.mxu0 0
        %5719 = vmatprep.subr.bf16.mxu0 0
        %5720 = vmatpush1.bf16.msra.mxu0 0
        %5721 = vmatprep.subr.bf16.mxu0 0
        %5722 = vmatpush1.bf16.msra.mxu0 0
        %5723 = vmatprep.subr.bf16.mxu0 0
        %5724 = vmatpush1.bf16.msra.mxu0 0
        %5725 = vmatprep.subr.bf16.mxu0 0
        %5726 = vmatpush1.bf16.msra.mxu0 0
        %5727 = vmatprep.subr.bf16.mxu0 0
        %5728 = vmatpush1.bf16.msra.mxu0 0
        %5729 = vmatprep.subr.bf16.mxu0 0
        %5730 = vmatpush1.bf16.msra.mxu0 0
        %5731 = vmatprep.subr.bf16.mxu0 0
        %5732 = vmatpush1.bf16.msra.mxu0 0
        %5733 = vmatprep.subr.bf16.mxu0 0
        %5734 = vmatpush1.bf16.msra.mxu0 0
        %5735 = vmatprep.mubr.bf16.mxu0 0
        %5736 = vmatmul.mubr.bf16.gmra.mrb[0].mxu0 %v5656
        %v5737 = vpop.f32.mrb[0].mxu0
        %v5738 = vadd.f32 0.0, %v5737
        %v5739 = vpop.f32.mrb[0].mxu0
        %v5740 = vpop.f32.mrb[0].mxu0
        %v5741 = vadd.f32 0.0, %v5740
        %v5742 = vpop.f32.mrb[0].mxu0
        %5743 = vmatprep.mubr.bf16.mxu0 0
        %5744 = vmatmul.mubr.bf16.gmra.mrb[0].mxu0 %v5659
        %v5745 = vpop.f32.mrb[0].mxu0
        %v5746 = vadd.f32 0.0, %v5745
        %v5747 = vpop.f32.mrb[0].mxu0
        %v5748 = vpop.f32.mrb[0].mxu0
        %v5749 = vadd.f32 0.0, %v5748
        %v5750 = vpop.f32.mrb[0].mxu0
        %5751 = vmatprep.mubr.bf16.mxu0 0
        %5752 = vmatmul.mubr.bf16.gmra.mrb[0].mxu0 %v5662
        %v5753 = vpop.f32.mrb[0].mxu0
        %v5754 = vadd.f32 0.0, %v5753
        %v5755 = vpop.f32.mrb[0].mxu0
        %v5756 = vpop.f32.mrb[0].mxu0
        %v5757 = vadd.f32 0.0, %v5756
        %v5758 = vpop.f32.mrb[0].mxu0
        %5759 = vmatprep.mubr.bf16.mxu0 0
        %5760 = vmatmul.mubr.bf16.gmra.mrb[0].mxu0 %v5665
        %v5761 = vpop.f32.mrb[0].mxu0
        %v5762 = vadd.f32 0.0, %v5761
        %v5763 = vpop.f32.mrb[0].mxu0
        %v5764 = vpop.f32.mrb[0].mxu0
        %v5765 = vadd.f32 0.0, %v5764
        %v5766 = vpop.f32.mrb[0].mxu0
        %5767 = vmatprep.mubr.bf16.mxu0 0
        %5768 = vmatmul.mubr.bf16.gmra.mrb[0].mxu0 %v5668
        %v5769 = vpop.f32.mrb[0].mxu0
        %v5770 = vadd.f32 0.0, %v5769
        %v5771 = vpop.f32.mrb[0].mxu0
        %v5772 = vpop.f32.mrb[0].mxu0
        %v5773 = vadd.f32 0.0, %v5772
        %v5774 = vpop.f32.mrb[0].mxu0
        %5775 = vmatprep.mubr.bf16.mxu0 0
        %5776 = vmatmul.mubr.bf16.gmra.mrb[0].mxu0 %v5671
        %v5777 = vpop.f32.mrb[0].mxu0
        %v5778 = vadd.f32 0.0, %v5777
        %v5779 = vpop.f32.mrb[0].mxu0
        %v5780 = vpop.f32.mrb[0].mxu0
        %v5781 = vadd.f32 0.0, %v5780
        %v5782 = vpop.f32.mrb[0].mxu0
        %5783 = vmatprep.mubr.bf16.mxu0 0
        %5784 = vmatmul.mubr.bf16.gmra.mrb[0].mxu0 %v5674
        %v5785 = vpop.f32.mrb[0].mxu0
        %v5786 = vadd.f32 0.0, %v5785
        %v5787 = vpop.f32.mrb[0].mxu0
        %v5788 = vpop.f32.mrb[0].mxu0
        %v5789 = vadd.f32 0.0, %v5788
        %v5790 = vpop.f32.mrb[0].mxu0
        %5791 = vmatprep.mubr.bf16.mxu0 0
        %5792 = vmatmul.mubr.bf16.gmra.mrb[0].mxu0 %v5677
        %v5793 = vpop.f32.mrb[0].mxu0
        %v5794 = vadd.f32 0.0, %v5793
        %v5795 = vpop.f32.mrb[0].mxu0
        %v5796 = vpop.f32.mrb[0].mxu0
        %v5797 = vadd.f32 0.0, %v5796
        %v5798 = vpop.f32.mrb[0].mxu0
        %5799 = vmatprep.mubr.bf16.mxu0 0
        %5800 = vmatmul.mubr.bf16.gmra.mrb[0].mxu0 %v5680
        %v5801 = vpop.f32.mrb[0].mxu0
        %v5802 = vadd.f32 0.0, %v5801
        %v5803 = vpop.f32.mrb[0].mxu0
        %v5804 = vpop.f32.mrb[0].mxu0
        %v5805 = vadd.f32 0.0, %v5804
        %v5806 = vpop.f32.mrb[0].mxu0
        %5807 = vmatprep.mubr.bf16.mxu0 0
        %5808 = vmatmul.mubr.bf16.gmra.mrb[0].mxu0 %v5683
        %v5809 = vpop.f32.mrb[0].mxu0
        %v5810 = vadd.f32 0.0, %v5809
        %v5811 = vpop.f32.mrb[0].mxu0
        %v5812 = vpop.f32.mrb[0].mxu0
        %v5813 = vadd.f32 0.0, %v5812
        %v5814 = vpop.f32.mrb[0].mxu0
        %5815 = vmatprep.mubr.bf16.mxu0 0
        %5816 = vmatmul.mubr.bf16.gmra.mrb[0].mxu0 %v5686
        %v5817 = vpop.f32.mrb[0].mxu0
        %v5818 = vadd.f32 0.0, %v5817
        %v5819 = vpop.f32.mrb[0].mxu0
        %v5820 = vpop.f32.mrb[0].mxu0
        %v5821 = vadd.f32 0.0, %v5820
        %v5822 = vpop.f32.mrb[0].mxu0
        %5823 = vmatprep.mubr.bf16.mxu0 0
        %5824 = vmatmul.mubr.bf16.gmra.mrb[0].mxu0 %v5689
        %v5825 = vpop.f32.mrb[0].mxu0
        %v5826 = vadd.f32 0.0, %v5825
        %v5827 = vpop.f32.mrb[0].mxu0
        %v5828 = vpop.f32.mrb[0].mxu0
        %v5829 = vadd.f32 0.0, %v5828
        %v5830 = vpop.f32.mrb[0].mxu0
        %5831 = vmatprep.mubr.bf16.mxu0 0
        %5832 = vmatmul.mubr.bf16.gmra.mrb[0].mxu0 %v5692
        %v5833 = vpop.f32.mrb[0].mxu0
        %v5834 = vadd.f32 0.0, %v5833
        %v5835 = vpop.f32.mrb[0].mxu0
        %v5836 = vpop.f32.mrb[0].mxu0
        %v5837 = vadd.f32 0.0, %v5836
        %v5838 = vpop.f32.mrb[0].mxu0
        %5839 = vmatprep.mubr.bf16.mxu0 0
        %5840 = vmatmul.mubr.bf16.gmra.mrb[0].mxu0 %v5695
        %v5841 = vpop.f32.mrb[0].mxu0
        %v5842 = vadd.f32 0.0, %v5841
        %v5843 = vpop.f32.mrb[0].mxu0
        %v5844 = vpop.f32.mrb[0].mxu0
        %v5845 = vadd.f32 0.0, %v5844
        %v5846 = vpop.f32.mrb[0].mxu0
        %5847 = vmatprep.mubr.bf16.mxu0 0
        %5848 = vmatmul.mubr.bf16.gmra.mrb[0].mxu0 %v5698
        %v5849 = vpop.f32.mrb[0].mxu0
        %v5850 = vadd.f32 0.0, %v5849
        %v5851 = vpop.f32.mrb[0].mxu0
        %v5852 = vpop.f32.mrb[0].mxu0
        %v5853 = vadd.f32 0.0, %v5852
        %v5854 = vpop.f32.mrb[0].mxu0
        %5855 = vmatprep.mubr.bf16.mxu0 0
        %5856 = vmatmul.mubr.bf16.gmra.mrb[0].mxu0 %v5701
        %v5857 = vpop.f32.mrb[0].mxu0
        %v5858 = vadd.f32 0.0, %v5857
        %v5859 = vpop.f32.mrb[0].mxu0
        %v5860 = vpop.f32.mrb[0].mxu0
        %v5861 = vadd.f32 0.0, %v5860
        %v5862 = vpop.f32.mrb[0].mxu0
        %5863 = vdwg.mxu0
        %v5865 = vsel %vm614, %v5540, 0
        %v5868 = vsel %vm614, %v5541, 0
        %v5871 = vsel %vm614, %v5542, 0
        %v5874 = vsel %vm614, %v5543, 0
        %v5877 = vsel %vm614, %v5544, 0
        %v5880 = vsel %vm614, %v5545, 0
        %v5883 = vsel %vm614, %v5546, 0
        %v5886 = vsel %vm614, %v5547, 0
        %v5889 = vsel %vm614, %v5548, 0
        %v5892 = vsel %vm614, %v5549, 0
        %v5895 = vsel %vm614, %v5550, 0
        %v5898 = vsel %vm614, %v5551, 0
        %v5901 = vsel %vm614, %v5552, 0
        %v5904 = vsel %vm614, %v5553, 0
        %v5907 = vsel %vm614, %v5554, 0
        %v5910 = vsel %vm614, %v5555, 0
        %v5913 = vsel %vm1485, %v5637, 0
        %5915 = vmatprep.subr.bf16.mxu0 0
        %5916 = vmatpush1.bf16.msra.mxu0 %v5913
        %5917 = vmatprep.subr.bf16.mxu0 0
        %5918 = vmatpush1.bf16.msra.mxu0 0
        %5919 = vmatprep.subr.bf16.mxu0 0
        %5920 = vmatpush1.bf16.msra.mxu0 0
        %5921 = vmatprep.subr.bf16.mxu0 0
        %5922 = vmatpush1.bf16.msra.mxu0 0
        %5923 = vmatprep.subr.bf16.mxu0 0
        %5924 = vmatpush1.bf16.msra.mxu0 0
        %5925 = vmatprep.subr.bf16.mxu0 0
        %5926 = vmatpush1.bf16.msra.mxu0 0
        %5927 = vmatprep.subr.bf16.mxu0 0
        %5928 = vmatpush1.bf16.msra.mxu0 0
        %5929 = vmatprep.subr.bf16.mxu0 0
        %5930 = vmatpush1.bf16.msra.mxu0 0
        %5931 = vmatprep.subr.bf16.mxu0 0
        %5932 = vmatpush1.bf16.msra.mxu0 0
        %5933 = vmatprep.subr.bf16.mxu0 0
        %5934 = vmatpush1.bf16.msra.mxu0 0
        %5935 = vmatprep.subr.bf16.mxu0 0
        %5936 = vmatpush1.bf16.msra.mxu0 0
        %5937 = vmatprep.subr.bf16.mxu0 0
        %5938 = vmatpush1.bf16.msra.mxu0 0
        %5939 = vmatprep.subr.bf16.mxu0 0
        %5940 = vmatpush1.bf16.msra.mxu0 0
        %5941 = vmatprep.subr.bf16.mxu0 0
        %5942 = vmatpush1.bf16.msra.mxu0 0
        %5943 = vmatprep.subr.bf16.mxu0 0
        %5944 = vmatpush1.bf16.msra.mxu0 0
        %5945 = vmatprep.subr.bf16.mxu0 0
        %5946 = vmatpush1.bf16.msra.mxu0 0
        %5947 = vmatprep.mubr.bf16.mxu0 0
        %5948 = vmatmul.mubr.bf16.gmra.mrb[0].mxu0 %v5865
        %v5949 = vpop.f32.mrb[0].mxu0
        %v5950 = vadd.f32 %v5738, %v5949
        %v5951 = vpop.f32.mrb[0].mxu0
        %v5952 = vpop.f32.mrb[0].mxu0
        %v5953 = vadd.f32 %v5741, %v5952
        %v5954 = vpop.f32.mrb[0].mxu0
        %5955 = vmatprep.mubr.bf16.mxu0 0
        %5956 = vmatmul.mubr.bf16.gmra.mrb[0].mxu0 %v5868
        %v5957 = vpop.f32.mrb[0].mxu0
        %v5958 = vadd.f32 %v5746, %v5957
        %v5959 = vpop.f32.mrb[0].mxu0
        %v5960 = vpop.f32.mrb[0].mxu0
        %v5961 = vadd.f32 %v5749, %v5960
        %v5962 = vpop.f32.mrb[0].mxu0
        %5963 = vmatprep.mubr.bf16.mxu0 0
        %5964 = vmatmul.mubr.bf16.gmra.mrb[0].mxu0 %v5871
        %v5965 = vpop.f32.mrb[0].mxu0
        %v5966 = vadd.f32 %v5754, %v5965
        %v5967 = vpop.f32.mrb[0].mxu0
        %v5968 = vpop.f32.mrb[0].mxu0
        %v5969 = vadd.f32 %v5757, %v5968
        %v5970 = vpop.f32.mrb[0].mxu0
        %5971 = vmatprep.mubr.bf16.mxu0 0
        %5972 = vmatmul.mubr.bf16.gmra.mrb[0].mxu0 %v5874
        %v5973 = vpop.f32.mrb[0].mxu0
        %v5974 = vadd.f32 %v5762, %v5973
        %v5975 = vpop.f32.mrb[0].mxu0
        %v5976 = vpop.f32.mrb[0].mxu0
        %v5977 = vadd.f32 %v5765, %v5976
        %v5978 = vpop.f32.mrb[0].mxu0
        %5979 = vmatprep.mubr.bf16.mxu0 0
        %5980 = vmatmul.mubr.bf16.gmra.mrb[0].mxu0 %v5877
        %v5981 = vpop.f32.mrb[0].mxu0
        %v5982 = vadd.f32 %v5770, %v5981
        %v5983 = vpop.f32.mrb[0].mxu0
        %v5984 = vpop.f32.mrb[0].mxu0
        %v5985 = vadd.f32 %v5773, %v5984
        %v5986 = vpop.f32.mrb[0].mxu0
        %5987 = vmatprep.mubr.bf16.mxu0 0
        %5988 = vmatmul.mubr.bf16.gmra.mrb[0].mxu0 %v5880
        %v5989 = vpop.f32.mrb[0].mxu0
        %v5990 = vadd.f32 %v5778, %v5989
        %v5991 = vpop.f32.mrb[0].mxu0
        %v5992 = vpop.f32.mrb[0].mxu0
        %v5993 = vadd.f32 %v5781, %v5992
        %v5994 = vpop.f32.mrb[0].mxu0
        %5995 = vmatprep.mubr.bf16.mxu0 0
        %5996 = vmatmul.mubr.bf16.gmra.mrb[0].mxu0 %v5883
        %v5997 = vpop.f32.mrb[0].mxu0
        %v5998 = vadd.f32 %v5786, %v5997
        %v5999 = vpop.f32.mrb[0].mxu0
        %v6000 = vpop.f32.mrb[0].mxu0
        %v6001 = vadd.f32 %v5789, %v6000
        %v6002 = vpop.f32.mrb[0].mxu0
        %6003 = vmatprep.mubr.bf16.mxu0 0
        %6004 = vmatmul.mubr.bf16.gmra.mrb[0].mxu0 %v5886
        %v6005 = vpop.f32.mrb[0].mxu0
        %v6006 = vadd.f32 %v5794, %v6005
        %v6007 = vpop.f32.mrb[0].mxu0
        %v6008 = vpop.f32.mrb[0].mxu0
        %v6009 = vadd.f32 %v5797, %v6008
        %v6010 = vpop.f32.mrb[0].mxu0
        %6011 = vmatprep.mubr.bf16.mxu0 0
        %6012 = vmatmul.mubr.bf16.gmra.mrb[0].mxu0 %v5889
        %v6013 = vpop.f32.mrb[0].mxu0
        %v6014 = vadd.f32 %v5802, %v6013
        %v6015 = vpop.f32.mrb[0].mxu0
        %v6016 = vpop.f32.mrb[0].mxu0
        %v6017 = vadd.f32 %v5805, %v6016
        %v6018 = vpop.f32.mrb[0].mxu0
        %6019 = vmatprep.mubr.bf16.mxu0 0
        %6020 = vmatmul.mubr.bf16.gmra.mrb[0].mxu0 %v5892
        %v6021 = vpop.f32.mrb[0].mxu0
        %v6022 = vadd.f32 %v5810, %v6021
        %v6023 = vpop.f32.mrb[0].mxu0
        %v6024 = vpop.f32.mrb[0].mxu0
        %v6025 = vadd.f32 %v5813, %v6024
        %v6026 = vpop.f32.mrb[0].mxu0
        %6027 = vmatprep.mubr.bf16.mxu0 0
        %6028 = vmatmul.mubr.bf16.gmra.mrb[0].mxu0 %v5895
        %v6029 = vpop.f32.mrb[0].mxu0
        %v6030 = vadd.f32 %v5818, %v6029
        %v6031 = vpop.f32.mrb[0].mxu0
        %v6032 = vpop.f32.mrb[0].mxu0
        %v6033 = vadd.f32 %v5821, %v6032
        %v6034 = vpop.f32.mrb[0].mxu0
        %6035 = vmatprep.mubr.bf16.mxu0 0
        %6036 = vmatmul.mubr.bf16.gmra.mrb[0].mxu0 %v5898
        %v6037 = vpop.f32.mrb[0].mxu0
        %v6038 = vadd.f32 %v5826, %v6037
        %v6039 = vpop.f32.mrb[0].mxu0
        %v6040 = vpop.f32.mrb[0].mxu0
        %v6041 = vadd.f32 %v5829, %v6040
        %v6042 = vpop.f32.mrb[0].mxu0
        %6043 = vmatprep.mubr.bf16.mxu0 0
        %6044 = vmatmul.mubr.bf16.gmra.mrb[0].mxu0 %v5901
        %v6045 = vpop.f32.mrb[0].mxu0
        %v6046 = vadd.f32 %v5834, %v6045
        %v6047 = vpop.f32.mrb[0].mxu0
        %v6048 = vpop.f32.mrb[0].mxu0
        %v6049 = vadd.f32 %v5837, %v6048
        %v6050 = vpop.f32.mrb[0].mxu0
        %6051 = vmatprep.mubr.bf16.mxu0 0
        %6052 = vmatmul.mubr.bf16.gmra.mrb[0].mxu0 %v5904
        %v6053 = vpop.f32.mrb[0].mxu0
        %v6054 = vadd.f32 %v5842, %v6053
        %v6055 = vpop.f32.mrb[0].mxu0
        %v6056 = vpop.f32.mrb[0].mxu0
        %v6057 = vadd.f32 %v5845, %v6056
        %v6058 = vpop.f32.mrb[0].mxu0
        %6059 = vmatprep.mubr.bf16.mxu0 0
        %6060 = vmatmul.mubr.bf16.gmra.mrb[0].mxu0 %v5907
        %v6061 = vpop.f32.mrb[0].mxu0
        %v6062 = vadd.f32 %v5850, %v6061
        %v6063 = vpop.f32.mrb[0].mxu0
        %v6064 = vpop.f32.mrb[0].mxu0
        %v6065 = vadd.f32 %v5853, %v6064
        %v6066 = vpop.f32.mrb[0].mxu0
        %6067 = vmatprep.mubr.bf16.mxu0 0
        %6068 = vmatmul.mubr.bf16.gmra.mrb[0].mxu0 %v5910
        %v6069 = vpop.f32.mrb[0].mxu0
        %v6070 = vadd.f32 %v5858, %v6069
        %v6071 = vpop.f32.mrb[0].mxu0
        %v6072 = vpop.f32.mrb[0].mxu0
        %v6073 = vadd.f32 %v5861, %v6072
        %v6074 = vpop.f32.mrb[0].mxu0
        %6075 = vdwg.mxu0
        %v6076 = vadd.f32 %v5604, %v5950
        %v6077 = vadd.f32 %v5605, %v5953
        %v6078 = vadd.f32 %v5606, %v5958
        %v6079 = vadd.f32 %v5607, %v5961
        %v6080 = vadd.f32 %v5608, %v5966
        %v6081 = vadd.f32 %v5609, %v5969
        %v6082 = vadd.f32 %v5610, %v5974
        %v6083 = vadd.f32 %v5611, %v5977
        %v6084 = vadd.f32 %v5612, %v5982
        %v6085 = vadd.f32 %v5613, %v5985
        %v6086 = vadd.f32 %v5614, %v5990
        %v6087 = vadd.f32 %v5615, %v5993
        %v6088 = vadd.f32 %v5616, %v5998
        %v6089 = vadd.f32 %v5617, %v6001
        %v6090 = vadd.f32 %v5618, %v6006
        %v6091 = vadd.f32 %v5619, %v6009
        %v6092 = vadd.f32 %v5620, %v6014
        %v6093 = vadd.f32 %v5621, %v6017
        %v6094 = vadd.f32 %v5622, %v6022
        %v6095 = vadd.f32 %v5623, %v6025
        %v6096 = vadd.f32 %v5624, %v6030
        %v6097 = vadd.f32 %v5625, %v6033
        %v6098 = vadd.f32 %v5626, %v6038
        %v6099 = vadd.f32 %v5627, %v6041
        %v6100 = vadd.f32 %v5628, %v6046
        %v6101 = vadd.f32 %v5629, %v6049
        %v6102 = vadd.f32 %v5630, %v6054
        %v6103 = vadd.f32 %v5631, %v6057
        %v6104 = vadd.f32 %v5632, %v6062
        %v6105 = vadd.f32 %v5633, %v6065
        %v6106 = vadd.f32 %v5634, %v6070
        %v6107 = vadd.f32 %v5635, %v6073
        %6108 = vst [vmem:[#allocation4] sm:$0xff] %v6076
        %6109 = vst [vmem:[#allocation4 + $0x8] sm:$0xff] %v6077
        %6110 = vst [vmem:[#allocation4 + $0x10] sm:$0xff] %v6078
        %6111 = vst [vmem:[#allocation4 + $0x18] sm:$0xff] %v6079
        %6112 = vst [vmem:[#allocation4 + $0x20] sm:$0xff] %v6080
        %6113 = vst [vmem:[#allocation4 + $0x28] sm:$0xff] %v6081
        %6114 = vst [vmem:[#allocation4 + $0x30] sm:$0xff] %v6082
        %6115 = vst [vmem:[#allocation4 + $0x38] sm:$0xff] %v6083
        %6116 = vst [vmem:[#allocation4 + $0x40] sm:$0xff] %v6084
        %6117 = vst [vmem:[#allocation4 + $0x48] sm:$0xff] %v6085
        %6118 = vst [vmem:[#allocation4 + $0x50] sm:$0xff] %v6086
        %6119 = vst [vmem:[#allocation4 + $0x58] sm:$0xff] %v6087
        %6120 = vst [vmem:[#allocation4 + $0x60] sm:$0xff] %v6088
        %6121 = vst [vmem:[#allocation4 + $0x68] sm:$0xff] %v6089
        %6122 = vst [vmem:[#allocation4 + $0x70] sm:$0xff] %v6090
        %6123 = vst [vmem:[#allocation4 + $0x78] sm:$0xff] %v6091
        %6124 = vst [vmem:[#allocation4 + $0x80] sm:$0xff] %v6092
        %6125 = vst [vmem:[#allocation4 + $0x88] sm:$0xff] %v6093
        %6126 = vst [vmem:[#allocation4 + $0x90] sm:$0xff] %v6094
        %6127 = vst [vmem:[#allocation4 + $0x98] sm:$0xff] %v6095
        %6128 = vst [vmem:[#allocation4 + $0xa0] sm:$0xff] %v6096
        %6129 = vst [vmem:[#allocation4 + $0xa8] sm:$0xff] %v6097
        %6130 = vst [vmem:[#allocation4 + $0xb0] sm:$0xff] %v6098
        %6131 = vst [vmem:[#allocation4 + $0xb8] sm:$0xff] %v6099
        %6132 = vst [vmem:[#allocation4 + $0xc0] sm:$0xff] %v6100
        %6133 = vst [vmem:[#allocation4 + $0xc8] sm:$0xff] %v6101
        %6134 = vst [vmem:[#allocation4 + $0xd0] sm:$0xff] %v6102
        %6135 = vst [vmem:[#allocation4 + $0xd8] sm:$0xff] %v6103
        %6136 = vst [vmem:[#allocation4 + $0xe0] sm:$0xff] %v6104
        %6137 = vst [vmem:[#allocation4 + $0xe8] sm:$0xff] %v6105
        %6138 = vst [vmem:[#allocation4 + $0xf0] sm:$0xff] %v6106
        %6139 = vst [vmem:[#allocation4 + $0xf8] sm:$0xff] %v6107
        %v6140 = vld [vmem:[%s4874 + $0x2] sm:$0xff]
        %v6141 = vld [vmem:[%s4874 + $0xa] sm:$0xff]
        %v6142 = vld [vmem:[%s4874 + $0x1a] sm:$0xff]
        %v6143 = vld [vmem:[%s4874 + $0x22] sm:$0xff]
        %v6144 = vld [vmem:[%s4874 + $0x32] sm:$0xff]
        %v6145 = vld [vmem:[%s4874 + $0x3a] sm:$0xff]
        %v6146 = vld [vmem:[%s4874 + $0x4a] sm:$0xff]
        %v6147 = vld [vmem:[%s4874 + $0x52] sm:$0xff]
        %v6148 = vld [vmem:[%s4874 + $0x62] sm:$0xff]
        %v6149 = vld [vmem:[%s4874 + $0x6a] sm:$0xff]
        %v6150 = vld [vmem:[%s4874 + $0x7a] sm:$0xff]
        %v6151 = vld [vmem:[%s4874 + $0x82] sm:$0xff]
        %v6152 = vld [vmem:[%s4874 + $0x92] sm:$0xff]
        %v6153 = vld [vmem:[%s4874 + $0x9a] sm:$0xff]
        %v6154 = vld [vmem:[%s4874 + $0xaa] sm:$0xff]
        %v6155 = vld [vmem:[%s4874 + $0xb2] sm:$0xff]
        %v6156 = vld [vmem:[%s4874 + $0xc2] sm:$0xff]
        %v6157 = vld [vmem:[%s4874 + $0xca] sm:$0xff]
        %v6158 = vld [vmem:[%s4874 + $0xda] sm:$0xff]
        %v6159 = vld [vmem:[%s4874 + $0xe2] sm:$0xff]
        %v6160 = vld [vmem:[%s4874 + $0xf2] sm:$0xff]
        %v6161 = vld [vmem:[%s4874 + $0xfa] sm:$0xff]
        %v6162 = vld [vmem:[%s4874 + $0x10a] sm:$0xff]
        %v6163 = vld [vmem:[%s4874 + $0x112] sm:$0xff]
        %v6164 = vld [vmem:[%s4874 + $0x122] sm:$0xff]
        %v6165 = vld [vmem:[%s4874 + $0x12a] sm:$0xff]
        %v6166 = vld [vmem:[%s4874 + $0x13a] sm:$0xff]
        %v6167 = vld [vmem:[%s4874 + $0x142] sm:$0xff]
        %v6168 = vld [vmem:[%s4874 + $0x152] sm:$0xff]
        %v6169 = vld [vmem:[%s4874 + $0x15a] sm:$0xff]
        %v6170 = vld [vmem:[%s4874 + $0x16a] sm:$0xff]
        %v6171 = vld [vmem:[%s4874 + $0x172] sm:$0xff]
        %v6172 = vpack.c.bf16 %v6141, %v6140
        %v6173 = vpack.c.bf16 %v6143, %v6142
        %v6174 = vpack.c.bf16 %v6145, %v6144
        %v6175 = vpack.c.bf16 %v6147, %v6146
        %v6176 = vpack.c.bf16 %v6149, %v6148
        %v6177 = vpack.c.bf16 %v6151, %v6150
        %v6178 = vpack.c.bf16 %v6153, %v6152
        %v6179 = vpack.c.bf16 %v6155, %v6154
        %v6180 = vpack.c.bf16 %v6157, %v6156
        %v6181 = vpack.c.bf16 %v6159, %v6158
        %v6182 = vpack.c.bf16 %v6161, %v6160
        %v6183 = vpack.c.bf16 %v6163, %v6162
        %v6184 = vpack.c.bf16 %v6165, %v6164
        %v6185 = vpack.c.bf16 %v6167, %v6166
        %v6186 = vpack.c.bf16 %v6169, %v6168
        %v6187 = vpack.c.bf16 %v6171, %v6170
        %v6188 = vld [vmem:[%s4923 + $0x2] sm:$0xff]
        %v6189 = vld [vmem:[%s4923 + $0xa] sm:$0xff]
        %v6190 = vld [vmem:[%s4923 + $0x1a] sm:$0xff]
        %v6191 = vld [vmem:[%s4923 + $0x22] sm:$0xff]
        %v6192 = vld [vmem:[%s4923 + $0x32] sm:$0xff]
        %v6193 = vld [vmem:[%s4923 + $0x3a] sm:$0xff]
        %v6194 = vld [vmem:[%s4923 + $0x4a] sm:$0xff]
        %v6195 = vld [vmem:[%s4923 + $0x52] sm:$0xff]
        %v6196 = vld [vmem:[%s4923 + $0x62] sm:$0xff]
        %v6197 = vld [vmem:[%s4923 + $0x6a] sm:$0xff]
        %v6198 = vld [vmem:[%s4923 + $0x7a] sm:$0xff]
        %v6199 = vld [vmem:[%s4923 + $0x82] sm:$0xff]
        %v6200 = vld [vmem:[%s4923 + $0x92] sm:$0xff]
        %v6201 = vld [vmem:[%s4923 + $0x9a] sm:$0xff]
        %v6202 = vld [vmem:[%s4923 + $0xaa] sm:$0xff]
        %v6203 = vld [vmem:[%s4923 + $0xb2] sm:$0xff]
        %v6204 = vld [vmem:[%s4923 + $0xc2] sm:$0xff]
        %v6205 = vld [vmem:[%s4923 + $0xca] sm:$0xff]
        %v6206 = vld [vmem:[%s4923 + $0xda] sm:$0xff]
        %v6207 = vld [vmem:[%s4923 + $0xe2] sm:$0xff]
        %v6208 = vld [vmem:[%s4923 + $0xf2] sm:$0xff]
        %v6209 = vld [vmem:[%s4923 + $0xfa] sm:$0xff]
        %v6210 = vld [vmem:[%s4923 + $0x10a] sm:$0xff]
        %v6211 = vld [vmem:[%s4923 + $0x112] sm:$0xff]
        %v6212 = vld [vmem:[%s4923 + $0x122] sm:$0xff]
        %v6213 = vld [vmem:[%s4923 + $0x12a] sm:$0xff]
        %v6214 = vld [vmem:[%s4923 + $0x13a] sm:$0xff]
        %v6215 = vld [vmem:[%s4923 + $0x142] sm:$0xff]
        %v6216 = vld [vmem:[%s4923 + $0x152] sm:$0xff]
        %v6217 = vld [vmem:[%s4923 + $0x15a] sm:$0xff]
        %v6218 = vld [vmem:[%s4923 + $0x16a] sm:$0xff]
        %v6219 = vld [vmem:[%s4923 + $0x172] sm:$0xff]
        %v6220 = vpack.c.bf16 %v6189, %v6188
        %v6221 = vpack.c.bf16 %v6191, %v6190
        %v6222 = vpack.c.bf16 %v6193, %v6192
        %v6223 = vpack.c.bf16 %v6195, %v6194
        %v6224 = vpack.c.bf16 %v6197, %v6196
        %v6225 = vpack.c.bf16 %v6199, %v6198
        %v6226 = vpack.c.bf16 %v6201, %v6200
        %v6227 = vpack.c.bf16 %v6203, %v6202
        %v6228 = vpack.c.bf16 %v6205, %v6204
        %v6229 = vpack.c.bf16 %v6207, %v6206
        %v6230 = vpack.c.bf16 %v6209, %v6208
        %v6231 = vpack.c.bf16 %v6211, %v6210
        %v6232 = vpack.c.bf16 %v6213, %v6212
        %v6233 = vpack.c.bf16 %v6215, %v6214
        %v6234 = vpack.c.bf16 %v6217, %v6216
        %v6235 = vpack.c.bf16 %v6219, %v6218
        %v6236 = vld [vmem:[#allocation4] sm:$0xff]
        %v6237 = vld [vmem:[#allocation4 + $0x8] sm:$0xff]
        %v6238 = vld [vmem:[#allocation4 + $0x10] sm:$0xff]
        %v6239 = vld [vmem:[#allocation4 + $0x18] sm:$0xff]
        %v6240 = vld [vmem:[#allocation4 + $0x20] sm:$0xff]
        %v6241 = vld [vmem:[#allocation4 + $0x28] sm:$0xff]
        %v6242 = vld [vmem:[#allocation4 + $0x30] sm:$0xff]
        %v6243 = vld [vmem:[#allocation4 + $0x38] sm:$0xff]
        %v6244 = vld [vmem:[#allocation4 + $0x40] sm:$0xff]
        %v6245 = vld [vmem:[#allocation4 + $0x48] sm:$0xff]
        %v6246 = vld [vmem:[#allocation4 + $0x50] sm:$0xff]
        %v6247 = vld [vmem:[#allocation4 + $0x58] sm:$0xff]
        %v6248 = vld [vmem:[#allocation4 + $0x60] sm:$0xff]
        %v6249 = vld [vmem:[#allocation4 + $0x68] sm:$0xff]
        %v6250 = vld [vmem:[#allocation4 + $0x70] sm:$0xff]
        %v6251 = vld [vmem:[#allocation4 + $0x78] sm:$0xff]
        %v6252 = vld [vmem:[#allocation4 + $0x80] sm:$0xff]
        %v6253 = vld [vmem:[#allocation4 + $0x88] sm:$0xff]
        %v6254 = vld [vmem:[#allocation4 + $0x90] sm:$0xff]
        %v6255 = vld [vmem:[#allocation4 + $0x98] sm:$0xff]
        %v6256 = vld [vmem:[#allocation4 + $0xa0] sm:$0xff]
        %v6257 = vld [vmem:[#allocation4 + $0xa8] sm:$0xff]
        %v6258 = vld [vmem:[#allocation4 + $0xb0] sm:$0xff]
        %v6259 = vld [vmem:[#allocation4 + $0xb8] sm:$0xff]
        %v6260 = vld [vmem:[#allocation4 + $0xc0] sm:$0xff]
        %v6261 = vld [vmem:[#allocation4 + $0xc8] sm:$0xff]
        %v6262 = vld [vmem:[#allocation4 + $0xd0] sm:$0xff]
        %v6263 = vld [vmem:[#allocation4 + $0xd8] sm:$0xff]
        %v6264 = vld [vmem:[#allocation4 + $0xe0] sm:$0xff]
        %v6265 = vld [vmem:[#allocation4 + $0xe8] sm:$0xff]
        %v6266 = vld [vmem:[#allocation4 + $0xf0] sm:$0xff]
        %v6267 = vld [vmem:[#allocation4 + $0xf8] sm:$0xff]
        %s6268 = scalar_lea.vmem [#allocation8], 16
        %v6269 = vld [vmem:[%s6268] sm:$0x3]
        %s6270 = scalar_lea.vmem %s4, 128
        %v6271 = vld [vmem:[%s6270] sm:$0xf]
        %v6272 = vld [vmem:[%s6270 + $0x4] sm:$0xf]
        %v6273 = vld [vmem:[%s6270 + $0x8] sm:$0xf]
        %v6274 = vld [vmem:[%s6270 + $0xc] sm:$0xf]
        %v6279 = vunpack.c.l.b16 %v6271
        %v6280 = vunpack.c.l.b16 %v6272
        %v6281 = vunpack.c.l.b16 %v6273
        %v6282 = vunpack.c.l.b16 %v6274
        %v6283 = vpack.c.b16 %v6280, %v6279
        %v6284 = vpack.c.b16 %v6282, %v6281
        %v6288 = vsel %vm823, %v6220, 0
        %v6291 = vsel %vm823, %v6221, 0
        %v6294 = vsel %vm823, %v6222, 0
        %v6297 = vsel %vm823, %v6223, 0
        %v6300 = vsel %vm823, %v6224, 0
        %v6303 = vsel %vm823, %v6225, 0
        %v6306 = vsel %vm823, %v6226, 0
        %v6309 = vsel %vm823, %v6227, 0
        %v6312 = vsel %vm823, %v6228, 0
        %v6315 = vsel %vm823, %v6229, 0
        %v6318 = vsel %vm823, %v6230, 0
        %v6321 = vsel %vm823, %v6231, 0
        %v6324 = vsel %vm823, %v6232, 0
        %v6327 = vsel %vm823, %v6233, 0
        %v6330 = vsel %vm823, %v6234, 0
        %v6333 = vsel %vm823, %v6235, 0
        %6335 = vmatprep.subr.bf16.mxu0 0
        %6336 = vmatpush1.bf16.msra.mxu0 %v6283
        %6337 = vmatprep.subr.bf16.mxu0 0
        %6338 = vmatpush1.bf16.msra.mxu0 %v6284
        %6339 = vmatprep.subr.bf16.mxu0 0
        %6340 = vmatpush1.bf16.msra.mxu0 0
        %6341 = vmatprep.subr.bf16.mxu0 0
        %6342 = vmatpush1.bf16.msra.mxu0 0
        %6343 = vmatprep.subr.bf16.mxu0 0
        %6344 = vmatpush1.bf16.msra.mxu0 0
        %6345 = vmatprep.subr.bf16.mxu0 0
        %6346 = vmatpush1.bf16.msra.mxu0 0
        %6347 = vmatprep.subr.bf16.mxu0 0
        %6348 = vmatpush1.bf16.msra.mxu0 0
        %6349 = vmatprep.subr.bf16.mxu0 0
        %6350 = vmatpush1.bf16.msra.mxu0 0
        %6351 = vmatprep.subr.bf16.mxu0 0
        %6352 = vmatpush1.bf16.msra.mxu0 0
        %6353 = vmatprep.subr.bf16.mxu0 0
        %6354 = vmatpush1.bf16.msra.mxu0 0
        %6355 = vmatprep.subr.bf16.mxu0 0
        %6356 = vmatpush1.bf16.msra.mxu0 0
        %6357 = vmatprep.subr.bf16.mxu0 0
        %6358 = vmatpush1.bf16.msra.mxu0 0
        %6359 = vmatprep.subr.bf16.mxu0 0
        %6360 = vmatpush1.bf16.msra.mxu0 0
        %6361 = vmatprep.subr.bf16.mxu0 0
        %6362 = vmatpush1.bf16.msra.mxu0 0
        %6363 = vmatprep.subr.bf16.mxu0 0
        %6364 = vmatpush1.bf16.msra.mxu0 0
        %6365 = vmatprep.subr.bf16.mxu0 0
        %6366 = vmatpush1.bf16.msra.mxu0 0
        %6367 = vmatprep.mubr.bf16.mxu0 0
        %6368 = vmatmul.mubr.bf16.gmra.mrb[0].mxu0 %v6288
        %v6369 = vpop.f32.mrb[0].mxu0
        %v6370 = vadd.f32 0.0, %v6369
        %v6371 = vpop.f32.mrb[0].mxu0
        %v6372 = vpop.f32.mrb[0].mxu0
        %v6373 = vadd.f32 0.0, %v6372
        %v6374 = vpop.f32.mrb[0].mxu0
        %6375 = vmatprep.mubr.bf16.mxu0 0
        %6376 = vmatmul.mubr.bf16.gmra.mrb[0].mxu0 %v6291
        %v6377 = vpop.f32.mrb[0].mxu0
        %v6378 = vadd.f32 0.0, %v6377
        %v6379 = vpop.f32.mrb[0].mxu0
        %v6380 = vpop.f32.mrb[0].mxu0
        %v6381 = vadd.f32 0.0, %v6380
        %v6382 = vpop.f32.mrb[0].mxu0
        %6383 = vmatprep.mubr.bf16.mxu0 0
        %6384 = vmatmul.mubr.bf16.gmra.mrb[0].mxu0 %v6294
        %v6385 = vpop.f32.mrb[0].mxu0
        %v6386 = vadd.f32 0.0, %v6385
        %v6387 = vpop.f32.mrb[0].mxu0
        %v6388 = vpop.f32.mrb[0].mxu0
        %v6389 = vadd.f32 0.0, %v6388
        %v6390 = vpop.f32.mrb[0].mxu0
        %6391 = vmatprep.mubr.bf16.mxu0 0
        %6392 = vmatmul.mubr.bf16.gmra.mrb[0].mxu0 %v6297
        %v6393 = vpop.f32.mrb[0].mxu0
        %v6394 = vadd.f32 0.0, %v6393
        %v6395 = vpop.f32.mrb[0].mxu0
        %v6396 = vpop.f32.mrb[0].mxu0
        %v6397 = vadd.f32 0.0, %v6396
        %v6398 = vpop.f32.mrb[0].mxu0
        %6399 = vmatprep.mubr.bf16.mxu0 0
        %6400 = vmatmul.mubr.bf16.gmra.mrb[0].mxu0 %v6300
        %v6401 = vpop.f32.mrb[0].mxu0
        %v6402 = vadd.f32 0.0, %v6401
        %v6403 = vpop.f32.mrb[0].mxu0
        %v6404 = vpop.f32.mrb[0].mxu0
        %v6405 = vadd.f32 0.0, %v6404
        %v6406 = vpop.f32.mrb[0].mxu0
        %6407 = vmatprep.mubr.bf16.mxu0 0
        %6408 = vmatmul.mubr.bf16.gmra.mrb[0].mxu0 %v6303
        %v6409 = vpop.f32.mrb[0].mxu0
        %v6410 = vadd.f32 0.0, %v6409
        %v6411 = vpop.f32.mrb[0].mxu0
        %v6412 = vpop.f32.mrb[0].mxu0
        %v6413 = vadd.f32 0.0, %v6412
        %v6414 = vpop.f32.mrb[0].mxu0
        %6415 = vmatprep.mubr.bf16.mxu0 0
        %6416 = vmatmul.mubr.bf16.gmra.mrb[0].mxu0 %v6306
        %v6417 = vpop.f32.mrb[0].mxu0
        %v6418 = vadd.f32 0.0, %v6417
        %v6419 = vpop.f32.mrb[0].mxu0
        %v6420 = vpop.f32.mrb[0].mxu0
        %v6421 = vadd.f32 0.0, %v6420
        %v6422 = vpop.f32.mrb[0].mxu0
        %6423 = vmatprep.mubr.bf16.mxu0 0
        %6424 = vmatmul.mubr.bf16.gmra.mrb[0].mxu0 %v6309
        %v6425 = vpop.f32.mrb[0].mxu0
        %v6426 = vadd.f32 0.0, %v6425
        %v6427 = vpop.f32.mrb[0].mxu0
        %v6428 = vpop.f32.mrb[0].mxu0
        %v6429 = vadd.f32 0.0, %v6428
        %v6430 = vpop.f32.mrb[0].mxu0
        %6431 = vmatprep.mubr.bf16.mxu0 0
        %6432 = vmatmul.mubr.bf16.gmra.mrb[0].mxu0 %v6312
        %v6433 = vpop.f32.mrb[0].mxu0
        %v6434 = vadd.f32 0.0, %v6433
        %v6435 = vpop.f32.mrb[0].mxu0
        %v6436 = vpop.f32.mrb[0].mxu0
        %v6437 = vadd.f32 0.0, %v6436
        %v6438 = vpop.f32.mrb[0].mxu0
        %6439 = vmatprep.mubr.bf16.mxu0 0
        %6440 = vmatmul.mubr.bf16.gmra.mrb[0].mxu0 %v6315
        %v6441 = vpop.f32.mrb[0].mxu0
        %v6442 = vadd.f32 0.0, %v6441
        %v6443 = vpop.f32.mrb[0].mxu0
        %v6444 = vpop.f32.mrb[0].mxu0
        %v6445 = vadd.f32 0.0, %v6444
        %v6446 = vpop.f32.mrb[0].mxu0
        %6447 = vmatprep.mubr.bf16.mxu0 0
        %6448 = vmatmul.mubr.bf16.gmra.mrb[0].mxu0 %v6318
        %v6449 = vpop.f32.mrb[0].mxu0
        %v6450 = vadd.f32 0.0, %v6449
        %v6451 = vpop.f32.mrb[0].mxu0
        %v6452 = vpop.f32.mrb[0].mxu0
        %v6453 = vadd.f32 0.0, %v6452
        %v6454 = vpop.f32.mrb[0].mxu0
        %6455 = vmatprep.mubr.bf16.mxu0 0
        %6456 = vmatmul.mubr.bf16.gmra.mrb[0].mxu0 %v6321
        %v6457 = vpop.f32.mrb[0].mxu0
        %v6458 = vadd.f32 0.0, %v6457
        %v6459 = vpop.f32.mrb[0].mxu0
        %v6460 = vpop.f32.mrb[0].mxu0
        %v6461 = vadd.f32 0.0, %v6460
        %v6462 = vpop.f32.mrb[0].mxu0
        %6463 = vmatprep.mubr.bf16.mxu0 0
        %6464 = vmatmul.mubr.bf16.gmra.mrb[0].mxu0 %v6324
        %v6465 = vpop.f32.mrb[0].mxu0
        %v6466 = vadd.f32 0.0, %v6465
        %v6467 = vpop.f32.mrb[0].mxu0
        %v6468 = vpop.f32.mrb[0].mxu0
        %v6469 = vadd.f32 0.0, %v6468
        %v6470 = vpop.f32.mrb[0].mxu0
        %6471 = vmatprep.mubr.bf16.mxu0 0
        %6472 = vmatmul.mubr.bf16.gmra.mrb[0].mxu0 %v6327
        %v6473 = vpop.f32.mrb[0].mxu0
        %v6474 = vadd.f32 0.0, %v6473
        %v6475 = vpop.f32.mrb[0].mxu0
        %v6476 = vpop.f32.mrb[0].mxu0
        %v6477 = vadd.f32 0.0, %v6476
        %v6478 = vpop.f32.mrb[0].mxu0
        %6479 = vmatprep.mubr.bf16.mxu0 0
        %6480 = vmatmul.mubr.bf16.gmra.mrb[0].mxu0 %v6330
        %v6481 = vpop.f32.mrb[0].mxu0
        %v6482 = vadd.f32 0.0, %v6481
        %v6483 = vpop.f32.mrb[0].mxu0
        %v6484 = vpop.f32.mrb[0].mxu0
        %v6485 = vadd.f32 0.0, %v6484
        %v6486 = vpop.f32.mrb[0].mxu0
        %6487 = vmatprep.mubr.bf16.mxu0 0
        %6488 = vmatmul.mubr.bf16.gmra.mrb[0].mxu0 %v6333
        %v6489 = vpop.f32.mrb[0].mxu0
        %v6490 = vadd.f32 0.0, %v6489
        %v6491 = vpop.f32.mrb[0].mxu0
        %v6492 = vpop.f32.mrb[0].mxu0
        %v6493 = vadd.f32 0.0, %v6492
        %v6494 = vpop.f32.mrb[0].mxu0
        %6495 = vdwg.mxu0
        %v6497 = vsel %vm614, %v6172, 0
        %v6500 = vsel %vm614, %v6173, 0
        %v6503 = vsel %vm614, %v6174, 0
        %v6506 = vsel %vm614, %v6175, 0
        %v6509 = vsel %vm614, %v6176, 0
        %v6512 = vsel %vm614, %v6177, 0
        %v6515 = vsel %vm614, %v6178, 0
        %v6518 = vsel %vm614, %v6179, 0
        %v6521 = vsel %vm614, %v6180, 0
        %v6524 = vsel %vm614, %v6181, 0
        %v6527 = vsel %vm614, %v6182, 0
        %v6530 = vsel %vm614, %v6183, 0
        %v6533 = vsel %vm614, %v6184, 0
        %v6536 = vsel %vm614, %v6185, 0
        %v6539 = vsel %vm614, %v6186, 0
        %v6542 = vsel %vm614, %v6187, 0
        %v6545 = vsel %vm1485, %v6269, 0
        %6547 = vmatprep.subr.bf16.mxu0 0
        %6548 = vmatpush1.bf16.msra.mxu0 %v6545
        %6549 = vmatprep.subr.bf16.mxu0 0
        %6550 = vmatpush1.bf16.msra.mxu0 0
        %6551 = vmatprep.subr.bf16.mxu0 0
        %6552 = vmatpush1.bf16.msra.mxu0 0
        %6553 = vmatprep.subr.bf16.mxu0 0
        %6554 = vmatpush1.bf16.msra.mxu0 0
        %6555 = vmatprep.subr.bf16.mxu0 0
        %6556 = vmatpush1.bf16.msra.mxu0 0
        %6557 = vmatprep.subr.bf16.mxu0 0
        %6558 = vmatpush1.bf16.msra.mxu0 0
        %6559 = vmatprep.subr.bf16.mxu0 0
        %6560 = vmatpush1.bf16.msra.mxu0 0
        %6561 = vmatprep.subr.bf16.mxu0 0
        %6562 = vmatpush1.bf16.msra.mxu0 0
        %6563 = vmatprep.subr.bf16.mxu0 0
        %6564 = vmatpush1.bf16.msra.mxu0 0
        %6565 = vmatprep.subr.bf16.mxu0 0
        %6566 = vmatpush1.bf16.msra.mxu0 0
        %6567 = vmatprep.subr.bf16.mxu0 0
        %6568 = vmatpush1.bf16.msra.mxu0 0
        %6569 = vmatprep.subr.bf16.mxu0 0
        %6570 = vmatpush1.bf16.msra.mxu0 0
        %6571 = vmatprep.subr.bf16.mxu0 0
        %6572 = vmatpush1.bf16.msra.mxu0 0
        %6573 = vmatprep.subr.bf16.mxu0 0
        %6574 = vmatpush1.bf16.msra.mxu0 0
        %6575 = vmatprep.subr.bf16.mxu0 0
        %6576 = vmatpush1.bf16.msra.mxu0 0
        %6577 = vmatprep.subr.bf16.mxu0 0
        %6578 = vmatpush1.bf16.msra.mxu0 0
        %6579 = vmatprep.mubr.bf16.mxu0 0
        %6580 = vmatmul.mubr.bf16.gmra.mrb[0].mxu0 %v6497
        %v6581 = vpop.f32.mrb[0].mxu0
        %v6582 = vadd.f32 %v6370, %v6581
        %v6583 = vpop.f32.mrb[0].mxu0
        %v6584 = vpop.f32.mrb[0].mxu0
        %v6585 = vadd.f32 %v6373, %v6584
        %v6586 = vpop.f32.mrb[0].mxu0
        %6587 = vmatprep.mubr.bf16.mxu0 0
        %6588 = vmatmul.mubr.bf16.gmra.mrb[0].mxu0 %v6500
        %v6589 = vpop.f32.mrb[0].mxu0
        %v6590 = vadd.f32 %v6378, %v6589
        %v6591 = vpop.f32.mrb[0].mxu0
        %v6592 = vpop.f32.mrb[0].mxu0
        %v6593 = vadd.f32 %v6381, %v6592
        %v6594 = vpop.f32.mrb[0].mxu0
        %6595 = vmatprep.mubr.bf16.mxu0 0
        %6596 = vmatmul.mubr.bf16.gmra.mrb[0].mxu0 %v6503
        %v6597 = vpop.f32.mrb[0].mxu0
        %v6598 = vadd.f32 %v6386, %v6597
        %v6599 = vpop.f32.mrb[0].mxu0
        %v6600 = vpop.f32.mrb[0].mxu0
        %v6601 = vadd.f32 %v6389, %v6600
        %v6602 = vpop.f32.mrb[0].mxu0
        %6603 = vmatprep.mubr.bf16.mxu0 0
        %6604 = vmatmul.mubr.bf16.gmra.mrb[0].mxu0 %v6506
        %v6605 = vpop.f32.mrb[0].mxu0
        %v6606 = vadd.f32 %v6394, %v6605
        %v6607 = vpop.f32.mrb[0].mxu0
        %v6608 = vpop.f32.mrb[0].mxu0
        %v6609 = vadd.f32 %v6397, %v6608
        %v6610 = vpop.f32.mrb[0].mxu0
        %6611 = vmatprep.mubr.bf16.mxu0 0
        %6612 = vmatmul.mubr.bf16.gmra.mrb[0].mxu0 %v6509
        %v6613 = vpop.f32.mrb[0].mxu0
        %v6614 = vadd.f32 %v6402, %v6613
        %v6615 = vpop.f32.mrb[0].mxu0
        %v6616 = vpop.f32.mrb[0].mxu0
        %v6617 = vadd.f32 %v6405, %v6616
        %v6618 = vpop.f32.mrb[0].mxu0
        %6619 = vmatprep.mubr.bf16.mxu0 0
        %6620 = vmatmul.mubr.bf16.gmra.mrb[0].mxu0 %v6512
        %v6621 = vpop.f32.mrb[0].mxu0
        %v6622 = vadd.f32 %v6410, %v6621
        %v6623 = vpop.f32.mrb[0].mxu0
        %v6624 = vpop.f32.mrb[0].mxu0
        %v6625 = vadd.f32 %v6413, %v6624
        %v6626 = vpop.f32.mrb[0].mxu0
        %6627 = vmatprep.mubr.bf16.mxu0 0
        %6628 = vmatmul.mubr.bf16.gmra.mrb[0].mxu0 %v6515
        %v6629 = vpop.f32.mrb[0].mxu0
        %v6630 = vadd.f32 %v6418, %v6629
        %v6631 = vpop.f32.mrb[0].mxu0
        %v6632 = vpop.f32.mrb[0].mxu0
        %v6633 = vadd.f32 %v6421, %v6632
        %v6634 = vpop.f32.mrb[0].mxu0
        %6635 = vmatprep.mubr.bf16.mxu0 0
        %6636 = vmatmul.mubr.bf16.gmra.mrb[0].mxu0 %v6518
        %v6637 = vpop.f32.mrb[0].mxu0
        %v6638 = vadd.f32 %v6426, %v6637
        %v6639 = vpop.f32.mrb[0].mxu0
        %v6640 = vpop.f32.mrb[0].mxu0
        %v6641 = vadd.f32 %v6429, %v6640
        %v6642 = vpop.f32.mrb[0].mxu0
        %6643 = vmatprep.mubr.bf16.mxu0 0
        %6644 = vmatmul.mubr.bf16.gmra.mrb[0].mxu0 %v6521
        %v6645 = vpop.f32.mrb[0].mxu0
        %v6646 = vadd.f32 %v6434, %v6645
        %v6647 = vpop.f32.mrb[0].mxu0
        %v6648 = vpop.f32.mrb[0].mxu0
        %v6649 = vadd.f32 %v6437, %v6648
        %v6650 = vpop.f32.mrb[0].mxu0
        %6651 = vmatprep.mubr.bf16.mxu0 0
        %6652 = vmatmul.mubr.bf16.gmra.mrb[0].mxu0 %v6524
        %v6653 = vpop.f32.mrb[0].mxu0
        %v6654 = vadd.f32 %v6442, %v6653
        %v6655 = vpop.f32.mrb[0].mxu0
        %v6656 = vpop.f32.mrb[0].mxu0
        %v6657 = vadd.f32 %v6445, %v6656
        %v6658 = vpop.f32.mrb[0].mxu0
        %6659 = vmatprep.mubr.bf16.mxu0 0
        %6660 = vmatmul.mubr.bf16.gmra.mrb[0].mxu0 %v6527
        %v6661 = vpop.f32.mrb[0].mxu0
        %v6662 = vadd.f32 %v6450, %v6661
        %v6663 = vpop.f32.mrb[0].mxu0
        %v6664 = vpop.f32.mrb[0].mxu0
        %v6665 = vadd.f32 %v6453, %v6664
        %v6666 = vpop.f32.mrb[0].mxu0
        %6667 = vmatprep.mubr.bf16.mxu0 0
        %6668 = vmatmul.mubr.bf16.gmra.mrb[0].mxu0 %v6530
        %v6669 = vpop.f32.mrb[0].mxu0
        %v6670 = vadd.f32 %v6458, %v6669
        %v6671 = vpop.f32.mrb[0].mxu0
        %v6672 = vpop.f32.mrb[0].mxu0
        %v6673 = vadd.f32 %v6461, %v6672
        %v6674 = vpop.f32.mrb[0].mxu0
        %6675 = vmatprep.mubr.bf16.mxu0 0
        %6676 = vmatmul.mubr.bf16.gmra.mrb[0].mxu0 %v6533
        %v6677 = vpop.f32.mrb[0].mxu0
        %v6678 = vadd.f32 %v6466, %v6677
        %v6679 = vpop.f32.mrb[0].mxu0
        %v6680 = vpop.f32.mrb[0].mxu0
        %v6681 = vadd.f32 %v6469, %v6680
        %v6682 = vpop.f32.mrb[0].mxu0
        %6683 = vmatprep.mubr.bf16.mxu0 0
        %6684 = vmatmul.mubr.bf16.gmra.mrb[0].mxu0 %v6536
        %v6685 = vpop.f32.mrb[0].mxu0
        %v6686 = vadd.f32 %v6474, %v6685
        %v6687 = vpop.f32.mrb[0].mxu0
        %v6688 = vpop.f32.mrb[0].mxu0
        %v6689 = vadd.f32 %v6477, %v6688
        %v6690 = vpop.f32.mrb[0].mxu0
        %6691 = vmatprep.mubr.bf16.mxu0 0
        %6692 = vmatmul.mubr.bf16.gmra.mrb[0].mxu0 %v6539
        %v6693 = vpop.f32.mrb[0].mxu0
        %v6694 = vadd.f32 %v6482, %v6693
        %v6695 = vpop.f32.mrb[0].mxu0
        %v6696 = vpop.f32.mrb[0].mxu0
        %v6697 = vadd.f32 %v6485, %v6696
        %v6698 = vpop.f32.mrb[0].mxu0
        %6699 = vmatprep.mubr.bf16.mxu0 0
        %6700 = vmatmul.mubr.bf16.gmra.mrb[0].mxu0 %v6542
        %v6701 = vpop.f32.mrb[0].mxu0
        %v6702 = vadd.f32 %v6490, %v6701
        %v6703 = vpop.f32.mrb[0].mxu0
        %v6704 = vpop.f32.mrb[0].mxu0
        %v6705 = vadd.f32 %v6493, %v6704
        %v6706 = vpop.f32.mrb[0].mxu0
        %6707 = vdwg.mxu0
        %v6708 = vadd.f32 %v6236, %v6582
        %v6709 = vadd.f32 %v6237, %v6585
        %v6710 = vadd.f32 %v6238, %v6590
        %v6711 = vadd.f32 %v6239, %v6593
        %v6712 = vadd.f32 %v6240, %v6598
        %v6713 = vadd.f32 %v6241, %v6601
        %v6714 = vadd.f32 %v6242, %v6606
        %v6715 = vadd.f32 %v6243, %v6609
        %v6716 = vadd.f32 %v6244, %v6614
        %v6717 = vadd.f32 %v6245, %v6617
        %v6718 = vadd.f32 %v6246, %v6622
        %v6719 = vadd.f32 %v6247, %v6625
        %v6720 = vadd.f32 %v6248, %v6630
        %v6721 = vadd.f32 %v6249, %v6633
        %v6722 = vadd.f32 %v6250, %v6638
        %v6723 = vadd.f32 %v6251, %v6641
        %v6724 = vadd.f32 %v6252, %v6646
        %v6725 = vadd.f32 %v6253, %v6649
        %v6726 = vadd.f32 %v6254, %v6654
        %v6727 = vadd.f32 %v6255, %v6657
        %v6728 = vadd.f32 %v6256, %v6662
        %v6729 = vadd.f32 %v6257, %v6665
        %v6730 = vadd.f32 %v6258, %v6670
        %v6731 = vadd.f32 %v6259, %v6673
        %v6732 = vadd.f32 %v6260, %v6678
        %v6733 = vadd.f32 %v6261, %v6681
        %v6734 = vadd.f32 %v6262, %v6686
        %v6735 = vadd.f32 %v6263, %v6689
        %v6736 = vadd.f32 %v6264, %v6694
        %v6737 = vadd.f32 %v6265, %v6697
        %v6738 = vadd.f32 %v6266, %v6702
        %v6739 = vadd.f32 %v6267, %v6705
        %6740 = vst [vmem:[#allocation4] sm:$0xff] %v6708
        %6741 = vst [vmem:[#allocation4 + $0x8] sm:$0xff] %v6709
        %6742 = vst [vmem:[#allocation4 + $0x10] sm:$0xff] %v6710
        %6743 = vst [vmem:[#allocation4 + $0x18] sm:$0xff] %v6711
        %6744 = vst [vmem:[#allocation4 + $0x20] sm:$0xff] %v6712
        %6745 = vst [vmem:[#allocation4 + $0x28] sm:$0xff] %v6713
        %6746 = vst [vmem:[#allocation4 + $0x30] sm:$0xff] %v6714
        %6747 = vst [vmem:[#allocation4 + $0x38] sm:$0xff] %v6715
        %6748 = vst [vmem:[#allocation4 + $0x40] sm:$0xff] %v6716
        %6749 = vst [vmem:[#allocation4 + $0x48] sm:$0xff] %v6717
        %6750 = vst [vmem:[#allocation4 + $0x50] sm:$0xff] %v6718
        %6751 = vst [vmem:[#allocation4 + $0x58] sm:$0xff] %v6719
        %6752 = vst [vmem:[#allocation4 + $0x60] sm:$0xff] %v6720
        %6753 = vst [vmem:[#allocation4 + $0x68] sm:$0xff] %v6721
        %6754 = vst [vmem:[#allocation4 + $0x70] sm:$0xff] %v6722
        %6755 = vst [vmem:[#allocation4 + $0x78] sm:$0xff] %v6723
        %6756 = vst [vmem:[#allocation4 + $0x80] sm:$0xff] %v6724
        %6757 = vst [vmem:[#allocation4 + $0x88] sm:$0xff] %v6725
        %6758 = vst [vmem:[#allocation4 + $0x90] sm:$0xff] %v6726
        %6759 = vst [vmem:[#allocation4 + $0x98] sm:$0xff] %v6727
        %6760 = vst [vmem:[#allocation4 + $0xa0] sm:$0xff] %v6728
        %6761 = vst [vmem:[#allocation4 + $0xa8] sm:$0xff] %v6729
        %6762 = vst [vmem:[#allocation4 + $0xb0] sm:$0xff] %v6730
        %6763 = vst [vmem:[#allocation4 + $0xb8] sm:$0xff] %v6731
        %6764 = vst [vmem:[#allocation4 + $0xc0] sm:$0xff] %v6732
        %6765 = vst [vmem:[#allocation4 + $0xc8] sm:$0xff] %v6733
        %6766 = vst [vmem:[#allocation4 + $0xd0] sm:$0xff] %v6734
        %6767 = vst [vmem:[#allocation4 + $0xd8] sm:$0xff] %v6735
        %6768 = vst [vmem:[#allocation4 + $0xe0] sm:$0xff] %v6736
        %6769 = vst [vmem:[#allocation4 + $0xe8] sm:$0xff] %v6737
        %6770 = vst [vmem:[#allocation4 + $0xf0] sm:$0xff] %v6738
        %6771 = vst [vmem:[#allocation4 + $0xf8] sm:$0xff] %v6739
        %v6772 = vld [vmem:[#allocation4] sm:$0xff]
        %v6773 = vld [vmem:[#allocation4 + $0x8] sm:$0xff]
        %v6774 = vld [vmem:[#allocation4 + $0x10] sm:$0xff]
        %v6775 = vld [vmem:[#allocation4 + $0x18] sm:$0xff]
        %v6776 = vld [vmem:[#allocation4 + $0x20] sm:$0xff]
        %v6777 = vld [vmem:[#allocation4 + $0x28] sm:$0xff]
        %v6778 = vld [vmem:[#allocation4 + $0x30] sm:$0xff]
        %v6779 = vld [vmem:[#allocation4 + $0x38] sm:$0xff]
        %v6780 = vld [vmem:[#allocation4 + $0x40] sm:$0xff]
        %v6781 = vld [vmem:[#allocation4 + $0x48] sm:$0xff]
        %v6782 = vld [vmem:[#allocation4 + $0x50] sm:$0xff]
        %v6783 = vld [vmem:[#allocation4 + $0x58] sm:$0xff]
        %v6784 = vld [vmem:[#allocation4 + $0x60] sm:$0xff]
        %v6785 = vld [vmem:[#allocation4 + $0x68] sm:$0xff]
        %v6786 = vld [vmem:[#allocation4 + $0x70] sm:$0xff]
        %v6787 = vld [vmem:[#allocation4 + $0x78] sm:$0xff]
        %v6788 = vld [vmem:[#allocation4 + $0x80] sm:$0xff]
        %v6789 = vld [vmem:[#allocation4 + $0x88] sm:$0xff]
        %v6790 = vld [vmem:[#allocation4 + $0x90] sm:$0xff]
        %v6791 = vld [vmem:[#allocation4 + $0x98] sm:$0xff]
        %v6792 = vld [vmem:[#allocation4 + $0xa0] sm:$0xff]
        %v6793 = vld [vmem:[#allocation4 + $0xa8] sm:$0xff]
        %v6794 = vld [vmem:[#allocation4 + $0xb0] sm:$0xff]
        %v6795 = vld [vmem:[#allocation4 + $0xb8] sm:$0xff]
        %v6796 = vld [vmem:[#allocation4 + $0xc0] sm:$0xff]
        %v6797 = vld [vmem:[#allocation4 + $0xc8] sm:$0xff]
        %v6798 = vld [vmem:[#allocation4 + $0xd0] sm:$0xff]
        %v6799 = vld [vmem:[#allocation4 + $0xd8] sm:$0xff]
        %v6800 = vld [vmem:[#allocation4 + $0xe0] sm:$0xff]
        %v6801 = vld [vmem:[#allocation4 + $0xe8] sm:$0xff]
        %v6802 = vld [vmem:[#allocation4 + $0xf0] sm:$0xff]
        %v6803 = vld [vmem:[#allocation4 + $0xf8] sm:$0xff]
        %v6804 = vtanh.pop %v6772
        %v6805 = vtanh.pop %v6773
        %v6806 = vtanh.pop %v6774
        %v6807 = vtanh.pop %v6775
        %v6808 = vtanh.pop %v6776
        %v6809 = vtanh.pop %v6777
        %v6810 = vtanh.pop %v6778
        %v6811 = vtanh.pop %v6779
        %v6812 = vtanh.pop %v6780
        %v6813 = vtanh.pop %v6781
        %v6814 = vtanh.pop %v6782
        %v6815 = vtanh.pop %v6783
        %v6816 = vtanh.pop %v6784
        %v6817 = vtanh.pop %v6785
        %v6818 = vtanh.pop %v6786
        %v6819 = vtanh.pop %v6787
        %v6820 = vtanh.pop %v6788
        %v6821 = vtanh.pop %v6789
        %v6822 = vtanh.pop %v6790
        %v6823 = vtanh.pop %v6791
        %v6824 = vtanh.pop %v6792
        %v6825 = vtanh.pop %v6793
        %v6826 = vtanh.pop %v6794
        %v6827 = vtanh.pop %v6795
        %v6828 = vtanh.pop %v6796
        %v6829 = vtanh.pop %v6797
        %v6830 = vtanh.pop %v6798
        %v6831 = vtanh.pop %v6799
        %v6832 = vtanh.pop %v6800
        %v6833 = vtanh.pop %v6801
        %v6834 = vtanh.pop %v6802
        %v6835 = vtanh.pop %v6803
        %v6836 = vadd.f32 %v6804, 1.0
        %v6837 = vadd.f32 %v6805, 1.0
        %v6838 = vadd.f32 %v6806, 1.0
        %v6839 = vadd.f32 %v6807, 1.0
        %v6840 = vadd.f32 %v6808, 1.0
        %v6841 = vadd.f32 %v6809, 1.0
        %v6842 = vadd.f32 %v6810, 1.0
        %v6843 = vadd.f32 %v6811, 1.0
        %v6844 = vadd.f32 %v6812, 1.0
        %v6845 = vadd.f32 %v6813, 1.0
        %v6846 = vadd.f32 %v6814, 1.0
        %v6847 = vadd.f32 %v6815, 1.0
        %v6848 = vadd.f32 %v6816, 1.0
        %v6849 = vadd.f32 %v6817, 1.0
        %v6850 = vadd.f32 %v6818, 1.0
        %v6851 = vadd.f32 %v6819, 1.0
        %v6852 = vadd.f32 %v6820, 1.0
        %v6853 = vadd.f32 %v6821, 1.0
        %v6854 = vadd.f32 %v6822, 1.0
        %v6855 = vadd.f32 %v6823, 1.0
        %v6856 = vadd.f32 %v6824, 1.0
        %v6857 = vadd.f32 %v6825, 1.0
        %v6858 = vadd.f32 %v6826, 1.0
        %v6859 = vadd.f32 %v6827, 1.0
        %v6860 = vadd.f32 %v6828, 1.0
        %v6861 = vadd.f32 %v6829, 1.0
        %v6862 = vadd.f32 %v6830, 1.0
        %v6863 = vadd.f32 %v6831, 1.0
        %v6864 = vadd.f32 %v6832, 1.0
        %v6865 = vadd.f32 %v6833, 1.0
        %v6866 = vadd.f32 %v6834, 1.0
        %v6867 = vadd.f32 %v6835, 1.0
        %v6868 = vmul.f32 %v6836, 0.5
        %v6869 = vmul.f32 %v6837, 0.5
        %v6870 = vmul.f32 %v6838, 0.5
        %v6871 = vmul.f32 %v6839, 0.5
        %v6872 = vmul.f32 %v6840, 0.5
        %v6873 = vmul.f32 %v6841, 0.5
        %v6874 = vmul.f32 %v6842, 0.5
        %v6875 = vmul.f32 %v6843, 0.5
        %v6876 = vmul.f32 %v6844, 0.5
        %v6877 = vmul.f32 %v6845, 0.5
        %v6878 = vmul.f32 %v6846, 0.5
        %v6879 = vmul.f32 %v6847, 0.5
        %v6880 = vmul.f32 %v6848, 0.5
        %v6881 = vmul.f32 %v6849, 0.5
        %v6882 = vmul.f32 %v6850, 0.5
        %v6883 = vmul.f32 %v6851, 0.5
        %v6884 = vmul.f32 %v6852, 0.5
        %v6885 = vmul.f32 %v6853, 0.5
        %v6886 = vmul.f32 %v6854, 0.5
        %v6887 = vmul.f32 %v6855, 0.5
        %v6888 = vmul.f32 %v6856, 0.5
        %v6889 = vmul.f32 %v6857, 0.5
        %v6890 = vmul.f32 %v6858, 0.5
        %v6891 = vmul.f32 %v6859, 0.5
        %v6892 = vmul.f32 %v6860, 0.5
        %v6893 = vmul.f32 %v6861, 0.5
        %v6894 = vmul.f32 %v6862, 0.5
        %v6895 = vmul.f32 %v6863, 0.5
        %v6896 = vmul.f32 %v6864, 0.5
        %v6897 = vmul.f32 %v6865, 0.5
        %v6898 = vmul.f32 %v6866, 0.5
        %v6899 = vmul.f32 %v6867, 0.5
        %v6900 = vld [vmem:[%s407] sm:$0xff]
        %v6901 = vld [vmem:[%s407 + $0x8] sm:$0xff]
        %v6902 = vld [vmem:[%s407 + $0x10] sm:$0xff]
        %v6903 = vld [vmem:[%s407 + $0x18] sm:$0xff]
        %v6904 = vld [vmem:[%s407 + $0x20] sm:$0xff]
        %v6905 = vld [vmem:[%s407 + $0x28] sm:$0xff]
        %v6906 = vld [vmem:[%s407 + $0x30] sm:$0xff]
        %v6907 = vld [vmem:[%s407 + $0x38] sm:$0xff]
        %v6908 = vld [vmem:[%s407 + $0x40] sm:$0xff]
        %v6909 = vld [vmem:[%s407 + $0x48] sm:$0xff]
        %v6910 = vld [vmem:[%s407 + $0x50] sm:$0xff]
        %v6911 = vld [vmem:[%s407 + $0x58] sm:$0xff]
        %v6912 = vld [vmem:[%s407 + $0x60] sm:$0xff]
        %v6913 = vld [vmem:[%s407 + $0x68] sm:$0xff]
        %v6914 = vld [vmem:[%s407 + $0x70] sm:$0xff]
        %v6915 = vld [vmem:[%s407 + $0x78] sm:$0xff]
        %v6916 = vld [vmem:[%s407 + $0x80] sm:$0xff]
        %v6917 = vld [vmem:[%s407 + $0x88] sm:$0xff]
        %v6918 = vld [vmem:[%s407 + $0x90] sm:$0xff]
        %v6919 = vld [vmem:[%s407 + $0x98] sm:$0xff]
        %v6920 = vld [vmem:[%s407 + $0xa0] sm:$0xff]
        %v6921 = vld [vmem:[%s407 + $0xa8] sm:$0xff]
        %v6922 = vld [vmem:[%s407 + $0xb0] sm:$0xff]
        %v6923 = vld [vmem:[%s407 + $0xb8] sm:$0xff]
        %v6924 = vld [vmem:[%s407 + $0xc0] sm:$0xff]
        %v6925 = vld [vmem:[%s407 + $0xc8] sm:$0xff]
        %v6926 = vld [vmem:[%s407 + $0xd0] sm:$0xff]
        %v6927 = vld [vmem:[%s407 + $0xd8] sm:$0xff]
        %v6928 = vld [vmem:[%s407 + $0xe0] sm:$0xff]
        %v6929 = vld [vmem:[%s407 + $0xe8] sm:$0xff]
        %v6930 = vld [vmem:[%s407 + $0xf0] sm:$0xff]
        %v6931 = vld [vmem:[%s407 + $0xf8] sm:$0xff]
        %6964 = vrot.lane.b32.xlu0 %v6900, 32
        %v6965 = vpop.permute.xlu0 %6964
        %6966 = vrot.lane.b32.xlu0 %v6901, 32
        %v6967 = vpop.permute.xlu0 %6966
        %6968 = vrot.lane.b32.xlu0 %v6902, 32
        %v6969 = vpop.permute.xlu0 %6968
        %6970 = vrot.lane.b32.xlu0 %v6903, 32
        %v6971 = vpop.permute.xlu0 %6970
        %6972 = vrot.lane.b32.xlu0 %v6904, 32
        %v6973 = vpop.permute.xlu0 %6972
        %6974 = vrot.lane.b32.xlu0 %v6905, 32
        %v6975 = vpop.permute.xlu0 %6974
        %6976 = vrot.lane.b32.xlu0 %v6906, 32
        %v6977 = vpop.permute.xlu0 %6976
        %6978 = vrot.lane.b32.xlu0 %v6907, 32
        %v6979 = vpop.permute.xlu0 %6978
        %6980 = vrot.lane.b32.xlu0 %v6908, 32
        %v6981 = vpop.permute.xlu0 %6980
        %6982 = vrot.lane.b32.xlu0 %v6909, 32
        %v6983 = vpop.permute.xlu0 %6982
        %6984 = vrot.lane.b32.xlu0 %v6910, 32
        %v6985 = vpop.permute.xlu0 %6984
        %6986 = vrot.lane.b32.xlu0 %v6911, 32
        %v6987 = vpop.permute.xlu0 %6986
        %6988 = vrot.lane.b32.xlu0 %v6912, 32
        %v6989 = vpop.permute.xlu0 %6988
        %6990 = vrot.lane.b32.xlu0 %v6913, 32
        %v6991 = vpop.permute.xlu0 %6990
        %6992 = vrot.lane.b32.xlu0 %v6914, 32
        %v6993 = vpop.permute.xlu0 %6992
        %6994 = vrot.lane.b32.xlu0 %v6915, 32
        %v6995 = vpop.permute.xlu0 %6994
        %6996 = vrot.lane.b32.xlu0 %v6916, 32
        %v6997 = vpop.permute.xlu0 %6996
        %6998 = vrot.lane.b32.xlu0 %v6917, 32
        %v6999 = vpop.permute.xlu0 %6998
        %7000 = vrot.lane.b32.xlu0 %v6918, 32
        %v7001 = vpop.permute.xlu0 %7000
        %7002 = vrot.lane.b32.xlu0 %v6919, 32
        %v7003 = vpop.permute.xlu0 %7002
        %7004 = vrot.lane.b32.xlu0 %v6920, 32
        %v7005 = vpop.permute.xlu0 %7004
        %7006 = vrot.lane.b32.xlu0 %v6921, 32
        %v7007 = vpop.permute.xlu0 %7006
        %7008 = vrot.lane.b32.xlu0 %v6922, 32
        %v7009 = vpop.permute.xlu0 %7008
        %7010 = vrot.lane.b32.xlu0 %v6923, 32
        %v7011 = vpop.permute.xlu0 %7010
        %7012 = vrot.lane.b32.xlu0 %v6924, 32
        %v7013 = vpop.permute.xlu0 %7012
        %7014 = vrot.lane.b32.xlu0 %v6925, 32
        %v7015 = vpop.permute.xlu0 %7014
        %7016 = vrot.lane.b32.xlu0 %v6926, 32
        %v7017 = vpop.permute.xlu0 %7016
        %7018 = vrot.lane.b32.xlu0 %v6927, 32
        %v7019 = vpop.permute.xlu0 %7018
        %7020 = vrot.lane.b32.xlu0 %v6928, 32
        %v7021 = vpop.permute.xlu0 %7020
        %7022 = vrot.lane.b32.xlu0 %v6929, 32
        %v7023 = vpop.permute.xlu0 %7022
        %7024 = vrot.lane.b32.xlu0 %v6930, 32
        %v7025 = vpop.permute.xlu0 %7024
        %7026 = vrot.lane.b32.xlu0 %v6931, 32
        %v7027 = vpop.permute.xlu0 %7026
        %v7060 = vmul.f32 %v6868, %v6965
        %v7061 = vmul.f32 %v6869, %v6967
        %v7062 = vmul.f32 %v6870, %v6969
        %v7063 = vmul.f32 %v6871, %v6971
        %v7064 = vmul.f32 %v6872, %v6973
        %v7065 = vmul.f32 %v6873, %v6975
        %v7066 = vmul.f32 %v6874, %v6977
        %v7067 = vmul.f32 %v6875, %v6979
        %v7068 = vmul.f32 %v6876, %v6981
        %v7069 = vmul.f32 %v6877, %v6983
        %v7070 = vmul.f32 %v6878, %v6985
        %v7071 = vmul.f32 %v6879, %v6987
        %v7072 = vmul.f32 %v6880, %v6989
        %v7073 = vmul.f32 %v6881, %v6991
        %v7074 = vmul.f32 %v6882, %v6993
        %v7075 = vmul.f32 %v6883, %v6995
        %v7076 = vmul.f32 %v6884, %v6997
        %v7077 = vmul.f32 %v6885, %v6999
        %v7078 = vmul.f32 %v6886, %v7001
        %v7079 = vmul.f32 %v6887, %v7003
        %v7080 = vmul.f32 %v6888, %v7005
        %v7081 = vmul.f32 %v6889, %v7007
        %v7082 = vmul.f32 %v6890, %v7009
        %v7083 = vmul.f32 %v6891, %v7011
        %v7084 = vmul.f32 %v6892, %v7013
        %v7085 = vmul.f32 %v6893, %v7015
        %v7086 = vmul.f32 %v6894, %v7017
        %v7087 = vmul.f32 %v6895, %v7019
        %v7088 = vmul.f32 %v6896, %v7021
        %v7089 = vmul.f32 %v6897, %v7023
        %v7090 = vmul.f32 %v6898, %v7025
        %v7091 = vmul.f32 %v6899, %v7027
        %7124 = vrot.lane.b32.xlu0 %v6804, 32
        %v7125 = vpop.permute.xlu0 %7124
        %7126 = vrot.lane.b32.xlu0 %v6805, 32
        %v7127 = vpop.permute.xlu0 %7126
        %7128 = vrot.lane.b32.xlu0 %v6806, 32
        %v7129 = vpop.permute.xlu0 %7128
        %7130 = vrot.lane.b32.xlu0 %v6807, 32
        %v7131 = vpop.permute.xlu0 %7130
        %7132 = vrot.lane.b32.xlu0 %v6808, 32
        %v7133 = vpop.permute.xlu0 %7132
        %7134 = vrot.lane.b32.xlu0 %v6809, 32
        %v7135 = vpop.permute.xlu0 %7134
        %7136 = vrot.lane.b32.xlu0 %v6810, 32
        %v7137 = vpop.permute.xlu0 %7136
        %7138 = vrot.lane.b32.xlu0 %v6811, 32
        %v7139 = vpop.permute.xlu0 %7138
        %7140 = vrot.lane.b32.xlu0 %v6812, 32
        %v7141 = vpop.permute.xlu0 %7140
        %7142 = vrot.lane.b32.xlu0 %v6813, 32
        %v7143 = vpop.permute.xlu0 %7142
        %7144 = vrot.lane.b32.xlu0 %v6814, 32
        %v7145 = vpop.permute.xlu0 %7144
        %7146 = vrot.lane.b32.xlu0 %v6815, 32
        %v7147 = vpop.permute.xlu0 %7146
        %7148 = vrot.lane.b32.xlu0 %v6816, 32
        %v7149 = vpop.permute.xlu0 %7148
        %7150 = vrot.lane.b32.xlu0 %v6817, 32
        %v7151 = vpop.permute.xlu0 %7150
        %7152 = vrot.lane.b32.xlu0 %v6818, 32
        %v7153 = vpop.permute.xlu0 %7152
        %7154 = vrot.lane.b32.xlu0 %v6819, 32
        %v7155 = vpop.permute.xlu0 %7154
        %7156 = vrot.lane.b32.xlu0 %v6820, 32
        %v7157 = vpop.permute.xlu0 %7156
        %7158 = vrot.lane.b32.xlu0 %v6821, 32
        %v7159 = vpop.permute.xlu0 %7158
        %7160 = vrot.lane.b32.xlu0 %v6822, 32
        %v7161 = vpop.permute.xlu0 %7160
        %7162 = vrot.lane.b32.xlu0 %v6823, 32
        %v7163 = vpop.permute.xlu0 %7162
        %7164 = vrot.lane.b32.xlu0 %v6824, 32
        %v7165 = vpop.permute.xlu0 %7164
        %7166 = vrot.lane.b32.xlu0 %v6825, 32
        %v7167 = vpop.permute.xlu0 %7166
        %7168 = vrot.lane.b32.xlu0 %v6826, 32
        %v7169 = vpop.permute.xlu0 %7168
        %7170 = vrot.lane.b32.xlu0 %v6827, 32
        %v7171 = vpop.permute.xlu0 %7170
        %7172 = vrot.lane.b32.xlu0 %v6828, 32
        %v7173 = vpop.permute.xlu0 %7172
        %7174 = vrot.lane.b32.xlu0 %v6829, 32
        %v7175 = vpop.permute.xlu0 %7174
        %7176 = vrot.lane.b32.xlu0 %v6830, 32
        %v7177 = vpop.permute.xlu0 %7176
        %7178 = vrot.lane.b32.xlu0 %v6831, 32
        %v7179 = vpop.permute.xlu0 %7178
        %7180 = vrot.lane.b32.xlu0 %v6832, 32
        %v7181 = vpop.permute.xlu0 %7180
        %7182 = vrot.lane.b32.xlu0 %v6833, 32
        %v7183 = vpop.permute.xlu0 %7182
        %7184 = vrot.lane.b32.xlu0 %v6834, 32
        %v7185 = vpop.permute.xlu0 %7184
        %7186 = vrot.lane.b32.xlu0 %v6835, 32
        %v7187 = vpop.permute.xlu0 %7186
        %v7220 = vmul.f32 %v6868, %v7125
        %v7221 = vmul.f32 %v6869, %v7127
        %v7222 = vmul.f32 %v6870, %v7129
        %v7223 = vmul.f32 %v6871, %v7131
        %v7224 = vmul.f32 %v6872, %v7133
        %v7225 = vmul.f32 %v6873, %v7135
        %v7226 = vmul.f32 %v6874, %v7137
        %v7227 = vmul.f32 %v6875, %v7139
        %v7228 = vmul.f32 %v6876, %v7141
        %v7229 = vmul.f32 %v6877, %v7143
        %v7230 = vmul.f32 %v6878, %v7145
        %v7231 = vmul.f32 %v6879, %v7147
        %v7232 = vmul.f32 %v6880, %v7149
        %v7233 = vmul.f32 %v6881, %v7151
        %v7234 = vmul.f32 %v6882, %v7153
        %v7235 = vmul.f32 %v6883, %v7155
        %v7236 = vmul.f32 %v6884, %v7157
        %v7237 = vmul.f32 %v6885, %v7159
        %v7238 = vmul.f32 %v6886, %v7161
        %v7239 = vmul.f32 %v6887, %v7163
        %v7240 = vmul.f32 %v6888, %v7165
        %v7241 = vmul.f32 %v6889, %v7167
        %v7242 = vmul.f32 %v6890, %v7169
        %v7243 = vmul.f32 %v6891, %v7171
        %v7244 = vmul.f32 %v6892, %v7173
        %v7245 = vmul.f32 %v6893, %v7175
        %v7246 = vmul.f32 %v6894, %v7177
        %v7247 = vmul.f32 %v6895, %v7179
        %v7248 = vmul.f32 %v6896, %v7181
        %v7249 = vmul.f32 %v6897, %v7183
        %v7250 = vmul.f32 %v6898, %v7185
        %v7251 = vmul.f32 %v6899, %v7187
        %7284 = vrot.lane.b32.xlu0 %v7220, 32
        %v7285 = vpop.permute.xlu0 %7284
        %7286 = vrot.lane.b32.xlu0 %v7221, 32
        %v7287 = vpop.permute.xlu0 %7286
        %7288 = vrot.lane.b32.xlu0 %v7222, 32
        %v7289 = vpop.permute.xlu0 %7288
        %7290 = vrot.lane.b32.xlu0 %v7223, 32
        %v7291 = vpop.permute.xlu0 %7290
        %7292 = vrot.lane.b32.xlu0 %v7224, 32
        %v7293 = vpop.permute.xlu0 %7292
        %7294 = vrot.lane.b32.xlu0 %v7225, 32
        %v7295 = vpop.permute.xlu0 %7294
        %7296 = vrot.lane.b32.xlu0 %v7226, 32
        %v7297 = vpop.permute.xlu0 %7296
        %7298 = vrot.lane.b32.xlu0 %v7227, 32
        %v7299 = vpop.permute.xlu0 %7298
        %7300 = vrot.lane.b32.xlu0 %v7228, 32
        %v7301 = vpop.permute.xlu0 %7300
        %7302 = vrot.lane.b32.xlu0 %v7229, 32
        %v7303 = vpop.permute.xlu0 %7302
        %7304 = vrot.lane.b32.xlu0 %v7230, 32
        %v7305 = vpop.permute.xlu0 %7304
        %7306 = vrot.lane.b32.xlu0 %v7231, 32
        %v7307 = vpop.permute.xlu0 %7306
        %7308 = vrot.lane.b32.xlu0 %v7232, 32
        %v7309 = vpop.permute.xlu0 %7308
        %7310 = vrot.lane.b32.xlu0 %v7233, 32
        %v7311 = vpop.permute.xlu0 %7310
        %7312 = vrot.lane.b32.xlu0 %v7234, 32
        %v7313 = vpop.permute.xlu0 %7312
        %7314 = vrot.lane.b32.xlu0 %v7235, 32
        %v7315 = vpop.permute.xlu0 %7314
        %7316 = vrot.lane.b32.xlu0 %v7236, 32
        %v7317 = vpop.permute.xlu0 %7316
        %7318 = vrot.lane.b32.xlu0 %v7237, 32
        %v7319 = vpop.permute.xlu0 %7318
        %7320 = vrot.lane.b32.xlu0 %v7238, 32
        %v7321 = vpop.permute.xlu0 %7320
        %7322 = vrot.lane.b32.xlu0 %v7239, 32
        %v7323 = vpop.permute.xlu0 %7322
        %7324 = vrot.lane.b32.xlu0 %v7240, 32
        %v7325 = vpop.permute.xlu0 %7324
        %7326 = vrot.lane.b32.xlu0 %v7241, 32
        %v7327 = vpop.permute.xlu0 %7326
        %7328 = vrot.lane.b32.xlu0 %v7242, 32
        %v7329 = vpop.permute.xlu0 %7328
        %7330 = vrot.lane.b32.xlu0 %v7243, 32
        %v7331 = vpop.permute.xlu0 %7330
        %7332 = vrot.lane.b32.xlu0 %v7244, 32
        %v7333 = vpop.permute.xlu0 %7332
        %7334 = vrot.lane.b32.xlu0 %v7245, 32
        %v7335 = vpop.permute.xlu0 %7334
        %7336 = vrot.lane.b32.xlu0 %v7246, 32
        %v7337 = vpop.permute.xlu0 %7336
        %7338 = vrot.lane.b32.xlu0 %v7247, 32
        %v7339 = vpop.permute.xlu0 %7338
        %7340 = vrot.lane.b32.xlu0 %v7248, 32
        %v7341 = vpop.permute.xlu0 %7340
        %7342 = vrot.lane.b32.xlu0 %v7249, 32
        %v7343 = vpop.permute.xlu0 %7342
        %7344 = vrot.lane.b32.xlu0 %v7250, 32
        %v7345 = vpop.permute.xlu0 %7344
        %7346 = vrot.lane.b32.xlu0 %v7251, 32
        %v7347 = vpop.permute.xlu0 %7346
        %v7380 = vadd.f32 %v7060, %v7285
        %v7381 = vadd.f32 %v7061, %v7287
        %v7382 = vadd.f32 %v7062, %v7289
        %v7383 = vadd.f32 %v7063, %v7291
        %v7384 = vadd.f32 %v7064, %v7293
        %v7385 = vadd.f32 %v7065, %v7295
        %v7386 = vadd.f32 %v7066, %v7297
        %v7387 = vadd.f32 %v7067, %v7299
        %v7388 = vadd.f32 %v7068, %v7301
        %v7389 = vadd.f32 %v7069, %v7303
        %v7390 = vadd.f32 %v7070, %v7305
        %v7391 = vadd.f32 %v7071, %v7307
        %v7392 = vadd.f32 %v7072, %v7309
        %v7393 = vadd.f32 %v7073, %v7311
        %v7394 = vadd.f32 %v7074, %v7313
        %v7395 = vadd.f32 %v7075, %v7315
        %v7396 = vadd.f32 %v7076, %v7317
        %v7397 = vadd.f32 %v7077, %v7319
        %v7398 = vadd.f32 %v7078, %v7321
        %v7399 = vadd.f32 %v7079, %v7323
        %v7400 = vadd.f32 %v7080, %v7325
        %v7401 = vadd.f32 %v7081, %v7327
        %v7402 = vadd.f32 %v7082, %v7329
        %v7403 = vadd.f32 %v7083, %v7331
        %v7404 = vadd.f32 %v7084, %v7333
        %v7405 = vadd.f32 %v7085, %v7335
        %v7406 = vadd.f32 %v7086, %v7337
        %v7407 = vadd.f32 %v7087, %v7339
        %v7408 = vadd.f32 %v7088, %v7341
        %v7409 = vadd.f32 %v7089, %v7343
        %v7410 = vadd.f32 %v7090, %v7345
        %v7411 = vadd.f32 %v7091, %v7347
        %v7412 = vtanh.pop %v7380
        %v7413 = vtanh.pop %v7381
        %v7414 = vtanh.pop %v7382
        %v7415 = vtanh.pop %v7383
        %v7416 = vtanh.pop %v7384
        %v7417 = vtanh.pop %v7385
        %v7418 = vtanh.pop %v7386
        %v7419 = vtanh.pop %v7387
        %v7420 = vtanh.pop %v7388
        %v7421 = vtanh.pop %v7389
        %v7422 = vtanh.pop %v7390
        %v7423 = vtanh.pop %v7391
        %v7424 = vtanh.pop %v7392
        %v7425 = vtanh.pop %v7393
        %v7426 = vtanh.pop %v7394
        %v7427 = vtanh.pop %v7395
        %v7428 = vtanh.pop %v7396
        %v7429 = vtanh.pop %v7397
        %v7430 = vtanh.pop %v7398
        %v7431 = vtanh.pop %v7399
        %v7432 = vtanh.pop %v7400
        %v7433 = vtanh.pop %v7401
        %v7434 = vtanh.pop %v7402
        %v7435 = vtanh.pop %v7403
        %v7436 = vtanh.pop %v7404
        %v7437 = vtanh.pop %v7405
        %v7438 = vtanh.pop %v7406
        %v7439 = vtanh.pop %v7407
        %v7440 = vtanh.pop %v7408
        %v7441 = vtanh.pop %v7409
        %v7442 = vtanh.pop %v7410
        %v7443 = vtanh.pop %v7411
        %7476 = vrot.lane.b32.xlu0 %v7412, 32
        %v7477 = vpop.permute.xlu0 %7476
        %7478 = vrot.lane.b32.xlu0 %v7413, 32
        %v7479 = vpop.permute.xlu0 %7478
        %7480 = vrot.lane.b32.xlu0 %v7414, 32
        %v7481 = vpop.permute.xlu0 %7480
        %7482 = vrot.lane.b32.xlu0 %v7415, 32
        %v7483 = vpop.permute.xlu0 %7482
        %7484 = vrot.lane.b32.xlu0 %v7416, 32
        %v7485 = vpop.permute.xlu0 %7484
        %7486 = vrot.lane.b32.xlu0 %v7417, 32
        %v7487 = vpop.permute.xlu0 %7486
        %7488 = vrot.lane.b32.xlu0 %v7418, 32
        %v7489 = vpop.permute.xlu0 %7488
        %7490 = vrot.lane.b32.xlu0 %v7419, 32
        %v7491 = vpop.permute.xlu0 %7490
        %7492 = vrot.lane.b32.xlu0 %v7420, 32
        %v7493 = vpop.permute.xlu0 %7492
        %7494 = vrot.lane.b32.xlu0 %v7421, 32
        %v7495 = vpop.permute.xlu0 %7494
        %7496 = vrot.lane.b32.xlu0 %v7422, 32
        %v7497 = vpop.permute.xlu0 %7496
        %7498 = vrot.lane.b32.xlu0 %v7423, 32
        %v7499 = vpop.permute.xlu0 %7498
        %7500 = vrot.lane.b32.xlu0 %v7424, 32
        %v7501 = vpop.permute.xlu0 %7500
        %7502 = vrot.lane.b32.xlu0 %v7425, 32
        %v7503 = vpop.permute.xlu0 %7502
        %7504 = vrot.lane.b32.xlu0 %v7426, 32
        %v7505 = vpop.permute.xlu0 %7504
        %7506 = vrot.lane.b32.xlu0 %v7427, 32
        %v7507 = vpop.permute.xlu0 %7506
        %7508 = vrot.lane.b32.xlu0 %v7428, 32
        %v7509 = vpop.permute.xlu0 %7508
        %7510 = vrot.lane.b32.xlu0 %v7429, 32
        %v7511 = vpop.permute.xlu0 %7510
        %7512 = vrot.lane.b32.xlu0 %v7430, 32
        %v7513 = vpop.permute.xlu0 %7512
        %7514 = vrot.lane.b32.xlu0 %v7431, 32
        %v7515 = vpop.permute.xlu0 %7514
        %7516 = vrot.lane.b32.xlu0 %v7432, 32
        %v7517 = vpop.permute.xlu0 %7516
        %7518 = vrot.lane.b32.xlu0 %v7433, 32
        %v7519 = vpop.permute.xlu0 %7518
        %7520 = vrot.lane.b32.xlu0 %v7434, 32
        %v7521 = vpop.permute.xlu0 %7520
        %7522 = vrot.lane.b32.xlu0 %v7435, 32
        %v7523 = vpop.permute.xlu0 %7522
        %7524 = vrot.lane.b32.xlu0 %v7436, 32
        %v7525 = vpop.permute.xlu0 %7524
        %7526 = vrot.lane.b32.xlu0 %v7437, 32
        %v7527 = vpop.permute.xlu0 %7526
        %7528 = vrot.lane.b32.xlu0 %v7438, 32
        %v7529 = vpop.permute.xlu0 %7528
        %7530 = vrot.lane.b32.xlu0 %v7439, 32
        %v7531 = vpop.permute.xlu0 %7530
        %7532 = vrot.lane.b32.xlu0 %v7440, 32
        %v7533 = vpop.permute.xlu0 %7532
        %7534 = vrot.lane.b32.xlu0 %v7441, 32
        %v7535 = vpop.permute.xlu0 %7534
        %7536 = vrot.lane.b32.xlu0 %v7442, 32
        %v7537 = vpop.permute.xlu0 %7536
        %7538 = vrot.lane.b32.xlu0 %v7443, 32
        %v7539 = vpop.permute.xlu0 %7538
        %v7572 = vmul.f32 %v6868, %v7477
        %v7573 = vmul.f32 %v6869, %v7479
        %v7574 = vmul.f32 %v6870, %v7481
        %v7575 = vmul.f32 %v6871, %v7483
        %v7576 = vmul.f32 %v6872, %v7485
        %v7577 = vmul.f32 %v6873, %v7487
        %v7578 = vmul.f32 %v6874, %v7489
        %v7579 = vmul.f32 %v6875, %v7491
        %v7580 = vmul.f32 %v6876, %v7493
        %v7581 = vmul.f32 %v6877, %v7495
        %v7582 = vmul.f32 %v6878, %v7497
        %v7583 = vmul.f32 %v6879, %v7499
        %v7584 = vmul.f32 %v6880, %v7501
        %v7585 = vmul.f32 %v6881, %v7503
        %v7586 = vmul.f32 %v6882, %v7505
        %v7587 = vmul.f32 %v6883, %v7507
        %v7588 = vmul.f32 %v6884, %v7509
        %v7589 = vmul.f32 %v6885, %v7511
        %v7590 = vmul.f32 %v6886, %v7513
        %v7591 = vmul.f32 %v6887, %v7515
        %v7592 = vmul.f32 %v6888, %v7517
        %v7593 = vmul.f32 %v6889, %v7519
        %v7594 = vmul.f32 %v6890, %v7521
        %v7595 = vmul.f32 %v6891, %v7523
        %v7596 = vmul.f32 %v6892, %v7525
        %v7597 = vmul.f32 %v6893, %v7527
        %v7598 = vmul.f32 %v6894, %v7529
        %v7599 = vmul.f32 %v6895, %v7531
        %v7600 = vmul.f32 %v6896, %v7533
        %v7601 = vmul.f32 %v6897, %v7535
        %v7602 = vmul.f32 %v6898, %v7537
        %v7603 = vmul.f32 %v6899, %v7539
        %7636 = vrot.lane.b32.xlu0 %v7380, 96
        %v7637 = vpop.permute.xlu0 %7636
        %7638 = vrot.lane.b32.xlu0 %v7381, 96
        %v7639 = vpop.permute.xlu0 %7638
        %7640 = vrot.lane.b32.xlu0 %v7382, 96
        %v7641 = vpop.permute.xlu0 %7640
        %7642 = vrot.lane.b32.xlu0 %v7383, 96
        %v7643 = vpop.permute.xlu0 %7642
        %7644 = vrot.lane.b32.xlu0 %v7384, 96
        %v7645 = vpop.permute.xlu0 %7644
        %7646 = vrot.lane.b32.xlu0 %v7385, 96
        %v7647 = vpop.permute.xlu0 %7646
        %7648 = vrot.lane.b32.xlu0 %v7386, 96
        %v7649 = vpop.permute.xlu0 %7648
        %7650 = vrot.lane.b32.xlu0 %v7387, 96
        %v7651 = vpop.permute.xlu0 %7650
        %7652 = vrot.lane.b32.xlu0 %v7388, 96
        %v7653 = vpop.permute.xlu0 %7652
        %7654 = vrot.lane.b32.xlu0 %v7389, 96
        %v7655 = vpop.permute.xlu0 %7654
        %7656 = vrot.lane.b32.xlu0 %v7390, 96
        %v7657 = vpop.permute.xlu0 %7656
        %7658 = vrot.lane.b32.xlu0 %v7391, 96
        %v7659 = vpop.permute.xlu0 %7658
        %7660 = vrot.lane.b32.xlu0 %v7392, 96
        %v7661 = vpop.permute.xlu0 %7660
        %7662 = vrot.lane.b32.xlu0 %v7393, 96
        %v7663 = vpop.permute.xlu0 %7662
        %7664 = vrot.lane.b32.xlu0 %v7394, 96
        %v7665 = vpop.permute.xlu0 %7664
        %7666 = vrot.lane.b32.xlu0 %v7395, 96
        %v7667 = vpop.permute.xlu0 %7666
        %7668 = vrot.lane.b32.xlu0 %v7396, 96
        %v7669 = vpop.permute.xlu0 %7668
        %7670 = vrot.lane.b32.xlu0 %v7397, 96
        %v7671 = vpop.permute.xlu0 %7670
        %7672 = vrot.lane.b32.xlu0 %v7398, 96
        %v7673 = vpop.permute.xlu0 %7672
        %7674 = vrot.lane.b32.xlu0 %v7399, 96
        %v7675 = vpop.permute.xlu0 %7674
        %7676 = vrot.lane.b32.xlu0 %v7400, 96
        %v7677 = vpop.permute.xlu0 %7676
        %7678 = vrot.lane.b32.xlu0 %v7401, 96
        %v7679 = vpop.permute.xlu0 %7678
        %7680 = vrot.lane.b32.xlu0 %v7402, 96
        %v7681 = vpop.permute.xlu0 %7680
        %7682 = vrot.lane.b32.xlu0 %v7403, 96
        %v7683 = vpop.permute.xlu0 %7682
        %7684 = vrot.lane.b32.xlu0 %v7404, 96
        %v7685 = vpop.permute.xlu0 %7684
        %7686 = vrot.lane.b32.xlu0 %v7405, 96
        %v7687 = vpop.permute.xlu0 %7686
        %7688 = vrot.lane.b32.xlu0 %v7406, 96
        %v7689 = vpop.permute.xlu0 %7688
        %7690 = vrot.lane.b32.xlu0 %v7407, 96
        %v7691 = vpop.permute.xlu0 %7690
        %7692 = vrot.lane.b32.xlu0 %v7408, 96
        %v7693 = vpop.permute.xlu0 %7692
        %7694 = vrot.lane.b32.xlu0 %v7409, 96
        %v7695 = vpop.permute.xlu0 %7694
        %7696 = vrot.lane.b32.xlu0 %v7410, 96
        %v7697 = vpop.permute.xlu0 %7696
        %7698 = vrot.lane.b32.xlu0 %v7411, 96
        %v7699 = vpop.permute.xlu0 %7698
        %7732 = vst.msk [vmem:[%s466] sm:$0xff] %vm823, %v7637
        %7733 = vst.msk [vmem:[%s466 + $0x8] sm:$0xff] %vm823, %v7639
        %7734 = vst.msk [vmem:[%s466 + $0x10] sm:$0xff] %vm823, %v7641
        %7735 = vst.msk [vmem:[%s466 + $0x18] sm:$0xff] %vm823, %v7643
        %7736 = vst.msk [vmem:[%s466 + $0x20] sm:$0xff] %vm823, %v7645
        %7737 = vst.msk [vmem:[%s466 + $0x28] sm:$0xff] %vm823, %v7647
        %7738 = vst.msk [vmem:[%s466 + $0x30] sm:$0xff] %vm823, %v7649
        %7739 = vst.msk [vmem:[%s466 + $0x38] sm:$0xff] %vm823, %v7651
        %7740 = vst.msk [vmem:[%s466 + $0x40] sm:$0xff] %vm823, %v7653
        %7741 = vst.msk [vmem:[%s466 + $0x48] sm:$0xff] %vm823, %v7655
        %7742 = vst.msk [vmem:[%s466 + $0x50] sm:$0xff] %vm823, %v7657
        %7743 = vst.msk [vmem:[%s466 + $0x58] sm:$0xff] %vm823, %v7659
        %7744 = vst.msk [vmem:[%s466 + $0x60] sm:$0xff] %vm823, %v7661
        %7745 = vst.msk [vmem:[%s466 + $0x68] sm:$0xff] %vm823, %v7663
        %7746 = vst.msk [vmem:[%s466 + $0x70] sm:$0xff] %vm823, %v7665
        %7747 = vst.msk [vmem:[%s466 + $0x78] sm:$0xff] %vm823, %v7667
        %7748 = vst.msk [vmem:[%s466 + $0x80] sm:$0xff] %vm823, %v7669
        %7749 = vst.msk [vmem:[%s466 + $0x88] sm:$0xff] %vm823, %v7671
        %7750 = vst.msk [vmem:[%s466 + $0x90] sm:$0xff] %vm823, %v7673
        %7751 = vst.msk [vmem:[%s466 + $0x98] sm:$0xff] %vm823, %v7675
        %7752 = vst.msk [vmem:[%s466 + $0xa0] sm:$0xff] %vm823, %v7677
        %7753 = vst.msk [vmem:[%s466 + $0xa8] sm:$0xff] %vm823, %v7679
        %7754 = vst.msk [vmem:[%s466 + $0xb0] sm:$0xff] %vm823, %v7681
        %7755 = vst.msk [vmem:[%s466 + $0xb8] sm:$0xff] %vm823, %v7683
        %7756 = vst.msk [vmem:[%s466 + $0xc0] sm:$0xff] %vm823, %v7685
        %7757 = vst.msk [vmem:[%s466 + $0xc8] sm:$0xff] %vm823, %v7687
        %7758 = vst.msk [vmem:[%s466 + $0xd0] sm:$0xff] %vm823, %v7689
        %7759 = vst.msk [vmem:[%s466 + $0xd8] sm:$0xff] %vm823, %v7691
        %7760 = vst.msk [vmem:[%s466 + $0xe0] sm:$0xff] %vm823, %v7693
        %7761 = vst.msk [vmem:[%s466 + $0xe8] sm:$0xff] %vm823, %v7695
        %7762 = vst.msk [vmem:[%s466 + $0xf0] sm:$0xff] %vm823, %v7697
        %7763 = vst.msk [vmem:[%s466 + $0xf8] sm:$0xff] %vm823, %v7699
        %7796 = vrot.lane.b32.xlu0 %v7572, 64
        %v7797 = vpop.permute.xlu0 %7796
        %7798 = vrot.lane.b32.xlu0 %v7573, 64
        %v7799 = vpop.permute.xlu0 %7798
        %7800 = vrot.lane.b32.xlu0 %v7574, 64
        %v7801 = vpop.permute.xlu0 %7800
        %7802 = vrot.lane.b32.xlu0 %v7575, 64
        %v7803 = vpop.permute.xlu0 %7802
        %7804 = vrot.lane.b32.xlu0 %v7576, 64
        %v7805 = vpop.permute.xlu0 %7804
        %7806 = vrot.lane.b32.xlu0 %v7577, 64
        %v7807 = vpop.permute.xlu0 %7806
        %7808 = vrot.lane.b32.xlu0 %v7578, 64
        %v7809 = vpop.permute.xlu0 %7808
        %7810 = vrot.lane.b32.xlu0 %v7579, 64
        %v7811 = vpop.permute.xlu0 %7810
        %7812 = vrot.lane.b32.xlu0 %v7580, 64
        %v7813 = vpop.permute.xlu0 %7812
        %7814 = vrot.lane.b32.xlu0 %v7581, 64
        %v7815 = vpop.permute.xlu0 %7814
        %7816 = vrot.lane.b32.xlu0 %v7582, 64
        %v7817 = vpop.permute.xlu0 %7816
        %7818 = vrot.lane.b32.xlu0 %v7583, 64
        %v7819 = vpop.permute.xlu0 %7818
        %7820 = vrot.lane.b32.xlu0 %v7584, 64
        %v7821 = vpop.permute.xlu0 %7820
        %7822 = vrot.lane.b32.xlu0 %v7585, 64
        %v7823 = vpop.permute.xlu0 %7822
        %7824 = vrot.lane.b32.xlu0 %v7586, 64
        %v7825 = vpop.permute.xlu0 %7824
        %7826 = vrot.lane.b32.xlu0 %v7587, 64
        %v7827 = vpop.permute.xlu0 %7826
        %7828 = vrot.lane.b32.xlu0 %v7588, 64
        %v7829 = vpop.permute.xlu0 %7828
        %7830 = vrot.lane.b32.xlu0 %v7589, 64
        %v7831 = vpop.permute.xlu0 %7830
        %7832 = vrot.lane.b32.xlu0 %v7590, 64
        %v7833 = vpop.permute.xlu0 %7832
        %7834 = vrot.lane.b32.xlu0 %v7591, 64
        %v7835 = vpop.permute.xlu0 %7834
        %7836 = vrot.lane.b32.xlu0 %v7592, 64
        %v7837 = vpop.permute.xlu0 %7836
        %7838 = vrot.lane.b32.xlu0 %v7593, 64
        %v7839 = vpop.permute.xlu0 %7838
        %7840 = vrot.lane.b32.xlu0 %v7594, 64
        %v7841 = vpop.permute.xlu0 %7840
        %7842 = vrot.lane.b32.xlu0 %v7595, 64
        %v7843 = vpop.permute.xlu0 %7842
        %7844 = vrot.lane.b32.xlu0 %v7596, 64
        %v7845 = vpop.permute.xlu0 %7844
        %7846 = vrot.lane.b32.xlu0 %v7597, 64
        %v7847 = vpop.permute.xlu0 %7846
        %7848 = vrot.lane.b32.xlu0 %v7598, 64
        %v7849 = vpop.permute.xlu0 %7848
        %7850 = vrot.lane.b32.xlu0 %v7599, 64
        %v7851 = vpop.permute.xlu0 %7850
        %7852 = vrot.lane.b32.xlu0 %v7600, 64
        %v7853 = vpop.permute.xlu0 %7852
        %7854 = vrot.lane.b32.xlu0 %v7601, 64
        %v7855 = vpop.permute.xlu0 %7854
        %7856 = vrot.lane.b32.xlu0 %v7602, 64
        %v7857 = vpop.permute.xlu0 %7856
        %7858 = vrot.lane.b32.xlu0 %v7603, 64
        %v7859 = vpop.permute.xlu0 %7858
        %7892 = vst.msk [vmem:[%s459] sm:$0xff] %vm823, %v7797
        %7893 = vst.msk [vmem:[%s459 + $0x8] sm:$0xff] %vm823, %v7799
        %7894 = vst.msk [vmem:[%s459 + $0x10] sm:$0xff] %vm823, %v7801
        %7895 = vst.msk [vmem:[%s459 + $0x18] sm:$0xff] %vm823, %v7803
        %7896 = vst.msk [vmem:[%s459 + $0x20] sm:$0xff] %vm823, %v7805
        %7897 = vst.msk [vmem:[%s459 + $0x28] sm:$0xff] %vm823, %v7807
        %7898 = vst.msk [vmem:[%s459 + $0x30] sm:$0xff] %vm823, %v7809
        %7899 = vst.msk [vmem:[%s459 + $0x38] sm:$0xff] %vm823, %v7811
        %7900 = vst.msk [vmem:[%s459 + $0x40] sm:$0xff] %vm823, %v7813
        %7901 = vst.msk [vmem:[%s459 + $0x48] sm:$0xff] %vm823, %v7815
        %7902 = vst.msk [vmem:[%s459 + $0x50] sm:$0xff] %vm823, %v7817
        %7903 = vst.msk [vmem:[%s459 + $0x58] sm:$0xff] %vm823, %v7819
        %7904 = vst.msk [vmem:[%s459 + $0x60] sm:$0xff] %vm823, %v7821
        %7905 = vst.msk [vmem:[%s459 + $0x68] sm:$0xff] %vm823, %v7823
        %7906 = vst.msk [vmem:[%s459 + $0x70] sm:$0xff] %vm823, %v7825
        %7907 = vst.msk [vmem:[%s459 + $0x78] sm:$0xff] %vm823, %v7827
        %7908 = vst.msk [vmem:[%s459 + $0x80] sm:$0xff] %vm823, %v7829
        %7909 = vst.msk [vmem:[%s459 + $0x88] sm:$0xff] %vm823, %v7831
        %7910 = vst.msk [vmem:[%s459 + $0x90] sm:$0xff] %vm823, %v7833
        %7911 = vst.msk [vmem:[%s459 + $0x98] sm:$0xff] %vm823, %v7835
        %7912 = vst.msk [vmem:[%s459 + $0xa0] sm:$0xff] %vm823, %v7837
        %7913 = vst.msk [vmem:[%s459 + $0xa8] sm:$0xff] %vm823, %v7839
        %7914 = vst.msk [vmem:[%s459 + $0xb0] sm:$0xff] %vm823, %v7841
        %7915 = vst.msk [vmem:[%s459 + $0xb8] sm:$0xff] %vm823, %v7843
        %7916 = vst.msk [vmem:[%s459 + $0xc0] sm:$0xff] %vm823, %v7845
        %7917 = vst.msk [vmem:[%s459 + $0xc8] sm:$0xff] %vm823, %v7847
        %7918 = vst.msk [vmem:[%s459 + $0xd0] sm:$0xff] %vm823, %v7849
        %7919 = vst.msk [vmem:[%s459 + $0xd8] sm:$0xff] %vm823, %v7851
        %7920 = vst.msk [vmem:[%s459 + $0xe0] sm:$0xff] %vm823, %v7853
        %7921 = vst.msk [vmem:[%s459 + $0xe8] sm:$0xff] %vm823, %v7855
        %7922 = vst.msk [vmem:[%s459 + $0xf0] sm:$0xff] %vm823, %v7857
        %7923 = vst.msk [vmem:[%s459 + $0xf8] sm:$0xff] %vm823, %v7859
        %7924 = vst.msk [vmem:[%s1011 + $0x1] sm:$0xff] %vm823, %v7797
        %7925 = vst.msk [vmem:[%s1011 + $0x9] sm:$0xff] %vm823, %v7799
        %7926 = vst.msk [vmem:[%s1011 + $0x19] sm:$0xff] %vm823, %v7801
        %7927 = vst.msk [vmem:[%s1011 + $0x21] sm:$0xff] %vm823, %v7803
        %7928 = vst.msk [vmem:[%s1011 + $0x31] sm:$0xff] %vm823, %v7805
        %7929 = vst.msk [vmem:[%s1011 + $0x39] sm:$0xff] %vm823, %v7807
        %7930 = vst.msk [vmem:[%s1011 + $0x49] sm:$0xff] %vm823, %v7809
        %7931 = vst.msk [vmem:[%s1011 + $0x51] sm:$0xff] %vm823, %v7811
        %7932 = vst.msk [vmem:[%s1011 + $0x61] sm:$0xff] %vm823, %v7813
        %7933 = vst.msk [vmem:[%s1011 + $0x69] sm:$0xff] %vm823, %v7815
        %7934 = vst.msk [vmem:[%s1011 + $0x79] sm:$0xff] %vm823, %v7817
        %7935 = vst.msk [vmem:[%s1011 + $0x81] sm:$0xff] %vm823, %v7819
        %7936 = vst.msk [vmem:[%s1011 + $0x91] sm:$0xff] %vm823, %v7821
        %7937 = vst.msk [vmem:[%s1011 + $0x99] sm:$0xff] %vm823, %v7823
        %7938 = vst.msk [vmem:[%s1011 + $0xa9] sm:$0xff] %vm823, %v7825
        %7939 = vst.msk [vmem:[%s1011 + $0xb1] sm:$0xff] %vm823, %v7827
        %7940 = vst.msk [vmem:[%s1011 + $0xc1] sm:$0xff] %vm823, %v7829
        %7941 = vst.msk [vmem:[%s1011 + $0xc9] sm:$0xff] %vm823, %v7831
        %7942 = vst.msk [vmem:[%s1011 + $0xd9] sm:$0xff] %vm823, %v7833
        %7943 = vst.msk [vmem:[%s1011 + $0xe1] sm:$0xff] %vm823, %v7835
        %7944 = vst.msk [vmem:[%s1011 + $0xf1] sm:$0xff] %vm823, %v7837
        %7945 = vst.msk [vmem:[%s1011 + $0xf9] sm:$0xff] %vm823, %v7839
        %7946 = vst.msk [vmem:[%s1011 + $0x109] sm:$0xff] %vm823, %v7841
        %7947 = vst.msk [vmem:[%s1011 + $0x111] sm:$0xff] %vm823, %v7843
        %7948 = vst.msk [vmem:[%s1011 + $0x121] sm:$0xff] %vm823, %v7845
        %7949 = vst.msk [vmem:[%s1011 + $0x129] sm:$0xff] %vm823, %v7847
        %7950 = vst.msk [vmem:[%s1011 + $0x139] sm:$0xff] %vm823, %v7849
        %7951 = vst.msk [vmem:[%s1011 + $0x141] sm:$0xff] %vm823, %v7851
        %7952 = vst.msk [vmem:[%s1011 + $0x151] sm:$0xff] %vm823, %v7853
        %7953 = vst.msk [vmem:[%s1011 + $0x159] sm:$0xff] %vm823, %v7855
        %7954 = vst.msk [vmem:[%s1011 + $0x169] sm:$0xff] %vm823, %v7857
        %7955 = vst.msk [vmem:[%s1011 + $0x171] sm:$0xff] %vm823, %v7859
        %v7956 = vld [vmem:[%s7] sm:$0xf]
        %7958 = vset.pattern.permute.xlu0 0
        %7959 = vperm.xlu0 %7958, %v7956
        %v7960 = vpop.permute.xlu0 %7959
        %v7962 = vld [vmem:[#allocation3] sm:$0xff]
        %v7963 = vld [vmem:[#allocation3 + $0x8] sm:$0xff]
        %v7964 = vld [vmem:[#allocation3 + $0x18] sm:$0xff]
        %v7965 = vld [vmem:[#allocation3 + $0x20] sm:$0xff]
        %v7966 = vld [vmem:[#allocation3 + $0x30] sm:$0xff]
        %v7967 = vld [vmem:[#allocation3 + $0x38] sm:$0xff]
        %v7968 = vld [vmem:[#allocation3 + $0x48] sm:$0xff]
        %v7969 = vld [vmem:[#allocation3 + $0x50] sm:$0xff]
        %v7970 = vld [vmem:[#allocation3 + $0x60] sm:$0xff]
        %v7971 = vld [vmem:[#allocation3 + $0x68] sm:$0xff]
        %v7972 = vld [vmem:[#allocation3 + $0x78] sm:$0xff]
        %v7973 = vld [vmem:[#allocation3 + $0x80] sm:$0xff]
        %v7974 = vld [vmem:[#allocation3 + $0x90] sm:$0xff]
        %v7975 = vld [vmem:[#allocation3 + $0x98] sm:$0xff]
        %v7976 = vld [vmem:[#allocation3 + $0xa8] sm:$0xff]
        %v7977 = vld [vmem:[#allocation3 + $0xb0] sm:$0xff]
        %v7978 = vld [vmem:[#allocation3 + $0xc0] sm:$0xff]
        %v7979 = vld [vmem:[#allocation3 + $0xc8] sm:$0xff]
        %v7980 = vld [vmem:[#allocation3 + $0xd8] sm:$0xff]
        %v7981 = vld [vmem:[#allocation3 + $0xe0] sm:$0xff]
        %v7982 = vld [vmem:[#allocation3 + $0xf0] sm:$0xff]
        %v7983 = vld [vmem:[#allocation3 + $0xf8] sm:$0xff]
        %v7984 = vld [vmem:[#allocation3 + $0x108] sm:$0xff]
        %v7985 = vld [vmem:[#allocation3 + $0x110] sm:$0xff]
        %v7986 = vld [vmem:[#allocation3 + $0x120] sm:$0xff]
        %v7987 = vld [vmem:[#allocation3 + $0x128] sm:$0xff]
        %v7988 = vld [vmem:[#allocation3 + $0x138] sm:$0xff]
        %v7989 = vld [vmem:[#allocation3 + $0x140] sm:$0xff]
        %v7990 = vld [vmem:[#allocation3 + $0x150] sm:$0xff]
        %v7991 = vld [vmem:[#allocation3 + $0x158] sm:$0xff]
        %v7992 = vld [vmem:[#allocation3 + $0x168] sm:$0xff]
        %v7993 = vld [vmem:[#allocation3 + $0x170] sm:$0xff]
        %v7994 = vpack.c.bf16 %v7963, %v7962
        %v7995 = vpack.c.bf16 %v7965, %v7964
        %v7996 = vpack.c.bf16 %v7967, %v7966
        %v7997 = vpack.c.bf16 %v7969, %v7968
        %v7998 = vpack.c.bf16 %v7971, %v7970
        %v7999 = vpack.c.bf16 %v7973, %v7972
        %v8000 = vpack.c.bf16 %v7975, %v7974
        %v8001 = vpack.c.bf16 %v7977, %v7976
        %v8002 = vpack.c.bf16 %v7979, %v7978
        %v8003 = vpack.c.bf16 %v7981, %v7980
        %v8004 = vpack.c.bf16 %v7983, %v7982
        %v8005 = vpack.c.bf16 %v7985, %v7984
        %v8006 = vpack.c.bf16 %v7987, %v7986
        %v8007 = vpack.c.bf16 %v7989, %v7988
        %v8008 = vpack.c.bf16 %v7991, %v7990
        %v8009 = vpack.c.bf16 %v7993, %v7992
        %v8010 = vld [vmem:[#allocation10] sm:$0x3]
        %v8012 = vsel %vm823, %v8010, 0
        %v8015 = vsel %vm823, %v7994, 0
        %v8018 = vsel %vm823, %v7995, 0
        %v8021 = vsel %vm823, %v7996, 0
        %v8024 = vsel %vm823, %v7997, 0
        %v8027 = vsel %vm823, %v7998, 0
        %v8030 = vsel %vm823, %v7999, 0
        %v8033 = vsel %vm823, %v8000, 0
        %v8036 = vsel %vm823, %v8001, 0
        %v8039 = vsel %vm823, %v8002, 0
        %v8042 = vsel %vm823, %v8003, 0
        %v8045 = vsel %vm823, %v8004, 0
        %v8048 = vsel %vm823, %v8005, 0
        %v8051 = vsel %vm823, %v8006, 0
        %v8054 = vsel %vm823, %v8007, 0
        %v8057 = vsel %vm823, %v8008, 0
        %v8060 = vsel %vm823, %v8009, 0
        %8062 = vmatprep.subr.bf16.mxu0 0
        %8063 = vmatpush1.bf16.xpose.msra.mxu0 %v8015
        %8064 = vmatprep.subr.bf16.mxu0 0
        %8065 = vmatpush1.bf16.xpose.msra.mxu0 %v8018
        %8066 = vmatprep.subr.bf16.mxu0 0
        %8067 = vmatpush1.bf16.xpose.msra.mxu0 %v8021
        %8068 = vmatprep.subr.bf16.mxu0 0
        %8069 = vmatpush1.bf16.xpose.msra.mxu0 %v8024
        %8070 = vmatprep.subr.bf16.mxu0 0
        %8071 = vmatpush1.bf16.xpose.msra.mxu0 %v8027
        %8072 = vmatprep.subr.bf16.mxu0 0
        %8073 = vmatpush1.bf16.xpose.msra.mxu0 %v8030
        %8074 = vmatprep.subr.bf16.mxu0 0
        %8075 = vmatpush1.bf16.xpose.msra.mxu0 %v8033
        %8076 = vmatprep.subr.bf16.mxu0 0
        %8077 = vmatpush1.bf16.xpose.msra.mxu0 %v8036
        %8078 = vmatprep.subr.bf16.mxu0 0
        %8079 = vmatpush1.bf16.xpose.msra.mxu0 %v8039
        %8080 = vmatprep.subr.bf16.mxu0 0
        %8081 = vmatpush1.bf16.xpose.msra.mxu0 %v8042
        %8082 = vmatprep.subr.bf16.mxu0 0
        %8083 = vmatpush1.bf16.xpose.msra.mxu0 %v8045
        %8084 = vmatprep.subr.bf16.mxu0 0
        %8085 = vmatpush1.bf16.xpose.msra.mxu0 %v8048
        %8086 = vmatprep.subr.bf16.mxu0 0
        %8087 = vmatpush1.bf16.xpose.msra.mxu0 %v8051
        %8088 = vmatprep.subr.bf16.mxu0 0
        %8089 = vmatpush1.bf16.xpose.msra.mxu0 %v8054
        %8090 = vmatprep.subr.bf16.mxu0 0
        %8091 = vmatpush1.bf16.xpose.msra.mxu0 %v8057
        %8092 = vmatprep.subr.bf16.mxu0 0
        %8093 = vmatpush1.bf16.xpose.msra.mxu0 %v8060
        %8094 = vmatprep.mubr.bf16.mxu0 0
        %8095 = vmatmul.mubr.bf16.gmra.mrb[0].mxu0 %v8012
        %v8096 = vpop.f32.mrb[0].mxu0
        %v8097 = vadd.f32 0.0, %v8096
        %v8098 = vpop.f32.mrb[0].mxu0
        %v8099 = vadd.f32 0.0, %v8098
        %v8100 = vpop.f32.mrb[0].mxu0
        %v8101 = vpop.f32.mrb[0].mxu0
        %8102 = vdwg.mxu0
        %v8103 = vadd.f32 %v7960, %v8097
        %v8104 = vadd.f32 %v7960, %v8099
        %v8105 = vld [vmem:[#allocation3 + $0x1] sm:$0xff]
        %v8106 = vld [vmem:[#allocation3 + $0x9] sm:$0xff]
        %v8107 = vld [vmem:[#allocation3 + $0x19] sm:$0xff]
        %v8108 = vld [vmem:[#allocation3 + $0x21] sm:$0xff]
        %v8109 = vld [vmem:[#allocation3 + $0x31] sm:$0xff]
        %v8110 = vld [vmem:[#allocation3 + $0x39] sm:$0xff]
        %v8111 = vld [vmem:[#allocation3 + $0x49] sm:$0xff]
        %v8112 = vld [vmem:[#allocation3 + $0x51] sm:$0xff]
        %v8113 = vld [vmem:[#allocation3 + $0x61] sm:$0xff]
        %v8114 = vld [vmem:[#allocation3 + $0x69] sm:$0xff]
        %v8115 = vld [vmem:[#allocation3 + $0x79] sm:$0xff]
        %v8116 = vld [vmem:[#allocation3 + $0x81] sm:$0xff]
        %v8117 = vld [vmem:[#allocation3 + $0x91] sm:$0xff]
        %v8118 = vld [vmem:[#allocation3 + $0x99] sm:$0xff]
        %v8119 = vld [vmem:[#allocation3 + $0xa9] sm:$0xff]
        %v8120 = vld [vmem:[#allocation3 + $0xb1] sm:$0xff]
        %v8121 = vld [vmem:[#allocation3 + $0xc1] sm:$0xff]
        %v8122 = vld [vmem:[#allocation3 + $0xc9] sm:$0xff]
        %v8123 = vld [vmem:[#allocation3 + $0xd9] sm:$0xff]
        %v8124 = vld [vmem:[#allocation3 + $0xe1] sm:$0xff]
        %v8125 = vld [vmem:[#allocation3 + $0xf1] sm:$0xff]
        %v8126 = vld [vmem:[#allocation3 + $0xf9] sm:$0xff]
        %v8127 = vld [vmem:[#allocation3 + $0x109] sm:$0xff]
        %v8128 = vld [vmem:[#allocation3 + $0x111] sm:$0xff]
        %v8129 = vld [vmem:[#allocation3 + $0x121] sm:$0xff]
        %v8130 = vld [vmem:[#allocation3 + $0x129] sm:$0xff]
        %v8131 = vld [vmem:[#allocation3 + $0x139] sm:$0xff]
        %v8132 = vld [vmem:[#allocation3 + $0x141] sm:$0xff]
        %v8133 = vld [vmem:[#allocation3 + $0x151] sm:$0xff]
        %v8134 = vld [vmem:[#allocation3 + $0x159] sm:$0xff]
        %v8135 = vld [vmem:[#allocation3 + $0x169] sm:$0xff]
        %v8136 = vld [vmem:[#allocation3 + $0x171] sm:$0xff]
        %v8137 = vpack.c.bf16 %v8106, %v8105
        %v8138 = vpack.c.bf16 %v8108, %v8107
        %v8139 = vpack.c.bf16 %v8110, %v8109
        %v8140 = vpack.c.bf16 %v8112, %v8111
        %v8141 = vpack.c.bf16 %v8114, %v8113
        %v8142 = vpack.c.bf16 %v8116, %v8115
        %v8143 = vpack.c.bf16 %v8118, %v8117
        %v8144 = vpack.c.bf16 %v8120, %v8119
        %v8145 = vpack.c.bf16 %v8122, %v8121
        %v8146 = vpack.c.bf16 %v8124, %v8123
        %v8147 = vpack.c.bf16 %v8126, %v8125
        %v8148 = vpack.c.bf16 %v8128, %v8127
        %v8149 = vpack.c.bf16 %v8130, %v8129
        %v8150 = vpack.c.bf16 %v8132, %v8131
        %v8151 = vpack.c.bf16 %v8134, %v8133
        %v8152 = vpack.c.bf16 %v8136, %v8135
        %s8153 = scalar_lea.vmem [#allocation10], 2
        %v8154 = vld [vmem:[%s8153] sm:$0x3]
        %v8156 = vsel %vm823, %v8154, 0
        %v8159 = vsel %vm823, %v8137, 0
        %v8162 = vsel %vm823, %v8138, 0
        %v8165 = vsel %vm823, %v8139, 0
        %v8168 = vsel %vm823, %v8140, 0
        %v8171 = vsel %vm823, %v8141, 0
        %v8174 = vsel %vm823, %v8142, 0
        %v8177 = vsel %vm823, %v8143, 0
        %v8180 = vsel %vm823, %v8144, 0
        %v8183 = vsel %vm823, %v8145, 0
        %v8186 = vsel %vm823, %v8146, 0
        %v8189 = vsel %vm823, %v8147, 0
        %v8192 = vsel %vm823, %v8148, 0
        %v8195 = vsel %vm823, %v8149, 0
        %v8198 = vsel %vm823, %v8150, 0
        %v8201 = vsel %vm823, %v8151, 0
        %v8204 = vsel %vm823, %v8152, 0
        %8206 = vmatprep.subr.bf16.mxu0 0
        %8207 = vmatpush1.bf16.xpose.msra.mxu0 %v8159
        %8208 = vmatprep.subr.bf16.mxu0 0
        %8209 = vmatpush1.bf16.xpose.msra.mxu0 %v8162
        %8210 = vmatprep.subr.bf16.mxu0 0
        %8211 = vmatpush1.bf16.xpose.msra.mxu0 %v8165
        %8212 = vmatprep.subr.bf16.mxu0 0
        %8213 = vmatpush1.bf16.xpose.msra.mxu0 %v8168
        %8214 = vmatprep.subr.bf16.mxu0 0
        %8215 = vmatpush1.bf16.xpose.msra.mxu0 %v8171
        %8216 = vmatprep.subr.bf16.mxu0 0
        %8217 = vmatpush1.bf16.xpose.msra.mxu0 %v8174
        %8218 = vmatprep.subr.bf16.mxu0 0
        %8219 = vmatpush1.bf16.xpose.msra.mxu0 %v8177
        %8220 = vmatprep.subr.bf16.mxu0 0
        %8221 = vmatpush1.bf16.xpose.msra.mxu0 %v8180
        %8222 = vmatprep.subr.bf16.mxu0 0
        %8223 = vmatpush1.bf16.xpose.msra.mxu0 %v8183
        %8224 = vmatprep.subr.bf16.mxu0 0
        %8225 = vmatpush1.bf16.xpose.msra.mxu0 %v8186
        %8226 = vmatprep.subr.bf16.mxu0 0
        %8227 = vmatpush1.bf16.xpose.msra.mxu0 %v8189
        %8228 = vmatprep.subr.bf16.mxu0 0
        %8229 = vmatpush1.bf16.xpose.msra.mxu0 %v8192
        %8230 = vmatprep.subr.bf16.mxu0 0
        %8231 = vmatpush1.bf16.xpose.msra.mxu0 %v8195
        %8232 = vmatprep.subr.bf16.mxu0 0
        %8233 = vmatpush1.bf16.xpose.msra.mxu0 %v8198
        %8234 = vmatprep.subr.bf16.mxu0 0
        %8235 = vmatpush1.bf16.xpose.msra.mxu0 %v8201
        %8236 = vmatprep.subr.bf16.mxu0 0
        %8237 = vmatpush1.bf16.xpose.msra.mxu0 %v8204
        %8238 = vmatprep.mubr.bf16.mxu0 0
        %8239 = vmatmul.mubr.bf16.gmra.mrb[0].mxu0 %v8156
        %v8240 = vpop.f32.mrb[0].mxu0
        %v8241 = vadd.f32 0.0, %v8240
        %v8242 = vpop.f32.mrb[0].mxu0
        %v8243 = vadd.f32 0.0, %v8242
        %v8244 = vpop.f32.mrb[0].mxu0
        %v8245 = vpop.f32.mrb[0].mxu0
        %8246 = vdwg.mxu0
        %v8247 = vadd.f32 %v8103, %v8241
        %v8248 = vadd.f32 %v8104, %v8243
        %v8249 = vld [vmem:[#allocation3 + $0x2] sm:$0xff]
        %v8250 = vld [vmem:[#allocation3 + $0xa] sm:$0xff]
        %v8251 = vld [vmem:[#allocation3 + $0x1a] sm:$0xff]
        %v8252 = vld [vmem:[#allocation3 + $0x22] sm:$0xff]
        %v8253 = vld [vmem:[#allocation3 + $0x32] sm:$0xff]
        %v8254 = vld [vmem:[#allocation3 + $0x3a] sm:$0xff]
        %v8255 = vld [vmem:[#allocation3 + $0x4a] sm:$0xff]
        %v8256 = vld [vmem:[#allocation3 + $0x52] sm:$0xff]
        %v8257 = vld [vmem:[#allocation3 + $0x62] sm:$0xff]
        %v8258 = vld [vmem:[#allocation3 + $0x6a] sm:$0xff]
        %v8259 = vld [vmem:[#allocation3 + $0x7a] sm:$0xff]
        %v8260 = vld [vmem:[#allocation3 + $0x82] sm:$0xff]
        %v8261 = vld [vmem:[#allocation3 + $0x92] sm:$0xff]
        %v8262 = vld [vmem:[#allocation3 + $0x9a] sm:$0xff]
        %v8263 = vld [vmem:[#allocation3 + $0xaa] sm:$0xff]
        %v8264 = vld [vmem:[#allocation3 + $0xb2] sm:$0xff]
        %v8265 = vld [vmem:[#allocation3 + $0xc2] sm:$0xff]
        %v8266 = vld [vmem:[#allocation3 + $0xca] sm:$0xff]
        %v8267 = vld [vmem:[#allocation3 + $0xda] sm:$0xff]
        %v8268 = vld [vmem:[#allocation3 + $0xe2] sm:$0xff]
        %v8269 = vld [vmem:[#allocation3 + $0xf2] sm:$0xff]
        %v8270 = vld [vmem:[#allocation3 + $0xfa] sm:$0xff]
        %v8271 = vld [vmem:[#allocation3 + $0x10a] sm:$0xff]
        %v8272 = vld [vmem:[#allocation3 + $0x112] sm:$0xff]
        %v8273 = vld [vmem:[#allocation3 + $0x122] sm:$0xff]
        %v8274 = vld [vmem:[#allocation3 + $0x12a] sm:$0xff]
        %v8275 = vld [vmem:[#allocation3 + $0x13a] sm:$0xff]
        %v8276 = vld [vmem:[#allocation3 + $0x142] sm:$0xff]
        %v8277 = vld [vmem:[#allocation3 + $0x152] sm:$0xff]
        %v8278 = vld [vmem:[#allocation3 + $0x15a] sm:$0xff]
        %v8279 = vld [vmem:[#allocation3 + $0x16a] sm:$0xff]
        %v8280 = vld [vmem:[#allocation3 + $0x172] sm:$0xff]
        %v8281 = vpack.c.bf16 %v8250, %v8249
        %v8282 = vpack.c.bf16 %v8252, %v8251
        %v8283 = vpack.c.bf16 %v8254, %v8253
        %v8284 = vpack.c.bf16 %v8256, %v8255
        %v8285 = vpack.c.bf16 %v8258, %v8257
        %v8286 = vpack.c.bf16 %v8260, %v8259
        %v8287 = vpack.c.bf16 %v8262, %v8261
        %v8288 = vpack.c.bf16 %v8264, %v8263
        %v8289 = vpack.c.bf16 %v8266, %v8265
        %v8290 = vpack.c.bf16 %v8268, %v8267
        %v8291 = vpack.c.bf16 %v8270, %v8269
        %v8292 = vpack.c.bf16 %v8272, %v8271
        %v8293 = vpack.c.bf16 %v8274, %v8273
        %v8294 = vpack.c.bf16 %v8276, %v8275
        %v8295 = vpack.c.bf16 %v8278, %v8277
        %v8296 = vpack.c.bf16 %v8280, %v8279
        %s8297 = scalar_lea.vmem [#allocation10], 4
        %v8298 = vld [vmem:[%s8297] sm:$0x3]
        %v8300 = vsel %vm823, %v8298, 0
        %v8303 = vsel %vm823, %v8281, 0
        %v8306 = vsel %vm823, %v8282, 0
        %v8309 = vsel %vm823, %v8283, 0
        %v8312 = vsel %vm823, %v8284, 0
        %v8315 = vsel %vm823, %v8285, 0
        %v8318 = vsel %vm823, %v8286, 0
        %v8321 = vsel %vm823, %v8287, 0
        %v8324 = vsel %vm823, %v8288, 0
        %v8327 = vsel %vm823, %v8289, 0
        %v8330 = vsel %vm823, %v8290, 0
        %v8333 = vsel %vm823, %v8291, 0
        %v8336 = vsel %vm823, %v8292, 0
        %v8339 = vsel %vm823, %v8293, 0
        %v8342 = vsel %vm823, %v8294, 0
        %v8345 = vsel %vm823, %v8295, 0
        %v8348 = vsel %vm823, %v8296, 0
        %8350 = vmatprep.subr.bf16.mxu0 0
        %8351 = vmatpush1.bf16.xpose.msra.mxu0 %v8303
        %8352 = vmatprep.subr.bf16.mxu0 0
        %8353 = vmatpush1.bf16.xpose.msra.mxu0 %v8306
        %8354 = vmatprep.subr.bf16.mxu0 0
        %8355 = vmatpush1.bf16.xpose.msra.mxu0 %v8309
        %8356 = vmatprep.subr.bf16.mxu0 0
        %8357 = vmatpush1.bf16.xpose.msra.mxu0 %v8312
        %8358 = vmatprep.subr.bf16.mxu0 0
        %8359 = vmatpush1.bf16.xpose.msra.mxu0 %v8315
        %8360 = vmatprep.subr.bf16.mxu0 0
        %8361 = vmatpush1.bf16.xpose.msra.mxu0 %v8318
        %8362 = vmatprep.subr.bf16.mxu0 0
        %8363 = vmatpush1.bf16.xpose.msra.mxu0 %v8321
        %8364 = vmatprep.subr.bf16.mxu0 0
        %8365 = vmatpush1.bf16.xpose.msra.mxu0 %v8324
        %8366 = vmatprep.subr.bf16.mxu0 0
        %8367 = vmatpush1.bf16.xpose.msra.mxu0 %v8327
        %8368 = vmatprep.subr.bf16.mxu0 0
        %8369 = vmatpush1.bf16.xpose.msra.mxu0 %v8330
        %8370 = vmatprep.subr.bf16.mxu0 0
        %8371 = vmatpush1.bf16.xpose.msra.mxu0 %v8333
        %8372 = vmatprep.subr.bf16.mxu0 0
        %8373 = vmatpush1.bf16.xpose.msra.mxu0 %v8336
        %8374 = vmatprep.subr.bf16.mxu0 0
        %8375 = vmatpush1.bf16.xpose.msra.mxu0 %v8339
        %8376 = vmatprep.subr.bf16.mxu0 0
        %8377 = vmatpush1.bf16.xpose.msra.mxu0 %v8342
        %8378 = vmatprep.subr.bf16.mxu0 0
        %8379 = vmatpush1.bf16.xpose.msra.mxu0 %v8345
        %8380 = vmatprep.subr.bf16.mxu0 0
        %8381 = vmatpush1.bf16.xpose.msra.mxu0 %v8348
        %8382 = vmatprep.mubr.bf16.mxu0 0
        %8383 = vmatmul.mubr.bf16.gmra.mrb[0].mxu0 %v8300
        %v8384 = vpop.f32.mrb[0].mxu0
        %v8385 = vadd.f32 0.0, %v8384
        %v8386 = vpop.f32.mrb[0].mxu0
        %v8387 = vadd.f32 0.0, %v8386
        %v8388 = vpop.f32.mrb[0].mxu0
        %v8389 = vpop.f32.mrb[0].mxu0
        %8390 = vdwg.mxu0
        %v8391 = vadd.f32 %v8247, %v8385
        %v8392 = vadd.f32 %v8248, %v8387
        %v8393 = vld [vmem:[%s1011] sm:$0xff]
        %v8394 = vld [vmem:[%s1011 + $0x8] sm:$0xff]
        %v8395 = vld [vmem:[%s1011 + $0x18] sm:$0xff]
        %v8396 = vld [vmem:[%s1011 + $0x20] sm:$0xff]
        %v8397 = vld [vmem:[%s1011 + $0x30] sm:$0xff]
        %v8398 = vld [vmem:[%s1011 + $0x38] sm:$0xff]
        %v8399 = vld [vmem:[%s1011 + $0x48] sm:$0xff]
        %v8400 = vld [vmem:[%s1011 + $0x50] sm:$0xff]
        %v8401 = vld [vmem:[%s1011 + $0x60] sm:$0xff]
        %v8402 = vld [vmem:[%s1011 + $0x68] sm:$0xff]
        %v8403 = vld [vmem:[%s1011 + $0x78] sm:$0xff]
        %v8404 = vld [vmem:[%s1011 + $0x80] sm:$0xff]
        %v8405 = vld [vmem:[%s1011 + $0x90] sm:$0xff]
        %v8406 = vld [vmem:[%s1011 + $0x98] sm:$0xff]
        %v8407 = vld [vmem:[%s1011 + $0xa8] sm:$0xff]
        %v8408 = vld [vmem:[%s1011 + $0xb0] sm:$0xff]
        %v8409 = vld [vmem:[%s1011 + $0xc0] sm:$0xff]
        %v8410 = vld [vmem:[%s1011 + $0xc8] sm:$0xff]
        %v8411 = vld [vmem:[%s1011 + $0xd8] sm:$0xff]
        %v8412 = vld [vmem:[%s1011 + $0xe0] sm:$0xff]
        %v8413 = vld [vmem:[%s1011 + $0xf0] sm:$0xff]
        %v8414 = vld [vmem:[%s1011 + $0xf8] sm:$0xff]
        %v8415 = vld [vmem:[%s1011 + $0x108] sm:$0xff]
        %v8416 = vld [vmem:[%s1011 + $0x110] sm:$0xff]
        %v8417 = vld [vmem:[%s1011 + $0x120] sm:$0xff]
        %v8418 = vld [vmem:[%s1011 + $0x128] sm:$0xff]
        %v8419 = vld [vmem:[%s1011 + $0x138] sm:$0xff]
        %v8420 = vld [vmem:[%s1011 + $0x140] sm:$0xff]
        %v8421 = vld [vmem:[%s1011 + $0x150] sm:$0xff]
        %v8422 = vld [vmem:[%s1011 + $0x158] sm:$0xff]
        %v8423 = vld [vmem:[%s1011 + $0x168] sm:$0xff]
        %v8424 = vld [vmem:[%s1011 + $0x170] sm:$0xff]
        %v8425 = vpack.c.bf16 %v8394, %v8393
        %v8426 = vpack.c.bf16 %v8396, %v8395
        %v8427 = vpack.c.bf16 %v8398, %v8397
        %v8428 = vpack.c.bf16 %v8400, %v8399
        %v8429 = vpack.c.bf16 %v8402, %v8401
        %v8430 = vpack.c.bf16 %v8404, %v8403
        %v8431 = vpack.c.bf16 %v8406, %v8405
        %v8432 = vpack.c.bf16 %v8408, %v8407
        %v8433 = vpack.c.bf16 %v8410, %v8409
        %v8434 = vpack.c.bf16 %v8412, %v8411
        %v8435 = vpack.c.bf16 %v8414, %v8413
        %v8436 = vpack.c.bf16 %v8416, %v8415
        %v8437 = vpack.c.bf16 %v8418, %v8417
        %v8438 = vpack.c.bf16 %v8420, %v8419
        %v8439 = vpack.c.bf16 %v8422, %v8421
        %v8440 = vpack.c.bf16 %v8424, %v8423
        %s8441 = scalar_lea.vmem [#allocation10], 6
        %v8442 = vld [vmem:[%s8441] sm:$0x3]
        %v8444 = vsel %vm823, %v8442, 0
        %v8447 = vsel %vm823, %v8425, 0
        %v8450 = vsel %vm823, %v8426, 0
        %v8453 = vsel %vm823, %v8427, 0
        %v8456 = vsel %vm823, %v8428, 0
        %v8459 = vsel %vm823, %v8429, 0
        %v8462 = vsel %vm823, %v8430, 0
        %v8465 = vsel %vm823, %v8431, 0
        %v8468 = vsel %vm823, %v8432, 0
        %v8471 = vsel %vm823, %v8433, 0
        %v8474 = vsel %vm823, %v8434, 0
        %v8477 = vsel %vm823, %v8435, 0
        %v8480 = vsel %vm823, %v8436, 0
        %v8483 = vsel %vm823, %v8437, 0
        %v8486 = vsel %vm823, %v8438, 0
        %v8489 = vsel %vm823, %v8439, 0
        %v8492 = vsel %vm823, %v8440, 0
        %8494 = vmatprep.subr.bf16.mxu0 0
        %8495 = vmatpush1.bf16.xpose.msra.mxu0 %v8447
        %8496 = vmatprep.subr.bf16.mxu0 0
        %8497 = vmatpush1.bf16.xpose.msra.mxu0 %v8450
        %8498 = vmatprep.subr.bf16.mxu0 0
        %8499 = vmatpush1.bf16.xpose.msra.mxu0 %v8453
        %8500 = vmatprep.subr.bf16.mxu0 0
        %8501 = vmatpush1.bf16.xpose.msra.mxu0 %v8456
        %8502 = vmatprep.subr.bf16.mxu0 0
        %8503 = vmatpush1.bf16.xpose.msra.mxu0 %v8459
        %8504 = vmatprep.subr.bf16.mxu0 0
        %8505 = vmatpush1.bf16.xpose.msra.mxu0 %v8462
        %8506 = vmatprep.subr.bf16.mxu0 0
        %8507 = vmatpush1.bf16.xpose.msra.mxu0 %v8465
        %8508 = vmatprep.subr.bf16.mxu0 0
        %8509 = vmatpush1.bf16.xpose.msra.mxu0 %v8468
        %8510 = vmatprep.subr.bf16.mxu0 0
        %8511 = vmatpush1.bf16.xpose.msra.mxu0 %v8471
        %8512 = vmatprep.subr.bf16.mxu0 0
        %8513 = vmatpush1.bf16.xpose.msra.mxu0 %v8474
        %8514 = vmatprep.subr.bf16.mxu0 0
        %8515 = vmatpush1.bf16.xpose.msra.mxu0 %v8477
        %8516 = vmatprep.subr.bf16.mxu0 0
        %8517 = vmatpush1.bf16.xpose.msra.mxu0 %v8480
        %8518 = vmatprep.subr.bf16.mxu0 0
        %8519 = vmatpush1.bf16.xpose.msra.mxu0 %v8483
        %8520 = vmatprep.subr.bf16.mxu0 0
        %8521 = vmatpush1.bf16.xpose.msra.mxu0 %v8486
        %8522 = vmatprep.subr.bf16.mxu0 0
        %8523 = vmatpush1.bf16.xpose.msra.mxu0 %v8489
        %8524 = vmatprep.subr.bf16.mxu0 0
        %8525 = vmatpush1.bf16.xpose.msra.mxu0 %v8492
        %8526 = vmatprep.mubr.bf16.mxu0 0
        %8527 = vmatmul.mubr.bf16.gmra.mrb[0].mxu0 %v8444
        %v8528 = vpop.f32.mrb[0].mxu0
        %v8529 = vadd.f32 0.0, %v8528
        %v8530 = vpop.f32.mrb[0].mxu0
        %v8531 = vadd.f32 0.0, %v8530
        %v8532 = vpop.f32.mrb[0].mxu0
        %v8533 = vpop.f32.mrb[0].mxu0
        %8534 = vdwg.mxu0
        %v8535 = vadd.f32 %v8391, %v8529
        %v8536 = vadd.f32 %v8392, %v8531
        %v8537 = vld [vmem:[%s1011 + $0x1] sm:$0xff]
        %v8538 = vld [vmem:[%s1011 + $0x9] sm:$0xff]
        %v8539 = vld [vmem:[%s1011 + $0x19] sm:$0xff]
        %v8540 = vld [vmem:[%s1011 + $0x21] sm:$0xff]
        %v8541 = vld [vmem:[%s1011 + $0x31] sm:$0xff]
        %v8542 = vld [vmem:[%s1011 + $0x39] sm:$0xff]
        %v8543 = vld [vmem:[%s1011 + $0x49] sm:$0xff]
        %v8544 = vld [vmem:[%s1011 + $0x51] sm:$0xff]
        %v8545 = vld [vmem:[%s1011 + $0x61] sm:$0xff]
        %v8546 = vld [vmem:[%s1011 + $0x69] sm:$0xff]
        %v8547 = vld [vmem:[%s1011 + $0x79] sm:$0xff]
        %v8548 = vld [vmem:[%s1011 + $0x81] sm:$0xff]
        %v8549 = vld [vmem:[%s1011 + $0x91] sm:$0xff]
        %v8550 = vld [vmem:[%s1011 + $0x99] sm:$0xff]
        %v8551 = vld [vmem:[%s1011 + $0xa9] sm:$0xff]
        %v8552 = vld [vmem:[%s1011 + $0xb1] sm:$0xff]
        %v8553 = vld [vmem:[%s1011 + $0xc1] sm:$0xff]
        %v8554 = vld [vmem:[%s1011 + $0xc9] sm:$0xff]
        %v8555 = vld [vmem:[%s1011 + $0xd9] sm:$0xff]
        %v8556 = vld [vmem:[%s1011 + $0xe1] sm:$0xff]
        %v8557 = vld [vmem:[%s1011 + $0xf1] sm:$0xff]
        %v8558 = vld [vmem:[%s1011 + $0xf9] sm:$0xff]
        %v8559 = vld [vmem:[%s1011 + $0x109] sm:$0xff]
        %v8560 = vld [vmem:[%s1011 + $0x111] sm:$0xff]
        %v8561 = vld [vmem:[%s1011 + $0x121] sm:$0xff]
        %v8562 = vld [vmem:[%s1011 + $0x129] sm:$0xff]
        %v8563 = vld [vmem:[%s1011 + $0x139] sm:$0xff]
        %v8564 = vld [vmem:[%s1011 + $0x141] sm:$0xff]
        %v8565 = vld [vmem:[%s1011 + $0x151] sm:$0xff]
        %v8566 = vld [vmem:[%s1011 + $0x159] sm:$0xff]
        %v8567 = vld [vmem:[%s1011 + $0x169] sm:$0xff]
        %v8568 = vld [vmem:[%s1011 + $0x171] sm:$0xff]
        %v8569 = vpack.c.bf16 %v8538, %v8537
        %v8570 = vpack.c.bf16 %v8540, %v8539
        %v8571 = vpack.c.bf16 %v8542, %v8541
        %v8572 = vpack.c.bf16 %v8544, %v8543
        %v8573 = vpack.c.bf16 %v8546, %v8545
        %v8574 = vpack.c.bf16 %v8548, %v8547
        %v8575 = vpack.c.bf16 %v8550, %v8549
        %v8576 = vpack.c.bf16 %v8552, %v8551
        %v8577 = vpack.c.bf16 %v8554, %v8553
        %v8578 = vpack.c.bf16 %v8556, %v8555
        %v8579 = vpack.c.bf16 %v8558, %v8557
        %v8580 = vpack.c.bf16 %v8560, %v8559
        %v8581 = vpack.c.bf16 %v8562, %v8561
        %v8582 = vpack.c.bf16 %v8564, %v8563
        %v8583 = vpack.c.bf16 %v8566, %v8565
        %v8584 = vpack.c.bf16 %v8568, %v8567
        %s8585 = scalar_lea.vmem [#allocation10], 8
        %v8586 = vld [vmem:[%s8585] sm:$0x3]
        %v8588 = vsel %vm823, %v8586, 0
        %v8591 = vsel %vm823, %v8569, 0
        %v8594 = vsel %vm823, %v8570, 0
        %v8597 = vsel %vm823, %v8571, 0
        %v8600 = vsel %vm823, %v8572, 0
        %v8603 = vsel %vm823, %v8573, 0
        %v8606 = vsel %vm823, %v8574, 0
        %v8609 = vsel %vm823, %v8575, 0
        %v8612 = vsel %vm823, %v8576, 0
        %v8615 = vsel %vm823, %v8577, 0
        %v8618 = vsel %vm823, %v8578, 0
        %v8621 = vsel %vm823, %v8579, 0
        %v8624 = vsel %vm823, %v8580, 0
        %v8627 = vsel %vm823, %v8581, 0
        %v8630 = vsel %vm823, %v8582, 0
        %v8633 = vsel %vm823, %v8583, 0
        %v8636 = vsel %vm823, %v8584, 0
        %8638 = vmatprep.subr.bf16.mxu0 0
        %8639 = vmatpush1.bf16.xpose.msra.mxu0 %v8591
        %8640 = vmatprep.subr.bf16.mxu0 0
        %8641 = vmatpush1.bf16.xpose.msra.mxu0 %v8594
        %8642 = vmatprep.subr.bf16.mxu0 0
        %8643 = vmatpush1.bf16.xpose.msra.mxu0 %v8597
        %8644 = vmatprep.subr.bf16.mxu0 0
        %8645 = vmatpush1.bf16.xpose.msra.mxu0 %v8600
        %8646 = vmatprep.subr.bf16.mxu0 0
        %8647 = vmatpush1.bf16.xpose.msra.mxu0 %v8603
        %8648 = vmatprep.subr.bf16.mxu0 0
        %8649 = vmatpush1.bf16.xpose.msra.mxu0 %v8606
        %8650 = vmatprep.subr.bf16.mxu0 0
        %8651 = vmatpush1.bf16.xpose.msra.mxu0 %v8609
        %8652 = vmatprep.subr.bf16.mxu0 0
        %8653 = vmatpush1.bf16.xpose.msra.mxu0 %v8612
        %8654 = vmatprep.subr.bf16.mxu0 0
        %8655 = vmatpush1.bf16.xpose.msra.mxu0 %v8615
        %8656 = vmatprep.subr.bf16.mxu0 0
        %8657 = vmatpush1.bf16.xpose.msra.mxu0 %v8618
        %8658 = vmatprep.subr.bf16.mxu0 0
        %8659 = vmatpush1.bf16.xpose.msra.mxu0 %v8621
        %8660 = vmatprep.subr.bf16.mxu0 0
        %8661 = vmatpush1.bf16.xpose.msra.mxu0 %v8624
        %8662 = vmatprep.subr.bf16.mxu0 0
        %8663 = vmatpush1.bf16.xpose.msra.mxu0 %v8627
        %8664 = vmatprep.subr.bf16.mxu0 0
        %8665 = vmatpush1.bf16.xpose.msra.mxu0 %v8630
        %8666 = vmatprep.subr.bf16.mxu0 0
        %8667 = vmatpush1.bf16.xpose.msra.mxu0 %v8633
        %8668 = vmatprep.subr.bf16.mxu0 0
        %8669 = vmatpush1.bf16.xpose.msra.mxu0 %v8636
        %8670 = vmatprep.mubr.bf16.mxu0 0
        %8671 = vmatmul.mubr.bf16.gmra.mrb[0].mxu0 %v8588
        %v8672 = vpop.f32.mrb[0].mxu0
        %v8673 = vadd.f32 0.0, %v8672
        %v8674 = vpop.f32.mrb[0].mxu0
        %v8675 = vadd.f32 0.0, %v8674
        %v8676 = vpop.f32.mrb[0].mxu0
        %v8677 = vpop.f32.mrb[0].mxu0
        %8678 = vdwg.mxu0
        %v8679 = vadd.f32 %v8535, %v8673
        %v8680 = vadd.f32 %v8536, %v8675
        %v8681 = vld [vmem:[%s1011 + $0x2] sm:$0xff]
        %v8682 = vld [vmem:[%s1011 + $0xa] sm:$0xff]
        %v8683 = vld [vmem:[%s1011 + $0x1a] sm:$0xff]
        %v8684 = vld [vmem:[%s1011 + $0x22] sm:$0xff]
        %v8685 = vld [vmem:[%s1011 + $0x32] sm:$0xff]
        %v8686 = vld [vmem:[%s1011 + $0x3a] sm:$0xff]
        %v8687 = vld [vmem:[%s1011 + $0x4a] sm:$0xff]
        %v8688 = vld [vmem:[%s1011 + $0x52] sm:$0xff]
        %v8689 = vld [vmem:[%s1011 + $0x62] sm:$0xff]
        %v8690 = vld [vmem:[%s1011 + $0x6a] sm:$0xff]
        %v8691 = vld [vmem:[%s1011 + $0x7a] sm:$0xff]
        %v8692 = vld [vmem:[%s1011 + $0x82] sm:$0xff]
        %v8693 = vld [vmem:[%s1011 + $0x92] sm:$0xff]
        %v8694 = vld [vmem:[%s1011 + $0x9a] sm:$0xff]
        %v8695 = vld [vmem:[%s1011 + $0xaa] sm:$0xff]
        %v8696 = vld [vmem:[%s1011 + $0xb2] sm:$0xff]
        %v8697 = vld [vmem:[%s1011 + $0xc2] sm:$0xff]
        %v8698 = vld [vmem:[%s1011 + $0xca] sm:$0xff]
        %v8699 = vld [vmem:[%s1011 + $0xda] sm:$0xff]
        %v8700 = vld [vmem:[%s1011 + $0xe2] sm:$0xff]
        %v8701 = vld [vmem:[%s1011 + $0xf2] sm:$0xff]
        %v8702 = vld [vmem:[%s1011 + $0xfa] sm:$0xff]
        %v8703 = vld [vmem:[%s1011 + $0x10a] sm:$0xff]
        %v8704 = vld [vmem:[%s1011 + $0x112] sm:$0xff]
        %v8705 = vld [vmem:[%s1011 + $0x122] sm:$0xff]
        %v8706 = vld [vmem:[%s1011 + $0x12a] sm:$0xff]
        %v8707 = vld [vmem:[%s1011 + $0x13a] sm:$0xff]
        %v8708 = vld [vmem:[%s1011 + $0x142] sm:$0xff]
        %v8709 = vld [vmem:[%s1011 + $0x152] sm:$0xff]
        %v8710 = vld [vmem:[%s1011 + $0x15a] sm:$0xff]
        %v8711 = vld [vmem:[%s1011 + $0x16a] sm:$0xff]
        %v8712 = vld [vmem:[%s1011 + $0x172] sm:$0xff]
        %v8713 = vpack.c.bf16 %v8682, %v8681
        %v8714 = vpack.c.bf16 %v8684, %v8683
        %v8715 = vpack.c.bf16 %v8686, %v8685
        %v8716 = vpack.c.bf16 %v8688, %v8687
        %v8717 = vpack.c.bf16 %v8690, %v8689
        %v8718 = vpack.c.bf16 %v8692, %v8691
        %v8719 = vpack.c.bf16 %v8694, %v8693
        %v8720 = vpack.c.bf16 %v8696, %v8695
        %v8721 = vpack.c.bf16 %v8698, %v8697
        %v8722 = vpack.c.bf16 %v8700, %v8699
        %v8723 = vpack.c.bf16 %v8702, %v8701
        %v8724 = vpack.c.bf16 %v8704, %v8703
        %v8725 = vpack.c.bf16 %v8706, %v8705
        %v8726 = vpack.c.bf16 %v8708, %v8707
        %v8727 = vpack.c.bf16 %v8710, %v8709
        %v8728 = vpack.c.bf16 %v8712, %v8711
        %s8729 = scalar_lea.vmem [#allocation10], 10
        %v8730 = vld [vmem:[%s8729] sm:$0x3]
        %v8732 = vsel %vm823, %v8730, 0
        %v8735 = vsel %vm823, %v8713, 0
        %v8738 = vsel %vm823, %v8714, 0
        %v8741 = vsel %vm823, %v8715, 0
        %v8744 = vsel %vm823, %v8716, 0
        %v8747 = vsel %vm823, %v8717, 0
        %v8750 = vsel %vm823, %v8718, 0
        %v8753 = vsel %vm823, %v8719, 0
        %v8756 = vsel %vm823, %v8720, 0
        %v8759 = vsel %vm823, %v8721, 0
        %v8762 = vsel %vm823, %v8722, 0
        %v8765 = vsel %vm823, %v8723, 0
        %v8768 = vsel %vm823, %v8724, 0
        %v8771 = vsel %vm823, %v8725, 0
        %v8774 = vsel %vm823, %v8726, 0
        %v8777 = vsel %vm823, %v8727, 0
        %v8780 = vsel %vm823, %v8728, 0
        %8782 = vmatprep.subr.bf16.mxu0 0
        %8783 = vmatpush1.bf16.xpose.msra.mxu0 %v8735
        %8784 = vmatprep.subr.bf16.mxu0 0
        %8785 = vmatpush1.bf16.xpose.msra.mxu0 %v8738
        %8786 = vmatprep.subr.bf16.mxu0 0
        %8787 = vmatpush1.bf16.xpose.msra.mxu0 %v8741
        %8788 = vmatprep.subr.bf16.mxu0 0
        %8789 = vmatpush1.bf16.xpose.msra.mxu0 %v8744
        %8790 = vmatprep.subr.bf16.mxu0 0
        %8791 = vmatpush1.bf16.xpose.msra.mxu0 %v8747
        %8792 = vmatprep.subr.bf16.mxu0 0
        %8793 = vmatpush1.bf16.xpose.msra.mxu0 %v8750
        %8794 = vmatprep.subr.bf16.mxu0 0
        %8795 = vmatpush1.bf16.xpose.msra.mxu0 %v8753
        %8796 = vmatprep.subr.bf16.mxu0 0
        %8797 = vmatpush1.bf16.xpose.msra.mxu0 %v8756
        %8798 = vmatprep.subr.bf16.mxu0 0
        %8799 = vmatpush1.bf16.xpose.msra.mxu0 %v8759
        %8800 = vmatprep.subr.bf16.mxu0 0
        %8801 = vmatpush1.bf16.xpose.msra.mxu0 %v8762
        %8802 = vmatprep.subr.bf16.mxu0 0
        %8803 = vmatpush1.bf16.xpose.msra.mxu0 %v8765
        %8804 = vmatprep.subr.bf16.mxu0 0
        %8805 = vmatpush1.bf16.xpose.msra.mxu0 %v8768
        %8806 = vmatprep.subr.bf16.mxu0 0
        %8807 = vmatpush1.bf16.xpose.msra.mxu0 %v8771
        %8808 = vmatprep.subr.bf16.mxu0 0
        %8809 = vmatpush1.bf16.xpose.msra.mxu0 %v8774
        %8810 = vmatprep.subr.bf16.mxu0 0
        %8811 = vmatpush1.bf16.xpose.msra.mxu0 %v8777
        %8812 = vmatprep.subr.bf16.mxu0 0
        %8813 = vmatpush1.bf16.xpose.msra.mxu0 %v8780
        %8814 = vmatprep.mubr.bf16.mxu0 0
        %8815 = vmatmul.mubr.bf16.gmra.mrb[0].mxu0 %v8732
        %v8816 = vpop.f32.mrb[0].mxu0
        %v8817 = vadd.f32 0.0, %v8816
        %v8818 = vpop.f32.mrb[0].mxu0
        %v8819 = vadd.f32 0.0, %v8818
        %v8820 = vpop.f32.mrb[0].mxu0
        %v8821 = vpop.f32.mrb[0].mxu0
        %8822 = vdwg.mxu0
        %v8823 = vadd.f32 %v8679, %v8817
        %v8824 = vadd.f32 %v8680, %v8819
        %v8825 = vld [vmem:[%s4923] sm:$0xff]
        %v8826 = vld [vmem:[%s4923 + $0x8] sm:$0xff]
        %v8827 = vld [vmem:[%s4923 + $0x18] sm:$0xff]
        %v8828 = vld [vmem:[%s4923 + $0x20] sm:$0xff]
        %v8829 = vld [vmem:[%s4923 + $0x30] sm:$0xff]
        %v8830 = vld [vmem:[%s4923 + $0x38] sm:$0xff]
        %v8831 = vld [vmem:[%s4923 + $0x48] sm:$0xff]
        %v8832 = vld [vmem:[%s4923 + $0x50] sm:$0xff]
        %v8833 = vld [vmem:[%s4923 + $0x60] sm:$0xff]
        %v8834 = vld [vmem:[%s4923 + $0x68] sm:$0xff]
        %v8835 = vld [vmem:[%s4923 + $0x78] sm:$0xff]
        %v8836 = vld [vmem:[%s4923 + $0x80] sm:$0xff]
        %v8837 = vld [vmem:[%s4923 + $0x90] sm:$0xff]
        %v8838 = vld [vmem:[%s4923 + $0x98] sm:$0xff]
        %v8839 = vld [vmem:[%s4923 + $0xa8] sm:$0xff]
        %v8840 = vld [vmem:[%s4923 + $0xb0] sm:$0xff]
        %v8841 = vld [vmem:[%s4923 + $0xc0] sm:$0xff]
        %v8842 = vld [vmem:[%s4923 + $0xc8] sm:$0xff]
        %v8843 = vld [vmem:[%s4923 + $0xd8] sm:$0xff]
        %v8844 = vld [vmem:[%s4923 + $0xe0] sm:$0xff]
        %v8845 = vld [vmem:[%s4923 + $0xf0] sm:$0xff]
        %v8846 = vld [vmem:[%s4923 + $0xf8] sm:$0xff]
        %v8847 = vld [vmem:[%s4923 + $0x108] sm:$0xff]
        %v8848 = vld [vmem:[%s4923 + $0x110] sm:$0xff]
        %v8849 = vld [vmem:[%s4923 + $0x120] sm:$0xff]
        %v8850 = vld [vmem:[%s4923 + $0x128] sm:$0xff]
        %v8851 = vld [vmem:[%s4923 + $0x138] sm:$0xff]
        %v8852 = vld [vmem:[%s4923 + $0x140] sm:$0xff]
        %v8853 = vld [vmem:[%s4923 + $0x150] sm:$0xff]
        %v8854 = vld [vmem:[%s4923 + $0x158] sm:$0xff]
        %v8855 = vld [vmem:[%s4923 + $0x168] sm:$0xff]
        %v8856 = vld [vmem:[%s4923 + $0x170] sm:$0xff]
        %v8857 = vpack.c.bf16 %v8826, %v8825
        %v8858 = vpack.c.bf16 %v8828, %v8827
        %v8859 = vpack.c.bf16 %v8830, %v8829
        %v8860 = vpack.c.bf16 %v8832, %v8831
        %v8861 = vpack.c.bf16 %v8834, %v8833
        %v8862 = vpack.c.bf16 %v8836, %v8835
        %v8863 = vpack.c.bf16 %v8838, %v8837
        %v8864 = vpack.c.bf16 %v8840, %v8839
        %v8865 = vpack.c.bf16 %v8842, %v8841
        %v8866 = vpack.c.bf16 %v8844, %v8843
        %v8867 = vpack.c.bf16 %v8846, %v8845
        %v8868 = vpack.c.bf16 %v8848, %v8847
        %v8869 = vpack.c.bf16 %v8850, %v8849
        %v8870 = vpack.c.bf16 %v8852, %v8851
        %v8871 = vpack.c.bf16 %v8854, %v8853
        %v8872 = vpack.c.bf16 %v8856, %v8855
        %s8873 = scalar_lea.vmem [#allocation10], 12
        %v8874 = vld [vmem:[%s8873] sm:$0x3]
        %v8876 = vsel %vm823, %v8874, 0
        %v8879 = vsel %vm823, %v8857, 0
        %v8882 = vsel %vm823, %v8858, 0
        %v8885 = vsel %vm823, %v8859, 0
        %v8888 = vsel %vm823, %v8860, 0
        %v8891 = vsel %vm823, %v8861, 0
        %v8894 = vsel %vm823, %v8862, 0
        %v8897 = vsel %vm823, %v8863, 0
        %v8900 = vsel %vm823, %v8864, 0
        %v8903 = vsel %vm823, %v8865, 0
        %v8906 = vsel %vm823, %v8866, 0
        %v8909 = vsel %vm823, %v8867, 0
        %v8912 = vsel %vm823, %v8868, 0
        %v8915 = vsel %vm823, %v8869, 0
        %v8918 = vsel %vm823, %v8870, 0
        %v8921 = vsel %vm823, %v8871, 0
        %v8924 = vsel %vm823, %v8872, 0
        %8926 = vmatprep.subr.bf16.mxu0 0
        %8927 = vmatpush1.bf16.xpose.msra.mxu0 %v8879
        %8928 = vmatprep.subr.bf16.mxu0 0
        %8929 = vmatpush1.bf16.xpose.msra.mxu0 %v8882
        %8930 = vmatprep.subr.bf16.mxu0 0
        %8931 = vmatpush1.bf16.xpose.msra.mxu0 %v8885
        %8932 = vmatprep.subr.bf16.mxu0 0
        %8933 = vmatpush1.bf16.xpose.msra.mxu0 %v8888
        %8934 = vmatprep.subr.bf16.mxu0 0
        %8935 = vmatpush1.bf16.xpose.msra.mxu0 %v8891
        %8936 = vmatprep.subr.bf16.mxu0 0
        %8937 = vmatpush1.bf16.xpose.msra.mxu0 %v8894
        %8938 = vmatprep.subr.bf16.mxu0 0
        %8939 = vmatpush1.bf16.xpose.msra.mxu0 %v8897
        %8940 = vmatprep.subr.bf16.mxu0 0
        %8941 = vmatpush1.bf16.xpose.msra.mxu0 %v8900
        %8942 = vmatprep.subr.bf16.mxu0 0
        %8943 = vmatpush1.bf16.xpose.msra.mxu0 %v8903
        %8944 = vmatprep.subr.bf16.mxu0 0
        %8945 = vmatpush1.bf16.xpose.msra.mxu0 %v8906
        %8946 = vmatprep.subr.bf16.mxu0 0
        %8947 = vmatpush1.bf16.xpose.msra.mxu0 %v8909
        %8948 = vmatprep.subr.bf16.mxu0 0
        %8949 = vmatpush1.bf16.xpose.msra.mxu0 %v8912
        %8950 = vmatprep.subr.bf16.mxu0 0
        %8951 = vmatpush1.bf16.xpose.msra.mxu0 %v8915
        %8952 = vmatprep.subr.bf16.mxu0 0
        %8953 = vmatpush1.bf16.xpose.msra.mxu0 %v8918
        %8954 = vmatprep.subr.bf16.mxu0 0
        %8955 = vmatpush1.bf16.xpose.msra.mxu0 %v8921
        %8956 = vmatprep.subr.bf16.mxu0 0
        %8957 = vmatpush1.bf16.xpose.msra.mxu0 %v8924
        %8958 = vmatprep.mubr.bf16.mxu0 0
        %8959 = vmatmul.mubr.bf16.gmra.mrb[0].mxu0 %v8876
        %v8960 = vpop.f32.mrb[0].mxu0
        %v8961 = vadd.f32 0.0, %v8960
        %v8962 = vpop.f32.mrb[0].mxu0
        %v8963 = vadd.f32 0.0, %v8962
        %v8964 = vpop.f32.mrb[0].mxu0
        %v8965 = vpop.f32.mrb[0].mxu0
        %8966 = vdwg.mxu0
        %v8967 = vadd.f32 %v8823, %v8961
        %v8968 = vadd.f32 %v8824, %v8963
        %v8969 = vld [vmem:[%s4923 + $0x1] sm:$0xff]
        %v8970 = vld [vmem:[%s4923 + $0x9] sm:$0xff]
        %v8971 = vld [vmem:[%s4923 + $0x19] sm:$0xff]
        %v8972 = vld [vmem:[%s4923 + $0x21] sm:$0xff]
        %v8973 = vld [vmem:[%s4923 + $0x31] sm:$0xff]
        %v8974 = vld [vmem:[%s4923 + $0x39] sm:$0xff]
        %v8975 = vld [vmem:[%s4923 + $0x49] sm:$0xff]
        %v8976 = vld [vmem:[%s4923 + $0x51] sm:$0xff]
        %v8977 = vld [vmem:[%s4923 + $0x61] sm:$0xff]
        %v8978 = vld [vmem:[%s4923 + $0x69] sm:$0xff]
        %v8979 = vld [vmem:[%s4923 + $0x79] sm:$0xff]
        %v8980 = vld [vmem:[%s4923 + $0x81] sm:$0xff]
        %v8981 = vld [vmem:[%s4923 + $0x91] sm:$0xff]
        %v8982 = vld [vmem:[%s4923 + $0x99] sm:$0xff]
        %v8983 = vld [vmem:[%s4923 + $0xa9] sm:$0xff]
        %v8984 = vld [vmem:[%s4923 + $0xb1] sm:$0xff]
        %v8985 = vld [vmem:[%s4923 + $0xc1] sm:$0xff]
        %v8986 = vld [vmem:[%s4923 + $0xc9] sm:$0xff]
        %v8987 = vld [vmem:[%s4923 + $0xd9] sm:$0xff]
        %v8988 = vld [vmem:[%s4923 + $0xe1] sm:$0xff]
        %v8989 = vld [vmem:[%s4923 + $0xf1] sm:$0xff]
        %v8990 = vld [vmem:[%s4923 + $0xf9] sm:$0xff]
        %v8991 = vld [vmem:[%s4923 + $0x109] sm:$0xff]
        %v8992 = vld [vmem:[%s4923 + $0x111] sm:$0xff]
        %v8993 = vld [vmem:[%s4923 + $0x121] sm:$0xff]
        %v8994 = vld [vmem:[%s4923 + $0x129] sm:$0xff]
        %v8995 = vld [vmem:[%s4923 + $0x139] sm:$0xff]
        %v8996 = vld [vmem:[%s4923 + $0x141] sm:$0xff]
        %v8997 = vld [vmem:[%s4923 + $0x151] sm:$0xff]
        %v8998 = vld [vmem:[%s4923 + $0x159] sm:$0xff]
        %v8999 = vld [vmem:[%s4923 + $0x169] sm:$0xff]
        %v9000 = vld [vmem:[%s4923 + $0x171] sm:$0xff]
        %v9001 = vpack.c.bf16 %v8970, %v8969
        %v9002 = vpack.c.bf16 %v8972, %v8971
        %v9003 = vpack.c.bf16 %v8974, %v8973
        %v9004 = vpack.c.bf16 %v8976, %v8975
        %v9005 = vpack.c.bf16 %v8978, %v8977
        %v9006 = vpack.c.bf16 %v8980, %v8979
        %v9007 = vpack.c.bf16 %v8982, %v8981
        %v9008 = vpack.c.bf16 %v8984, %v8983
        %v9009 = vpack.c.bf16 %v8986, %v8985
        %v9010 = vpack.c.bf16 %v8988, %v8987
        %v9011 = vpack.c.bf16 %v8990, %v8989
        %v9012 = vpack.c.bf16 %v8992, %v8991
        %v9013 = vpack.c.bf16 %v8994, %v8993
        %v9014 = vpack.c.bf16 %v8996, %v8995
        %v9015 = vpack.c.bf16 %v8998, %v8997
        %v9016 = vpack.c.bf16 %v9000, %v8999
        %s9017 = scalar_lea.vmem [#allocation10], 14
        %v9018 = vld [vmem:[%s9017] sm:$0x3]
        %v9020 = vsel %vm823, %v9018, 0
        %v9023 = vsel %vm823, %v9001, 0
        %v9026 = vsel %vm823, %v9002, 0
        %v9029 = vsel %vm823, %v9003, 0
        %v9032 = vsel %vm823, %v9004, 0
        %v9035 = vsel %vm823, %v9005, 0
        %v9038 = vsel %vm823, %v9006, 0
        %v9041 = vsel %vm823, %v9007, 0
        %v9044 = vsel %vm823, %v9008, 0
        %v9047 = vsel %vm823, %v9009, 0
        %v9050 = vsel %vm823, %v9010, 0
        %v9053 = vsel %vm823, %v9011, 0
        %v9056 = vsel %vm823, %v9012, 0
        %v9059 = vsel %vm823, %v9013, 0
        %v9062 = vsel %vm823, %v9014, 0
        %v9065 = vsel %vm823, %v9015, 0
        %v9068 = vsel %vm823, %v9016, 0
        %9070 = vmatprep.subr.bf16.mxu0 0
        %9071 = vmatpush1.bf16.xpose.msra.mxu0 %v9023
        %9072 = vmatprep.subr.bf16.mxu0 0
        %9073 = vmatpush1.bf16.xpose.msra.mxu0 %v9026
        %9074 = vmatprep.subr.bf16.mxu0 0
        %9075 = vmatpush1.bf16.xpose.msra.mxu0 %v9029
        %9076 = vmatprep.subr.bf16.mxu0 0
        %9077 = vmatpush1.bf16.xpose.msra.mxu0 %v9032
        %9078 = vmatprep.subr.bf16.mxu0 0
        %9079 = vmatpush1.bf16.xpose.msra.mxu0 %v9035
        %9080 = vmatprep.subr.bf16.mxu0 0
        %9081 = vmatpush1.bf16.xpose.msra.mxu0 %v9038
        %9082 = vmatprep.subr.bf16.mxu0 0
        %9083 = vmatpush1.bf16.xpose.msra.mxu0 %v9041
        %9084 = vmatprep.subr.bf16.mxu0 0
        %9085 = vmatpush1.bf16.xpose.msra.mxu0 %v9044
        %9086 = vmatprep.subr.bf16.mxu0 0
        %9087 = vmatpush1.bf16.xpose.msra.mxu0 %v9047
        %9088 = vmatprep.subr.bf16.mxu0 0
        %9089 = vmatpush1.bf16.xpose.msra.mxu0 %v9050
        %9090 = vmatprep.subr.bf16.mxu0 0
        %9091 = vmatpush1.bf16.xpose.msra.mxu0 %v9053
        %9092 = vmatprep.subr.bf16.mxu0 0
        %9093 = vmatpush1.bf16.xpose.msra.mxu0 %v9056
        %9094 = vmatprep.subr.bf16.mxu0 0
        %9095 = vmatpush1.bf16.xpose.msra.mxu0 %v9059
        %9096 = vmatprep.subr.bf16.mxu0 0
        %9097 = vmatpush1.bf16.xpose.msra.mxu0 %v9062
        %9098 = vmatprep.subr.bf16.mxu0 0
        %9099 = vmatpush1.bf16.xpose.msra.mxu0 %v9065
        %9100 = vmatprep.subr.bf16.mxu0 0
        %9101 = vmatpush1.bf16.xpose.msra.mxu0 %v9068
        %9102 = vmatprep.mubr.bf16.mxu0 0
        %9103 = vmatmul.mubr.bf16.gmra.mrb[0].mxu0 %v9020
        %v9104 = vpop.f32.mrb[0].mxu0
        %v9105 = vadd.f32 0.0, %v9104
        %v9106 = vpop.f32.mrb[0].mxu0
        %v9107 = vadd.f32 0.0, %v9106
        %v9108 = vpop.f32.mrb[0].mxu0
        %v9109 = vpop.f32.mrb[0].mxu0
        %9110 = vdwg.mxu0
        %v9111 = vadd.f32 %v8967, %v9105
        %v9112 = vadd.f32 %v8968, %v9107
        %v9113 = vld [vmem:[%s4923 + $0x2] sm:$0xff]
        %v9114 = vld [vmem:[%s4923 + $0xa] sm:$0xff]
        %v9115 = vld [vmem:[%s4923 + $0x1a] sm:$0xff]
        %v9116 = vld [vmem:[%s4923 + $0x22] sm:$0xff]
        %v9117 = vld [vmem:[%s4923 + $0x32] sm:$0xff]
        %v9118 = vld [vmem:[%s4923 + $0x3a] sm:$0xff]
        %v9119 = vld [vmem:[%s4923 + $0x4a] sm:$0xff]
        %v9120 = vld [vmem:[%s4923 + $0x52] sm:$0xff]
        %v9121 = vld [vmem:[%s4923 + $0x62] sm:$0xff]
        %v9122 = vld [vmem:[%s4923 + $0x6a] sm:$0xff]
        %v9123 = vld [vmem:[%s4923 + $0x7a] sm:$0xff]
        %v9124 = vld [vmem:[%s4923 + $0x82] sm:$0xff]
        %v9125 = vld [vmem:[%s4923 + $0x92] sm:$0xff]
        %v9126 = vld [vmem:[%s4923 + $0x9a] sm:$0xff]
        %v9127 = vld [vmem:[%s4923 + $0xaa] sm:$0xff]
        %v9128 = vld [vmem:[%s4923 + $0xb2] sm:$0xff]
        %v9129 = vld [vmem:[%s4923 + $0xc2] sm:$0xff]
        %v9130 = vld [vmem:[%s4923 + $0xca] sm:$0xff]
        %v9131 = vld [vmem:[%s4923 + $0xda] sm:$0xff]
        %v9132 = vld [vmem:[%s4923 + $0xe2] sm:$0xff]
        %v9133 = vld [vmem:[%s4923 + $0xf2] sm:$0xff]
        %v9134 = vld [vmem:[%s4923 + $0xfa] sm:$0xff]
        %v9135 = vld [vmem:[%s4923 + $0x10a] sm:$0xff]
        %v9136 = vld [vmem:[%s4923 + $0x112] sm:$0xff]
        %v9137 = vld [vmem:[%s4923 + $0x122] sm:$0xff]
        %v9138 = vld [vmem:[%s4923 + $0x12a] sm:$0xff]
        %v9139 = vld [vmem:[%s4923 + $0x13a] sm:$0xff]
        %v9140 = vld [vmem:[%s4923 + $0x142] sm:$0xff]
        %v9141 = vld [vmem:[%s4923 + $0x152] sm:$0xff]
        %v9142 = vld [vmem:[%s4923 + $0x15a] sm:$0xff]
        %v9143 = vld [vmem:[%s4923 + $0x16a] sm:$0xff]
        %v9144 = vld [vmem:[%s4923 + $0x172] sm:$0xff]
        %v9145 = vpack.c.bf16 %v9114, %v9113
        %v9146 = vpack.c.bf16 %v9116, %v9115
        %v9147 = vpack.c.bf16 %v9118, %v9117
        %v9148 = vpack.c.bf16 %v9120, %v9119
        %v9149 = vpack.c.bf16 %v9122, %v9121
        %v9150 = vpack.c.bf16 %v9124, %v9123
        %v9151 = vpack.c.bf16 %v9126, %v9125
        %v9152 = vpack.c.bf16 %v9128, %v9127
        %v9153 = vpack.c.bf16 %v9130, %v9129
        %v9154 = vpack.c.bf16 %v9132, %v9131
        %v9155 = vpack.c.bf16 %v9134, %v9133
        %v9156 = vpack.c.bf16 %v9136, %v9135
        %v9157 = vpack.c.bf16 %v9138, %v9137
        %v9158 = vpack.c.bf16 %v9140, %v9139
        %v9159 = vpack.c.bf16 %v9142, %v9141
        %v9160 = vpack.c.bf16 %v9144, %v9143
        %s9161 = scalar_lea.vmem [#allocation10], 16
        %v9162 = vld [vmem:[%s9161] sm:$0x3]
        %v9164 = vsel %vm823, %v9162, 0
        %v9167 = vsel %vm823, %v9145, 0
        %v9170 = vsel %vm823, %v9146, 0
        %v9173 = vsel %vm823, %v9147, 0
        %v9176 = vsel %vm823, %v9148, 0
        %v9179 = vsel %vm823, %v9149, 0
        %v9182 = vsel %vm823, %v9150, 0
        %v9185 = vsel %vm823, %v9151, 0
        %v9188 = vsel %vm823, %v9152, 0
        %v9191 = vsel %vm823, %v9153, 0
        %v9194 = vsel %vm823, %v9154, 0
        %v9197 = vsel %vm823, %v9155, 0
        %v9200 = vsel %vm823, %v9156, 0
        %v9203 = vsel %vm823, %v9157, 0
        %v9206 = vsel %vm823, %v9158, 0
        %v9209 = vsel %vm823, %v9159, 0
        %v9212 = vsel %vm823, %v9160, 0
        %9214 = vmatprep.subr.bf16.mxu0 0
        %9215 = vmatpush1.bf16.xpose.msra.mxu0 %v9167
        %9216 = vmatprep.subr.bf16.mxu0 0
        %9217 = vmatpush1.bf16.xpose.msra.mxu0 %v9170
        %9218 = vmatprep.subr.bf16.mxu0 0
        %9219 = vmatpush1.bf16.xpose.msra.mxu0 %v9173
        %9220 = vmatprep.subr.bf16.mxu0 0
        %9221 = vmatpush1.bf16.xpose.msra.mxu0 %v9176
        %9222 = vmatprep.subr.bf16.mxu0 0
        %9223 = vmatpush1.bf16.xpose.msra.mxu0 %v9179
        %9224 = vmatprep.subr.bf16.mxu0 0
        %9225 = vmatpush1.bf16.xpose.msra.mxu0 %v9182
        %9226 = vmatprep.subr.bf16.mxu0 0
        %9227 = vmatpush1.bf16.xpose.msra.mxu0 %v9185
        %9228 = vmatprep.subr.bf16.mxu0 0
        %9229 = vmatpush1.bf16.xpose.msra.mxu0 %v9188
        %9230 = vmatprep.subr.bf16.mxu0 0
        %9231 = vmatpush1.bf16.xpose.msra.mxu0 %v9191
        %9232 = vmatprep.subr.bf16.mxu0 0
        %9233 = vmatpush1.bf16.xpose.msra.mxu0 %v9194
        %9234 = vmatprep.subr.bf16.mxu0 0
        %9235 = vmatpush1.bf16.xpose.msra.mxu0 %v9197
        %9236 = vmatprep.subr.bf16.mxu0 0
        %9237 = vmatpush1.bf16.xpose.msra.mxu0 %v9200
        %9238 = vmatprep.subr.bf16.mxu0 0
        %9239 = vmatpush1.bf16.xpose.msra.mxu0 %v9203
        %9240 = vmatprep.subr.bf16.mxu0 0
        %9241 = vmatpush1.bf16.xpose.msra.mxu0 %v9206
        %9242 = vmatprep.subr.bf16.mxu0 0
        %9243 = vmatpush1.bf16.xpose.msra.mxu0 %v9209
        %9244 = vmatprep.subr.bf16.mxu0 0
        %9245 = vmatpush1.bf16.xpose.msra.mxu0 %v9212
        %9246 = vmatprep.mubr.bf16.mxu0 0
        %9247 = vmatmul.mubr.bf16.gmra.mrb[0].mxu0 %v9164
        %v9248 = vpop.f32.mrb[0].mxu0
        %v9249 = vadd.f32 0.0, %v9248
        %v9250 = vpop.f32.mrb[0].mxu0
        %v9251 = vadd.f32 0.0, %v9250
        %v9252 = vpop.f32.mrb[0].mxu0
        %v9253 = vpop.f32.mrb[0].mxu0
        %9254 = vdwg.mxu0
        %v9255 = vadd.f32 %v9111, %v9249
        %v9256 = vadd.f32 %v9112, %v9251
        %v9259 = vcombine.low %v9255, %v9256
        %9261 = vst [vmem:[%s481] sm:$0xff] %v9259
        %p9262 = scmp.lt.s32.totalorder %s33, 1
        %s9263 = scalar_select %p9262, %s33, 1
        %s9264 = smul.addr %s9263, 2
        %s9265 = smul.addr %s9264, 4
        %s9266 = scalar_lea.vmem %s8, %s9265
        %s9267 = sand.u32 %s245, 1
        %s9268 = scalar_lea.sflag [#allocation7], %s9267
        %s9269 = sand.u32 %s245, 1
        %s9270 = smul.addr %s9269, 256
        %s9271 = scalar_lea.vmem [#allocation11], %s9270
        %s9272 = sand.u32 %s271, 1
        %s9273 = scalar_lea.sflag [#allocation13], %s9272
        %s9274 = sand.u32 %s271, 1
        %s9275 = smul.addr %s9274, 256
        %s9276 = scalar_lea.vmem [#allocation12], %s9275
        %p9277 = scmp.lt.s32.totalorder %s33, 1
        %s9278 = scalar_select %p9277, %s33, 1
        %s9279 = scalar_lea.vmem %s11, %s9278
        // Predicated region
        $region65: #{conv_lstm_grad_forward.1} parent=51 // pred_check
          %p9280 = pneg %p229
        $region66: #{conv_lstm_grad_forward.1} parent=51 // pred_check_branch
          %9282 = sbr.rel (%p9280) target = $region68
        $region67: #{conv_lstm_grad_forward.1} parent=51 // pred_region
          _
        $region68: #{conv_lstm_grad_forward.1} parent=51 // pred_fallthru
          _
        // Predicated region
        $region69: #{conv_lstm_grad_forward.1} parent=51 // pred_check
          %p9283 = pneg %p255
        $region70: #{conv_lstm_grad_forward.1} parent=51 // pred_check_branch
          %9285 = sbr.rel (%p9283) target = $region72
        $region71: #{conv_lstm_grad_forward.1} parent=51 // pred_region
          %s9287 = ssub.s32 4096, 4096
          %9288 = vsyncadd %s9268, %s9287
          %s9289 = smul.addr %s33, 32
          %s9290 = smul.addr %s9289, 128
          %s9291 = scalar_lea.hbm %s9, %s9290
          %s9292 = sshll.u32 %s9271, 4
          %s9293 = int_to_ptr.vmem [resolvable:$true] %s9292
          %9298 = dma.vmem_to_hbm [thread:$0]  %s9293, 4096, %s9291, %s9268, 128, 128, 8
        $region72: #{conv_lstm_grad_forward.1} parent=51 // pred_fallthru
          _
        // Predicated region
        $region73: #{conv_lstm_grad_forward.1} parent=51 // pred_check
          %p9299 = pneg %p281
        $region74: #{conv_lstm_grad_forward.1} parent=51 // pred_check_branch
          %9301 = sbr.rel (%p9299) target = $region76
        $region75: #{conv_lstm_grad_forward.1} parent=51 // pred_region
          %s9303 = ssub.s32 4096, 4096
          %9304 = vsyncadd %s9273, %s9303
          %s9305 = smul.addr %s33, 32
          %s9306 = smul.addr %s9305, 128
          %s9307 = scalar_lea.hbm %s10, %s9306
          %s9308 = sshll.u32 %s9276, 4
          %s9309 = int_to_ptr.vmem [resolvable:$true] %s9308
          %9314 = dma.vmem_to_hbm [thread:$0]  %s9309, 4096, %s9307, %s9273, 128, 128, 8
        $region76: #{conv_lstm_grad_forward.1} parent=51 // pred_fallthru
          _
        // Predicated region
        $region77: #{conv_lstm_grad_forward.1} parent=51 // pred_check
          %p9315 = pneg %p307
        $region78: #{conv_lstm_grad_forward.1} parent=51 // pred_check_branch
          %9317 = sbr.rel (%p9315) target = $region80
        $region79: #{conv_lstm_grad_forward.1} parent=51 // pred_region
          _
        $region80: #{conv_lstm_grad_forward.1} parent=51 // pred_fallthru
          _
      $region52: #{conv_lstm_grad_forward.1} parent=5 // pred_fallthru
        _
      %p9318 = scmp.le.s32.totalorder 2, %s28
      // Predicated region
      $region81: #{conv_lstm_grad_forward.1} parent=5 // pred_check
        %p9319 = pneg %p9318
      $region82: #{conv_lstm_grad_forward.1} parent=5 // pred_check_branch
        %9321 = sbr.rel (%p9319) target = $region84
      $region83: #{conv_lstm_grad_forward.1} parent=5 // pred_region
        %s9322 = ssub.s32 %s28, 2
        // Predicated region
        $region85: #{conv_lstm_grad_forward.1} parent=83 // pred_check
          %p9323 = pneg %p235
        $region86: #{conv_lstm_grad_forward.1} parent=83 // pred_check_branch
          %9325 = sbr.rel (%p9323) target = $region88
        $region87: #{conv_lstm_grad_forward.1} parent=83 // pred_region
          %p9326 = scmp.lt.s32.totalorder %s34, 1
          %s9327 = scalar_select %p9326, %s34, 1
          %s9328 = smul.addr %s9327, 2
          %s9329 = smul.addr %s9328, 4
          %s9330 = scalar_lea.vmem %s8, %s9329
        $region88: #{conv_lstm_grad_forward.1} parent=83 // pred_fallthru
          _
        // Predicated region
        $region89: #{conv_lstm_grad_forward.1} parent=83 // pred_check
          %p9331 = pneg %p261
        $region90: #{conv_lstm_grad_forward.1} parent=83 // pred_check_branch
          %9333 = sbr.rel (%p9331) target = $region92
        $region91: #{conv_lstm_grad_forward.1} parent=83 // pred_region
          %s9334 = sand.u32 %s246, 1
          %s9335 = scalar_lea.sflag [#allocation7], %s9334
          %s9336 = sand.u32 %s246, 1
          %s9337 = smul.addr %s9336, 256
          %s9338 = scalar_lea.vmem [#allocation11], %s9337
          %9339 = dma.done %s9335, 4096
        $region92: #{conv_lstm_grad_forward.1} parent=83 // pred_fallthru
          _
        // Predicated region
        $region93: #{conv_lstm_grad_forward.1} parent=83 // pred_check
          %p9340 = pneg %p287
        $region94: #{conv_lstm_grad_forward.1} parent=83 // pred_check_branch
          %9342 = sbr.rel (%p9340) target = $region96
        $region95: #{conv_lstm_grad_forward.1} parent=83 // pred_region
          %s9343 = sand.u32 %s272, 1
          %s9344 = scalar_lea.sflag [#allocation13], %s9343
          %s9345 = sand.u32 %s272, 1
          %s9346 = smul.addr %s9345, 256
          %s9347 = scalar_lea.vmem [#allocation12], %s9346
          %9348 = dma.done %s9344, 4096
        $region96: #{conv_lstm_grad_forward.1} parent=83 // pred_fallthru
          _
        // Predicated region
        $region97: #{conv_lstm_grad_forward.1} parent=83 // pred_check
          %p9349 = pneg %p313
        $region98: #{conv_lstm_grad_forward.1} parent=83 // pred_check_branch
          %9351 = sbr.rel (%p9349) target = $region100
        $region99: #{conv_lstm_grad_forward.1} parent=83 // pred_region
          %p9352 = scmp.lt.s32.totalorder %s34, 1
          %s9353 = scalar_select %p9352, %s34, 1
          %s9354 = scalar_lea.vmem %s11, %s9353
        $region100: #{conv_lstm_grad_forward.1} parent=83 // pred_fallthru
          _
      $region84: #{conv_lstm_grad_forward.1} parent=5 // pred_fallthru
        _
    $region6: #{conv_lstm_grad_forward.1} parent=1 // loop_footer
      %s32 = sadd.s32 1, %s28
    $region7: #{conv_lstm_grad_forward.1} parent=1 // loop_footer_branch
      %27 = sbr.rel target = $region3
    $region8: #{conv_lstm_grad_forward.1} parent=1 // loop_exit
      _
    %9355 = vsyncpa [#allocation6], 1
    %s9356 = scalar_lea.sflag [#allocation6], 1
    %9357 = vsyncpa %s9356, 1
    %9358 = vsyncpa [#allocation9], 1
    %9359 = vsyncpa [#allocation7], 1
    %s9360 = scalar_lea.sflag [#allocation7], 1
    %9361 = vsyncpa %s9360, 1
    %9362 = vsyncpa [#allocation13], 1
    %s9363 = scalar_lea.sflag [#allocation13], 1
    %9364 = vsyncpa %s9363, 1

</llo_original>
